<compile_context>
chip_gen: v5e
topology: v5e:2x2
jax: 0.10.0
libtpu: 0.0.40
codegen_flags: <defaults>
</compile_context>

<pallas_src>
import functools

import jax
import jax.numpy as jnp
from jax import lax
from jax.experimental import pallas as pl
from jax.experimental.pallas import tpu as pltpu

EPS_BN = 1e-5
EPS_LN = 1e-5


# --------------------------------- kernel ----------------------------------

def eegnet_kernel(
    pat_ref, feat_ref,
    c1w_ref, bn1s_ref, bn1h_ref,
    c2w_ref, bn2s_ref, bn2h_ref,
    wqkv_ref, bqkv_ref, wo_ref, bo_ref, ln1g_ref, ln1b_ref,
    wf1_ref, bf1_ref, wf2_ref, bf2_ref, ln2g_ref, ln2b_ref,
    wm1_ref, bm1_ref, wm2_ref, bm2_ref,
    wc1a_ref, wc1b_ref, bc1_ref, wc2_ref, bc2_ref,
    o_ref,
    qp_ref,
    *, n_layers, n_heads):
    f32 = jnp.float32
    S, D = 32, 64
    H = n_heads
    HD = D // H

    # ---------------- conv1 + BN1 + ReLU + MaxPool1d(4), fully fused ----------
    # Output row g packs pooled time steps 4g..4g+3 (32 ch each) along 128 lanes.
    w1 = c1w_ref[...]                       # (192, 128) block-diagonal weight
    s1 = bn1s_ref[...]                      # (1, 128)
    h1 = bn1h_ref[...]                      # (1, 128)  (conv bias folded in)
    z = None
    for p in range(4):                      # the 4 MaxPool taps
        a = jnp.dot(pat_ref[0, p], w1, preferred_element_type=f32) * s1 + h1
        z = a if z is None else jnp.maximum(z, a)
    zu = jnp.maximum(z, 0.0)                # (32, 128) pooled, lane-packed

    # ---------------- conv2 + BN2 + ReLU (no im2col; 9 block-tap matmuls) -----
    # Stage the zero-padded pooled activation in VMEM: rows 8..39 hold data,
    # rows 0..7 / 40..47 are conv2's zero padding (pad=14 per side, lane-packed).
    qp_ref[pl.ds(0, 8), :] = jnp.zeros((8, 128), f32)
    qp_ref[pl.ds(40, 8), :] = jnp.zeros((8, 128), f32)
    qp_ref[pl.ds(8, 32), :] = zu
    acc = jnp.zeros((S, D), f32)
    for d in range(9):                      # each block-tap covers 4 conv taps
        acc = acc + jnp.dot(qp_ref[pl.ds(d + 4, 32), :], c2w_ref[d],
                            preferred_element_type=f32)
    x = jnp.maximum(acc * bn2s_ref[...] + bn2h_ref[...], 0.0)   # (S=32, D=64)
    # AdaptiveAvgPool1d(32) is the identity here (T2 == 32 by construction).

    # ---------------- transformer encoder (post-norm, per-batch, no mask) -----
    def layer_norm(v, g, b):
        mu = jnp.mean(v, axis=-1, keepdims=True)
        var = jnp.mean((v - mu) ** 2, axis=-1, keepdims=True)
        return (v - mu) * lax.rsqrt(var + EPS_LN) * g + b

    for l in range(n_layers):
        qkv = jnp.dot(x, wqkv_ref[l], preferred_element_type=f32) + bqkv_ref[l]
        heads = []
        for h in range(H):                  # 1/sqrt(HD) pre-folded into Wq
            qh = qkv[:, h * HD:(h + 1) * HD]
            kh = qkv[:, D + h * HD:D + (h + 1) * HD]
            vh = qkv[:, 2 * D + h * HD:2 * D + (h + 1) * HD]
            s = lax.dot_general(qh, kh, (((1,), (1,)), ((), ())),
                                preferred_element_type=f32)      # (S, S)
            s = s - jnp.max(s, axis=-1, keepdims=True)
            pr = jnp.exp(s)
            pr = pr * pl.reciprocal(jnp.sum(pr, axis=-1, keepdims=True),
                                    approx=True)
            heads.append(jnp.dot(pr, vh, preferred_element_type=f32))   # (S, HD)
        # single K=64 output projection over the concatenated heads
        attn = jnp.dot(jnp.concatenate(heads, axis=-1), wo_ref[l],
                       preferred_element_type=f32) + bo_ref[l]
        x = layer_norm(x + attn, ln1g_ref[l], ln1b_ref[l])
        hid = jnp.maximum(jnp.dot(x, wf1_ref[l], preferred_element_type=f32)
                          + bf1_ref[l], 0.0)
        ff = jnp.dot(hid, wf2_ref[l], preferred_element_type=f32) + bf2_ref[l]
        x = layer_norm(x + ff, ln2g_ref[l], ln2b_ref[l])

    # ---------------- seq mean + feature MLP + fused classifier ---------------
    x_wave = jnp.mean(x, axis=0, keepdims=True)                  # (1, 64)
    feat = feat_ref[0]                                           # (1, feat_dim)
    hm = jnp.maximum(jnp.dot(feat, wm1_ref[...], preferred_element_type=f32)
                     + bm1_ref[...], 0.0)
    x_feat = jnp.dot(hm, wm2_ref[...], preferred_element_type=f32) + bm2_ref[...]
    # concat([x_wave, x_feat]) folded into split halves of the classifier W1
    hc = jnp.maximum(jnp.dot(x_wave, wc1a_ref[...], preferred_element_type=f32)
                     + jnp.dot(x_feat, wc1b_ref[...], preferred_element_type=f32)
                     + bc1_ref[...], 0.0)
    o_ref[0] = jnp.dot(hc, wc2_ref[...], preferred_element_type=f32) + bc2_ref[...]


# --------------------------------- wrapper ---------------------------------

WEIGHT_ORDER = (
    "conv1_w", "bn1_scale", "bn1_shift",
    "conv2_w", "bn2_scale", "bn2_shift",
    "wqkv", "bqkv", "wo", "bo", "ln1g", "ln1b",
    "wf1", "bf1", "wf2", "bf2", "ln2g", "ln2b",
    "wm1", "bm1", "wm2", "bm2",
    "wc1a", "wc1b", "bc1", "wc2", "bc2",
)


def forward(params, waveform, features):
    """waveform: (B, 1, L) NCW as in PyTorch; features: (B, feat_dim)."""
    B, _, L = waveform.shape
    x = waveform.reshape(B, L).astype(jnp.float32)

    # conv1 geometry (k=48, s=6, p=28). The fused kernel is specialized to
    # T1=512 -> 128 pooled steps -> conv2 yields exactly 32 (AdaptiveAvgPool1d(32)
    # is then the identity).
    T1 = (L + 2 * 28 - 48) // 6 + 1
    if T1 != 512:
        # TODO(synk): general input lengths need true AdaptiveAvgPool1d binning.
        raise NotImplementedError("kernel is specialized to T1 == 512 (L == 3058)")

    xpad = jnp.pad(x, ((0, 0), (28, 28)))
    idx = jnp.arange(512)[:, None] * 6 + jnp.arange(48)[None, :]      # (512, 48)
    pat = xpad[:, idx]                                                # (B, 512, 48)
    # conv1 time index = 16*g + 4*q + p  ->  arrange as (B, p, g, q*48 + k)
    pat = pat.reshape(B, 32, 4, 4, 48)
    pat = jnp.transpose(pat, (0, 3, 1, 2, 4)).reshape(B, 4, 32, 192)

    feat3 = features.astype(jnp.float32)[:, None, :]                  # (B, 1, Fd)
    feat_dim = feat3.shape[-1]
    num_classes = params["wc2"].shape[1]

    weights = [params[k] for k in WEIGHT_ORDER]
    kernel = functools.partial(eegnet_kernel, n_layers=3, n_heads=8)

    def _const_spec(a):
        return pl.BlockSpec(a.shape, lambda b, n=a.ndim: (0,) * n)

    out = pl.pallas_call(
        kernel,
        out_shape=jax.ShapeDtypeStruct((B, 1, num_classes), jnp.float32),
        grid=(B,),
        in_specs=[
            pl.BlockSpec((1, 4, 32, 192), lambda b: (b, 0, 0, 0)),
            pl.BlockSpec((1, 1, feat_dim), lambda b: (b, 0, 0)),
        ] + [_const_spec(w) for w in weights],
        out_specs=pl.BlockSpec((1, 1, num_classes), lambda b: (b, 0, 0)),
        scratch_shapes=[pltpu.VMEM((48, 128), jnp.float32)],
        compiler_params=pltpu.CompilerParams(dimension_semantics=("parallel",)),
    )(pat, feat3, *weights)
    return out[:, 0, :]


# ---------------------------- deterministic init ----------------------------

def init_params(key, feat_dim=14, num_classes=4):
    D, H, NL, FF = 64, 8, 3, 256
    HD = D // H
    keys = iter(jax.random.split(key, 64))

    def normal(shape, scale):
        return jax.random.normal(next(keys), shape, jnp.float32) * scale

    p = {}

    # conv1 (Conv1d(1,32,48,s=6,p=28)) + BatchNorm1d(32) folded (eval mode)
    w1 = normal((32, 1, 48), 1.0 / 48 ** 0.5)
    b1 = normal((32,), 0.02)
    g1 = 1.0 + normal((32,), 0.05)
    be1 = normal((32,), 0.02)
    rm1 = normal((32,), 0.05)
    rv1 = 1.0 + 0.1 * jax.nn.sigmoid(normal((32,), 1.0))
    s1 = g1 / jnp.sqrt(rv1 + EPS_BN)
    sh1 = (b1 - rm1) * s1 + be1
    w1_t = w1.reshape(32, 48).T                                   # (48, 32)
    p["conv1_w"] = jnp.kron(jnp.eye(4, dtype=jnp.float32), w1_t)  # (192, 128)
    p["bn1_scale"] = jnp.tile(s1, 4).reshape(1, 128)
    p["bn1_shift"] = jnp.tile(sh1, 4).reshape(1, 128)

    # conv2 (Conv1d(32,64,32,s=4,p=14)) + BatchNorm1d(64) folded
    w2 = normal((64, 32, 32), 1.0 / (32 * 32) ** 0.5)
    b2 = normal((64,), 0.02)
    g2 = 1.0 + normal((64,), 0.05)
    be2 = normal((64,), 0.02)
    rm2 = normal((64,), 0.05)
    rv2 = 1.0 + 0.1 * jax.nn.sigmoid(normal((64,), 1.0))
    s2 = g2 / jnp.sqrt(rv2 + EPS_BN)
    sh2 = (b2 - rm2) * s2 + be2
    # re-pack the 32 taps into 9 block-taps over the lane-packed pooled layout
    v = jnp.zeros((9, 4, 32, 64), jnp.float32)
    for j in range(32):
        d, q = divmod(j + 2, 4)
        v = v.at[d, q].set(w2[:, :, j].T)                         # (Cin, Cout)
    p["conv2_w"] = v.reshape(9, 128, 64)
    p["bn2_scale"] = s2.reshape(1, 64)
    p["bn2_shift"] = sh2.reshape(1, 64)

    # transformer encoder: 3 post-norm layers, d_model=64, 8 heads, ff=256
    wqkv = normal((NL, D, 3 * D), 1.0 / D ** 0.5)                 # in_proj_weight.T
    bqkv = normal((NL, 1, 3 * D), 0.02)
    qscale = jnp.concatenate(
        [jnp.full((D,), 1.0 / HD ** 0.5, jnp.float32),
         jnp.ones((2 * D,), jnp.float32)]).reshape(1, 1, 3 * D)
    p["wqkv"] = wqkv * qscale                                     # fold 1/sqrt(HD)
    p["bqkv"] = bqkv * qscale
    p["wo"] = normal((NL, D, D), 1.0 / D ** 0.5)                  # out_proj.weight.T
    p["bo"] = normal((NL, 1, D), 0.02)
    p["ln1g"] = 1.0 + normal((NL, 1, D), 0.05)
    p["ln1b"] = normal((NL, 1, D), 0.02)
    p["wf1"] = normal((NL, D, FF), 1.0 / D ** 0.5)
    p["bf1"] = normal((NL, 1, FF), 0.02)
    p["wf2"] = normal((NL, FF, D), 1.0 / FF ** 0.5)
    p["bf2"] = normal((NL, 1, D), 0.02)
    p["ln2g"] = 1.0 + normal((NL, 1, D), 0.05)
    p["ln2b"] = normal((NL, 1, D), 0.02)

    # feature MLP: Linear(14,48) -> ReLU -> Linear(48,32)
    p["wm1"] = normal((feat_dim, 48), 1.0 / feat_dim ** 0.5)
    p["bm1"] = normal((1, 48), 0.02)
    p["wm2"] = normal((48, 32), 1.0 / 48 ** 0.5)
    p["bm2"] = normal((1, 32), 0.02)

    # classifier: Linear(96,64) split into wave(64)/feat(32) halves, Linear(64,C)
    p["wc1a"] = normal((D, 64), 1.0 / 96 ** 0.5)
    p["wc1b"] = normal((32, 64), 1.0 / 96 ** 0.5)
    p["bc1"] = normal((1, 64), 0.02)
    p["wc2"] = normal((64, num_classes), 1.0 / 64 ** 0.5)
    p["bc2"] = normal((1, num_classes), 0.02)
    return p


if __name__ == "__main__":
    key = jax.random.PRNGKey(0)
    k_param, k_wave, k_feat = jax.random.split(key, 3)

    B, FEAT_DIM, NUM_CLASSES = 2, 14, 4
    # L chosen so the CNN yields exactly 32 time steps before AdaptiveAvgPool1d(32):
    # conv1: (3058+56-48)//6+1 = 512 ; maxpool4: 128 ; conv2: (128+28-32)//4+1 = 32.
    L_WAVE = 3058

    params = init_params(k_param, feat_dim=FEAT_DIM, num_classes=NUM_CLASSES)
    waveform = jax.random.normal(k_wave, (B, 1, L_WAVE), jnp.float32)
    features = jax.random.normal(k_feat, (B, FEAT_DIM), jnp.float32)

    fwd = jax.jit(forward)
    logits = jax.block_until_ready(fwd(params, waveform, features))
    assert logits.shape == (B, NUM_CLASSES), logits.shape
    print("KERNEL_OK")
</pallas_src>

<mosaic_0001>
module attributes {stable_mosaic.version = 11 : i64} {
  func.func @eegnet_kernel(%arg0: i32, %arg1: memref<1x4x32x192xf32, #tpu.memory_space<vmem>>, %arg2: memref<1x1x14xf32, #tpu.memory_space<vmem>>, %arg3: memref<192x128xf32, #tpu.memory_space<vmem>>, %arg4: memref<1x128xf32, #tpu.memory_space<vmem>>, %arg5: memref<1x128xf32, #tpu.memory_space<vmem>>, %arg6: memref<9x128x64xf32, #tpu.memory_space<vmem>>, %arg7: memref<1x64xf32, #tpu.memory_space<vmem>>, %arg8: memref<1x64xf32, #tpu.memory_space<vmem>>, %arg9: memref<3x64x192xf32, #tpu.memory_space<vmem>>, %arg10: memref<3x1x192xf32, #tpu.memory_space<vmem>>, %arg11: memref<3x64x64xf32, #tpu.memory_space<vmem>>, %arg12: memref<3x1x64xf32, #tpu.memory_space<vmem>>, %arg13: memref<3x1x64xf32, #tpu.memory_space<vmem>>, %arg14: memref<3x1x64xf32, #tpu.memory_space<vmem>>, %arg15: memref<3x64x256xf32, #tpu.memory_space<vmem>>, %arg16: memref<3x1x256xf32, #tpu.memory_space<vmem>>, %arg17: memref<3x256x64xf32, #tpu.memory_space<vmem>>, %arg18: memref<3x1x64xf32, #tpu.memory_space<vmem>>, %arg19: memref<3x1x64xf32, #tpu.memory_space<vmem>>, %arg20: memref<3x1x64xf32, #tpu.memory_space<vmem>>, %arg21: memref<14x48xf32, #tpu.memory_space<vmem>>, %arg22: memref<1x48xf32, #tpu.memory_space<vmem>>, %arg23: memref<48x32xf32, #tpu.memory_space<vmem>>, %arg24: memref<1x32xf32, #tpu.memory_space<vmem>>, %arg25: memref<64x64xf32, #tpu.memory_space<vmem>>, %arg26: memref<32x64xf32, #tpu.memory_space<vmem>>, %arg27: memref<1x64xf32, #tpu.memory_space<vmem>>, %arg28: memref<64x4xf32, #tpu.memory_space<vmem>>, %arg29: memref<1x4xf32, #tpu.memory_space<vmem>>, %arg30: memref<1x1x4xf32, #tpu.memory_space<vmem>>, %arg31: memref<48x128xf32, #tpu.memory_space<vmem>>) attributes {dimension_semantics = [#tpu.dimension_semantics<parallel>], iteration_bounds = array<i64: 2>, scalar_prefetch = 0 : i64, scratch_operands = 1 : i64, tpu.core_type = #tpu.core_type<tc>, window_params = [{transform_indices = @transform_0, window_bounds = array<i64: 1, 4, 32, 192>}, {transform_indices = @transform_1, window_bounds = array<i64: 1, 1, 14>}, {pipeline_mode = #tpu.pipeline_mode<synchronous>, transform_indices = @transform_2, window_bounds = array<i64: 192, 128>}, {pipeline_mode = #tpu.pipeline_mode<synchronous>, transform_indices = @transform_3, window_bounds = array<i64: 1, 128>}, {pipeline_mode = #tpu.pipeline_mode<synchronous>, transform_indices = @transform_4, window_bounds = array<i64: 1, 128>}, {pipeline_mode = #tpu.pipeline_mode<synchronous>, transform_indices = @transform_5, window_bounds = array<i64: 9, 128, 64>}, {pipeline_mode = #tpu.pipeline_mode<synchronous>, transform_indices = @transform_6, window_bounds = array<i64: 1, 64>}, {pipeline_mode = #tpu.pipeline_mode<synchronous>, transform_indices = @transform_7, window_bounds = array<i64: 1, 64>}, {pipeline_mode = #tpu.pipeline_mode<synchronous>, transform_indices = @transform_8, window_bounds = array<i64: 3, 64, 192>}, {pipeline_mode = #tpu.pipeline_mode<synchronous>, transform_indices = @transform_9, window_bounds = array<i64: 3, 1, 192>}, {pipeline_mode = #tpu.pipeline_mode<synchronous>, transform_indices = @transform_10, window_bounds = array<i64: 3, 64, 64>}, {pipeline_mode = #tpu.pipeline_mode<synchronous>, transform_indices = @transform_11, window_bounds = array<i64: 3, 1, 64>}, {pipeline_mode = #tpu.pipeline_mode<synchronous>, transform_indices = @transform_12, window_bounds = array<i64: 3, 1, 64>}, {pipeline_mode = #tpu.pipeline_mode<synchronous>, transform_indices = @transform_13, window_bounds = array<i64: 3, 1, 64>}, {pipeline_mode = #tpu.pipeline_mode<synchronous>, transform_indices = @transform_14, window_bounds = array<i64: 3, 64, 256>}, {pipeline_mode = #tpu.pipeline_mode<synchronous>, transform_indices = @transform_15, window_bounds = array<i64: 3, 1, 256>}, {pipeline_mode = #tpu.pipeline_mode<synchronous>, transform_indices = @transform_16, window_bounds = array<i64: 3, 256, 64>}, {pipeline_mode = #tpu.pipeline_mode<synchronous>, transform_indices = @transform_17, window_bounds = array<i64: 3, 1, 64>}, {pipeline_mode = #tpu.pipeline_mode<synchronous>, transform_indices = @transform_18, window_bounds = array<i64: 3, 1, 64>}, {pipeline_mode = #tpu.pipeline_mode<synchronous>, transform_indices = @transform_19, window_bounds = array<i64: 3, 1, 64>}, {pipeline_mode = #tpu.pipeline_mode<synchronous>, transform_indices = @transform_20, window_bounds = array<i64: 14, 48>}, {pipeline_mode = #tpu.pipeline_mode<synchronous>, transform_indices = @transform_21, window_bounds = array<i64: 1, 48>}, {pipeline_mode = #tpu.pipeline_mode<synchronous>, transform_indices = @transform_22, window_bounds = array<i64: 48, 32>}, {pipeline_mode = #tpu.pipeline_mode<synchronous>, transform_indices = @transform_23, window_bounds = array<i64: 1, 32>}, {pipeline_mode = #tpu.pipeline_mode<synchronous>, transform_indices = @transform_24, window_bounds = array<i64: 64, 64>}, {pipeline_mode = #tpu.pipeline_mode<synchronous>, transform_indices = @transform_25, window_bounds = array<i64: 32, 64>}, {pipeline_mode = #tpu.pipeline_mode<synchronous>, transform_indices = @transform_26, window_bounds = array<i64: 1, 64>}, {pipeline_mode = #tpu.pipeline_mode<synchronous>, transform_indices = @transform_27, window_bounds = array<i64: 64, 4>}, {pipeline_mode = #tpu.pipeline_mode<synchronous>, transform_indices = @transform_28, window_bounds = array<i64: 1, 4>}, {transform_indices = @transform_29, window_bounds = array<i64: 1, 1, 4>}]} {
    %c0 = arith.constant 0 : index
    %c0_0 = arith.constant 0 : index
    %0 = vector.load %arg3[%c0, %c0_0] : memref<192x128xf32, #tpu.memory_space<vmem>>, vector<192x128xf32>
    %c0_1 = arith.constant 0 : index
    %c0_2 = arith.constant 0 : index
    %1 = vector.load %arg4[%c0_1, %c0_2] : memref<1x128xf32, #tpu.memory_space<vmem>>, vector<1x128xf32>
    %c0_3 = arith.constant 0 : index
    %c0_4 = arith.constant 0 : index
    %2 = vector.load %arg5[%c0_3, %c0_4] : memref<1x128xf32, #tpu.memory_space<vmem>>, vector<1x128xf32>
    %c0_5 = arith.constant 0 : index
    %c0_6 = arith.constant 0 : index
    %c0_7 = arith.constant 0 : index
    %c0_8 = arith.constant 0 : index
    %3 = vector.load %arg1[%c0_5, %c0_6, %c0_7, %c0_8] : memref<1x4x32x192xf32, #tpu.memory_space<vmem>>, vector<1x1x32x192xf32>
    %4 = vector.shape_cast %3 : vector<1x1x32x192xf32> to vector<32x192xf32>
    %cst = arith.constant dense<0.000000e+00> : vector<32x128xf32>
    %5 = tpu.matmul %4, %0, %cst {dimension_numbers = #tpu.dot_dimension_numbers<[1], [0], [0], [1], [0, 0, 1, 1], [], []>} : vector<32x192xf32>, vector<192x128xf32>, vector<32x128xf32> -> vector<32x128xf32>
    %6 = vector.broadcast %1 : vector<1x128xf32> to vector<32x128xf32>
    %7 = arith.mulf %5, %6 : vector<32x128xf32>
    %8 = vector.broadcast %2 : vector<1x128xf32> to vector<32x128xf32>
    %9 = arith.addf %7, %8 : vector<32x128xf32>
    %c0_9 = arith.constant 0 : index
    %c1 = arith.constant 1 : index
    %c0_10 = arith.constant 0 : index
    %c0_11 = arith.constant 0 : index
    %10 = vector.load %arg1[%c0_9, %c1, %c0_10, %c0_11] : memref<1x4x32x192xf32, #tpu.memory_space<vmem>>, vector<1x1x32x192xf32>
    %11 = vector.shape_cast %10 : vector<1x1x32x192xf32> to vector<32x192xf32>
    %cst_12 = arith.constant dense<0.000000e+00> : vector<32x128xf32>
    %12 = tpu.matmul %11, %0, %cst_12 {dimension_numbers = #tpu.dot_dimension_numbers<[1], [0], [0], [1], [0, 0, 1, 1], [], []>} : vector<32x192xf32>, vector<192x128xf32>, vector<32x128xf32> -> vector<32x128xf32>
    %13 = vector.broadcast %1 : vector<1x128xf32> to vector<32x128xf32>
    %14 = arith.mulf %12, %13 : vector<32x128xf32>
    %15 = vector.broadcast %2 : vector<1x128xf32> to vector<32x128xf32>
    %16 = arith.addf %14, %15 : vector<32x128xf32>
    %17 = arith.maximumf %9, %16 : vector<32x128xf32>
    %c0_13 = arith.constant 0 : index
    %c2 = arith.constant 2 : index
    %c0_14 = arith.constant 0 : index
    %c0_15 = arith.constant 0 : index
    %18 = vector.load %arg1[%c0_13, %c2, %c0_14, %c0_15] : memref<1x4x32x192xf32, #tpu.memory_space<vmem>>, vector<1x1x32x192xf32>
    %19 = vector.shape_cast %18 : vector<1x1x32x192xf32> to vector<32x192xf32>
    %cst_16 = arith.constant dense<0.000000e+00> : vector<32x128xf32>
    %20 = tpu.matmul %19, %0, %cst_16 {dimension_numbers = #tpu.dot_dimension_numbers<[1], [0], [0], [1], [0, 0, 1, 1], [], []>} : vector<32x192xf32>, vector<192x128xf32>, vector<32x128xf32> -> vector<32x128xf32>
    %21 = vector.broadcast %1 : vector<1x128xf32> to vector<32x128xf32>
    %22 = arith.mulf %20, %21 : vector<32x128xf32>
    %23 = vector.broadcast %2 : vector<1x128xf32> to vector<32x128xf32>
    %24 = arith.addf %22, %23 : vector<32x128xf32>
    %25 = arith.maximumf %17, %24 : vector<32x128xf32>
    %c0_17 = arith.constant 0 : index
    %c3 = arith.constant 3 : index
    %c0_18 = arith.constant 0 : index
    %c0_19 = arith.constant 0 : index
    %26 = vector.load %arg1[%c0_17, %c3, %c0_18, %c0_19] : memref<1x4x32x192xf32, #tpu.memory_space<vmem>>, vector<1x1x32x192xf32>
    %27 = vector.shape_cast %26 : vector<1x1x32x192xf32> to vector<32x192xf32>
    %cst_20 = arith.constant dense<0.000000e+00> : vector<32x128xf32>
    %28 = tpu.matmul %27, %0, %cst_20 {dimension_numbers = #tpu.dot_dimension_numbers<[1], [0], [0], [1], [0, 0, 1, 1], [], []>} : vector<32x192xf32>, vector<192x128xf32>, vector<32x128xf32> -> vector<32x128xf32>
    %29 = vector.broadcast %1 : vector<1x128xf32> to vector<32x128xf32>
    %30 = arith.mulf %28, %29 : vector<32x128xf32>
    %31 = vector.broadcast %2 : vector<1x128xf32> to vector<32x128xf32>
    %32 = arith.addf %30, %31 : vector<32x128xf32>
    %33 = arith.maximumf %25, %32 : vector<32x128xf32>
    %cst_21 = arith.constant 0.000000e+00 : f32
    %34 = vector.broadcast %cst_21 : f32 to vector<32x128xf32>
    %35 = arith.maximumf %33, %34 : vector<32x128xf32>
    %cst_22 = arith.constant 0.000000e+00 : f32
    %36 = vector.broadcast %cst_22 : f32 to vector<8x128xf32>
    %c0_23 = arith.constant 0 : index
    %c0_24 = arith.constant 0 : index
    %37 = vector.load %arg31[%c0_23, %c0_24] : memref<48x128xf32, #tpu.memory_space<vmem>>, vector<8x128xf32>
    tpu.vector_store %arg31[%c0_23, %c0_24], %36 {strides = array<i32>} : memref<48x128xf32, #tpu.memory_space<vmem>>, vector<8x128xf32>,
    %cst_25 = arith.constant 0.000000e+00 : f32
    %38 = vector.broadcast %cst_25 : f32 to vector<8x128xf32>
    %c40 = arith.constant 40 : index
    %c0_26 = arith.constant 0 : index
    %39 = vector.load %arg31[%c40, %c0_26] : memref<48x128xf32, #tpu.memory_space<vmem>>, vector<8x128xf32>
    tpu.vector_store %arg31[%c40, %c0_26], %38 {strides = array<i32>} : memref<48x128xf32, #tpu.memory_space<vmem>>, vector<8x128xf32>,
    %c8 = arith.constant 8 : index
    %c0_27 = arith.constant 0 : index
    %40 = vector.load %arg31[%c8, %c0_27] : memref<48x128xf32, #tpu.memory_space<vmem>>, vector<32x128xf32>
    tpu.vector_store %arg31[%c8, %c0_27], %35 {strides = array<i32>} : memref<48x128xf32, #tpu.memory_space<vmem>>, vector<32x128xf32>,
    %cst_28 = arith.constant 0.000000e+00 : f32
    %41 = vector.broadcast %cst_28 : f32 to vector<32x64xf32>
    %c4 = arith.constant 4 : index
    %c0_29 = arith.constant 0 : index
    %42 = vector.load %arg31[%c4, %c0_29] : memref<48x128xf32, #tpu.memory_space<vmem>>, vector<32x128xf32>
    %c0_30 = arith.constant 0 : index
    %c0_31 = arith.constant 0 : index
    %c0_32 = arith.constant 0 : index
    %43 = vector.load %arg6[%c0_30, %c0_31, %c0_32] : memref<9x128x64xf32, #tpu.memory_space<vmem>>, vector<1x128x64xf32>
    %44 = vector.shape_cast %43 : vector<1x128x64xf32> to vector<128x64xf32>
    %cst_33 = arith.constant dense<0.000000e+00> : vector<32x64xf32>
    %45 = tpu.matmul %42, %44, %cst_33 {dimension_numbers = #tpu.dot_dimension_numbers<[1], [0], [0], [1], [0, 0, 1, 1], [], []>} : vector<32x128xf32>, vector<128x64xf32>, vector<32x64xf32> -> vector<32x64xf32>
    %46 = arith.addf %41, %45 : vector<32x64xf32>
    %c5 = arith.constant 5 : index
    %c0_34 = arith.constant 0 : index
    %47 = vector.load %arg31[%c5, %c0_34] : memref<48x128xf32, #tpu.memory_space<vmem>>, vector<32x128xf32>
    %c1_35 = arith.constant 1 : index
    %c0_36 = arith.constant 0 : index
    %c0_37 = arith.constant 0 : index
    %48 = vector.load %arg6[%c1_35, %c0_36, %c0_37] : memref<9x128x64xf32, #tpu.memory_space<vmem>>, vector<1x128x64xf32>
    %49 = vector.shape_cast %48 : vector<1x128x64xf32> to vector<128x64xf32>
    %cst_38 = arith.constant dense<0.000000e+00> : vector<32x64xf32>
    %50 = tpu.matmul %47, %49, %cst_38 {dimension_numbers = #tpu.dot_dimension_numbers<[1], [0], [0], [1], [0, 0, 1, 1], [], []>} : vector<32x128xf32>, vector<128x64xf32>, vector<32x64xf32> -> vector<32x64xf32>
    %51 = arith.addf %46, %50 : vector<32x64xf32>
    %c6 = arith.constant 6 : index
    %c0_39 = arith.constant 0 : index
    %52 = vector.load %arg31[%c6, %c0_39] : memref<48x128xf32, #tpu.memory_space<vmem>>, vector<32x128xf32>
    %c2_40 = arith.constant 2 : index
    %c0_41 = arith.constant 0 : index
    %c0_42 = arith.constant 0 : index
    %53 = vector.load %arg6[%c2_40, %c0_41, %c0_42] : memref<9x128x64xf32, #tpu.memory_space<vmem>>, vector<1x128x64xf32>
    %54 = vector.shape_cast %53 : vector<1x128x64xf32> to vector<128x64xf32>
    %cst_43 = arith.constant dense<0.000000e+00> : vector<32x64xf32>
    %55 = tpu.matmul %52, %54, %cst_43 {dimension_numbers = #tpu.dot_dimension_numbers<[1], [0], [0], [1], [0, 0, 1, 1], [], []>} : vector<32x128xf32>, vector<128x64xf32>, vector<32x64xf32> -> vector<32x64xf32>
    %56 = arith.addf %51, %55 : vector<32x64xf32>
    %c7 = arith.constant 7 : index
    %c0_44 = arith.constant 0 : index
    %57 = vector.load %arg31[%c7, %c0_44] : memref<48x128xf32, #tpu.memory_space<vmem>>, vector<32x128xf32>
    %c3_45 = arith.constant 3 : index
    %c0_46 = arith.constant 0 : index
    %c0_47 = arith.constant 0 : index
    %58 = vector.load %arg6[%c3_45, %c0_46, %c0_47] : memref<9x128x64xf32, #tpu.memory_space<vmem>>, vector<1x128x64xf32>
    %59 = vector.shape_cast %58 : vector<1x128x64xf32> to vector<128x64xf32>
    %cst_48 = arith.constant dense<0.000000e+00> : vector<32x64xf32>
    %60 = tpu.matmul %57, %59, %cst_48 {dimension_numbers = #tpu.dot_dimension_numbers<[1], [0], [0], [1], [0, 0, 1, 1], [], []>} : vector<32x128xf32>, vector<128x64xf32>, vector<32x64xf32> -> vector<32x64xf32>
    %61 = arith.addf %56, %60 : vector<32x64xf32>
    %c8_49 = arith.constant 8 : index
    %c0_50 = arith.constant 0 : index
    %62 = vector.load %arg31[%c8_49, %c0_50] : memref<48x128xf32, #tpu.memory_space<vmem>>, vector<32x128xf32>
    %c4_51 = arith.constant 4 : index
    %c0_52 = arith.constant 0 : index
    %c0_53 = arith.constant 0 : index
    %63 = vector.load %arg6[%c4_51, %c0_52, %c0_53] : memref<9x128x64xf32, #tpu.memory_space<vmem>>, vector<1x128x64xf32>
    %64 = vector.shape_cast %63 : vector<1x128x64xf32> to vector<128x64xf32>
    %cst_54 = arith.constant dense<0.000000e+00> : vector<32x64xf32>
    %65 = tpu.matmul %62, %64, %cst_54 {dimension_numbers = #tpu.dot_dimension_numbers<[1], [0], [0], [1], [0, 0, 1, 1], [], []>} : vector<32x128xf32>, vector<128x64xf32>, vector<32x64xf32> -> vector<32x64xf32>
    %66 = arith.addf %61, %65 : vector<32x64xf32>
    %c9 = arith.constant 9 : index
    %c0_55 = arith.constant 0 : index
    %67 = vector.load %arg31[%c9, %c0_55] : memref<48x128xf32, #tpu.memory_space<vmem>>, vector<32x128xf32>
    %c5_56 = arith.constant 5 : index
    %c0_57 = arith.constant 0 : index
    %c0_58 = arith.constant 0 : index
    %68 = vector.load %arg6[%c5_56, %c0_57, %c0_58] : memref<9x128x64xf32, #tpu.memory_space<vmem>>, vector<1x128x64xf32>
    %69 = vector.shape_cast %68 : vector<1x128x64xf32> to vector<128x64xf32>
    %cst_59 = arith.constant dense<0.000000e+00> : vector<32x64xf32>
    %70 = tpu.matmul %67, %69, %cst_59 {dimension_numbers = #tpu.dot_dimension_numbers<[1], [0], [0], [1], [0, 0, 1, 1], [], []>} : vector<32x128xf32>, vector<128x64xf32>, vector<32x64xf32> -> vector<32x64xf32>
    %71 = arith.addf %66, %70 : vector<32x64xf32>
    %c10 = arith.constant 10 : index
    %c0_60 = arith.constant 0 : index
    %72 = vector.load %arg31[%c10, %c0_60] : memref<48x128xf32, #tpu.memory_space<vmem>>, vector<32x128xf32>
    %c6_61 = arith.constant 6 : index
    %c0_62 = arith.constant 0 : index
    %c0_63 = arith.constant 0 : index
    %73 = vector.load %arg6[%c6_61, %c0_62, %c0_63] : memref<9x128x64xf32, #tpu.memory_space<vmem>>, vector<1x128x64xf32>
    %74 = vector.shape_cast %73 : vector<1x128x64xf32> to vector<128x64xf32>
    %cst_64 = arith.constant dense<0.000000e+00> : vector<32x64xf32>
    %75 = tpu.matmul %72, %74, %cst_64 {dimension_numbers = #tpu.dot_dimension_numbers<[1], [0], [0], [1], [0, 0, 1, 1], [], []>} : vector<32x128xf32>, vector<128x64xf32>, vector<32x64xf32> -> vector<32x64xf32>
    %76 = arith.addf %71, %75 : vector<32x64xf32>
    %c11 = arith.constant 11 : index
    %c0_65 = arith.constant 0 : index
    %77 = vector.load %arg31[%c11, %c0_65] : memref<48x128xf32, #tpu.memory_space<vmem>>, vector<32x128xf32>
    %c7_66 = arith.constant 7 : index
    %c0_67 = arith.constant 0 : index
    %c0_68 = arith.constant 0 : index
    %78 = vector.load %arg6[%c7_66, %c0_67, %c0_68] : memref<9x128x64xf32, #tpu.memory_space<vmem>>, vector<1x128x64xf32>
    %79 = vector.shape_cast %78 : vector<1x128x64xf32> to vector<128x64xf32>
    %cst_69 = arith.constant dense<0.000000e+00> : vector<32x64xf32>
    %80 = tpu.matmul %77, %79, %cst_69 {dimension_numbers = #tpu.dot_dimension_numbers<[1], [0], [0], [1], [0, 0, 1, 1], [], []>} : vector<32x128xf32>, vector<128x64xf32>, vector<32x64xf32> -> vector<32x64xf32>
    %81 = arith.addf %76, %80 : vector<32x64xf32>
    %c12 = arith.constant 12 : index
    %c0_70 = arith.constant 0 : index
    %82 = vector.load %arg31[%c12, %c0_70] : memref<48x128xf32, #tpu.memory_space<vmem>>, vector<32x128xf32>
    %c8_71 = arith.constant 8 : index
    %c0_72 = arith.constant 0 : index
    %c0_73 = arith.constant 0 : index
    %83 = vector.load %arg6[%c8_71, %c0_72, %c0_73] : memref<9x128x64xf32, #tpu.memory_space<vmem>>, vector<1x128x64xf32>
    %84 = vector.shape_cast %83 : vector<1x128x64xf32> to vector<128x64xf32>
    %cst_74 = arith.constant dense<0.000000e+00> : vector<32x64xf32>
    %85 = tpu.matmul %82, %84, %cst_74 {dimension_numbers = #tpu.dot_dimension_numbers<[1], [0], [0], [1], [0, 0, 1, 1], [], []>} : vector<32x128xf32>, vector<128x64xf32>, vector<32x64xf32> -> vector<32x64xf32>
    %86 = arith.addf %81, %85 : vector<32x64xf32>
    %c0_75 = arith.constant 0 : index
    %c0_76 = arith.constant 0 : index
    %87 = vector.load %arg7[%c0_75, %c0_76] : memref<1x64xf32, #tpu.memory_space<vmem>>, vector<1x64xf32>
    %88 = vector.broadcast %87 : vector<1x64xf32> to vector<32x64xf32>
    %89 = arith.mulf %86, %88 : vector<32x64xf32>
    %c0_77 = arith.constant 0 : index
    %c0_78 = arith.constant 0 : index
    %90 = vector.load %arg8[%c0_77, %c0_78] : memref<1x64xf32, #tpu.memory_space<vmem>>, vector<1x64xf32>
    %91 = vector.broadcast %90 : vector<1x64xf32> to vector<32x64xf32>
    %92 = arith.addf %89, %91 : vector<32x64xf32>
    %cst_79 = arith.constant 0.000000e+00 : f32
    %93 = vector.broadcast %cst_79 : f32 to vector<32x64xf32>
    %94 = arith.maximumf %92, %93 : vector<32x64xf32>
    %c0_80 = arith.constant 0 : index
    %c0_81 = arith.constant 0 : index
    %c0_82 = arith.constant 0 : index
    %95 = vector.load %arg9[%c0_80, %c0_81, %c0_82] : memref<3x64x192xf32, #tpu.memory_space<vmem>>, vector<1x64x192xf32>
    %96 = vector.shape_cast %95 : vector<1x64x192xf32> to vector<64x192xf32>
    %cst_83 = arith.constant dense<0.000000e+00> : vector<32x192xf32>
    %97 = tpu.matmul %94, %96, %cst_83 {dimension_numbers = #tpu.dot_dimension_numbers<[1], [0], [0], [1], [0, 0, 1, 1], [], []>} : vector<32x64xf32>, vector<64x192xf32>, vector<32x192xf32> -> vector<32x192xf32>
    %c0_84 = arith.constant 0 : index
    %c0_85 = arith.constant 0 : index
    %c0_86 = arith.constant 0 : index
    %98 = vector.load %arg10[%c0_84, %c0_85, %c0_86] : memref<3x1x192xf32, #tpu.memory_space<vmem>>, vector<1x1x192xf32>
    %99 = vector.shape_cast %98 : vector<1x1x192xf32> to vector<1x192xf32>
    %100 = vector.broadcast %99 : vector<1x192xf32> to vector<32x192xf32>
    %101 = arith.addf %97, %100 : vector<32x192xf32>
    %102 = vector.extract_strided_slice %101 {offsets = [0, 0], sizes = [32, 8], strides = [1, 1]} : vector<32x192xf32> to vector<32x8xf32>
    %103 = vector.extract_strided_slice %101 {offsets = [0, 64], sizes = [32, 8], strides = [1, 1]} : vector<32x192xf32> to vector<32x8xf32>
    %104 = vector.extract_strided_slice %101 {offsets = [0, 128], sizes = [32, 8], strides = [1, 1]} : vector<32x192xf32> to vector<32x8xf32>
    %cst_87 = arith.constant dense<0.000000e+00> : vector<32x32xf32>
    %105 = tpu.matmul %102, %103, %cst_87 {dimension_numbers = #tpu.dot_dimension_numbers<[1], [1], [0], [0], [0, 0, 1, 0], [], []>} : vector<32x8xf32>, vector<32x8xf32>, vector<32x32xf32> -> vector<32x32xf32>
    %cst_88 = arith.constant dense<0xFF800000> : vector<32xf32>
    %106 = vector.multi_reduction <maximumf>, %105, %cst_88 [1] : vector<32x32xf32> to vector<32xf32>
    %107 = vector.shape_cast %106 : vector<32xf32> to vector<32x1xf32>
    %108 = vector.broadcast %107 : vector<32x1xf32> to vector<32x32xf32>
    %109 = arith.subf %105, %108 : vector<32x32xf32>
    %110 = math.exp %109 : vector<32x32xf32>
    %cst_89 = arith.constant dense<0.000000e+00> : vector<32xf32>
    %111 = vector.multi_reduction <add>, %110, %cst_89 [1] : vector<32x32xf32> to vector<32xf32>
    %112 = vector.shape_cast %111 : vector<32xf32> to vector<32x1xf32>
    %113 = tpu.reciprocal %112 {approx = true} : vector<32x1xf32> -> vector<32x1xf32>
    %114 = vector.broadcast %113 : vector<32x1xf32> to vector<32x32xf32>
    %115 = arith.mulf %110, %114 : vector<32x32xf32>
    %cst_90 = arith.constant dense<0.000000e+00> : vector<32x8xf32>
    %116 = tpu.matmul %115, %104, %cst_90 {dimension_numbers = #tpu.dot_dimension_numbers<[1], [0], [0], [1], [0, 0, 1, 1], [], []>} : vector<32x32xf32>, vector<32x8xf32>, vector<32x8xf32> -> vector<32x8xf32>
    %117 = vector.extract_strided_slice %101 {offsets = [0, 8], sizes = [32, 8], strides = [1, 1]} : vector<32x192xf32> to vector<32x8xf32>
    %118 = vector.extract_strided_slice %101 {offsets = [0, 72], sizes = [32, 8], strides = [1, 1]} : vector<32x192xf32> to vector<32x8xf32>
    %119 = vector.extract_strided_slice %101 {offsets = [0, 136], sizes = [32, 8], strides = [1, 1]} : vector<32x192xf32> to vector<32x8xf32>
    %cst_91 = arith.constant dense<0.000000e+00> : vector<32x32xf32>
    %120 = tpu.matmul %117, %118, %cst_91 {dimension_numbers = #tpu.dot_dimension_numbers<[1], [1], [0], [0], [0, 0, 1, 0], [], []>} : vector<32x8xf32>, vector<32x8xf32>, vector<32x32xf32> -> vector<32x32xf32>
    %cst_92 = arith.constant dense<0xFF800000> : vector<32xf32>
    %121 = vector.multi_reduction <maximumf>, %120, %cst_92 [1] : vector<32x32xf32> to vector<32xf32>
    %122 = vector.shape_cast %121 : vector<32xf32> to vector<32x1xf32>
    %123 = vector.broadcast %122 : vector<32x1xf32> to vector<32x32xf32>
    %124 = arith.subf %120, %123 : vector<32x32xf32>
    %125 = math.exp %124 : vector<32x32xf32>
    %cst_93 = arith.constant dense<0.000000e+00> : vector<32xf32>
    %126 = vector.multi_reduction <add>, %125, %cst_93 [1] : vector<32x32xf32> to vector<32xf32>
    %127 = vector.shape_cast %126 : vector<32xf32> to vector<32x1xf32>
    %128 = tpu.reciprocal %127 {approx = true} : vector<32x1xf32> -> vector<32x1xf32>
    %129 = vector.broadcast %128 : vector<32x1xf32> to vector<32x32xf32>
    %130 = arith.mulf %125, %129 : vector<32x32xf32>
    %cst_94 = arith.constant dense<0.000000e+00> : vector<32x8xf32>
    %131 = tpu.matmul %130, %119, %cst_94 {dimension_numbers = #tpu.dot_dimension_numbers<[1], [0], [0], [1], [0, 0, 1, 1], [], []>} : vector<32x32xf32>, vector<32x8xf32>, vector<32x8xf32> -> vector<32x8xf32>
    %132 = vector.extract_strided_slice %101 {offsets = [0, 16], sizes = [32, 8], strides = [1, 1]} : vector<32x192xf32> to vector<32x8xf32>
    %133 = vector.extract_strided_slice %101 {offsets = [0, 80], sizes = [32, 8], strides = [1, 1]} : vector<32x192xf32> to vector<32x8xf32>
    %134 = vector.extract_strided_slice %101 {offsets = [0, 144], sizes = [32, 8], strides = [1, 1]} : vector<32x192xf32> to vector<32x8xf32>
    %cst_95 = arith.constant dense<0.000000e+00> : vector<32x32xf32>
    %135 = tpu.matmul %132, %133, %cst_95 {dimension_numbers = #tpu.dot_dimension_numbers<[1], [1], [0], [0], [0, 0, 1, 0], [], []>} : vector<32x8xf32>, vector<32x8xf32>, vector<32x32xf32> -> vector<32x32xf32>
    %cst_96 = arith.constant dense<0xFF800000> : vector<32xf32>
    %136 = vector.multi_reduction <maximumf>, %135, %cst_96 [1] : vector<32x32xf32> to vector<32xf32>
    %137 = vector.shape_cast %136 : vector<32xf32> to vector<32x1xf32>
    %138 = vector.broadcast %137 : vector<32x1xf32> to vector<32x32xf32>
    %139 = arith.subf %135, %138 : vector<32x32xf32>
    %140 = math.exp %139 : vector<32x32xf32>
    %cst_97 = arith.constant dense<0.000000e+00> : vector<32xf32>
    %141 = vector.multi_reduction <add>, %140, %cst_97 [1] : vector<32x32xf32> to vector<32xf32>
    %142 = vector.shape_cast %141 : vector<32xf32> to vector<32x1xf32>
    %143 = tpu.reciprocal %142 {approx = true} : vector<32x1xf32> -> vector<32x1xf32>
    %144 = vector.broadcast %143 : vector<32x1xf32> to vector<32x32xf32>
    %145 = arith.mulf %140, %144 : vector<32x32xf32>
    %cst_98 = arith.constant dense<0.000000e+00> : vector<32x8xf32>
    %146 = tpu.matmul %145, %134, %cst_98 {dimension_numbers = #tpu.dot_dimension_numbers<[1], [0], [0], [1], [0, 0, 1, 1], [], []>} : vector<32x32xf32>, vector<32x8xf32>, vector<32x8xf32> -> vector<32x8xf32>
    %147 = vector.extract_strided_slice %101 {offsets = [0, 24], sizes = [32, 8], strides = [1, 1]} : vector<32x192xf32> to vector<32x8xf32>
    %148 = vector.extract_strided_slice %101 {offsets = [0, 88], sizes = [32, 8], strides = [1, 1]} : vector<32x192xf32> to vector<32x8xf32>
    %149 = vector.extract_strided_slice %101 {offsets = [0, 152], sizes = [32, 8], strides = [1, 1]} : vector<32x192xf32> to vector<32x8xf32>
    %cst_99 = arith.constant dense<0.000000e+00> : vector<32x32xf32>
    %150 = tpu.matmul %147, %148, %cst_99 {dimension_numbers = #tpu.dot_dimension_numbers<[1], [1], [0], [0], [0, 0, 1, 0], [], []>} : vector<32x8xf32>, vector<32x8xf32>, vector<32x32xf32> -> vector<32x32xf32>
    %cst_100 = arith.constant dense<0xFF800000> : vector<32xf32>
    %151 = vector.multi_reduction <maximumf>, %150, %cst_100 [1] : vector<32x32xf32> to vector<32xf32>
    %152 = vector.shape_cast %151 : vector<32xf32> to vector<32x1xf32>
    %153 = vector.broadcast %152 : vector<32x1xf32> to vector<32x32xf32>
    %154 = arith.subf %150, %153 : vector<32x32xf32>
    %155 = math.exp %154 : vector<32x32xf32>
    %cst_101 = arith.constant dense<0.000000e+00> : vector<32xf32>
    %156 = vector.multi_reduction <add>, %155, %cst_101 [1] : vector<32x32xf32> to vector<32xf32>
    %157 = vector.shape_cast %156 : vector<32xf32> to vector<32x1xf32>
    %158 = tpu.reciprocal %157 {approx = true} : vector<32x1xf32> -> vector<32x1xf32>
    %159 = vector.broadcast %158 : vector<32x1xf32> to vector<32x32xf32>
    %160 = arith.mulf %155, %159 : vector<32x32xf32>
    %cst_102 = arith.constant dense<0.000000e+00> : vector<32x8xf32>
    %161 = tpu.matmul %160, %149, %cst_102 {dimension_numbers = #tpu.dot_dimension_numbers<[1], [0], [0], [1], [0, 0, 1, 1], [], []>} : vector<32x32xf32>, vector<32x8xf32>, vector<32x8xf32> -> vector<32x8xf32>
    %162 = vector.extract_strided_slice %101 {offsets = [0, 32], sizes = [32, 8], strides = [1, 1]} : vector<32x192xf32> to vector<32x8xf32>
    %163 = vector.extract_strided_slice %101 {offsets = [0, 96], sizes = [32, 8], strides = [1, 1]} : vector<32x192xf32> to vector<32x8xf32>
    %164 = vector.extract_strided_slice %101 {offsets = [0, 160], sizes = [32, 8], strides = [1, 1]} : vector<32x192xf32> to vector<32x8xf32>
    %cst_103 = arith.constant dense<0.000000e+00> : vector<32x32xf32>
    %165 = tpu.matmul %162, %163, %cst_103 {dimension_numbers = #tpu.dot_dimension_numbers<[1], [1], [0], [0], [0, 0, 1, 0], [], []>} : vector<32x8xf32>, vector<32x8xf32>, vector<32x32xf32> -> vector<32x32xf32>
    %cst_104 = arith.constant dense<0xFF800000> : vector<32xf32>
    %166 = vector.multi_reduction <maximumf>, %165, %cst_104 [1] : vector<32x32xf32> to vector<32xf32>
    %167 = vector.shape_cast %166 : vector<32xf32> to vector<32x1xf32>
    %168 = vector.broadcast %167 : vector<32x1xf32> to vector<32x32xf32>
    %169 = arith.subf %165, %168 : vector<32x32xf32>
    %170 = math.exp %169 : vector<32x32xf32>
    %cst_105 = arith.constant dense<0.000000e+00> : vector<32xf32>
    %171 = vector.multi_reduction <add>, %170, %cst_105 [1] : vector<32x32xf32> to vector<32xf32>
    %172 = vector.shape_cast %171 : vector<32xf32> to vector<32x1xf32>
    %173 = tpu.reciprocal %172 {approx = true} : vector<32x1xf32> -> vector<32x1xf32>
    %174 = vector.broadcast %173 : vector<32x1xf32> to vector<32x32xf32>
    %175 = arith.mulf %170, %174 : vector<32x32xf32>
    %cst_106 = arith.constant dense<0.000000e+00> : vector<32x8xf32>
    %176 = tpu.matmul %175, %164, %cst_106 {dimension_numbers = #tpu.dot_dimension_numbers<[1], [0], [0], [1], [0, 0, 1, 1], [], []>} : vector<32x32xf32>, vector<32x8xf32>, vector<32x8xf32> -> vector<32x8xf32>
    %177 = vector.extract_strided_slice %101 {offsets = [0, 40], sizes = [32, 8], strides = [1, 1]} : vector<32x192xf32> to vector<32x8xf32>
    %178 = vector.extract_strided_slice %101 {offsets = [0, 104], sizes = [32, 8], strides = [1, 1]} : vector<32x192xf32> to vector<32x8xf32>
    %179 = vector.extract_strided_slice %101 {offsets = [0, 168], sizes = [32, 8], strides = [1, 1]} : vector<32x192xf32> to vector<32x8xf32>
    %cst_107 = arith.constant dense<0.000000e+00> : vector<32x32xf32>
    %180 = tpu.matmul %177, %178, %cst_107 {dimension_numbers = #tpu.dot_dimension_numbers<[1], [1], [0], [0], [0, 0, 1, 0], [], []>} : vector<32x8xf32>, vector<32x8xf32>, vector<32x32xf32> -> vector<32x32xf32>
    %cst_108 = arith.constant dense<0xFF800000> : vector<32xf32>
    %181 = vector.multi_reduction <maximumf>, %180, %cst_108 [1] : vector<32x32xf32> to vector<32xf32>
    %182 = vector.shape_cast %181 : vector<32xf32> to vector<32x1xf32>
    %183 = vector.broadcast %182 : vector<32x1xf32> to vector<32x32xf32>
    %184 = arith.subf %180, %183 : vector<32x32xf32>
    %185 = math.exp %184 : vector<32x32xf32>
    %cst_109 = arith.constant dense<0.000000e+00> : vector<32xf32>
    %186 = vector.multi_reduction <add>, %185, %cst_109 [1] : vector<32x32xf32> to vector<32xf32>
    %187 = vector.shape_cast %186 : vector<32xf32> to vector<32x1xf32>
    %188 = tpu.reciprocal %187 {approx = true} : vector<32x1xf32> -> vector<32x1xf32>
    %189 = vector.broadcast %188 : vector<32x1xf32> to vector<32x32xf32>
    %190 = arith.mulf %185, %189 : vector<32x32xf32>
    %cst_110 = arith.constant dense<0.000000e+00> : vector<32x8xf32>
    %191 = tpu.matmul %190, %179, %cst_110 {dimension_numbers = #tpu.dot_dimension_numbers<[1], [0], [0], [1], [0, 0, 1, 1], [], []>} : vector<32x32xf32>, vector<32x8xf32>, vector<32x8xf32> -> vector<32x8xf32>
    %192 = vector.extract_strided_slice %101 {offsets = [0, 48], sizes = [32, 8], strides = [1, 1]} : vector<32x192xf32> to vector<32x8xf32>
    %193 = vector.extract_strided_slice %101 {offsets = [0, 112], sizes = [32, 8], strides = [1, 1]} : vector<32x192xf32> to vector<32x8xf32>
    %194 = vector.extract_strided_slice %101 {offsets = [0, 176], sizes = [32, 8], strides = [1, 1]} : vector<32x192xf32> to vector<32x8xf32>
    %cst_111 = arith.constant dense<0.000000e+00> : vector<32x32xf32>
    %195 = tpu.matmul %192, %193, %cst_111 {dimension_numbers = #tpu.dot_dimension_numbers<[1], [1], [0], [0], [0, 0, 1, 0], [], []>} : vector<32x8xf32>, vector<32x8xf32>, vector<32x32xf32> -> vector<32x32xf32>
    %cst_112 = arith.constant dense<0xFF800000> : vector<32xf32>
    %196 = vector.multi_reduction <maximumf>, %195, %cst_112 [1] : vector<32x32xf32> to vector<32xf32>
    %197 = vector.shape_cast %196 : vector<32xf32> to vector<32x1xf32>
    %198 = vector.broadcast %197 : vector<32x1xf32> to vector<32x32xf32>
    %199 = arith.subf %195, %198 : vector<32x32xf32>
    %200 = math.exp %199 : vector<32x32xf32>
    %cst_113 = arith.constant dense<0.000000e+00> : vector<32xf32>
    %201 = vector.multi_reduction <add>, %200, %cst_113 [1] : vector<32x32xf32> to vector<32xf32>
    %202 = vector.shape_cast %201 : vector<32xf32> to vector<32x1xf32>
    %203 = tpu.reciprocal %202 {approx = true} : vector<32x1xf32> -> vector<32x1xf32>
    %204 = vector.broadcast %203 : vector<32x1xf32> to vector<32x32xf32>
    %205 = arith.mulf %200, %204 : vector<32x32xf32>
    %cst_114 = arith.constant dense<0.000000e+00> : vector<32x8xf32>
    %206 = tpu.matmul %205, %194, %cst_114 {dimension_numbers = #tpu.dot_dimension_numbers<[1], [0], [0], [1], [0, 0, 1, 1], [], []>} : vector<32x32xf32>, vector<32x8xf32>, vector<32x8xf32> -> vector<32x8xf32>
    %207 = vector.extract_strided_slice %101 {offsets = [0, 56], sizes = [32, 8], strides = [1, 1]} : vector<32x192xf32> to vector<32x8xf32>
    %208 = vector.extract_strided_slice %101 {offsets = [0, 120], sizes = [32, 8], strides = [1, 1]} : vector<32x192xf32> to vector<32x8xf32>
    %209 = vector.extract_strided_slice %101 {offsets = [0, 184], sizes = [32, 8], strides = [1, 1]} : vector<32x192xf32> to vector<32x8xf32>
    %cst_115 = arith.constant dense<0.000000e+00> : vector<32x32xf32>
    %210 = tpu.matmul %207, %208, %cst_115 {dimension_numbers = #tpu.dot_dimension_numbers<[1], [1], [0], [0], [0, 0, 1, 0], [], []>} : vector<32x8xf32>, vector<32x8xf32>, vector<32x32xf32> -> vector<32x32xf32>
    %cst_116 = arith.constant dense<0xFF800000> : vector<32xf32>
    %211 = vector.multi_reduction <maximumf>, %210, %cst_116 [1] : vector<32x32xf32> to vector<32xf32>
    %212 = vector.shape_cast %211 : vector<32xf32> to vector<32x1xf32>
    %213 = vector.broadcast %212 : vector<32x1xf32> to vector<32x32xf32>
    %214 = arith.subf %210, %213 : vector<32x32xf32>
    %215 = math.exp %214 : vector<32x32xf32>
    %cst_117 = arith.constant dense<0.000000e+00> : vector<32xf32>
    %216 = vector.multi_reduction <add>, %215, %cst_117 [1] : vector<32x32xf32> to vector<32xf32>
    %217 = vector.shape_cast %216 : vector<32xf32> to vector<32x1xf32>
    %218 = tpu.reciprocal %217 {approx = true} : vector<32x1xf32> -> vector<32x1xf32>
    %219 = vector.broadcast %218 : vector<32x1xf32> to vector<32x32xf32>
    %220 = arith.mulf %215, %219 : vector<32x32xf32>
    %cst_118 = arith.constant dense<0.000000e+00> : vector<32x8xf32>
    %221 = tpu.matmul %220, %209, %cst_118 {dimension_numbers = #tpu.dot_dimension_numbers<[1], [0], [0], [1], [0, 0, 1, 1], [], []>} : vector<32x32xf32>, vector<32x8xf32>, vector<32x8xf32> -> vector<32x8xf32>
    %222 = tpu.concatenate %116, %131, %146, %161, %176, %191, %206, %221 in 1 : vector<32x8xf32>, vector<32x8xf32>, vector<32x8xf32>, vector<32x8xf32>, vector<32x8xf32>, vector<32x8xf32>, vector<32x8xf32>, vector<32x8xf32> -> vector<32x64xf32>
    %c0_119 = arith.constant 0 : index
    %c0_120 = arith.constant 0 : index
    %c0_121 = arith.constant 0 : index
    %223 = vector.load %arg11[%c0_119, %c0_120, %c0_121] : memref<3x64x64xf32, #tpu.memory_space<vmem>>, vector<1x64x64xf32>
    %224 = vector.shape_cast %223 : vector<1x64x64xf32> to vector<64x64xf32>
    %cst_122 = arith.constant dense<0.000000e+00> : vector<32x64xf32>
    %225 = tpu.matmul %222, %224, %cst_122 {dimension_numbers = #tpu.dot_dimension_numbers<[1], [0], [0], [1], [0, 0, 1, 1], [], []>} : vector<32x64xf32>, vector<64x64xf32>, vector<32x64xf32> -> vector<32x64xf32>
    %c0_123 = arith.constant 0 : index
    %c0_124 = arith.constant 0 : index
    %c0_125 = arith.constant 0 : index
    %226 = vector.load %arg12[%c0_123, %c0_124, %c0_125] : memref<3x1x64xf32, #tpu.memory_space<vmem>>, vector<1x1x64xf32>
    %227 = vector.shape_cast %226 : vector<1x1x64xf32> to vector<1x64xf32>
    %228 = vector.broadcast %227 : vector<1x64xf32> to vector<32x64xf32>
    %229 = arith.addf %225, %228 : vector<32x64xf32>
    %230 = arith.addf %94, %229 : vector<32x64xf32>
    %c0_126 = arith.constant 0 : index
    %c0_127 = arith.constant 0 : index
    %c0_128 = arith.constant 0 : index
    %231 = vector.load %arg13[%c0_126, %c0_127, %c0_128] : memref<3x1x64xf32, #tpu.memory_space<vmem>>, vector<1x1x64xf32>
    %232 = vector.shape_cast %231 : vector<1x1x64xf32> to vector<1x64xf32>
    %c0_129 = arith.constant 0 : index
    %c0_130 = arith.constant 0 : index
    %c0_131 = arith.constant 0 : index
    %233 = vector.load %arg14[%c0_129, %c0_130, %c0_131] : memref<3x1x64xf32, #tpu.memory_space<vmem>>, vector<1x1x64xf32>
    %234 = vector.shape_cast %233 : vector<1x1x64xf32> to vector<1x64xf32>
    %cst_132 = arith.constant dense<0.000000e+00> : vector<32xf32>
    %235 = vector.multi_reduction <add>, %230, %cst_132 [1] : vector<32x64xf32> to vector<32xf32>
    %236 = vector.shape_cast %235 : vector<32xf32> to vector<32x1xf32>
    %cst_133 = arith.constant 6.400000e+01 : f32
    %237 = vector.broadcast %cst_133 : f32 to vector<32x1xf32>
    %238 = arith.divf %236, %237 : vector<32x1xf32>
    %239 = vector.broadcast %238 : vector<32x1xf32> to vector<32x64xf32>
    %240 = arith.subf %230, %239 : vector<32x64xf32>
    %241 = arith.mulf %240, %240 : vector<32x64xf32>
    %cst_134 = arith.constant dense<0.000000e+00> : vector<32xf32>
    %242 = vector.multi_reduction <add>, %241, %cst_134 [1] : vector<32x64xf32> to vector<32xf32>
    %243 = vector.shape_cast %242 : vector<32xf32> to vector<32x1xf32>
    %cst_135 = arith.constant 6.400000e+01 : f32
    %244 = vector.broadcast %cst_135 : f32 to vector<32x1xf32>
    %245 = arith.divf %243, %244 : vector<32x1xf32>
    %246 = vector.broadcast %238 : vector<32x1xf32> to vector<32x64xf32>
    %247 = arith.subf %230, %246 : vector<32x64xf32>
    %cst_136 = arith.constant 9.99999974E-6 : f32
    %248 = vector.broadcast %cst_136 : f32 to vector<32x1xf32>
    %249 = arith.addf %245, %248 : vector<32x1xf32>
    %250 = math.rsqrt %249 : vector<32x1xf32>
    %251 = vector.broadcast %250 : vector<32x1xf32> to vector<32x64xf32>
    %252 = arith.mulf %247, %251 : vector<32x64xf32>
    %253 = vector.broadcast %232 : vector<1x64xf32> to vector<32x64xf32>
    %254 = arith.mulf %252, %253 : vector<32x64xf32>
    %255 = vector.broadcast %234 : vector<1x64xf32> to vector<32x64xf32>
    %256 = arith.addf %254, %255 : vector<32x64xf32>
    %c0_137 = arith.constant 0 : index
    %c0_138 = arith.constant 0 : index
    %c0_139 = arith.constant 0 : index
    %257 = vector.load %arg15[%c0_137, %c0_138, %c0_139] : memref<3x64x256xf32, #tpu.memory_space<vmem>>, vector<1x64x256xf32>
    %258 = vector.shape_cast %257 : vector<1x64x256xf32> to vector<64x256xf32>
    %cst_140 = arith.constant dense<0.000000e+00> : vector<32x256xf32>
    %259 = tpu.matmul %256, %258, %cst_140 {dimension_numbers = #tpu.dot_dimension_numbers<[1], [0], [0], [1], [0, 0, 1, 1], [], []>} : vector<32x64xf32>, vector<64x256xf32>, vector<32x256xf32> -> vector<32x256xf32>
    %c0_141 = arith.constant 0 : index
    %c0_142 = arith.constant 0 : index
    %c0_143 = arith.constant 0 : index
    %260 = vector.load %arg16[%c0_141, %c0_142, %c0_143] : memref<3x1x256xf32, #tpu.memory_space<vmem>>, vector<1x1x256xf32>
    %261 = vector.shape_cast %260 : vector<1x1x256xf32> to vector<1x256xf32>
    %262 = vector.broadcast %261 : vector<1x256xf32> to vector<32x256xf32>
    %263 = arith.addf %259, %262 : vector<32x256xf32>
    %cst_144 = arith.constant 0.000000e+00 : f32
    %264 = vector.broadcast %cst_144 : f32 to vector<32x256xf32>
    %265 = arith.maximumf %263, %264 : vector<32x256xf32>
    %c0_145 = arith.constant 0 : index
    %c0_146 = arith.constant 0 : index
    %c0_147 = arith.constant 0 : index
    %266 = vector.load %arg17[%c0_145, %c0_146, %c0_147] : memref<3x256x64xf32, #tpu.memory_space<vmem>>, vector<1x256x64xf32>
    %267 = vector.shape_cast %266 : vector<1x256x64xf32> to vector<256x64xf32>
    %cst_148 = arith.constant dense<0.000000e+00> : vector<32x64xf32>
    %268 = tpu.matmul %265, %267, %cst_148 {dimension_numbers = #tpu.dot_dimension_numbers<[1], [0], [0], [1], [0, 0, 1, 1], [], []>} : vector<32x256xf32>, vector<256x64xf32>, vector<32x64xf32> -> vector<32x64xf32>
    %c0_149 = arith.constant 0 : index
    %c0_150 = arith.constant 0 : index
    %c0_151 = arith.constant 0 : index
    %269 = vector.load %arg18[%c0_149, %c0_150, %c0_151] : memref<3x1x64xf32, #tpu.memory_space<vmem>>, vector<1x1x64xf32>
    %270 = vector.shape_cast %269 : vector<1x1x64xf32> to vector<1x64xf32>
    %271 = vector.broadcast %270 : vector<1x64xf32> to vector<32x64xf32>
    %272 = arith.addf %268, %271 : vector<32x64xf32>
    %273 = arith.addf %256, %272 : vector<32x64xf32>
    %c0_152 = arith.constant 0 : index
    %c0_153 = arith.constant 0 : index
    %c0_154 = arith.constant 0 : index
    %274 = vector.load %arg19[%c0_152, %c0_153, %c0_154] : memref<3x1x64xf32, #tpu.memory_space<vmem>>, vector<1x1x64xf32>
    %275 = vector.shape_cast %274 : vector<1x1x64xf32> to vector<1x64xf32>
    %c0_155 = arith.constant 0 : index
    %c0_156 = arith.constant 0 : index
    %c0_157 = arith.constant 0 : index
    %276 = vector.load %arg20[%c0_155, %c0_156, %c0_157] : memref<3x1x64xf32, #tpu.memory_space<vmem>>, vector<1x1x64xf32>
    %277 = vector.shape_cast %276 : vector<1x1x64xf32> to vector<1x64xf32>
    %cst_158 = arith.constant dense<0.000000e+00> : vector<32xf32>
    %278 = vector.multi_reduction <add>, %273, %cst_158 [1] : vector<32x64xf32> to vector<32xf32>
    %279 = vector.shape_cast %278 : vector<32xf32> to vector<32x1xf32>
    %cst_159 = arith.constant 6.400000e+01 : f32
    %280 = vector.broadcast %cst_159 : f32 to vector<32x1xf32>
    %281 = arith.divf %279, %280 : vector<32x1xf32>
    %282 = vector.broadcast %281 : vector<32x1xf32> to vector<32x64xf32>
    %283 = arith.subf %273, %282 : vector<32x64xf32>
    %284 = arith.mulf %283, %283 : vector<32x64xf32>
    %cst_160 = arith.constant dense<0.000000e+00> : vector<32xf32>
    %285 = vector.multi_reduction <add>, %284, %cst_160 [1] : vector<32x64xf32> to vector<32xf32>
    %286 = vector.shape_cast %285 : vector<32xf32> to vector<32x1xf32>
    %cst_161 = arith.constant 6.400000e+01 : f32
    %287 = vector.broadcast %cst_161 : f32 to vector<32x1xf32>
    %288 = arith.divf %286, %287 : vector<32x1xf32>
    %289 = vector.broadcast %281 : vector<32x1xf32> to vector<32x64xf32>
    %290 = arith.subf %273, %289 : vector<32x64xf32>
    %cst_162 = arith.constant 9.99999974E-6 : f32
    %291 = vector.broadcast %cst_162 : f32 to vector<32x1xf32>
    %292 = arith.addf %288, %291 : vector<32x1xf32>
    %293 = math.rsqrt %292 : vector<32x1xf32>
    %294 = vector.broadcast %293 : vector<32x1xf32> to vector<32x64xf32>
    %295 = arith.mulf %290, %294 : vector<32x64xf32>
    %296 = vector.broadcast %275 : vector<1x64xf32> to vector<32x64xf32>
    %297 = arith.mulf %295, %296 : vector<32x64xf32>
    %298 = vector.broadcast %277 : vector<1x64xf32> to vector<32x64xf32>
    %299 = arith.addf %297, %298 : vector<32x64xf32>
    %c1_163 = arith.constant 1 : index
    %c0_164 = arith.constant 0 : index
    %c0_165 = arith.constant 0 : index
    %300 = vector.load %arg9[%c1_163, %c0_164, %c0_165] : memref<3x64x192xf32, #tpu.memory_space<vmem>>, vector<1x64x192xf32>
    %301 = vector.shape_cast %300 : vector<1x64x192xf32> to vector<64x192xf32>
    %cst_166 = arith.constant dense<0.000000e+00> : vector<32x192xf32>
    %302 = tpu.matmul %299, %301, %cst_166 {dimension_numbers = #tpu.dot_dimension_numbers<[1], [0], [0], [1], [0, 0, 1, 1], [], []>} : vector<32x64xf32>, vector<64x192xf32>, vector<32x192xf32> -> vector<32x192xf32>
    %c1_167 = arith.constant 1 : index
    %c0_168 = arith.constant 0 : index
    %c0_169 = arith.constant 0 : index
    %303 = vector.load %arg10[%c1_167, %c0_168, %c0_169] : memref<3x1x192xf32, #tpu.memory_space<vmem>>, vector<1x1x192xf32>
    %304 = vector.shape_cast %303 : vector<1x1x192xf32> to vector<1x192xf32>
    %305 = vector.broadcast %304 : vector<1x192xf32> to vector<32x192xf32>
    %306 = arith.addf %302, %305 : vector<32x192xf32>
    %307 = vector.extract_strided_slice %306 {offsets = [0, 0], sizes = [32, 8], strides = [1, 1]} : vector<32x192xf32> to vector<32x8xf32>
    %308 = vector.extract_strided_slice %306 {offsets = [0, 64], sizes = [32, 8], strides = [1, 1]} : vector<32x192xf32> to vector<32x8xf32>
    %309 = vector.extract_strided_slice %306 {offsets = [0, 128], sizes = [32, 8], strides = [1, 1]} : vector<32x192xf32> to vector<32x8xf32>
    %cst_170 = arith.constant dense<0.000000e+00> : vector<32x32xf32>
    %310 = tpu.matmul %307, %308, %cst_170 {dimension_numbers = #tpu.dot_dimension_numbers<[1], [1], [0], [0], [0, 0, 1, 0], [], []>} : vector<32x8xf32>, vector<32x8xf32>, vector<32x32xf32> -> vector<32x32xf32>
    %cst_171 = arith.constant dense<0xFF800000> : vector<32xf32>
    %311 = vector.multi_reduction <maximumf>, %310, %cst_171 [1] : vector<32x32xf32> to vector<32xf32>
    %312 = vector.shape_cast %311 : vector<32xf32> to vector<32x1xf32>
    %313 = vector.broadcast %312 : vector<32x1xf32> to vector<32x32xf32>
    %314 = arith.subf %310, %313 : vector<32x32xf32>
    %315 = math.exp %314 : vector<32x32xf32>
    %cst_172 = arith.constant dense<0.000000e+00> : vector<32xf32>
    %316 = vector.multi_reduction <add>, %315, %cst_172 [1] : vector<32x32xf32> to vector<32xf32>
    %317 = vector.shape_cast %316 : vector<32xf32> to vector<32x1xf32>
    %318 = tpu.reciprocal %317 {approx = true} : vector<32x1xf32> -> vector<32x1xf32>
    %319 = vector.broadcast %318 : vector<32x1xf32> to vector<32x32xf32>
    %320 = arith.mulf %315, %319 : vector<32x32xf32>
    %cst_173 = arith.constant dense<0.000000e+00> : vector<32x8xf32>
    %321 = tpu.matmul %320, %309, %cst_173 {dimension_numbers = #tpu.dot_dimension_numbers<[1], [0], [0], [1], [0, 0, 1, 1], [], []>} : vector<32x32xf32>, vector<32x8xf32>, vector<32x8xf32> -> vector<32x8xf32>
    %322 = vector.extract_strided_slice %306 {offsets = [0, 8], sizes = [32, 8], strides = [1, 1]} : vector<32x192xf32> to vector<32x8xf32>
    %323 = vector.extract_strided_slice %306 {offsets = [0, 72], sizes = [32, 8], strides = [1, 1]} : vector<32x192xf32> to vector<32x8xf32>
    %324 = vector.extract_strided_slice %306 {offsets = [0, 136], sizes = [32, 8], strides = [1, 1]} : vector<32x192xf32> to vector<32x8xf32>
    %cst_174 = arith.constant dense<0.000000e+00> : vector<32x32xf32>
    %325 = tpu.matmul %322, %323, %cst_174 {dimension_numbers = #tpu.dot_dimension_numbers<[1], [1], [0], [0], [0, 0, 1, 0], [], []>} : vector<32x8xf32>, vector<32x8xf32>, vector<32x32xf32> -> vector<32x32xf32>
    %cst_175 = arith.constant dense<0xFF800000> : vector<32xf32>
    %326 = vector.multi_reduction <maximumf>, %325, %cst_175 [1] : vector<32x32xf32> to vector<32xf32>
    %327 = vector.shape_cast %326 : vector<32xf32> to vector<32x1xf32>
    %328 = vector.broadcast %327 : vector<32x1xf32> to vector<32x32xf32>
    %329 = arith.subf %325, %328 : vector<32x32xf32>
    %330 = math.exp %329 : vector<32x32xf32>
    %cst_176 = arith.constant dense<0.000000e+00> : vector<32xf32>
    %331 = vector.multi_reduction <add>, %330, %cst_176 [1] : vector<32x32xf32> to vector<32xf32>
    %332 = vector.shape_cast %331 : vector<32xf32> to vector<32x1xf32>
    %333 = tpu.reciprocal %332 {approx = true} : vector<32x1xf32> -> vector<32x1xf32>
    %334 = vector.broadcast %333 : vector<32x1xf32> to vector<32x32xf32>
    %335 = arith.mulf %330, %334 : vector<32x32xf32>
    %cst_177 = arith.constant dense<0.000000e+00> : vector<32x8xf32>
    %336 = tpu.matmul %335, %324, %cst_177 {dimension_numbers = #tpu.dot_dimension_numbers<[1], [0], [0], [1], [0, 0, 1, 1], [], []>} : vector<32x32xf32>, vector<32x8xf32>, vector<32x8xf32> -> vector<32x8xf32>
    %337 = vector.extract_strided_slice %306 {offsets = [0, 16], sizes = [32, 8], strides = [1, 1]} : vector<32x192xf32> to vector<32x8xf32>
    %338 = vector.extract_strided_slice %306 {offsets = [0, 80], sizes = [32, 8], strides = [1, 1]} : vector<32x192xf32> to vector<32x8xf32>
    %339 = vector.extract_strided_slice %306 {offsets = [0, 144], sizes = [32, 8], strides = [1, 1]} : vector<32x192xf32> to vector<32x8xf32>
    %cst_178 = arith.constant dense<0.000000e+00> : vector<32x32xf32>
    %340 = tpu.matmul %337, %338, %cst_178 {dimension_numbers = #tpu.dot_dimension_numbers<[1], [1], [0], [0], [0, 0, 1, 0], [], []>} : vector<32x8xf32>, vector<32x8xf32>, vector<32x32xf32> -> vector<32x32xf32>
    %cst_179 = arith.constant dense<0xFF800000> : vector<32xf32>
    %341 = vector.multi_reduction <maximumf>, %340, %cst_179 [1] : vector<32x32xf32> to vector<32xf32>
    %342 = vector.shape_cast %341 : vector<32xf32> to vector<32x1xf32>
    %343 = vector.broadcast %342 : vector<32x1xf32> to vector<32x32xf32>
    %344 = arith.subf %340, %343 : vector<32x32xf32>
    %345 = math.exp %344 : vector<32x32xf32>
    %cst_180 = arith.constant dense<0.000000e+00> : vector<32xf32>
    %346 = vector.multi_reduction <add>, %345, %cst_180 [1] : vector<32x32xf32> to vector<32xf32>
    %347 = vector.shape_cast %346 : vector<32xf32> to vector<32x1xf32>
    %348 = tpu.reciprocal %347 {approx = true} : vector<32x1xf32> -> vector<32x1xf32>
    %349 = vector.broadcast %348 : vector<32x1xf32> to vector<32x32xf32>
    %350 = arith.mulf %345, %349 : vector<32x32xf32>
    %cst_181 = arith.constant dense<0.000000e+00> : vector<32x8xf32>
    %351 = tpu.matmul %350, %339, %cst_181 {dimension_numbers = #tpu.dot_dimension_numbers<[1], [0], [0], [1], [0, 0, 1, 1], [], []>} : vector<32x32xf32>, vector<32x8xf32>, vector<32x8xf32> -> vector<32x8xf32>
    %352 = vector.extract_strided_slice %306 {offsets = [0, 24], sizes = [32, 8], strides = [1, 1]} : vector<32x192xf32> to vector<32x8xf32>
    %353 = vector.extract_strided_slice %306 {offsets = [0, 88], sizes = [32, 8], strides = [1, 1]} : vector<32x192xf32> to vector<32x8xf32>
    %354 = vector.extract_strided_slice %306 {offsets = [0, 152], sizes = [32, 8], strides = [1, 1]} : vector<32x192xf32> to vector<32x8xf32>
    %cst_182 = arith.constant dense<0.000000e+00> : vector<32x32xf32>
    %355 = tpu.matmul %352, %353, %cst_182 {dimension_numbers = #tpu.dot_dimension_numbers<[1], [1], [0], [0], [0, 0, 1, 0], [], []>} : vector<32x8xf32>, vector<32x8xf32>, vector<32x32xf32> -> vector<32x32xf32>
    %cst_183 = arith.constant dense<0xFF800000> : vector<32xf32>
    %356 = vector.multi_reduction <maximumf>, %355, %cst_183 [1] : vector<32x32xf32> to vector<32xf32>
    %357 = vector.shape_cast %356 : vector<32xf32> to vector<32x1xf32>
    %358 = vector.broadcast %357 : vector<32x1xf32> to vector<32x32xf32>
    %359 = arith.subf %355, %358 : vector<32x32xf32>
    %360 = math.exp %359 : vector<32x32xf32>
    %cst_184 = arith.constant dense<0.000000e+00> : vector<32xf32>
    %361 = vector.multi_reduction <add>, %360, %cst_184 [1] : vector<32x32xf32> to vector<32xf32>
    %362 = vector.shape_cast %361 : vector<32xf32> to vector<32x1xf32>
    %363 = tpu.reciprocal %362 {approx = true} : vector<32x1xf32> -> vector<32x1xf32>
    %364 = vector.broadcast %363 : vector<32x1xf32> to vector<32x32xf32>
    %365 = arith.mulf %360, %364 : vector<32x32xf32>
    %cst_185 = arith.constant dense<0.000000e+00> : vector<32x8xf32>
    %366 = tpu.matmul %365, %354, %cst_185 {dimension_numbers = #tpu.dot_dimension_numbers<[1], [0], [0], [1], [0, 0, 1, 1], [], []>} : vector<32x32xf32>, vector<32x8xf32>, vector<32x8xf32> -> vector<32x8xf32>
    %367 = vector.extract_strided_slice %306 {offsets = [0, 32], sizes = [32, 8], strides = [1, 1]} : vector<32x192xf32> to vector<32x8xf32>
    %368 = vector.extract_strided_slice %306 {offsets = [0, 96], sizes = [32, 8], strides = [1, 1]} : vector<32x192xf32> to vector<32x8xf32>
    %369 = vector.extract_strided_slice %306 {offsets = [0, 160], sizes = [32, 8], strides = [1, 1]} : vector<32x192xf32> to vector<32x8xf32>
    %cst_186 = arith.constant dense<0.000000e+00> : vector<32x32xf32>
    %370 = tpu.matmul %367, %368, %cst_186 {dimension_numbers = #tpu.dot_dimension_numbers<[1], [1], [0], [0], [0, 0, 1, 0], [], []>} : vector<32x8xf32>, vector<32x8xf32>, vector<32x32xf32> -> vector<32x32xf32>
    %cst_187 = arith.constant dense<0xFF800000> : vector<32xf32>
    %371 = vector.multi_reduction <maximumf>, %370, %cst_187 [1] : vector<32x32xf32> to vector<32xf32>
    %372 = vector.shape_cast %371 : vector<32xf32> to vector<32x1xf32>
    %373 = vector.broadcast %372 : vector<32x1xf32> to vector<32x32xf32>
    %374 = arith.subf %370, %373 : vector<32x32xf32>
    %375 = math.exp %374 : vector<32x32xf32>
    %cst_188 = arith.constant dense<0.000000e+00> : vector<32xf32>
    %376 = vector.multi_reduction <add>, %375, %cst_188 [1] : vector<32x32xf32> to vector<32xf32>
    %377 = vector.shape_cast %376 : vector<32xf32> to vector<32x1xf32>
    %378 = tpu.reciprocal %377 {approx = true} : vector<32x1xf32> -> vector<32x1xf32>
    %379 = vector.broadcast %378 : vector<32x1xf32> to vector<32x32xf32>
    %380 = arith.mulf %375, %379 : vector<32x32xf32>
    %cst_189 = arith.constant dense<0.000000e+00> : vector<32x8xf32>
    %381 = tpu.matmul %380, %369, %cst_189 {dimension_numbers = #tpu.dot_dimension_numbers<[1], [0], [0], [1], [0, 0, 1, 1], [], []>} : vector<32x32xf32>, vector<32x8xf32>, vector<32x8xf32> -> vector<32x8xf32>
    %382 = vector.extract_strided_slice %306 {offsets = [0, 40], sizes = [32, 8], strides = [1, 1]} : vector<32x192xf32> to vector<32x8xf32>
    %383 = vector.extract_strided_slice %306 {offsets = [0, 104], sizes = [32, 8], strides = [1, 1]} : vector<32x192xf32> to vector<32x8xf32>
    %384 = vector.extract_strided_slice %306 {offsets = [0, 168], sizes = [32, 8], strides = [1, 1]} : vector<32x192xf32> to vector<32x8xf32>
    %cst_190 = arith.constant dense<0.000000e+00> : vector<32x32xf32>
    %385 = tpu.matmul %382, %383, %cst_190 {dimension_numbers = #tpu.dot_dimension_numbers<[1], [1], [0], [0], [0, 0, 1, 0], [], []>} : vector<32x8xf32>, vector<32x8xf32>, vector<32x32xf32> -> vector<32x32xf32>
    %cst_191 = arith.constant dense<0xFF800000> : vector<32xf32>
    %386 = vector.multi_reduction <maximumf>, %385, %cst_191 [1] : vector<32x32xf32> to vector<32xf32>
    %387 = vector.shape_cast %386 : vector<32xf32> to vector<32x1xf32>
    %388 = vector.broadcast %387 : vector<32x1xf32> to vector<32x32xf32>
    %389 = arith.subf %385, %388 : vector<32x32xf32>
    %390 = math.exp %389 : vector<32x32xf32>
    %cst_192 = arith.constant dense<0.000000e+00> : vector<32xf32>
    %391 = vector.multi_reduction <add>, %390, %cst_192 [1] : vector<32x32xf32> to vector<32xf32>
    %392 = vector.shape_cast %391 : vector<32xf32> to vector<32x1xf32>
    %393 = tpu.reciprocal %392 {approx = true} : vector<32x1xf32> -> vector<32x1xf32>
    %394 = vector.broadcast %393 : vector<32x1xf32> to vector<32x32xf32>
    %395 = arith.mulf %390, %394 : vector<32x32xf32>
    %cst_193 = arith.constant dense<0.000000e+00> : vector<32x8xf32>
    %396 = tpu.matmul %395, %384, %cst_193 {dimension_numbers = #tpu.dot_dimension_numbers<[1], [0], [0], [1], [0, 0, 1, 1], [], []>} : vector<32x32xf32>, vector<32x8xf32>, vector<32x8xf32> -> vector<32x8xf32>
    %397 = vector.extract_strided_slice %306 {offsets = [0, 48], sizes = [32, 8], strides = [1, 1]} : vector<32x192xf32> to vector<32x8xf32>
    %398 = vector.extract_strided_slice %306 {offsets = [0, 112], sizes = [32, 8], strides = [1, 1]} : vector<32x192xf32> to vector<32x8xf32>
    %399 = vector.extract_strided_slice %306 {offsets = [0, 176], sizes = [32, 8], strides = [1, 1]} : vector<32x192xf32> to vector<32x8xf32>
    %cst_194 = arith.constant dense<0.000000e+00> : vector<32x32xf32>
    %400 = tpu.matmul %397, %398, %cst_194 {dimension_numbers = #tpu.dot_dimension_numbers<[1], [1], [0], [0], [0, 0, 1, 0], [], []>} : vector<32x8xf32>, vector<32x8xf32>, vector<32x32xf32> -> vector<32x32xf32>
    %cst_195 = arith.constant dense<0xFF800000> : vector<32xf32>
    %401 = vector.multi_reduction <maximumf>, %400, %cst_195 [1] : vector<32x32xf32> to vector<32xf32>
    %402 = vector.shape_cast %401 : vector<32xf32> to vector<32x1xf32>
    %403 = vector.broadcast %402 : vector<32x1xf32> to vector<32x32xf32>
    %404 = arith.subf %400, %403 : vector<32x32xf32>
    %405 = math.exp %404 : vector<32x32xf32>
    %cst_196 = arith.constant dense<0.000000e+00> : vector<32xf32>
    %406 = vector.multi_reduction <add>, %405, %cst_196 [1] : vector<32x32xf32> to vector<32xf32>
    %407 = vector.shape_cast %406 : vector<32xf32> to vector<32x1xf32>
    %408 = tpu.reciprocal %407 {approx = true} : vector<32x1xf32> -> vector<32x1xf32>
    %409 = vector.broadcast %408 : vector<32x1xf32> to vector<32x32xf32>
    %410 = arith.mulf %405, %409 : vector<32x32xf32>
    %cst_197 = arith.constant dense<0.000000e+00> : vector<32x8xf32>
    %411 = tpu.matmul %410, %399, %cst_197 {dimension_numbers = #tpu.dot_dimension_numbers<[1], [0], [0], [1], [0, 0, 1, 1], [], []>} : vector<32x32xf32>, vector<32x8xf32>, vector<32x8xf32> -> vector<32x8xf32>
    %412 = vector.extract_strided_slice %306 {offsets = [0, 56], sizes = [32, 8], strides = [1, 1]} : vector<32x192xf32> to vector<32x8xf32>
    %413 = vector.extract_strided_slice %306 {offsets = [0, 120], sizes = [32, 8], strides = [1, 1]} : vector<32x192xf32> to vector<32x8xf32>
    %414 = vector.extract_strided_slice %306 {offsets = [0, 184], sizes = [32, 8], strides = [1, 1]} : vector<32x192xf32> to vector<32x8xf32>
    %cst_198 = arith.constant dense<0.000000e+00> : vector<32x32xf32>
    %415 = tpu.matmul %412, %413, %cst_198 {dimension_numbers = #tpu.dot_dimension_numbers<[1], [1], [0], [0], [0, 0, 1, 0], [], []>} : vector<32x8xf32>, vector<32x8xf32>, vector<32x32xf32> -> vector<32x32xf32>
    %cst_199 = arith.constant dense<0xFF800000> : vector<32xf32>
    %416 = vector.multi_reduction <maximumf>, %415, %cst_199 [1] : vector<32x32xf32> to vector<32xf32>
    %417 = vector.shape_cast %416 : vector<32xf32> to vector<32x1xf32>
    %418 = vector.broadcast %417 : vector<32x1xf32> to vector<32x32xf32>
    %419 = arith.subf %415, %418 : vector<32x32xf32>
    %420 = math.exp %419 : vector<32x32xf32>
    %cst_200 = arith.constant dense<0.000000e+00> : vector<32xf32>
    %421 = vector.multi_reduction <add>, %420, %cst_200 [1] : vector<32x32xf32> to vector<32xf32>
    %422 = vector.shape_cast %421 : vector<32xf32> to vector<32x1xf32>
    %423 = tpu.reciprocal %422 {approx = true} : vector<32x1xf32> -> vector<32x1xf32>
    %424 = vector.broadcast %423 : vector<32x1xf32> to vector<32x32xf32>
    %425 = arith.mulf %420, %424 : vector<32x32xf32>
    %cst_201 = arith.constant dense<0.000000e+00> : vector<32x8xf32>
    %426 = tpu.matmul %425, %414, %cst_201 {dimension_numbers = #tpu.dot_dimension_numbers<[1], [0], [0], [1], [0, 0, 1, 1], [], []>} : vector<32x32xf32>, vector<32x8xf32>, vector<32x8xf32> -> vector<32x8xf32>
    %427 = tpu.concatenate %321, %336, %351, %366, %381, %396, %411, %426 in 1 : vector<32x8xf32>, vector<32x8xf32>, vector<32x8xf32>, vector<32x8xf32>, vector<32x8xf32>, vector<32x8xf32>, vector<32x8xf32>, vector<32x8xf32> -> vector<32x64xf32>
    %c1_202 = arith.constant 1 : index
    %c0_203 = arith.constant 0 : index
    %c0_204 = arith.constant 0 : index
    %428 = vector.load %arg11[%c1_202, %c0_203, %c0_204] : memref<3x64x64xf32, #tpu.memory_space<vmem>>, vector<1x64x64xf32>
    %429 = vector.shape_cast %428 : vector<1x64x64xf32> to vector<64x64xf32>
    %cst_205 = arith.constant dense<0.000000e+00> : vector<32x64xf32>
    %430 = tpu.matmul %427, %429, %cst_205 {dimension_numbers = #tpu.dot_dimension_numbers<[1], [0], [0], [1], [0, 0, 1, 1], [], []>} : vector<32x64xf32>, vector<64x64xf32>, vector<32x64xf32> -> vector<32x64xf32>
    %c1_206 = arith.constant 1 : index
    %c0_207 = arith.constant 0 : index
    %c0_208 = arith.constant 0 : index
    %431 = vector.load %arg12[%c1_206, %c0_207, %c0_208] : memref<3x1x64xf32, #tpu.memory_space<vmem>>, vector<1x1x64xf32>
    %432 = vector.shape_cast %431 : vector<1x1x64xf32> to vector<1x64xf32>
    %433 = vector.broadcast %432 : vector<1x64xf32> to vector<32x64xf32>
    %434 = arith.addf %430, %433 : vector<32x64xf32>
    %435 = arith.addf %299, %434 : vector<32x64xf32>
    %c1_209 = arith.constant 1 : index
    %c0_210 = arith.constant 0 : index
    %c0_211 = arith.constant 0 : index
    %436 = vector.load %arg13[%c1_209, %c0_210, %c0_211] : memref<3x1x64xf32, #tpu.memory_space<vmem>>, vector<1x1x64xf32>
    %437 = vector.shape_cast %436 : vector<1x1x64xf32> to vector<1x64xf32>
    %c1_212 = arith.constant 1 : index
    %c0_213 = arith.constant 0 : index
    %c0_214 = arith.constant 0 : index
    %438 = vector.load %arg14[%c1_212, %c0_213, %c0_214] : memref<3x1x64xf32, #tpu.memory_space<vmem>>, vector<1x1x64xf32>
    %439 = vector.shape_cast %438 : vector<1x1x64xf32> to vector<1x64xf32>
    %cst_215 = arith.constant dense<0.000000e+00> : vector<32xf32>
    %440 = vector.multi_reduction <add>, %435, %cst_215 [1] : vector<32x64xf32> to vector<32xf32>
    %441 = vector.shape_cast %440 : vector<32xf32> to vector<32x1xf32>
    %cst_216 = arith.constant 6.400000e+01 : f32
    %442 = vector.broadcast %cst_216 : f32 to vector<32x1xf32>
    %443 = arith.divf %441, %442 : vector<32x1xf32>
    %444 = vector.broadcast %443 : vector<32x1xf32> to vector<32x64xf32>
    %445 = arith.subf %435, %444 : vector<32x64xf32>
    %446 = arith.mulf %445, %445 : vector<32x64xf32>
    %cst_217 = arith.constant dense<0.000000e+00> : vector<32xf32>
    %447 = vector.multi_reduction <add>, %446, %cst_217 [1] : vector<32x64xf32> to vector<32xf32>
    %448 = vector.shape_cast %447 : vector<32xf32> to vector<32x1xf32>
    %cst_218 = arith.constant 6.400000e+01 : f32
    %449 = vector.broadcast %cst_218 : f32 to vector<32x1xf32>
    %450 = arith.divf %448, %449 : vector<32x1xf32>
    %451 = vector.broadcast %443 : vector<32x1xf32> to vector<32x64xf32>
    %452 = arith.subf %435, %451 : vector<32x64xf32>
    %cst_219 = arith.constant 9.99999974E-6 : f32
    %453 = vector.broadcast %cst_219 : f32 to vector<32x1xf32>
    %454 = arith.addf %450, %453 : vector<32x1xf32>
    %455 = math.rsqrt %454 : vector<32x1xf32>
    %456 = vector.broadcast %455 : vector<32x1xf32> to vector<32x64xf32>
    %457 = arith.mulf %452, %456 : vector<32x64xf32>
    %458 = vector.broadcast %437 : vector<1x64xf32> to vector<32x64xf32>
    %459 = arith.mulf %457, %458 : vector<32x64xf32>
    %460 = vector.broadcast %439 : vector<1x64xf32> to vector<32x64xf32>
    %461 = arith.addf %459, %460 : vector<32x64xf32>
    %c1_220 = arith.constant 1 : index
    %c0_221 = arith.constant 0 : index
    %c0_222 = arith.constant 0 : index
    %462 = vector.load %arg15[%c1_220, %c0_221, %c0_222] : memref<3x64x256xf32, #tpu.memory_space<vmem>>, vector<1x64x256xf32>
    %463 = vector.shape_cast %462 : vector<1x64x256xf32> to vector<64x256xf32>
    %cst_223 = arith.constant dense<0.000000e+00> : vector<32x256xf32>
    %464 = tpu.matmul %461, %463, %cst_223 {dimension_numbers = #tpu.dot_dimension_numbers<[1], [0], [0], [1], [0, 0, 1, 1], [], []>} : vector<32x64xf32>, vector<64x256xf32>, vector<32x256xf32> -> vector<32x256xf32>
    %c1_224 = arith.constant 1 : index
    %c0_225 = arith.constant 0 : index
    %c0_226 = arith.constant 0 : index
    %465 = vector.load %arg16[%c1_224, %c0_225, %c0_226] : memref<3x1x256xf32, #tpu.memory_space<vmem>>, vector<1x1x256xf32>
    %466 = vector.shape_cast %465 : vector<1x1x256xf32> to vector<1x256xf32>
    %467 = vector.broadcast %466 : vector<1x256xf32> to vector<32x256xf32>
    %468 = arith.addf %464, %467 : vector<32x256xf32>
    %cst_227 = arith.constant 0.000000e+00 : f32
    %469 = vector.broadcast %cst_227 : f32 to vector<32x256xf32>
    %470 = arith.maximumf %468, %469 : vector<32x256xf32>
    %c1_228 = arith.constant 1 : index
    %c0_229 = arith.constant 0 : index
    %c0_230 = arith.constant 0 : index
    %471 = vector.load %arg17[%c1_228, %c0_229, %c0_230] : memref<3x256x64xf32, #tpu.memory_space<vmem>>, vector<1x256x64xf32>
    %472 = vector.shape_cast %471 : vector<1x256x64xf32> to vector<256x64xf32>
    %cst_231 = arith.constant dense<0.000000e+00> : vector<32x64xf32>
    %473 = tpu.matmul %470, %472, %cst_231 {dimension_numbers = #tpu.dot_dimension_numbers<[1], [0], [0], [1], [0, 0, 1, 1], [], []>} : vector<32x256xf32>, vector<256x64xf32>, vector<32x64xf32> -> vector<32x64xf32>
    %c1_232 = arith.constant 1 : index
    %c0_233 = arith.constant 0 : index
    %c0_234 = arith.constant 0 : index
    %474 = vector.load %arg18[%c1_232, %c0_233, %c0_234] : memref<3x1x64xf32, #tpu.memory_space<vmem>>, vector<1x1x64xf32>
    %475 = vector.shape_cast %474 : vector<1x1x64xf32> to vector<1x64xf32>
    %476 = vector.broadcast %475 : vector<1x64xf32> to vector<32x64xf32>
    %477 = arith.addf %473, %476 : vector<32x64xf32>
    %478 = arith.addf %461, %477 : vector<32x64xf32>
    %c1_235 = arith.constant 1 : index
    %c0_236 = arith.constant 0 : index
    %c0_237 = arith.constant 0 : index
    %479 = vector.load %arg19[%c1_235, %c0_236, %c0_237] : memref<3x1x64xf32, #tpu.memory_space<vmem>>, vector<1x1x64xf32>
    %480 = vector.shape_cast %479 : vector<1x1x64xf32> to vector<1x64xf32>
    %c1_238 = arith.constant 1 : index
    %c0_239 = arith.constant 0 : index
    %c0_240 = arith.constant 0 : index
    %481 = vector.load %arg20[%c1_238, %c0_239, %c0_240] : memref<3x1x64xf32, #tpu.memory_space<vmem>>, vector<1x1x64xf32>
    %482 = vector.shape_cast %481 : vector<1x1x64xf32> to vector<1x64xf32>
    %cst_241 = arith.constant dense<0.000000e+00> : vector<32xf32>
    %483 = vector.multi_reduction <add>, %478, %cst_241 [1] : vector<32x64xf32> to vector<32xf32>
    %484 = vector.shape_cast %483 : vector<32xf32> to vector<32x1xf32>
    %cst_242 = arith.constant 6.400000e+01 : f32
    %485 = vector.broadcast %cst_242 : f32 to vector<32x1xf32>
    %486 = arith.divf %484, %485 : vector<32x1xf32>
    %487 = vector.broadcast %486 : vector<32x1xf32> to vector<32x64xf32>
    %488 = arith.subf %478, %487 : vector<32x64xf32>
    %489 = arith.mulf %488, %488 : vector<32x64xf32>
    %cst_243 = arith.constant dense<0.000000e+00> : vector<32xf32>
    %490 = vector.multi_reduction <add>, %489, %cst_243 [1] : vector<32x64xf32> to vector<32xf32>
    %491 = vector.shape_cast %490 : vector<32xf32> to vector<32x1xf32>
    %cst_244 = arith.constant 6.400000e+01 : f32
    %492 = vector.broadcast %cst_244 : f32 to vector<32x1xf32>
    %493 = arith.divf %491, %492 : vector<32x1xf32>
    %494 = vector.broadcast %486 : vector<32x1xf32> to vector<32x64xf32>
    %495 = arith.subf %478, %494 : vector<32x64xf32>
    %cst_245 = arith.constant 9.99999974E-6 : f32
    %496 = vector.broadcast %cst_245 : f32 to vector<32x1xf32>
    %497 = arith.addf %493, %496 : vector<32x1xf32>
    %498 = math.rsqrt %497 : vector<32x1xf32>
    %499 = vector.broadcast %498 : vector<32x1xf32> to vector<32x64xf32>
    %500 = arith.mulf %495, %499 : vector<32x64xf32>
    %501 = vector.broadcast %480 : vector<1x64xf32> to vector<32x64xf32>
    %502 = arith.mulf %500, %501 : vector<32x64xf32>
    %503 = vector.broadcast %482 : vector<1x64xf32> to vector<32x64xf32>
    %504 = arith.addf %502, %503 : vector<32x64xf32>
    %c2_246 = arith.constant 2 : index
    %c0_247 = arith.constant 0 : index
    %c0_248 = arith.constant 0 : index
    %505 = vector.load %arg9[%c2_246, %c0_247, %c0_248] : memref<3x64x192xf32, #tpu.memory_space<vmem>>, vector<1x64x192xf32>
    %506 = vector.shape_cast %505 : vector<1x64x192xf32> to vector<64x192xf32>
    %cst_249 = arith.constant dense<0.000000e+00> : vector<32x192xf32>
    %507 = tpu.matmul %504, %506, %cst_249 {dimension_numbers = #tpu.dot_dimension_numbers<[1], [0], [0], [1], [0, 0, 1, 1], [], []>} : vector<32x64xf32>, vector<64x192xf32>, vector<32x192xf32> -> vector<32x192xf32>
    %c2_250 = arith.constant 2 : index
    %c0_251 = arith.constant 0 : index
    %c0_252 = arith.constant 0 : index
    %508 = vector.load %arg10[%c2_250, %c0_251, %c0_252] : memref<3x1x192xf32, #tpu.memory_space<vmem>>, vector<1x1x192xf32>
    %509 = vector.shape_cast %508 : vector<1x1x192xf32> to vector<1x192xf32>
    %510 = vector.broadcast %509 : vector<1x192xf32> to vector<32x192xf32>
    %511 = arith.addf %507, %510 : vector<32x192xf32>
    %512 = vector.extract_strided_slice %511 {offsets = [0, 0], sizes = [32, 8], strides = [1, 1]} : vector<32x192xf32> to vector<32x8xf32>
    %513 = vector.extract_strided_slice %511 {offsets = [0, 64], sizes = [32, 8], strides = [1, 1]} : vector<32x192xf32> to vector<32x8xf32>
    %514 = vector.extract_strided_slice %511 {offsets = [0, 128], sizes = [32, 8], strides = [1, 1]} : vector<32x192xf32> to vector<32x8xf32>
    %cst_253 = arith.constant dense<0.000000e+00> : vector<32x32xf32>
    %515 = tpu.matmul %512, %513, %cst_253 {dimension_numbers = #tpu.dot_dimension_numbers<[1], [1], [0], [0], [0, 0, 1, 0], [], []>} : vector<32x8xf32>, vector<32x8xf32>, vector<32x32xf32> -> vector<32x32xf32>
    %cst_254 = arith.constant dense<0xFF800000> : vector<32xf32>
    %516 = vector.multi_reduction <maximumf>, %515, %cst_254 [1] : vector<32x32xf32> to vector<32xf32>
    %517 = vector.shape_cast %516 : vector<32xf32> to vector<32x1xf32>
    %518 = vector.broadcast %517 : vector<32x1xf32> to vector<32x32xf32>
    %519 = arith.subf %515, %518 : vector<32x32xf32>
    %520 = math.exp %519 : vector<32x32xf32>
    %cst_255 = arith.constant dense<0.000000e+00> : vector<32xf32>
    %521 = vector.multi_reduction <add>, %520, %cst_255 [1] : vector<32x32xf32> to vector<32xf32>
    %522 = vector.shape_cast %521 : vector<32xf32> to vector<32x1xf32>
    %523 = tpu.reciprocal %522 {approx = true} : vector<32x1xf32> -> vector<32x1xf32>
    %524 = vector.broadcast %523 : vector<32x1xf32> to vector<32x32xf32>
    %525 = arith.mulf %520, %524 : vector<32x32xf32>
    %cst_256 = arith.constant dense<0.000000e+00> : vector<32x8xf32>
    %526 = tpu.matmul %525, %514, %cst_256 {dimension_numbers = #tpu.dot_dimension_numbers<[1], [0], [0], [1], [0, 0, 1, 1], [], []>} : vector<32x32xf32>, vector<32x8xf32>, vector<32x8xf32> -> vector<32x8xf32>
    %527 = vector.extract_strided_slice %511 {offsets = [0, 8], sizes = [32, 8], strides = [1, 1]} : vector<32x192xf32> to vector<32x8xf32>
    %528 = vector.extract_strided_slice %511 {offsets = [0, 72], sizes = [32, 8], strides = [1, 1]} : vector<32x192xf32> to vector<32x8xf32>
    %529 = vector.extract_strided_slice %511 {offsets = [0, 136], sizes = [32, 8], strides = [1, 1]} : vector<32x192xf32> to vector<32x8xf32>
    %cst_257 = arith.constant dense<0.000000e+00> : vector<32x32xf32>
    %530 = tpu.matmul %527, %528, %cst_257 {dimension_numbers = #tpu.dot_dimension_numbers<[1], [1], [0], [0], [0, 0, 1, 0], [], []>} : vector<32x8xf32>, vector<32x8xf32>, vector<32x32xf32> -> vector<32x32xf32>
    %cst_258 = arith.constant dense<0xFF800000> : vector<32xf32>
    %531 = vector.multi_reduction <maximumf>, %530, %cst_258 [1] : vector<32x32xf32> to vector<32xf32>
    %532 = vector.shape_cast %531 : vector<32xf32> to vector<32x1xf32>
    %533 = vector.broadcast %532 : vector<32x1xf32> to vector<32x32xf32>
    %534 = arith.subf %530, %533 : vector<32x32xf32>
    %535 = math.exp %534 : vector<32x32xf32>
    %cst_259 = arith.constant dense<0.000000e+00> : vector<32xf32>
    %536 = vector.multi_reduction <add>, %535, %cst_259 [1] : vector<32x32xf32> to vector<32xf32>
    %537 = vector.shape_cast %536 : vector<32xf32> to vector<32x1xf32>
    %538 = tpu.reciprocal %537 {approx = true} : vector<32x1xf32> -> vector<32x1xf32>
    %539 = vector.broadcast %538 : vector<32x1xf32> to vector<32x32xf32>
    %540 = arith.mulf %535, %539 : vector<32x32xf32>
    %cst_260 = arith.constant dense<0.000000e+00> : vector<32x8xf32>
    %541 = tpu.matmul %540, %529, %cst_260 {dimension_numbers = #tpu.dot_dimension_numbers<[1], [0], [0], [1], [0, 0, 1, 1], [], []>} : vector<32x32xf32>, vector<32x8xf32>, vector<32x8xf32> -> vector<32x8xf32>
    %542 = vector.extract_strided_slice %511 {offsets = [0, 16], sizes = [32, 8], strides = [1, 1]} : vector<32x192xf32> to vector<32x8xf32>
    %543 = vector.extract_strided_slice %511 {offsets = [0, 80], sizes = [32, 8], strides = [1, 1]} : vector<32x192xf32> to vector<32x8xf32>
    %544 = vector.extract_strided_slice %511 {offsets = [0, 144], sizes = [32, 8], strides = [1, 1]} : vector<32x192xf32> to vector<32x8xf32>
    %cst_261 = arith.constant dense<0.000000e+00> : vector<32x32xf32>
    %545 = tpu.matmul %542, %543, %cst_261 {dimension_numbers = #tpu.dot_dimension_numbers<[1], [1], [0], [0], [0, 0, 1, 0], [], []>} : vector<32x8xf32>, vector<32x8xf32>, vector<32x32xf32> -> vector<32x32xf32>
    %cst_262 = arith.constant dense<0xFF800000> : vector<32xf32>
    %546 = vector.multi_reduction <maximumf>, %545, %cst_262 [1] : vector<32x32xf32> to vector<32xf32>
    %547 = vector.shape_cast %546 : vector<32xf32> to vector<32x1xf32>
    %548 = vector.broadcast %547 : vector<32x1xf32> to vector<32x32xf32>
    %549 = arith.subf %545, %548 : vector<32x32xf32>
    %550 = math.exp %549 : vector<32x32xf32>
    %cst_263 = arith.constant dense<0.000000e+00> : vector<32xf32>
    %551 = vector.multi_reduction <add>, %550, %cst_263 [1] : vector<32x32xf32> to vector<32xf32>
    %552 = vector.shape_cast %551 : vector<32xf32> to vector<32x1xf32>
    %553 = tpu.reciprocal %552 {approx = true} : vector<32x1xf32> -> vector<32x1xf32>
    %554 = vector.broadcast %553 : vector<32x1xf32> to vector<32x32xf32>
    %555 = arith.mulf %550, %554 : vector<32x32xf32>
    %cst_264 = arith.constant dense<0.000000e+00> : vector<32x8xf32>
    %556 = tpu.matmul %555, %544, %cst_264 {dimension_numbers = #tpu.dot_dimension_numbers<[1], [0], [0], [1], [0, 0, 1, 1], [], []>} : vector<32x32xf32>, vector<32x8xf32>, vector<32x8xf32> -> vector<32x8xf32>
    %557 = vector.extract_strided_slice %511 {offsets = [0, 24], sizes = [32, 8], strides = [1, 1]} : vector<32x192xf32> to vector<32x8xf32>
    %558 = vector.extract_strided_slice %511 {offsets = [0, 88], sizes = [32, 8], strides = [1, 1]} : vector<32x192xf32> to vector<32x8xf32>
    %559 = vector.extract_strided_slice %511 {offsets = [0, 152], sizes = [32, 8], strides = [1, 1]} : vector<32x192xf32> to vector<32x8xf32>
    %cst_265 = arith.constant dense<0.000000e+00> : vector<32x32xf32>
    %560 = tpu.matmul %557, %558, %cst_265 {dimension_numbers = #tpu.dot_dimension_numbers<[1], [1], [0], [0], [0, 0, 1, 0], [], []>} : vector<32x8xf32>, vector<32x8xf32>, vector<32x32xf32> -> vector<32x32xf32>
    %cst_266 = arith.constant dense<0xFF800000> : vector<32xf32>
    %561 = vector.multi_reduction <maximumf>, %560, %cst_266 [1] : vector<32x32xf32> to vector<32xf32>
    %562 = vector.shape_cast %561 : vector<32xf32> to vector<32x1xf32>
    %563 = vector.broadcast %562 : vector<32x1xf32> to vector<32x32xf32>
    %564 = arith.subf %560, %563 : vector<32x32xf32>
    %565 = math.exp %564 : vector<32x32xf32>
    %cst_267 = arith.constant dense<0.000000e+00> : vector<32xf32>
    %566 = vector.multi_reduction <add>, %565, %cst_267 [1] : vector<32x32xf32> to vector<32xf32>
    %567 = vector.shape_cast %566 : vector<32xf32> to vector<32x1xf32>
    %568 = tpu.reciprocal %567 {approx = true} : vector<32x1xf32> -> vector<32x1xf32>
    %569 = vector.broadcast %568 : vector<32x1xf32> to vector<32x32xf32>
    %570 = arith.mulf %565, %569 : vector<32x32xf32>
    %cst_268 = arith.constant dense<0.000000e+00> : vector<32x8xf32>
    %571 = tpu.matmul %570, %559, %cst_268 {dimension_numbers = #tpu.dot_dimension_numbers<[1], [0], [0], [1], [0, 0, 1, 1], [], []>} : vector<32x32xf32>, vector<32x8xf32>, vector<32x8xf32> -> vector<32x8xf32>
    %572 = vector.extract_strided_slice %511 {offsets = [0, 32], sizes = [32, 8], strides = [1, 1]} : vector<32x192xf32> to vector<32x8xf32>
    %573 = vector.extract_strided_slice %511 {offsets = [0, 96], sizes = [32, 8], strides = [1, 1]} : vector<32x192xf32> to vector<32x8xf32>
    %574 = vector.extract_strided_slice %511 {offsets = [0, 160], sizes = [32, 8], strides = [1, 1]} : vector<32x192xf32> to vector<32x8xf32>
    %cst_269 = arith.constant dense<0.000000e+00> : vector<32x32xf32>
    %575 = tpu.matmul %572, %573, %cst_269 {dimension_numbers = #tpu.dot_dimension_numbers<[1], [1], [0], [0], [0, 0, 1, 0], [], []>} : vector<32x8xf32>, vector<32x8xf32>, vector<32x32xf32> -> vector<32x32xf32>
    %cst_270 = arith.constant dense<0xFF800000> : vector<32xf32>
    %576 = vector.multi_reduction <maximumf>, %575, %cst_270 [1] : vector<32x32xf32> to vector<32xf32>
    %577 = vector.shape_cast %576 : vector<32xf32> to vector<32x1xf32>
    %578 = vector.broadcast %577 : vector<32x1xf32> to vector<32x32xf32>
    %579 = arith.subf %575, %578 : vector<32x32xf32>
    %580 = math.exp %579 : vector<32x32xf32>
    %cst_271 = arith.constant dense<0.000000e+00> : vector<32xf32>
    %581 = vector.multi_reduction <add>, %580, %cst_271 [1] : vector<32x32xf32> to vector<32xf32>
    %582 = vector.shape_cast %581 : vector<32xf32> to vector<32x1xf32>
    %583 = tpu.reciprocal %582 {approx = true} : vector<32x1xf32> -> vector<32x1xf32>
    %584 = vector.broadcast %583 : vector<32x1xf32> to vector<32x32xf32>
    %585 = arith.mulf %580, %584 : vector<32x32xf32>
    %cst_272 = arith.constant dense<0.000000e+00> : vector<32x8xf32>
    %586 = tpu.matmul %585, %574, %cst_272 {dimension_numbers = #tpu.dot_dimension_numbers<[1], [0], [0], [1], [0, 0, 1, 1], [], []>} : vector<32x32xf32>, vector<32x8xf32>, vector<32x8xf32> -> vector<32x8xf32>
    %587 = vector.extract_strided_slice %511 {offsets = [0, 40], sizes = [32, 8], strides = [1, 1]} : vector<32x192xf32> to vector<32x8xf32>
    %588 = vector.extract_strided_slice %511 {offsets = [0, 104], sizes = [32, 8], strides = [1, 1]} : vector<32x192xf32> to vector<32x8xf32>
    %589 = vector.extract_strided_slice %511 {offsets = [0, 168], sizes = [32, 8], strides = [1, 1]} : vector<32x192xf32> to vector<32x8xf32>
    %cst_273 = arith.constant dense<0.000000e+00> : vector<32x32xf32>
    %590 = tpu.matmul %587, %588, %cst_273 {dimension_numbers = #tpu.dot_dimension_numbers<[1], [1], [0], [0], [0, 0, 1, 0], [], []>} : vector<32x8xf32>, vector<32x8xf32>, vector<32x32xf32> -> vector<32x32xf32>
    %cst_274 = arith.constant dense<0xFF800000> : vector<32xf32>
    %591 = vector.multi_reduction <maximumf>, %590, %cst_274 [1] : vector<32x32xf32> to vector<32xf32>
    %592 = vector.shape_cast %591 : vector<32xf32> to vector<32x1xf32>
    %593 = vector.broadcast %592 : vector<32x1xf32> to vector<32x32xf32>
    %594 = arith.subf %590, %593 : vector<32x32xf32>
    %595 = math.exp %594 : vector<32x32xf32>
    %cst_275 = arith.constant dense<0.000000e+00> : vector<32xf32>
    %596 = vector.multi_reduction <add>, %595, %cst_275 [1] : vector<32x32xf32> to vector<32xf32>
    %597 = vector.shape_cast %596 : vector<32xf32> to vector<32x1xf32>
    %598 = tpu.reciprocal %597 {approx = true} : vector<32x1xf32> -> vector<32x1xf32>
    %599 = vector.broadcast %598 : vector<32x1xf32> to vector<32x32xf32>
    %600 = arith.mulf %595, %599 : vector<32x32xf32>
    %cst_276 = arith.constant dense<0.000000e+00> : vector<32x8xf32>
    %601 = tpu.matmul %600, %589, %cst_276 {dimension_numbers = #tpu.dot_dimension_numbers<[1], [0], [0], [1], [0, 0, 1, 1], [], []>} : vector<32x32xf32>, vector<32x8xf32>, vector<32x8xf32> -> vector<32x8xf32>
    %602 = vector.extract_strided_slice %511 {offsets = [0, 48], sizes = [32, 8], strides = [1, 1]} : vector<32x192xf32> to vector<32x8xf32>
    %603 = vector.extract_strided_slice %511 {offsets = [0, 112], sizes = [32, 8], strides = [1, 1]} : vector<32x192xf32> to vector<32x8xf32>
    %604 = vector.extract_strided_slice %511 {offsets = [0, 176], sizes = [32, 8], strides = [1, 1]} : vector<32x192xf32> to vector<32x8xf32>
    %cst_277 = arith.constant dense<0.000000e+00> : vector<32x32xf32>
    %605 = tpu.matmul %602, %603, %cst_277 {dimension_numbers = #tpu.dot_dimension_numbers<[1], [1], [0], [0], [0, 0, 1, 0], [], []>} : vector<32x8xf32>, vector<32x8xf32>, vector<32x32xf32> -> vector<32x32xf32>
    %cst_278 = arith.constant dense<0xFF800000> : vector<32xf32>
    %606 = vector.multi_reduction <maximumf>, %605, %cst_278 [1] : vector<32x32xf32> to vector<32xf32>
    %607 = vector.shape_cast %606 : vector<32xf32> to vector<32x1xf32>
    %608 = vector.broadcast %607 : vector<32x1xf32> to vector<32x32xf32>
    %609 = arith.subf %605, %608 : vector<32x32xf32>
    %610 = math.exp %609 : vector<32x32xf32>
    %cst_279 = arith.constant dense<0.000000e+00> : vector<32xf32>
    %611 = vector.multi_reduction <add>, %610, %cst_279 [1] : vector<32x32xf32> to vector<32xf32>
    %612 = vector.shape_cast %611 : vector<32xf32> to vector<32x1xf32>
    %613 = tpu.reciprocal %612 {approx = true} : vector<32x1xf32> -> vector<32x1xf32>
    %614 = vector.broadcast %613 : vector<32x1xf32> to vector<32x32xf32>
    %615 = arith.mulf %610, %614 : vector<32x32xf32>
    %cst_280 = arith.constant dense<0.000000e+00> : vector<32x8xf32>
    %616 = tpu.matmul %615, %604, %cst_280 {dimension_numbers = #tpu.dot_dimension_numbers<[1], [0], [0], [1], [0, 0, 1, 1], [], []>} : vector<32x32xf32>, vector<32x8xf32>, vector<32x8xf32> -> vector<32x8xf32>
    %617 = vector.extract_strided_slice %511 {offsets = [0, 56], sizes = [32, 8], strides = [1, 1]} : vector<32x192xf32> to vector<32x8xf32>
    %618 = vector.extract_strided_slice %511 {offsets = [0, 120], sizes = [32, 8], strides = [1, 1]} : vector<32x192xf32> to vector<32x8xf32>
    %619 = vector.extract_strided_slice %511 {offsets = [0, 184], sizes = [32, 8], strides = [1, 1]} : vector<32x192xf32> to vector<32x8xf32>
    %cst_281 = arith.constant dense<0.000000e+00> : vector<32x32xf32>
    %620 = tpu.matmul %617, %618, %cst_281 {dimension_numbers = #tpu.dot_dimension_numbers<[1], [1], [0], [0], [0, 0, 1, 0], [], []>} : vector<32x8xf32>, vector<32x8xf32>, vector<32x32xf32> -> vector<32x32xf32>
    %cst_282 = arith.constant dense<0xFF800000> : vector<32xf32>
    %621 = vector.multi_reduction <maximumf>, %620, %cst_282 [1] : vector<32x32xf32> to vector<32xf32>
    %622 = vector.shape_cast %621 : vector<32xf32> to vector<32x1xf32>
    %623 = vector.broadcast %622 : vector<32x1xf32> to vector<32x32xf32>
    %624 = arith.subf %620, %623 : vector<32x32xf32>
    %625 = math.exp %624 : vector<32x32xf32>
    %cst_283 = arith.constant dense<0.000000e+00> : vector<32xf32>
    %626 = vector.multi_reduction <add>, %625, %cst_283 [1] : vector<32x32xf32> to vector<32xf32>
    %627 = vector.shape_cast %626 : vector<32xf32> to vector<32x1xf32>
    %628 = tpu.reciprocal %627 {approx = true} : vector<32x1xf32> -> vector<32x1xf32>
    %629 = vector.broadcast %628 : vector<32x1xf32> to vector<32x32xf32>
    %630 = arith.mulf %625, %629 : vector<32x32xf32>
    %cst_284 = arith.constant dense<0.000000e+00> : vector<32x8xf32>
    %631 = tpu.matmul %630, %619, %cst_284 {dimension_numbers = #tpu.dot_dimension_numbers<[1], [0], [0], [1], [0, 0, 1, 1], [], []>} : vector<32x32xf32>, vector<32x8xf32>, vector<32x8xf32> -> vector<32x8xf32>
    %632 = tpu.concatenate %526, %541, %556, %571, %586, %601, %616, %631 in 1 : vector<32x8xf32>, vector<32x8xf32>, vector<32x8xf32>, vector<32x8xf32>, vector<32x8xf32>, vector<32x8xf32>, vector<32x8xf32>, vector<32x8xf32> -> vector<32x64xf32>
    %c2_285 = arith.constant 2 : index
    %c0_286 = arith.constant 0 : index
    %c0_287 = arith.constant 0 : index
    %633 = vector.load %arg11[%c2_285, %c0_286, %c0_287] : memref<3x64x64xf32, #tpu.memory_space<vmem>>, vector<1x64x64xf32>
    %634 = vector.shape_cast %633 : vector<1x64x64xf32> to vector<64x64xf32>
    %cst_288 = arith.constant dense<0.000000e+00> : vector<32x64xf32>
    %635 = tpu.matmul %632, %634, %cst_288 {dimension_numbers = #tpu.dot_dimension_numbers<[1], [0], [0], [1], [0, 0, 1, 1], [], []>} : vector<32x64xf32>, vector<64x64xf32>, vector<32x64xf32> -> vector<32x64xf32>
    %c2_289 = arith.constant 2 : index
    %c0_290 = arith.constant 0 : index
    %c0_291 = arith.constant 0 : index
    %636 = vector.load %arg12[%c2_289, %c0_290, %c0_291] : memref<3x1x64xf32, #tpu.memory_space<vmem>>, vector<1x1x64xf32>
    %637 = vector.shape_cast %636 : vector<1x1x64xf32> to vector<1x64xf32>
    %638 = vector.broadcast %637 : vector<1x64xf32> to vector<32x64xf32>
    %639 = arith.addf %635, %638 : vector<32x64xf32>
    %640 = arith.addf %504, %639 : vector<32x64xf32>
    %c2_292 = arith.constant 2 : index
    %c0_293 = arith.constant 0 : index
    %c0_294 = arith.constant 0 : index
    %641 = vector.load %arg13[%c2_292, %c0_293, %c0_294] : memref<3x1x64xf32, #tpu.memory_space<vmem>>, vector<1x1x64xf32>
    %642 = vector.shape_cast %641 : vector<1x1x64xf32> to vector<1x64xf32>
    %c2_295 = arith.constant 2 : index
    %c0_296 = arith.constant 0 : index
    %c0_297 = arith.constant 0 : index
    %643 = vector.load %arg14[%c2_295, %c0_296, %c0_297] : memref<3x1x64xf32, #tpu.memory_space<vmem>>, vector<1x1x64xf32>
    %644 = vector.shape_cast %643 : vector<1x1x64xf32> to vector<1x64xf32>
    %cst_298 = arith.constant dense<0.000000e+00> : vector<32xf32>
    %645 = vector.multi_reduction <add>, %640, %cst_298 [1] : vector<32x64xf32> to vector<32xf32>
    %646 = vector.shape_cast %645 : vector<32xf32> to vector<32x1xf32>
    %cst_299 = arith.constant 6.400000e+01 : f32
    %647 = vector.broadcast %cst_299 : f32 to vector<32x1xf32>
    %648 = arith.divf %646, %647 : vector<32x1xf32>
    %649 = vector.broadcast %648 : vector<32x1xf32> to vector<32x64xf32>
    %650 = arith.subf %640, %649 : vector<32x64xf32>
    %651 = arith.mulf %650, %650 : vector<32x64xf32>
    %cst_300 = arith.constant dense<0.000000e+00> : vector<32xf32>
    %652 = vector.multi_reduction <add>, %651, %cst_300 [1] : vector<32x64xf32> to vector<32xf32>
    %653 = vector.shape_cast %652 : vector<32xf32> to vector<32x1xf32>
    %cst_301 = arith.constant 6.400000e+01 : f32
    %654 = vector.broadcast %cst_301 : f32 to vector<32x1xf32>
    %655 = arith.divf %653, %654 : vector<32x1xf32>
    %656 = vector.broadcast %648 : vector<32x1xf32> to vector<32x64xf32>
    %657 = arith.subf %640, %656 : vector<32x64xf32>
    %cst_302 = arith.constant 9.99999974E-6 : f32
    %658 = vector.broadcast %cst_302 : f32 to vector<32x1xf32>
    %659 = arith.addf %655, %658 : vector<32x1xf32>
    %660 = math.rsqrt %659 : vector<32x1xf32>
    %661 = vector.broadcast %660 : vector<32x1xf32> to vector<32x64xf32>
    %662 = arith.mulf %657, %661 : vector<32x64xf32>
    %663 = vector.broadcast %642 : vector<1x64xf32> to vector<32x64xf32>
    %664 = arith.mulf %662, %663 : vector<32x64xf32>
    %665 = vector.broadcast %644 : vector<1x64xf32> to vector<32x64xf32>
    %666 = arith.addf %664, %665 : vector<32x64xf32>
    %c2_303 = arith.constant 2 : index
    %c0_304 = arith.constant 0 : index
    %c0_305 = arith.constant 0 : index
    %667 = vector.load %arg15[%c2_303, %c0_304, %c0_305] : memref<3x64x256xf32, #tpu.memory_space<vmem>>, vector<1x64x256xf32>
    %668 = vector.shape_cast %667 : vector<1x64x256xf32> to vector<64x256xf32>
    %cst_306 = arith.constant dense<0.000000e+00> : vector<32x256xf32>
    %669 = tpu.matmul %666, %668, %cst_306 {dimension_numbers = #tpu.dot_dimension_numbers<[1], [0], [0], [1], [0, 0, 1, 1], [], []>} : vector<32x64xf32>, vector<64x256xf32>, vector<32x256xf32> -> vector<32x256xf32>
    %c2_307 = arith.constant 2 : index
    %c0_308 = arith.constant 0 : index
    %c0_309 = arith.constant 0 : index
    %670 = vector.load %arg16[%c2_307, %c0_308, %c0_309] : memref<3x1x256xf32, #tpu.memory_space<vmem>>, vector<1x1x256xf32>
    %671 = vector.shape_cast %670 : vector<1x1x256xf32> to vector<1x256xf32>
    %672 = vector.broadcast %671 : vector<1x256xf32> to vector<32x256xf32>
    %673 = arith.addf %669, %672 : vector<32x256xf32>
    %cst_310 = arith.constant 0.000000e+00 : f32
    %674 = vector.broadcast %cst_310 : f32 to vector<32x256xf32>
    %675 = arith.maximumf %673, %674 : vector<32x256xf32>
    %c2_311 = arith.constant 2 : index
    %c0_312 = arith.constant 0 : index
    %c0_313 = arith.constant 0 : index
    %676 = vector.load %arg17[%c2_311, %c0_312, %c0_313] : memref<3x256x64xf32, #tpu.memory_space<vmem>>, vector<1x256x64xf32>
    %677 = vector.shape_cast %676 : vector<1x256x64xf32> to vector<256x64xf32>
    %cst_314 = arith.constant dense<0.000000e+00> : vector<32x64xf32>
    %678 = tpu.matmul %675, %677, %cst_314 {dimension_numbers = #tpu.dot_dimension_numbers<[1], [0], [0], [1], [0, 0, 1, 1], [], []>} : vector<32x256xf32>, vector<256x64xf32>, vector<32x64xf32> -> vector<32x64xf32>
    %c2_315 = arith.constant 2 : index
    %c0_316 = arith.constant 0 : index
    %c0_317 = arith.constant 0 : index
    %679 = vector.load %arg18[%c2_315, %c0_316, %c0_317] : memref<3x1x64xf32, #tpu.memory_space<vmem>>, vector<1x1x64xf32>
    %680 = vector.shape_cast %679 : vector<1x1x64xf32> to vector<1x64xf32>
    %681 = vector.broadcast %680 : vector<1x64xf32> to vector<32x64xf32>
    %682 = arith.addf %678, %681 : vector<32x64xf32>
    %683 = arith.addf %666, %682 : vector<32x64xf32>
    %c2_318 = arith.constant 2 : index
    %c0_319 = arith.constant 0 : index
    %c0_320 = arith.constant 0 : index
    %684 = vector.load %arg19[%c2_318, %c0_319, %c0_320] : memref<3x1x64xf32, #tpu.memory_space<vmem>>, vector<1x1x64xf32>
    %685 = vector.shape_cast %684 : vector<1x1x64xf32> to vector<1x64xf32>
    %c2_321 = arith.constant 2 : index
    %c0_322 = arith.constant 0 : index
    %c0_323 = arith.constant 0 : index
    %686 = vector.load %arg20[%c2_321, %c0_322, %c0_323] : memref<3x1x64xf32, #tpu.memory_space<vmem>>, vector<1x1x64xf32>
    %687 = vector.shape_cast %686 : vector<1x1x64xf32> to vector<1x64xf32>
    %cst_324 = arith.constant dense<0.000000e+00> : vector<32xf32>
    %688 = vector.multi_reduction <add>, %683, %cst_324 [1] : vector<32x64xf32> to vector<32xf32>
    %689 = vector.shape_cast %688 : vector<32xf32> to vector<32x1xf32>
    %cst_325 = arith.constant 6.400000e+01 : f32
    %690 = vector.broadcast %cst_325 : f32 to vector<32x1xf32>
    %691 = arith.divf %689, %690 : vector<32x1xf32>
    %692 = vector.broadcast %691 : vector<32x1xf32> to vector<32x64xf32>
    %693 = arith.subf %683, %692 : vector<32x64xf32>
    %694 = arith.mulf %693, %693 : vector<32x64xf32>
    %cst_326 = arith.constant dense<0.000000e+00> : vector<32xf32>
    %695 = vector.multi_reduction <add>, %694, %cst_326 [1] : vector<32x64xf32> to vector<32xf32>
    %696 = vector.shape_cast %695 : vector<32xf32> to vector<32x1xf32>
    %cst_327 = arith.constant 6.400000e+01 : f32
    %697 = vector.broadcast %cst_327 : f32 to vector<32x1xf32>
    %698 = arith.divf %696, %697 : vector<32x1xf32>
    %699 = vector.broadcast %691 : vector<32x1xf32> to vector<32x64xf32>
    %700 = arith.subf %683, %699 : vector<32x64xf32>
    %cst_328 = arith.constant 9.99999974E-6 : f32
    %701 = vector.broadcast %cst_328 : f32 to vector<32x1xf32>
    %702 = arith.addf %698, %701 : vector<32x1xf32>
    %703 = math.rsqrt %702 : vector<32x1xf32>
    %704 = vector.broadcast %703 : vector<32x1xf32> to vector<32x64xf32>
    %705 = arith.mulf %700, %704 : vector<32x64xf32>
    %706 = vector.broadcast %685 : vector<1x64xf32> to vector<32x64xf32>
    %707 = arith.mulf %705, %706 : vector<32x64xf32>
    %708 = vector.broadcast %687 : vector<1x64xf32> to vector<32x64xf32>
    %709 = arith.addf %707, %708 : vector<32x64xf32>
    %cst_329 = arith.constant dense<0.000000e+00> : vector<64xf32>
    %710 = vector.multi_reduction <add>, %709, %cst_329 [0] : vector<32x64xf32> to vector<64xf32>
    %711 = vector.shape_cast %710 : vector<64xf32> to vector<1x64xf32>
    %cst_330 = arith.constant 3.200000e+01 : f32
    %712 = vector.broadcast %cst_330 : f32 to vector<1x64xf32>
    %713 = arith.divf %711, %712 : vector<1x64xf32>
    %c0_331 = arith.constant 0 : index
    %c0_332 = arith.constant 0 : index
    %c0_333 = arith.constant 0 : index
    %714 = vector.load %arg2[%c0_331, %c0_332, %c0_333] : memref<1x1x14xf32, #tpu.memory_space<vmem>>, vector<1x1x14xf32>
    %715 = vector.shape_cast %714 : vector<1x1x14xf32> to vector<1x14xf32>
    %c0_334 = arith.constant 0 : index
    %c0_335 = arith.constant 0 : index
    %716 = vector.load %arg21[%c0_334, %c0_335] : memref<14x48xf32, #tpu.memory_space<vmem>>, vector<14x48xf32>
    %cst_336 = arith.constant dense<0.000000e+00> : vector<1x48xf32>
    %717 = tpu.matmul %715, %716, %cst_336 {dimension_numbers = #tpu.dot_dimension_numbers<[1], [0], [0], [1], [0, 0, 1, 1], [], []>} : vector<1x14xf32>, vector<14x48xf32>, vector<1x48xf32> -> vector<1x48xf32>
    %c0_337 = arith.constant 0 : index
    %c0_338 = arith.constant 0 : index
    %718 = vector.load %arg22[%c0_337, %c0_338] : memref<1x48xf32, #tpu.memory_space<vmem>>, vector<1x48xf32>
    %719 = arith.addf %717, %718 : vector<1x48xf32>
    %cst_339 = arith.constant 0.000000e+00 : f32
    %720 = vector.broadcast %cst_339 : f32 to vector<1x48xf32>
    %721 = arith.maximumf %719, %720 : vector<1x48xf32>
    %c0_340 = arith.constant 0 : index
    %c0_341 = arith.constant 0 : index
    %722 = vector.load %arg23[%c0_340, %c0_341] : memref<48x32xf32, #tpu.memory_space<vmem>>, vector<48x32xf32>
    %cst_342 = arith.constant dense<0.000000e+00> : vector<1x32xf32>
    %723 = tpu.matmul %721, %722, %cst_342 {dimension_numbers = #tpu.dot_dimension_numbers<[1], [0], [0], [1], [0, 0, 1, 1], [], []>} : vector<1x48xf32>, vector<48x32xf32>, vector<1x32xf32> -> vector<1x32xf32>
    %c0_343 = arith.constant 0 : index
    %c0_344 = arith.constant 0 : index
    %724 = vector.load %arg24[%c0_343, %c0_344] : memref<1x32xf32, #tpu.memory_space<vmem>>, vector<1x32xf32>
    %725 = arith.addf %723, %724 : vector<1x32xf32>
    %c0_345 = arith.constant 0 : index
    %c0_346 = arith.constant 0 : index
    %726 = vector.load %arg25[%c0_345, %c0_346] : memref<64x64xf32, #tpu.memory_space<vmem>>, vector<64x64xf32>
    %cst_347 = arith.constant dense<0.000000e+00> : vector<1x64xf32>
    %727 = tpu.matmul %713, %726, %cst_347 {dimension_numbers = #tpu.dot_dimension_numbers<[1], [0], [0], [1], [0, 0, 1, 1], [], []>} : vector<1x64xf32>, vector<64x64xf32>, vector<1x64xf32> -> vector<1x64xf32>
    %c0_348 = arith.constant 0 : index
    %c0_349 = arith.constant 0 : index
    %728 = vector.load %arg26[%c0_348, %c0_349] : memref<32x64xf32, #tpu.memory_space<vmem>>, vector<32x64xf32>
    %cst_350 = arith.constant dense<0.000000e+00> : vector<1x64xf32>
    %729 = tpu.matmul %725, %728, %cst_350 {dimension_numbers = #tpu.dot_dimension_numbers<[1], [0], [0], [1], [0, 0, 1, 1], [], []>} : vector<1x32xf32>, vector<32x64xf32>, vector<1x64xf32> -> vector<1x64xf32>
    %730 = arith.addf %727, %729 : vector<1x64xf32>
    %c0_351 = arith.constant 0 : index
    %c0_352 = arith.constant 0 : index
    %731 = vector.load %arg27[%c0_351, %c0_352] : memref<1x64xf32, #tpu.memory_space<vmem>>, vector<1x64xf32>
    %732 = arith.addf %730, %731 : vector<1x64xf32>
    %cst_353 = arith.constant 0.000000e+00 : f32
    %733 = vector.broadcast %cst_353 : f32 to vector<1x64xf32>
    %734 = arith.maximumf %732, %733 : vector<1x64xf32>
    %c0_354 = arith.constant 0 : index
    %c0_355 = arith.constant 0 : index
    %735 = vector.load %arg28[%c0_354, %c0_355] : memref<64x4xf32, #tpu.memory_space<vmem>>, vector<64x4xf32>
    %cst_356 = arith.constant dense<0.000000e+00> : vector<1x4xf32>
    %736 = tpu.matmul %734, %735, %cst_356 {dimension_numbers = #tpu.dot_dimension_numbers<[1], [0], [0], [1], [0, 0, 1, 1], [], []>} : vector<1x64xf32>, vector<64x4xf32>, vector<1x4xf32> -> vector<1x4xf32>
    %c0_357 = arith.constant 0 : index
    %c0_358 = arith.constant 0 : index
    %737 = vector.load %arg29[%c0_357, %c0_358] : memref<1x4xf32, #tpu.memory_space<vmem>>, vector<1x4xf32>
    %738 = arith.addf %736, %737 : vector<1x4xf32>
    %c0_359 = arith.constant 0 : index
    %c0_360 = arith.constant 0 : index
    %c0_361 = arith.constant 0 : index
    %739 = vector.load %arg30[%c0_359, %c0_360, %c0_361] : memref<1x1x4xf32, #tpu.memory_space<vmem>>, vector<1x1x4xf32>
    %740 = vector.shape_cast %739 : vector<1x1x4xf32> to vector<1x4xf32>
    %741 = vector.shape_cast %738 : vector<1x4xf32> to vector<1x1x4xf32>
    tpu.vector_store %arg30[%c0_359, %c0_360, %c0_361], %741 {strides = array<i32>} : memref<1x1x4xf32, #tpu.memory_space<vmem>>, vector<1x1x4xf32>,
    return
  }
  func.func @transform_0(%arg0: i32) -> (i32, i32, i32, i32) {
    %c0_i32 = arith.constant 0 : i32
    %c0_i32_0 = arith.constant 0 : i32
    %c0_i32_1 = arith.constant 0 : i32
    %c0_i32_2 = arith.constant 0 : i32
    return %arg0, %c0_i32, %c0_i32_0, %c0_i32_1 : i32, i32, i32, i32
  }
  func.func @transform_1(%arg0: i32) -> (i32, i32, i32) {
    %c0_i32 = arith.constant 0 : i32
    %c0_i32_0 = arith.constant 0 : i32
    %c0_i32_1 = arith.constant 0 : i32
    return %arg0, %c0_i32, %c0_i32_0 : i32, i32, i32
  }
  func.func @transform_2(%arg0: i32) -> (i32, i32) {
    %c0_i32 = arith.constant 0 : i32
    %c0_i32_0 = arith.constant 0 : i32
    %c0_i32_1 = arith.constant 0 : i32
    return %c0_i32, %c0_i32_0 : i32, i32
  }
  func.func @transform_3(%arg0: i32) -> (i32, i32) {
    %c0_i32 = arith.constant 0 : i32
    %c0_i32_0 = arith.constant 0 : i32
    %c0_i32_1 = arith.constant 0 : i32
    return %c0_i32, %c0_i32_0 : i32, i32
  }
  func.func @transform_4(%arg0: i32) -> (i32, i32) {
    %c0_i32 = arith.constant 0 : i32
    %c0_i32_0 = arith.constant 0 : i32
    %c0_i32_1 = arith.constant 0 : i32
    return %c0_i32, %c0_i32_0 : i32, i32
  }
  func.func @transform_5(%arg0: i32) -> (i32, i32, i32) {
    %c0_i32 = arith.constant 0 : i32
    %c0_i32_0 = arith.constant 0 : i32
    %c0_i32_1 = arith.constant 0 : i32
    %c0_i32_2 = arith.constant 0 : i32
    return %c0_i32, %c0_i32_0, %c0_i32_1 : i32, i32, i32
  }
  func.func @transform_6(%arg0: i32) -> (i32, i32) {
    %c0_i32 = arith.constant 0 : i32
    %c0_i32_0 = arith.constant 0 : i32
    %c0_i32_1 = arith.constant 0 : i32
    return %c0_i32, %c0_i32_0 : i32, i32
  }
  func.func @transform_7(%arg0: i32) -> (i32, i32) {
    %c0_i32 = arith.constant 0 : i32
    %c0_i32_0 = arith.constant 0 : i32
    %c0_i32_1 = arith.constant 0 : i32
    return %c0_i32, %c0_i32_0 : i32, i32
  }
  func.func @transform_8(%arg0: i32) -> (i32, i32, i32) {
    %c0_i32 = arith.constant 0 : i32
    %c0_i32_0 = arith.constant 0 : i32
    %c0_i32_1 = arith.constant 0 : i32
    %c0_i32_2 = arith.constant 0 : i32
    return %c0_i32, %c0_i32_0, %c0_i32_1 : i32, i32, i32
  }
  func.func @transform_9(%arg0: i32) -> (i32, i32, i32) {
    %c0_i32 = arith.constant 0 : i32
    %c0_i32_0 = arith.constant 0 : i32
    %c0_i32_1 = arith.constant 0 : i32
    %c0_i32_2 = arith.constant 0 : i32
    return %c0_i32, %c0_i32_0, %c0_i32_1 : i32, i32, i32
  }
  func.func @transform_10(%arg0: i32) -> (i32, i32, i32) {
    %c0_i32 = arith.constant 0 : i32
    %c0_i32_0 = arith.constant 0 : i32
    %c0_i32_1 = arith.constant 0 : i32
    %c0_i32_2 = arith.constant 0 : i32
    return %c0_i32, %c0_i32_0, %c0_i32_1 : i32, i32, i32
  }
  func.func @transform_11(%arg0: i32) -> (i32, i32, i32) {
    %c0_i32 = arith.constant 0 : i32
    %c0_i32_0 = arith.constant 0 : i32
    %c0_i32_1 = arith.constant 0 : i32
    %c0_i32_2 = arith.constant 0 : i32
    return %c0_i32, %c0_i32_0, %c0_i32_1 : i32, i32, i32
  }
  func.func @transform_12(%arg0: i32) -> (i32, i32, i32) {
    %c0_i32 = arith.constant 0 : i32
    %c0_i32_0 = arith.constant 0 : i32
    %c0_i32_1 = arith.constant 0 : i32
    %c0_i32_2 = arith.constant 0 : i32
    return %c0_i32, %c0_i32_0, %c0_i32_1 : i32, i32, i32
  }
  func.func @transform_13(%arg0: i32) -> (i32, i32, i32) {
    %c0_i32 = arith.constant 0 : i32
    %c0_i32_0 = arith.constant 0 : i32
    %c0_i32_1 = arith.constant 0 : i32
    %c0_i32_2 = arith.constant 0 : i32
    return %c0_i32, %c0_i32_0, %c0_i32_1 : i32, i32, i32
  }
  func.func @transform_14(%arg0: i32) -> (i32, i32, i32) {
    %c0_i32 = arith.constant 0 : i32
    %c0_i32_0 = arith.constant 0 : i32
    %c0_i32_1 = arith.constant 0 : i32
    %c0_i32_2 = arith.constant 0 : i32
    return %c0_i32, %c0_i32_0, %c0_i32_1 : i32, i32, i32
  }
  func.func @transform_15(%arg0: i32) -> (i32, i32, i32) {
    %c0_i32 = arith.constant 0 : i32
    %c0_i32_0 = arith.constant 0 : i32
    %c0_i32_1 = arith.constant 0 : i32
    %c0_i32_2 = arith.constant 0 : i32
    return %c0_i32, %c0_i32_0, %c0_i32_1 : i32, i32, i32
  }
  func.func @transform_16(%arg0: i32) -> (i32, i32, i32) {
    %c0_i32 = arith.constant 0 : i32
    %c0_i32_0 = arith.constant 0 : i32
    %c0_i32_1 = arith.constant 0 : i32
    %c0_i32_2 = arith.constant 0 : i32
    return %c0_i32, %c0_i32_0, %c0_i32_1 : i32, i32, i32
  }
  func.func @transform_17(%arg0: i32) -> (i32, i32, i32) {
    %c0_i32 = arith.constant 0 : i32
    %c0_i32_0 = arith.constant 0 : i32
    %c0_i32_1 = arith.constant 0 : i32
    %c0_i32_2 = arith.constant 0 : i32
    return %c0_i32, %c0_i32_0, %c0_i32_1 : i32, i32, i32
  }
  func.func @transform_18(%arg0: i32) -> (i32, i32, i32) {
    %c0_i32 = arith.constant 0 : i32
    %c0_i32_0 = arith.constant 0 : i32
    %c0_i32_1 = arith.constant 0 : i32
    %c0_i32_2 = arith.constant 0 : i32
    return %c0_i32, %c0_i32_0, %c0_i32_1 : i32, i32, i32
  }
  func.func @transform_19(%arg0: i32) -> (i32, i32, i32) {
    %c0_i32 = arith.constant 0 : i32
    %c0_i32_0 = arith.constant 0 : i32
    %c0_i32_1 = arith.constant 0 : i32
    %c0_i32_2 = arith.constant 0 : i32
    return %c0_i32, %c0_i32_0, %c0_i32_1 : i32, i32, i32
  }
  func.func @transform_20(%arg0: i32) -> (i32, i32) {
    %c0_i32 = arith.constant 0 : i32
    %c0_i32_0 = arith.constant 0 : i32
    %c0_i32_1 = arith.constant 0 : i32
    return %c0_i32, %c0_i32_0 : i32, i32
  }
  func.func @transform_21(%arg0: i32) -> (i32, i32) {
    %c0_i32 = arith.constant 0 : i32
    %c0_i32_0 = arith.constant 0 : i32
    %c0_i32_1 = arith.constant 0 : i32
    return %c0_i32, %c0_i32_0 : i32, i32
  }
  func.func @transform_22(%arg0: i32) -> (i32, i32) {
    %c0_i32 = arith.constant 0 : i32
    %c0_i32_0 = arith.constant 0 : i32
    %c0_i32_1 = arith.constant 0 : i32
    return %c0_i32, %c0_i32_0 : i32, i32
  }
  func.func @transform_23(%arg0: i32) -> (i32, i32) {
    %c0_i32 = arith.constant 0 : i32
    %c0_i32_0 = arith.constant 0 : i32
    %c0_i32_1 = arith.constant 0 : i32
    return %c0_i32, %c0_i32_0 : i32, i32
  }
  func.func @transform_24(%arg0: i32) -> (i32, i32) {
    %c0_i32 = arith.constant 0 : i32
    %c0_i32_0 = arith.constant 0 : i32
    %c0_i32_1 = arith.constant 0 : i32
    return %c0_i32, %c0_i32_0 : i32, i32
  }
  func.func @transform_25(%arg0: i32) -> (i32, i32) {
    %c0_i32 = arith.constant 0 : i32
    %c0_i32_0 = arith.constant 0 : i32
    %c0_i32_1 = arith.constant 0 : i32
    return %c0_i32, %c0_i32_0 : i32, i32
  }
  func.func @transform_26(%arg0: i32) -> (i32, i32) {
    %c0_i32 = arith.constant 0 : i32
    %c0_i32_0 = arith.constant 0 : i32
    %c0_i32_1 = arith.constant 0 : i32
    return %c0_i32, %c0_i32_0 : i32, i32
  }
  func.func @transform_27(%arg0: i32) -> (i32, i32) {
    %c0_i32 = arith.constant 0 : i32
    %c0_i32_0 = arith.constant 0 : i32
    %c0_i32_1 = arith.constant 0 : i32
    return %c0_i32, %c0_i32_0 : i32, i32
  }
  func.func @transform_28(%arg0: i32) -> (i32, i32) {
    %c0_i32 = arith.constant 0 : i32
    %c0_i32_0 = arith.constant 0 : i32
    %c0_i32_1 = arith.constant 0 : i32
    return %c0_i32, %c0_i32_0 : i32, i32
  }
  func.func @transform_29(%arg0: i32) -> (i32, i32, i32) {
    %c0_i32 = arith.constant 0 : i32
    %c0_i32_0 = arith.constant 0 : i32
    %c0_i32_1 = arith.constant 0 : i32
    return %arg0, %c0_i32, %c0_i32_0 : i32, i32, i32
  }
}

</mosaic_0001>

<llo_original>
// kernel: forward.1
$region0: #{forward.1}
  #allocation0 [shape = 'u32[]', space=smem, size = 0x4, offset = 0x4, fixed_abs, tag = 'smem constant byte address 0x4 - core index']
  #allocation1 [shape = 'u32[72,128]{1,0:T(1,128)}', space=vmem, size = 0x9000, scoped, tag = 'internal scratch']
  #allocation2 [shape = 'f32[48,128]{1,0:T(8,128)}', space=vmem, size = 0x6000, scoped, tag = 'scratch operand']
  %s0 = inlined_call_operand.smem [shape: u32[30], index: -1, kind: input, shape index: {}]
  %s1 = sld [smem:[%s0]]
  %s2 = scalar_lea.smem %s0, 1
  %s3 = sld [smem:[%s2]]
  %s4 = scalar_lea.smem %s0, 2
  %s5 = sld [smem:[%s4]]
  %s6 = scalar_lea.smem %s0, 3
  %s7 = sld [smem:[%s6]]
  %s8 = scalar_lea.smem %s0, 4
  %s9 = sld [smem:[%s8]]
  %s10 = scalar_lea.smem %s0, 5
  %s11 = sld [smem:[%s10]]
  %s12 = scalar_lea.smem %s0, 6
  %s13 = sld [smem:[%s12]]
  %s14 = scalar_lea.smem %s0, 7
  %s15 = sld [smem:[%s14]]
  %s16 = scalar_lea.smem %s0, 8
  %s17 = sld [smem:[%s16]]
  %s18 = scalar_lea.smem %s0, 9
  %s19 = sld [smem:[%s18]]
  %s20 = scalar_lea.smem %s0, 10
  %s21 = sld [smem:[%s20]]
  %s22 = scalar_lea.smem %s0, 11
  %s23 = sld [smem:[%s22]]
  %s24 = scalar_lea.smem %s0, 12
  %s25 = sld [smem:[%s24]]
  %s26 = scalar_lea.smem %s0, 13
  %s27 = sld [smem:[%s26]]
  %s28 = scalar_lea.smem %s0, 14
  %s29 = sld [smem:[%s28]]
  %s30 = scalar_lea.smem %s0, 15
  %s31 = sld [smem:[%s30]]
  %s32 = scalar_lea.smem %s0, 16
  %s33 = sld [smem:[%s32]]
  %s34 = scalar_lea.smem %s0, 17
  %s35 = sld [smem:[%s34]]
  %s36 = scalar_lea.smem %s0, 18
  %s37 = sld [smem:[%s36]]
  %s38 = scalar_lea.smem %s0, 19
  %s39 = sld [smem:[%s38]]
  %s40 = scalar_lea.smem %s0, 20
  %s41 = sld [smem:[%s40]]
  %s42 = scalar_lea.smem %s0, 21
  %s43 = sld [smem:[%s42]]
  %s44 = scalar_lea.smem %s0, 22
  %s45 = sld [smem:[%s44]]
  %s46 = scalar_lea.smem %s0, 23
  %s47 = sld [smem:[%s46]]
  %s48 = scalar_lea.smem %s0, 24
  %s49 = sld [smem:[%s48]]
  %s50 = scalar_lea.smem %s0, 25
  %s51 = sld [smem:[%s50]]
  %s52 = scalar_lea.smem %s0, 26
  %s53 = sld [smem:[%s52]]
  %s54 = scalar_lea.smem %s0, 27
  %s55 = sld [smem:[%s54]]
  %s56 = scalar_lea.smem %s0, 28
  %s57 = sld [smem:[%s56]]
  %s58 = scalar_lea.smem %s0, 29
  %s59 = sld [smem:[%s58]]
  %s60 = sld [smem:[#allocation0]]
  $region149: #{forward.1} parent=0
    _
  %s62 = ssub.s32 1, %s60
  %s63 = scalar_select 0, %s62, %s60
  $region1: #{forward.1} parent=0
    #allocation3 [shape = 'u8[1024]{0}', space=vmem, size = 0x400, scoped, tag = 'output window, operand 0']
    #allocation4 [shape = 's32[2]{0}', space=sflag, size = 0x8, scoped, tag = 'scoped memory for forward.1']
    %64 = vsyncpa [#allocation4], 0
    %s65 = scalar_lea.sflag [#allocation4], 1
    %66 = vsyncpa %s65, 0
    loop: start=0, step=1, limit=4
    $region2: #{forward.1} parent=1 // loop_pre_header
      _
    $region3: #{forward.1} parent=1 // loop_header
      %s68 = sphi 0, %s72
      %p69 = scmp.ge.s32.totalorder %s68, 4
      %s78 = sphi 0, %s80
      %s81 = sphi 0, %s78
      %s82 = sphi 0, %s81
      %s98 = sphi 0, %s82
      %s104 = sphi 0, %s106
      %s107 = sphi 0, %s104
      %s108 = sphi 0, %s107
      %s124 = sphi 0, %s108
      %s128 = sphi 0, %s128
      %s130 = sphi 0, %s128
      %s131 = sphi 0, %s130
      %s145 = sphi 0, %s131
      %s149 = sphi 0, %s149
      %s151 = sphi 0, %s149
      %s152 = sphi 0, %s151
      %s166 = sphi 0, %s152
      %s170 = sphi 0, %s170
      %s172 = sphi 0, %s170
      %s173 = sphi 0, %s172
      %s187 = sphi 0, %s173
      %s191 = sphi 0, %s191
      %s193 = sphi 0, %s191
      %s194 = sphi 0, %s193
      %s208 = sphi 0, %s194
      %s212 = sphi 0, %s212
      %s214 = sphi 0, %s212
      %s215 = sphi 0, %s214
      %s229 = sphi 0, %s215
      %s233 = sphi 0, %s233
      %s235 = sphi 0, %s233
      %s236 = sphi 0, %s235
      %s250 = sphi 0, %s236
      %s254 = sphi 0, %s254
      %s256 = sphi 0, %s254
      %s257 = sphi 0, %s256
      %s271 = sphi 0, %s257
      %s275 = sphi 0, %s275
      %s277 = sphi 0, %s275
      %s278 = sphi 0, %s277
      %s292 = sphi 0, %s278
      %s296 = sphi 0, %s296
      %s298 = sphi 0, %s296
      %s299 = sphi 0, %s298
      %s313 = sphi 0, %s299
      %s317 = sphi 0, %s317
      %s319 = sphi 0, %s317
      %s320 = sphi 0, %s319
      %s334 = sphi 0, %s320
      %s338 = sphi 0, %s338
      %s340 = sphi 0, %s338
      %s341 = sphi 0, %s340
      %s355 = sphi 0, %s341
      %s359 = sphi 0, %s359
      %s361 = sphi 0, %s359
      %s362 = sphi 0, %s361
      %s376 = sphi 0, %s362
      %s380 = sphi 0, %s380
      %s382 = sphi 0, %s380
      %s383 = sphi 0, %s382
      %s397 = sphi 0, %s383
      %s401 = sphi 0, %s401
      %s403 = sphi 0, %s401
      %s404 = sphi 0, %s403
      %s418 = sphi 0, %s404
      %s422 = sphi 0, %s422
      %s424 = sphi 0, %s422
      %s425 = sphi 0, %s424
      %s439 = sphi 0, %s425
      %s443 = sphi 0, %s443
      %s445 = sphi 0, %s443
      %s446 = sphi 0, %s445
      %s460 = sphi 0, %s446
      %s464 = sphi 0, %s464
      %s466 = sphi 0, %s464
      %s467 = sphi 0, %s466
      %s481 = sphi 0, %s467
      %s485 = sphi 0, %s485
      %s487 = sphi 0, %s485
      %s488 = sphi 0, %s487
      %s502 = sphi 0, %s488
      %s506 = sphi 0, %s506
      %s508 = sphi 0, %s506
      %s509 = sphi 0, %s508
      %s523 = sphi 0, %s509
      %s527 = sphi 0, %s527
      %s529 = sphi 0, %s527
      %s530 = sphi 0, %s529
      %s544 = sphi 0, %s530
      %s548 = sphi 0, %s548
      %s550 = sphi 0, %s548
      %s551 = sphi 0, %s550
      %s565 = sphi 0, %s551
      %s569 = sphi 0, %s569
      %s571 = sphi 0, %s569
      %s572 = sphi 0, %s571
      %s586 = sphi 0, %s572
      %s590 = sphi 0, %s590
      %s592 = sphi 0, %s590
      %s593 = sphi 0, %s592
      %s607 = sphi 0, %s593
      %s611 = sphi 0, %s611
      %s613 = sphi 0, %s611
      %s614 = sphi 0, %s613
      %s628 = sphi 0, %s614
      %s632 = sphi 0, %s632
      %s634 = sphi 0, %s632
      %s635 = sphi 0, %s634
      %s649 = sphi 0, %s635
      %s653 = sphi 0, %s653
      %s655 = sphi 0, %s653
      %s656 = sphi 0, %s655
      %s670 = sphi 0, %s656
      %s674 = sphi 0, %s674
      %s676 = sphi 0, %s674
      %s677 = sphi 0, %s676
      %s691 = sphi 0, %s677
      %s697 = sphi 0, %s699
      %s700 = sphi 0, %s697
      %s701 = sphi 0, %s700
      %s717 = sphi 0, %s701
    $region4: #{forward.1} parent=1 // loop_header_branch
      %71 = sbr.rel (%p69) target = $region8
    $region5: #{forward.1} parent=1 // loop_body
      %s73 = ssub.s32 %s68, 1
      %s74 = ssub.s32 %s68, 2
      %s75 = sadd.s32 %s68, 1
      %s76 = ssub.s32 %s68, %s75
      %p77 = scmp.eq.s32.totalorder %s76, 0
      %s79 = sadd.s32 %s78, 1
      %s80 = scalar_select %p77, %s78, %s79
      %p83 = pneg %p77
      %p84 = scmp.eq.s32.totalorder %s68, 1
      %p85 = por %p83, %p84
      %p86 = scmp.ne.s32.totalorder %s78, %s81
      %p87 = scmp.eq.s32.totalorder %s68, 0
      %p88 = por %p86, %p87
      %p89 = scmp.ne.s32.totalorder %s78, %s81
      %p90 = scmp.eq.s32.totalorder %s73, 1
      %p91 = por %p89, %p90
      %p92 = scmp.ne.s32.totalorder %s81, %s82
      %p93 = scmp.eq.s32.totalorder %s73, 0
      %p94 = por %p92, %p93
      %p95 = scmp.ne.s32.totalorder %s81, %s82
      %p96 = scmp.eq.s32.totalorder %s74, 1
      %p97 = por %p95, %p96
      %p99 = scmp.ne.s32.totalorder %s82, %s98
      %p100 = scmp.eq.s32.totalorder %s74, 0
      %p101 = por %p99, %p100
      %s102 = ssub.s32 %s68, %s75
      %p103 = scmp.eq.s32.totalorder %s102, 0
      %s105 = sadd.s32 %s104, 1
      %s106 = scalar_select %p103, %s104, %s105
      %p109 = pneg %p103
      %p110 = scmp.eq.s32.totalorder %s68, 1
      %p111 = por %p109, %p110
      %p112 = scmp.ne.s32.totalorder %s104, %s107
      %p113 = scmp.eq.s32.totalorder %s68, 0
      %p114 = por %p112, %p113
      %p115 = scmp.ne.s32.totalorder %s104, %s107
      %p116 = scmp.eq.s32.totalorder %s73, 1
      %p117 = por %p115, %p116
      %p118 = scmp.ne.s32.totalorder %s107, %s108
      %p119 = scmp.eq.s32.totalorder %s73, 0
      %p120 = por %p118, %p119
      %p121 = scmp.ne.s32.totalorder %s107, %s108
      %p122 = scmp.eq.s32.totalorder %s74, 1
      %p123 = por %p121, %p122
      %p125 = scmp.ne.s32.totalorder %s108, %s124
      %p126 = scmp.eq.s32.totalorder %s74, 0
      %p127 = por %p125, %p126
      %s129 = sadd.s32 %s128, 1
      %p132 = scmp.eq.s32.totalorder %s68, 1
      %p133 = scmp.ne.s32.totalorder %s128, %s130
      %p134 = scmp.eq.s32.totalorder %s68, 0
      %p135 = por %p133, %p134
      %p136 = scmp.ne.s32.totalorder %s128, %s130
      %p137 = scmp.eq.s32.totalorder %s73, 1
      %p138 = por %p136, %p137
      %p139 = scmp.ne.s32.totalorder %s130, %s131
      %p140 = scmp.eq.s32.totalorder %s73, 0
      %p141 = por %p139, %p140
      %p142 = scmp.ne.s32.totalorder %s130, %s131
      %p143 = scmp.eq.s32.totalorder %s74, 1
      %p144 = por %p142, %p143
      %p146 = scmp.ne.s32.totalorder %s131, %s145
      %p147 = scmp.eq.s32.totalorder %s74, 0
      %p148 = por %p146, %p147
      %s150 = sadd.s32 %s149, 1
      %p153 = scmp.eq.s32.totalorder %s68, 1
      %p154 = scmp.ne.s32.totalorder %s149, %s151
      %p155 = scmp.eq.s32.totalorder %s68, 0
      %p156 = por %p154, %p155
      %p157 = scmp.ne.s32.totalorder %s149, %s151
      %p158 = scmp.eq.s32.totalorder %s73, 1
      %p159 = por %p157, %p158
      %p160 = scmp.ne.s32.totalorder %s151, %s152
      %p161 = scmp.eq.s32.totalorder %s73, 0
      %p162 = por %p160, %p161
      %p163 = scmp.ne.s32.totalorder %s151, %s152
      %p164 = scmp.eq.s32.totalorder %s74, 1
      %p165 = por %p163, %p164
      %p167 = scmp.ne.s32.totalorder %s152, %s166
      %p168 = scmp.eq.s32.totalorder %s74, 0
      %p169 = por %p167, %p168
      %s171 = sadd.s32 %s170, 1
      %p174 = scmp.eq.s32.totalorder %s68, 1
      %p175 = scmp.ne.s32.totalorder %s170, %s172
      %p176 = scmp.eq.s32.totalorder %s68, 0
      %p177 = por %p175, %p176
      %p178 = scmp.ne.s32.totalorder %s170, %s172
      %p179 = scmp.eq.s32.totalorder %s73, 1
      %p180 = por %p178, %p179
      %p181 = scmp.ne.s32.totalorder %s172, %s173
      %p182 = scmp.eq.s32.totalorder %s73, 0
      %p183 = por %p181, %p182
      %p184 = scmp.ne.s32.totalorder %s172, %s173
      %p185 = scmp.eq.s32.totalorder %s74, 1
      %p186 = por %p184, %p185
      %p188 = scmp.ne.s32.totalorder %s173, %s187
      %p189 = scmp.eq.s32.totalorder %s74, 0
      %p190 = por %p188, %p189
      %s192 = sadd.s32 %s191, 1
      %p195 = scmp.eq.s32.totalorder %s68, 1
      %p196 = scmp.ne.s32.totalorder %s191, %s193
      %p197 = scmp.eq.s32.totalorder %s68, 0
      %p198 = por %p196, %p197
      %p199 = scmp.ne.s32.totalorder %s191, %s193
      %p200 = scmp.eq.s32.totalorder %s73, 1
      %p201 = por %p199, %p200
      %p202 = scmp.ne.s32.totalorder %s193, %s194
      %p203 = scmp.eq.s32.totalorder %s73, 0
      %p204 = por %p202, %p203
      %p205 = scmp.ne.s32.totalorder %s193, %s194
      %p206 = scmp.eq.s32.totalorder %s74, 1
      %p207 = por %p205, %p206
      %p209 = scmp.ne.s32.totalorder %s194, %s208
      %p210 = scmp.eq.s32.totalorder %s74, 0
      %p211 = por %p209, %p210
      %s213 = sadd.s32 %s212, 1
      %p216 = scmp.eq.s32.totalorder %s68, 1
      %p217 = scmp.ne.s32.totalorder %s212, %s214
      %p218 = scmp.eq.s32.totalorder %s68, 0
      %p219 = por %p217, %p218
      %p220 = scmp.ne.s32.totalorder %s212, %s214
      %p221 = scmp.eq.s32.totalorder %s73, 1
      %p222 = por %p220, %p221
      %p223 = scmp.ne.s32.totalorder %s214, %s215
      %p224 = scmp.eq.s32.totalorder %s73, 0
      %p225 = por %p223, %p224
      %p226 = scmp.ne.s32.totalorder %s214, %s215
      %p227 = scmp.eq.s32.totalorder %s74, 1
      %p228 = por %p226, %p227
      %p230 = scmp.ne.s32.totalorder %s215, %s229
      %p231 = scmp.eq.s32.totalorder %s74, 0
      %p232 = por %p230, %p231
      %s234 = sadd.s32 %s233, 1
      %p237 = scmp.eq.s32.totalorder %s68, 1
      %p238 = scmp.ne.s32.totalorder %s233, %s235
      %p239 = scmp.eq.s32.totalorder %s68, 0
      %p240 = por %p238, %p239
      %p241 = scmp.ne.s32.totalorder %s233, %s235
      %p242 = scmp.eq.s32.totalorder %s73, 1
      %p243 = por %p241, %p242
      %p244 = scmp.ne.s32.totalorder %s235, %s236
      %p245 = scmp.eq.s32.totalorder %s73, 0
      %p246 = por %p244, %p245
      %p247 = scmp.ne.s32.totalorder %s235, %s236
      %p248 = scmp.eq.s32.totalorder %s74, 1
      %p249 = por %p247, %p248
      %p251 = scmp.ne.s32.totalorder %s236, %s250
      %p252 = scmp.eq.s32.totalorder %s74, 0
      %p253 = por %p251, %p252
      %s255 = sadd.s32 %s254, 1
      %p258 = scmp.eq.s32.totalorder %s68, 1
      %p259 = scmp.ne.s32.totalorder %s254, %s256
      %p260 = scmp.eq.s32.totalorder %s68, 0
      %p261 = por %p259, %p260
      %p262 = scmp.ne.s32.totalorder %s254, %s256
      %p263 = scmp.eq.s32.totalorder %s73, 1
      %p264 = por %p262, %p263
      %p265 = scmp.ne.s32.totalorder %s256, %s257
      %p266 = scmp.eq.s32.totalorder %s73, 0
      %p267 = por %p265, %p266
      %p268 = scmp.ne.s32.totalorder %s256, %s257
      %p269 = scmp.eq.s32.totalorder %s74, 1
      %p270 = por %p268, %p269
      %p272 = scmp.ne.s32.totalorder %s257, %s271
      %p273 = scmp.eq.s32.totalorder %s74, 0
      %p274 = por %p272, %p273
      %s276 = sadd.s32 %s275, 1
      %p279 = scmp.eq.s32.totalorder %s68, 1
      %p280 = scmp.ne.s32.totalorder %s275, %s277
      %p281 = scmp.eq.s32.totalorder %s68, 0
      %p282 = por %p280, %p281
      %p283 = scmp.ne.s32.totalorder %s275, %s277
      %p284 = scmp.eq.s32.totalorder %s73, 1
      %p285 = por %p283, %p284
      %p286 = scmp.ne.s32.totalorder %s277, %s278
      %p287 = scmp.eq.s32.totalorder %s73, 0
      %p288 = por %p286, %p287
      %p289 = scmp.ne.s32.totalorder %s277, %s278
      %p290 = scmp.eq.s32.totalorder %s74, 1
      %p291 = por %p289, %p290
      %p293 = scmp.ne.s32.totalorder %s278, %s292
      %p294 = scmp.eq.s32.totalorder %s74, 0
      %p295 = por %p293, %p294
      %s297 = sadd.s32 %s296, 1
      %p300 = scmp.eq.s32.totalorder %s68, 1
      %p301 = scmp.ne.s32.totalorder %s296, %s298
      %p302 = scmp.eq.s32.totalorder %s68, 0
      %p303 = por %p301, %p302
      %p304 = scmp.ne.s32.totalorder %s296, %s298
      %p305 = scmp.eq.s32.totalorder %s73, 1
      %p306 = por %p304, %p305
      %p307 = scmp.ne.s32.totalorder %s298, %s299
      %p308 = scmp.eq.s32.totalorder %s73, 0
      %p309 = por %p307, %p308
      %p310 = scmp.ne.s32.totalorder %s298, %s299
      %p311 = scmp.eq.s32.totalorder %s74, 1
      %p312 = por %p310, %p311
      %p314 = scmp.ne.s32.totalorder %s299, %s313
      %p315 = scmp.eq.s32.totalorder %s74, 0
      %p316 = por %p314, %p315
      %s318 = sadd.s32 %s317, 1
      %p321 = scmp.eq.s32.totalorder %s68, 1
      %p322 = scmp.ne.s32.totalorder %s317, %s319
      %p323 = scmp.eq.s32.totalorder %s68, 0
      %p324 = por %p322, %p323
      %p325 = scmp.ne.s32.totalorder %s317, %s319
      %p326 = scmp.eq.s32.totalorder %s73, 1
      %p327 = por %p325, %p326
      %p328 = scmp.ne.s32.totalorder %s319, %s320
      %p329 = scmp.eq.s32.totalorder %s73, 0
      %p330 = por %p328, %p329
      %p331 = scmp.ne.s32.totalorder %s319, %s320
      %p332 = scmp.eq.s32.totalorder %s74, 1
      %p333 = por %p331, %p332
      %p335 = scmp.ne.s32.totalorder %s320, %s334
      %p336 = scmp.eq.s32.totalorder %s74, 0
      %p337 = por %p335, %p336
      %s339 = sadd.s32 %s338, 1
      %p342 = scmp.eq.s32.totalorder %s68, 1
      %p343 = scmp.ne.s32.totalorder %s338, %s340
      %p344 = scmp.eq.s32.totalorder %s68, 0
      %p345 = por %p343, %p344
      %p346 = scmp.ne.s32.totalorder %s338, %s340
      %p347 = scmp.eq.s32.totalorder %s73, 1
      %p348 = por %p346, %p347
      %p349 = scmp.ne.s32.totalorder %s340, %s341
      %p350 = scmp.eq.s32.totalorder %s73, 0
      %p351 = por %p349, %p350
      %p352 = scmp.ne.s32.totalorder %s340, %s341
      %p353 = scmp.eq.s32.totalorder %s74, 1
      %p354 = por %p352, %p353
      %p356 = scmp.ne.s32.totalorder %s341, %s355
      %p357 = scmp.eq.s32.totalorder %s74, 0
      %p358 = por %p356, %p357
      %s360 = sadd.s32 %s359, 1
      %p363 = scmp.eq.s32.totalorder %s68, 1
      %p364 = scmp.ne.s32.totalorder %s359, %s361
      %p365 = scmp.eq.s32.totalorder %s68, 0
      %p366 = por %p364, %p365
      %p367 = scmp.ne.s32.totalorder %s359, %s361
      %p368 = scmp.eq.s32.totalorder %s73, 1
      %p369 = por %p367, %p368
      %p370 = scmp.ne.s32.totalorder %s361, %s362
      %p371 = scmp.eq.s32.totalorder %s73, 0
      %p372 = por %p370, %p371
      %p373 = scmp.ne.s32.totalorder %s361, %s362
      %p374 = scmp.eq.s32.totalorder %s74, 1
      %p375 = por %p373, %p374
      %p377 = scmp.ne.s32.totalorder %s362, %s376
      %p378 = scmp.eq.s32.totalorder %s74, 0
      %p379 = por %p377, %p378
      %s381 = sadd.s32 %s380, 1
      %p384 = scmp.eq.s32.totalorder %s68, 1
      %p385 = scmp.ne.s32.totalorder %s380, %s382
      %p386 = scmp.eq.s32.totalorder %s68, 0
      %p387 = por %p385, %p386
      %p388 = scmp.ne.s32.totalorder %s380, %s382
      %p389 = scmp.eq.s32.totalorder %s73, 1
      %p390 = por %p388, %p389
      %p391 = scmp.ne.s32.totalorder %s382, %s383
      %p392 = scmp.eq.s32.totalorder %s73, 0
      %p393 = por %p391, %p392
      %p394 = scmp.ne.s32.totalorder %s382, %s383
      %p395 = scmp.eq.s32.totalorder %s74, 1
      %p396 = por %p394, %p395
      %p398 = scmp.ne.s32.totalorder %s383, %s397
      %p399 = scmp.eq.s32.totalorder %s74, 0
      %p400 = por %p398, %p399
      %s402 = sadd.s32 %s401, 1
      %p405 = scmp.eq.s32.totalorder %s68, 1
      %p406 = scmp.ne.s32.totalorder %s401, %s403
      %p407 = scmp.eq.s32.totalorder %s68, 0
      %p408 = por %p406, %p407
      %p409 = scmp.ne.s32.totalorder %s401, %s403
      %p410 = scmp.eq.s32.totalorder %s73, 1
      %p411 = por %p409, %p410
      %p412 = scmp.ne.s32.totalorder %s403, %s404
      %p413 = scmp.eq.s32.totalorder %s73, 0
      %p414 = por %p412, %p413
      %p415 = scmp.ne.s32.totalorder %s403, %s404
      %p416 = scmp.eq.s32.totalorder %s74, 1
      %p417 = por %p415, %p416
      %p419 = scmp.ne.s32.totalorder %s404, %s418
      %p420 = scmp.eq.s32.totalorder %s74, 0
      %p421 = por %p419, %p420
      %s423 = sadd.s32 %s422, 1
      %p426 = scmp.eq.s32.totalorder %s68, 1
      %p427 = scmp.ne.s32.totalorder %s422, %s424
      %p428 = scmp.eq.s32.totalorder %s68, 0
      %p429 = por %p427, %p428
      %p430 = scmp.ne.s32.totalorder %s422, %s424
      %p431 = scmp.eq.s32.totalorder %s73, 1
      %p432 = por %p430, %p431
      %p433 = scmp.ne.s32.totalorder %s424, %s425
      %p434 = scmp.eq.s32.totalorder %s73, 0
      %p435 = por %p433, %p434
      %p436 = scmp.ne.s32.totalorder %s424, %s425
      %p437 = scmp.eq.s32.totalorder %s74, 1
      %p438 = por %p436, %p437
      %p440 = scmp.ne.s32.totalorder %s425, %s439
      %p441 = scmp.eq.s32.totalorder %s74, 0
      %p442 = por %p440, %p441
      %s444 = sadd.s32 %s443, 1
      %p447 = scmp.eq.s32.totalorder %s68, 1
      %p448 = scmp.ne.s32.totalorder %s443, %s445
      %p449 = scmp.eq.s32.totalorder %s68, 0
      %p450 = por %p448, %p449
      %p451 = scmp.ne.s32.totalorder %s443, %s445
      %p452 = scmp.eq.s32.totalorder %s73, 1
      %p453 = por %p451, %p452
      %p454 = scmp.ne.s32.totalorder %s445, %s446
      %p455 = scmp.eq.s32.totalorder %s73, 0
      %p456 = por %p454, %p455
      %p457 = scmp.ne.s32.totalorder %s445, %s446
      %p458 = scmp.eq.s32.totalorder %s74, 1
      %p459 = por %p457, %p458
      %p461 = scmp.ne.s32.totalorder %s446, %s460
      %p462 = scmp.eq.s32.totalorder %s74, 0
      %p463 = por %p461, %p462
      %s465 = sadd.s32 %s464, 1
      %p468 = scmp.eq.s32.totalorder %s68, 1
      %p469 = scmp.ne.s32.totalorder %s464, %s466
      %p470 = scmp.eq.s32.totalorder %s68, 0
      %p471 = por %p469, %p470
      %p472 = scmp.ne.s32.totalorder %s464, %s466
      %p473 = scmp.eq.s32.totalorder %s73, 1
      %p474 = por %p472, %p473
      %p475 = scmp.ne.s32.totalorder %s466, %s467
      %p476 = scmp.eq.s32.totalorder %s73, 0
      %p477 = por %p475, %p476
      %p478 = scmp.ne.s32.totalorder %s466, %s467
      %p479 = scmp.eq.s32.totalorder %s74, 1
      %p480 = por %p478, %p479
      %p482 = scmp.ne.s32.totalorder %s467, %s481
      %p483 = scmp.eq.s32.totalorder %s74, 0
      %p484 = por %p482, %p483
      %s486 = sadd.s32 %s485, 1
      %p489 = scmp.eq.s32.totalorder %s68, 1
      %p490 = scmp.ne.s32.totalorder %s485, %s487
      %p491 = scmp.eq.s32.totalorder %s68, 0
      %p492 = por %p490, %p491
      %p493 = scmp.ne.s32.totalorder %s485, %s487
      %p494 = scmp.eq.s32.totalorder %s73, 1
      %p495 = por %p493, %p494
      %p496 = scmp.ne.s32.totalorder %s487, %s488
      %p497 = scmp.eq.s32.totalorder %s73, 0
      %p498 = por %p496, %p497
      %p499 = scmp.ne.s32.totalorder %s487, %s488
      %p500 = scmp.eq.s32.totalorder %s74, 1
      %p501 = por %p499, %p500
      %p503 = scmp.ne.s32.totalorder %s488, %s502
      %p504 = scmp.eq.s32.totalorder %s74, 0
      %p505 = por %p503, %p504
      %s507 = sadd.s32 %s506, 1
      %p510 = scmp.eq.s32.totalorder %s68, 1
      %p511 = scmp.ne.s32.totalorder %s506, %s508
      %p512 = scmp.eq.s32.totalorder %s68, 0
      %p513 = por %p511, %p512
      %p514 = scmp.ne.s32.totalorder %s506, %s508
      %p515 = scmp.eq.s32.totalorder %s73, 1
      %p516 = por %p514, %p515
      %p517 = scmp.ne.s32.totalorder %s508, %s509
      %p518 = scmp.eq.s32.totalorder %s73, 0
      %p519 = por %p517, %p518
      %p520 = scmp.ne.s32.totalorder %s508, %s509
      %p521 = scmp.eq.s32.totalorder %s74, 1
      %p522 = por %p520, %p521
      %p524 = scmp.ne.s32.totalorder %s509, %s523
      %p525 = scmp.eq.s32.totalorder %s74, 0
      %p526 = por %p524, %p525
      %s528 = sadd.s32 %s527, 1
      %p531 = scmp.eq.s32.totalorder %s68, 1
      %p532 = scmp.ne.s32.totalorder %s527, %s529
      %p533 = scmp.eq.s32.totalorder %s68, 0
      %p534 = por %p532, %p533
      %p535 = scmp.ne.s32.totalorder %s527, %s529
      %p536 = scmp.eq.s32.totalorder %s73, 1
      %p537 = por %p535, %p536
      %p538 = scmp.ne.s32.totalorder %s529, %s530
      %p539 = scmp.eq.s32.totalorder %s73, 0
      %p540 = por %p538, %p539
      %p541 = scmp.ne.s32.totalorder %s529, %s530
      %p542 = scmp.eq.s32.totalorder %s74, 1
      %p543 = por %p541, %p542
      %p545 = scmp.ne.s32.totalorder %s530, %s544
      %p546 = scmp.eq.s32.totalorder %s74, 0
      %p547 = por %p545, %p546
      %s549 = sadd.s32 %s548, 1
      %p552 = scmp.eq.s32.totalorder %s68, 1
      %p553 = scmp.ne.s32.totalorder %s548, %s550
      %p554 = scmp.eq.s32.totalorder %s68, 0
      %p555 = por %p553, %p554
      %p556 = scmp.ne.s32.totalorder %s548, %s550
      %p557 = scmp.eq.s32.totalorder %s73, 1
      %p558 = por %p556, %p557
      %p559 = scmp.ne.s32.totalorder %s550, %s551
      %p560 = scmp.eq.s32.totalorder %s73, 0
      %p561 = por %p559, %p560
      %p562 = scmp.ne.s32.totalorder %s550, %s551
      %p563 = scmp.eq.s32.totalorder %s74, 1
      %p564 = por %p562, %p563
      %p566 = scmp.ne.s32.totalorder %s551, %s565
      %p567 = scmp.eq.s32.totalorder %s74, 0
      %p568 = por %p566, %p567
      %s570 = sadd.s32 %s569, 1
      %p573 = scmp.eq.s32.totalorder %s68, 1
      %p574 = scmp.ne.s32.totalorder %s569, %s571
      %p575 = scmp.eq.s32.totalorder %s68, 0
      %p576 = por %p574, %p575
      %p577 = scmp.ne.s32.totalorder %s569, %s571
      %p578 = scmp.eq.s32.totalorder %s73, 1
      %p579 = por %p577, %p578
      %p580 = scmp.ne.s32.totalorder %s571, %s572
      %p581 = scmp.eq.s32.totalorder %s73, 0
      %p582 = por %p580, %p581
      %p583 = scmp.ne.s32.totalorder %s571, %s572
      %p584 = scmp.eq.s32.totalorder %s74, 1
      %p585 = por %p583, %p584
      %p587 = scmp.ne.s32.totalorder %s572, %s586
      %p588 = scmp.eq.s32.totalorder %s74, 0
      %p589 = por %p587, %p588
      %s591 = sadd.s32 %s590, 1
      %p594 = scmp.eq.s32.totalorder %s68, 1
      %p595 = scmp.ne.s32.totalorder %s590, %s592
      %p596 = scmp.eq.s32.totalorder %s68, 0
      %p597 = por %p595, %p596
      %p598 = scmp.ne.s32.totalorder %s590, %s592
      %p599 = scmp.eq.s32.totalorder %s73, 1
      %p600 = por %p598, %p599
      %p601 = scmp.ne.s32.totalorder %s592, %s593
      %p602 = scmp.eq.s32.totalorder %s73, 0
      %p603 = por %p601, %p602
      %p604 = scmp.ne.s32.totalorder %s592, %s593
      %p605 = scmp.eq.s32.totalorder %s74, 1
      %p606 = por %p604, %p605
      %p608 = scmp.ne.s32.totalorder %s593, %s607
      %p609 = scmp.eq.s32.totalorder %s74, 0
      %p610 = por %p608, %p609
      %s612 = sadd.s32 %s611, 1
      %p615 = scmp.eq.s32.totalorder %s68, 1
      %p616 = scmp.ne.s32.totalorder %s611, %s613
      %p617 = scmp.eq.s32.totalorder %s68, 0
      %p618 = por %p616, %p617
      %p619 = scmp.ne.s32.totalorder %s611, %s613
      %p620 = scmp.eq.s32.totalorder %s73, 1
      %p621 = por %p619, %p620
      %p622 = scmp.ne.s32.totalorder %s613, %s614
      %p623 = scmp.eq.s32.totalorder %s73, 0
      %p624 = por %p622, %p623
      %p625 = scmp.ne.s32.totalorder %s613, %s614
      %p626 = scmp.eq.s32.totalorder %s74, 1
      %p627 = por %p625, %p626
      %p629 = scmp.ne.s32.totalorder %s614, %s628
      %p630 = scmp.eq.s32.totalorder %s74, 0
      %p631 = por %p629, %p630
      %s633 = sadd.s32 %s632, 1
      %p636 = scmp.eq.s32.totalorder %s68, 1
      %p637 = scmp.ne.s32.totalorder %s632, %s634
      %p638 = scmp.eq.s32.totalorder %s68, 0
      %p639 = por %p637, %p638
      %p640 = scmp.ne.s32.totalorder %s632, %s634
      %p641 = scmp.eq.s32.totalorder %s73, 1
      %p642 = por %p640, %p641
      %p643 = scmp.ne.s32.totalorder %s634, %s635
      %p644 = scmp.eq.s32.totalorder %s73, 0
      %p645 = por %p643, %p644
      %p646 = scmp.ne.s32.totalorder %s634, %s635
      %p647 = scmp.eq.s32.totalorder %s74, 1
      %p648 = por %p646, %p647
      %p650 = scmp.ne.s32.totalorder %s635, %s649
      %p651 = scmp.eq.s32.totalorder %s74, 0
      %p652 = por %p650, %p651
      %s654 = sadd.s32 %s653, 1
      %p657 = scmp.eq.s32.totalorder %s68, 1
      %p658 = scmp.ne.s32.totalorder %s653, %s655
      %p659 = scmp.eq.s32.totalorder %s68, 0
      %p660 = por %p658, %p659
      %p661 = scmp.ne.s32.totalorder %s653, %s655
      %p662 = scmp.eq.s32.totalorder %s73, 1
      %p663 = por %p661, %p662
      %p664 = scmp.ne.s32.totalorder %s655, %s656
      %p665 = scmp.eq.s32.totalorder %s73, 0
      %p666 = por %p664, %p665
      %p667 = scmp.ne.s32.totalorder %s655, %s656
      %p668 = scmp.eq.s32.totalorder %s74, 1
      %p669 = por %p667, %p668
      %p671 = scmp.ne.s32.totalorder %s656, %s670
      %p672 = scmp.eq.s32.totalorder %s74, 0
      %p673 = por %p671, %p672
      %s675 = sadd.s32 %s674, 1
      %p678 = scmp.eq.s32.totalorder %s68, 1
      %p679 = scmp.ne.s32.totalorder %s674, %s676
      %p680 = scmp.eq.s32.totalorder %s68, 0
      %p681 = por %p679, %p680
      %p682 = scmp.ne.s32.totalorder %s674, %s676
      %p683 = scmp.eq.s32.totalorder %s73, 1
      %p684 = por %p682, %p683
      %p685 = scmp.ne.s32.totalorder %s676, %s677
      %p686 = scmp.eq.s32.totalorder %s73, 0
      %p687 = por %p685, %p686
      %p688 = scmp.ne.s32.totalorder %s676, %s677
      %p689 = scmp.eq.s32.totalorder %s74, 1
      %p690 = por %p688, %p689
      %p692 = scmp.ne.s32.totalorder %s677, %s691
      %p693 = scmp.eq.s32.totalorder %s74, 0
      %p694 = por %p692, %p693
      %s695 = ssub.s32 %s68, %s75
      %p696 = scmp.eq.s32.totalorder %s695, 0
      %s698 = sadd.s32 %s697, 1
      %s699 = scalar_select %p696, %s697, %s698
      %p702 = pneg %p696
      %p703 = scmp.eq.s32.totalorder %s68, 1
      %p704 = por %p702, %p703
      %p705 = scmp.ne.s32.totalorder %s697, %s700
      %p706 = scmp.eq.s32.totalorder %s68, 0
      %p707 = por %p705, %p706
      %p708 = scmp.ne.s32.totalorder %s697, %s700
      %p709 = scmp.eq.s32.totalorder %s73, 1
      %p710 = por %p708, %p709
      %p711 = scmp.ne.s32.totalorder %s700, %s701
      %p712 = scmp.eq.s32.totalorder %s73, 0
      %p713 = por %p711, %p712
      %p714 = scmp.ne.s32.totalorder %s700, %s701
      %p715 = scmp.eq.s32.totalorder %s74, 1
      %p716 = por %p714, %p715
      %p718 = scmp.ne.s32.totalorder %s701, %s717
      %p719 = scmp.eq.s32.totalorder %s74, 0
      %p720 = por %p718, %p719
      %p721 = scmp.le.s32.totalorder 1, %s68
      %p722 = scmp.lt.s32.totalorder %s68, 3
      %p723 = pnand %p721, %p722
      %p724 = pneg %p723
      // Predicated region
      $region9: #{forward.1} parent=5 // pred_check
        _
      $region10: #{forward.1} parent=5 // pred_check_branch
        %726 = sbr.rel (%p723) target = $region12
      $region11: #{forward.1} parent=5 // pred_region
        %s727 = ssub.s32 %s68, 1
        // Predicated region
        $region13: #{forward.1} parent=11 // pred_check
          %p728 = pneg %p141
        $region14: #{forward.1} parent=11 // pred_check_branch
          %730 = sbr.rel (%p728) target = $region16
        $region15: #{forward.1} parent=11 // pred_region
          _
        $region16: #{forward.1} parent=11 // pred_fallthru
          _
        // Predicated region
        $region17: #{forward.1} parent=11 // pred_check
          %p731 = pneg %p162
        $region18: #{forward.1} parent=11 // pred_check_branch
          %733 = sbr.rel (%p731) target = $region20
        $region19: #{forward.1} parent=11 // pred_region
          _
        $region20: #{forward.1} parent=11 // pred_fallthru
          _
        // Predicated region
        $region21: #{forward.1} parent=11 // pred_check
          %p734 = pneg %p183
        $region22: #{forward.1} parent=11 // pred_check_branch
          %736 = sbr.rel (%p734) target = $region24
        $region23: #{forward.1} parent=11 // pred_region
          _
        $region24: #{forward.1} parent=11 // pred_fallthru
          _
        // Predicated region
        $region25: #{forward.1} parent=11 // pred_check
          %p737 = pneg %p204
        $region26: #{forward.1} parent=11 // pred_check_branch
          %739 = sbr.rel (%p737) target = $region28
        $region27: #{forward.1} parent=11 // pred_region
          _
        $region28: #{forward.1} parent=11 // pred_fallthru
          _
        // Predicated region
        $region29: #{forward.1} parent=11 // pred_check
          %p740 = pneg %p225
        $region30: #{forward.1} parent=11 // pred_check_branch
          %742 = sbr.rel (%p740) target = $region32
        $region31: #{forward.1} parent=11 // pred_region
          _
        $region32: #{forward.1} parent=11 // pred_fallthru
          _
        // Predicated region
        $region33: #{forward.1} parent=11 // pred_check
          %p743 = pneg %p246
        $region34: #{forward.1} parent=11 // pred_check_branch
          %745 = sbr.rel (%p743) target = $region36
        $region35: #{forward.1} parent=11 // pred_region
          _
        $region36: #{forward.1} parent=11 // pred_fallthru
          _
        // Predicated region
        $region37: #{forward.1} parent=11 // pred_check
          %p746 = pneg %p267
        $region38: #{forward.1} parent=11 // pred_check_branch
          %748 = sbr.rel (%p746) target = $region40
        $region39: #{forward.1} parent=11 // pred_region
          _
        $region40: #{forward.1} parent=11 // pred_fallthru
          _
        // Predicated region
        $region41: #{forward.1} parent=11 // pred_check
          %p749 = pneg %p288
        $region42: #{forward.1} parent=11 // pred_check_branch
          %751 = sbr.rel (%p749) target = $region44
        $region43: #{forward.1} parent=11 // pred_region
          _
        $region44: #{forward.1} parent=11 // pred_fallthru
          _
        // Predicated region
        $region45: #{forward.1} parent=11 // pred_check
          %p752 = pneg %p309
        $region46: #{forward.1} parent=11 // pred_check_branch
          %754 = sbr.rel (%p752) target = $region48
        $region47: #{forward.1} parent=11 // pred_region
          _
        $region48: #{forward.1} parent=11 // pred_fallthru
          _
        // Predicated region
        $region49: #{forward.1} parent=11 // pred_check
          %p755 = pneg %p330
        $region50: #{forward.1} parent=11 // pred_check_branch
          %757 = sbr.rel (%p755) target = $region52
        $region51: #{forward.1} parent=11 // pred_region
          _
        $region52: #{forward.1} parent=11 // pred_fallthru
          _
        // Predicated region
        $region53: #{forward.1} parent=11 // pred_check
          %p758 = pneg %p351
        $region54: #{forward.1} parent=11 // pred_check_branch
          %760 = sbr.rel (%p758) target = $region56
        $region55: #{forward.1} parent=11 // pred_region
          _
        $region56: #{forward.1} parent=11 // pred_fallthru
          _
        // Predicated region
        $region57: #{forward.1} parent=11 // pred_check
          %p761 = pneg %p372
        $region58: #{forward.1} parent=11 // pred_check_branch
          %763 = sbr.rel (%p761) target = $region60
        $region59: #{forward.1} parent=11 // pred_region
          _
        $region60: #{forward.1} parent=11 // pred_fallthru
          _
        // Predicated region
        $region61: #{forward.1} parent=11 // pred_check
          %p764 = pneg %p393
        $region62: #{forward.1} parent=11 // pred_check_branch
          %766 = sbr.rel (%p764) target = $region64
        $region63: #{forward.1} parent=11 // pred_region
          _
        $region64: #{forward.1} parent=11 // pred_fallthru
          _
        // Predicated region
        $region65: #{forward.1} parent=11 // pred_check
          %p767 = pneg %p414
        $region66: #{forward.1} parent=11 // pred_check_branch
          %769 = sbr.rel (%p767) target = $region68
        $region67: #{forward.1} parent=11 // pred_region
          _
        $region68: #{forward.1} parent=11 // pred_fallthru
          _
        // Predicated region
        $region69: #{forward.1} parent=11 // pred_check
          %p770 = pneg %p435
        $region70: #{forward.1} parent=11 // pred_check_branch
          %772 = sbr.rel (%p770) target = $region72
        $region71: #{forward.1} parent=11 // pred_region
          _
        $region72: #{forward.1} parent=11 // pred_fallthru
          _
        // Predicated region
        $region73: #{forward.1} parent=11 // pred_check
          %p773 = pneg %p456
        $region74: #{forward.1} parent=11 // pred_check_branch
          %775 = sbr.rel (%p773) target = $region76
        $region75: #{forward.1} parent=11 // pred_region
          _
        $region76: #{forward.1} parent=11 // pred_fallthru
          _
        // Predicated region
        $region77: #{forward.1} parent=11 // pred_check
          %p776 = pneg %p477
        $region78: #{forward.1} parent=11 // pred_check_branch
          %778 = sbr.rel (%p776) target = $region80
        $region79: #{forward.1} parent=11 // pred_region
          _
        $region80: #{forward.1} parent=11 // pred_fallthru
          _
        // Predicated region
        $region81: #{forward.1} parent=11 // pred_check
          %p779 = pneg %p498
        $region82: #{forward.1} parent=11 // pred_check_branch
          %781 = sbr.rel (%p779) target = $region84
        $region83: #{forward.1} parent=11 // pred_region
          _
        $region84: #{forward.1} parent=11 // pred_fallthru
          _
        // Predicated region
        $region85: #{forward.1} parent=11 // pred_check
          %p782 = pneg %p519
        $region86: #{forward.1} parent=11 // pred_check_branch
          %784 = sbr.rel (%p782) target = $region88
        $region87: #{forward.1} parent=11 // pred_region
          _
        $region88: #{forward.1} parent=11 // pred_fallthru
          _
        // Predicated region
        $region89: #{forward.1} parent=11 // pred_check
          %p785 = pneg %p540
        $region90: #{forward.1} parent=11 // pred_check_branch
          %787 = sbr.rel (%p785) target = $region92
        $region91: #{forward.1} parent=11 // pred_region
          _
        $region92: #{forward.1} parent=11 // pred_fallthru
          _
        // Predicated region
        $region93: #{forward.1} parent=11 // pred_check
          %p788 = pneg %p561
        $region94: #{forward.1} parent=11 // pred_check_branch
          %790 = sbr.rel (%p788) target = $region96
        $region95: #{forward.1} parent=11 // pred_region
          _
        $region96: #{forward.1} parent=11 // pred_fallthru
          _
        // Predicated region
        $region97: #{forward.1} parent=11 // pred_check
          %p791 = pneg %p582
        $region98: #{forward.1} parent=11 // pred_check_branch
          %793 = sbr.rel (%p791) target = $region100
        $region99: #{forward.1} parent=11 // pred_region
          _
        $region100: #{forward.1} parent=11 // pred_fallthru
          _
        // Predicated region
        $region101: #{forward.1} parent=11 // pred_check
          %p794 = pneg %p603
        $region102: #{forward.1} parent=11 // pred_check_branch
          %796 = sbr.rel (%p794) target = $region104
        $region103: #{forward.1} parent=11 // pred_region
          _
        $region104: #{forward.1} parent=11 // pred_fallthru
          _
        // Predicated region
        $region105: #{forward.1} parent=11 // pred_check
          %p797 = pneg %p624
        $region106: #{forward.1} parent=11 // pred_check_branch
          %799 = sbr.rel (%p797) target = $region108
        $region107: #{forward.1} parent=11 // pred_region
          _
        $region108: #{forward.1} parent=11 // pred_fallthru
          _
        // Predicated region
        $region109: #{forward.1} parent=11 // pred_check
          %p800 = pneg %p645
        $region110: #{forward.1} parent=11 // pred_check_branch
          %802 = sbr.rel (%p800) target = $region112
        $region111: #{forward.1} parent=11 // pred_region
          _
        $region112: #{forward.1} parent=11 // pred_fallthru
          _
        // Predicated region
        $region113: #{forward.1} parent=11 // pred_check
          %p803 = pneg %p666
        $region114: #{forward.1} parent=11 // pred_check_branch
          %805 = sbr.rel (%p803) target = $region116
        $region115: #{forward.1} parent=11 // pred_region
          _
        $region116: #{forward.1} parent=11 // pred_fallthru
          _
        // Predicated region
        $region117: #{forward.1} parent=11 // pred_check
          %p806 = pneg %p687
        $region118: #{forward.1} parent=11 // pred_check_branch
          %808 = sbr.rel (%p806) target = $region120
        $region119: #{forward.1} parent=11 // pred_region
          _
        $region120: #{forward.1} parent=11 // pred_fallthru
          _
      $region12: #{forward.1} parent=5 // pred_fallthru
        _
      %p809 = scmp.lt.s32.totalorder %s68, 2
      // Predicated region
      $region121: #{forward.1} parent=5 // pred_check
        %p810 = pneg %p809
      $region122: #{forward.1} parent=5 // pred_check_branch
        %812 = sbr.rel (%p810) target = $region124
      $region123: #{forward.1} parent=5 // pred_region
        // Predicated region
        $region125: #{forward.1} parent=123 // pred_check
          %p813 = pneg %p88
        $region126: #{forward.1} parent=123 // pred_check_branch
          %815 = sbr.rel (%p813) target = $region128
        $region127: #{forward.1} parent=123 // pred_region
          %p816 = scmp.lt.s32.totalorder %s68, 1
          %s817 = scalar_select %p816, %s68, 1
          %s818 = smul.addr %s817, 32
          %s819 = smul.addr %s818, 8
          %s820 = scalar_lea.vmem %s1, %s819
        $region128: #{forward.1} parent=123 // pred_fallthru
          _
        // Predicated region
        $region129: #{forward.1} parent=123 // pred_check
          %p821 = pneg %p114
        $region130: #{forward.1} parent=123 // pred_check_branch
          %823 = sbr.rel (%p821) target = $region132
        $region131: #{forward.1} parent=123 // pred_region
          %p824 = scmp.lt.s32.totalorder %s68, 1
          %s825 = scalar_select %p824, %s68, 1
          %s826 = scalar_lea.vmem %s3, %s825
        $region132: #{forward.1} parent=123 // pred_fallthru
          _
      $region124: #{forward.1} parent=5 // pred_fallthru
        _
      %p827 = scmp.le.s32.totalorder 1, %s68
      %p828 = scmp.lt.s32.totalorder %s68, 3
      %p829 = pnand %p827, %p828
      %p830 = pneg %p829
      // Predicated region
      $region133: #{forward.1} parent=5 // pred_check
        _
      $region134: #{forward.1} parent=5 // pred_check_branch
        %832 = sbr.rel (%p829) target = $region136
      $region135: #{forward.1} parent=5 // pred_region
        %s833 = ssub.s32 %s68, 1
        %p834 = scmp.lt.s32.totalorder %s73, 1
        %s835 = scalar_select %p834, %s73, 1
        %s836 = smul.addr %s835, 32
        %s837 = smul.addr %s836, 8
        %s838 = scalar_lea.vmem %s1, %s837
        %p839 = pneg %p94
        %p840 = pneg %p91
        %p841 = scmp.lt.s32.totalorder %s73, 1
        %s842 = scalar_select %p841, %s73, 1
        %s843 = scalar_lea.vmem %s3, %s842
        %p844 = pneg %p120
        %p845 = pneg %p117
        %p846 = pneg %p141
        %p847 = pneg %p138
        %p848 = pneg %p162
        %p849 = pneg %p159
        %p850 = pneg %p183
        %p851 = pneg %p180
        %p852 = pneg %p204
        %p853 = pneg %p201
        %p854 = pneg %p225
        %p855 = pneg %p222
        %p856 = pneg %p246
        %p857 = pneg %p243
        %p858 = pneg %p267
        %p859 = pneg %p264
        %p860 = pneg %p288
        %p861 = pneg %p285
        %p862 = pneg %p309
        %p863 = pneg %p306
        %p864 = pneg %p330
        %p865 = pneg %p327
        %p866 = pneg %p351
        %p867 = pneg %p348
        %p868 = pneg %p372
        %p869 = pneg %p369
        %p870 = pneg %p393
        %p871 = pneg %p390
        %p872 = pneg %p414
        %p873 = pneg %p411
        %p874 = pneg %p435
        %p875 = pneg %p432
        %p876 = pneg %p456
        %p877 = pneg %p453
        %p878 = pneg %p477
        %p879 = pneg %p474
        %p880 = pneg %p498
        %p881 = pneg %p495
        %p882 = pneg %p519
        %p883 = pneg %p516
        %p884 = pneg %p540
        %p885 = pneg %p537
        %p886 = pneg %p561
        %p887 = pneg %p558
        %p888 = pneg %p582
        %p889 = pneg %p579
        %p890 = pneg %p603
        %p891 = pneg %p600
        %p892 = pneg %p624
        %p893 = pneg %p621
        %p894 = pneg %p645
        %p895 = pneg %p642
        %p896 = pneg %p666
        %p897 = pneg %p663
        %p898 = pneg %p687
        %p899 = pneg %p684
        %p900 = pneg %p713
        %p901 = pneg %p710
        %s902 = sand.u32 %s700, 1
        %s903 = scalar_lea.sflag [#allocation4], %s902
        %s904 = sand.u32 %s700, 1
        %s905 = scalar_lea.vmem [#allocation3], %s904
        %p906 = scmp.lt.s32.totalorder %s73, 1
        %s907 = scalar_select %p906, %s73, 1
        %s908 = smul.addr %s907, 32
        %s909 = smul.addr %s908, 8
        %s910 = scalar_lea.vmem %s1, %s909
        %p911 = scmp.lt.s32.totalorder %s73, 1
        %s912 = scalar_select %p911, %s73, 1
        %s913 = scalar_lea.vmem %s3, %s912
        %v914 = vld [vmem:[%s5] sm:$0xff]
        %v915 = vld [vmem:[%s5 + $0x8] sm:$0xff]
        %v916 = vld [vmem:[%s5 + $0x10] sm:$0xff]
        %v917 = vld [vmem:[%s5 + $0x18] sm:$0xff]
        %v918 = vld [vmem:[%s5 + $0x20] sm:$0xff]
        %v919 = vld [vmem:[%s5 + $0x28] sm:$0xff]
        %v920 = vld [vmem:[%s5 + $0x30] sm:$0xff]
        %v921 = vld [vmem:[%s5 + $0x38] sm:$0xff]
        %v922 = vld [vmem:[%s5 + $0x40] sm:$0xff]
        %v923 = vld [vmem:[%s5 + $0x48] sm:$0xff]
        %v924 = vld [vmem:[%s5 + $0x50] sm:$0xff]
        %v925 = vld [vmem:[%s5 + $0x58] sm:$0xff]
        %v926 = vld [vmem:[%s5 + $0x60] sm:$0xff]
        %v927 = vld [vmem:[%s5 + $0x68] sm:$0xff]
        %v928 = vld [vmem:[%s5 + $0x70] sm:$0xff]
        %v929 = vld [vmem:[%s5 + $0x78] sm:$0xff]
        %v930 = vld [vmem:[%s5 + $0x80] sm:$0xff]
        %v931 = vld [vmem:[%s5 + $0x88] sm:$0xff]
        %v932 = vld [vmem:[%s5 + $0x90] sm:$0xff]
        %v933 = vld [vmem:[%s5 + $0x98] sm:$0xff]
        %v934 = vld [vmem:[%s5 + $0xa0] sm:$0xff]
        %v935 = vld [vmem:[%s5 + $0xa8] sm:$0xff]
        %v936 = vld [vmem:[%s5 + $0xb0] sm:$0xff]
        %v937 = vld [vmem:[%s5 + $0xb8] sm:$0xff]
        %v938 = vld [vmem:[%s7] sm:$0x1]
        %v939 = vld [vmem:[%s9] sm:$0x1]
        %v940 = vld [vmem:[%s910] sm:$0xff]
        %v941 = vld [vmem:[%s910 + $0x8] sm:$0xff]
        %v942 = vld [vmem:[%s910 + $0x10] sm:$0xff]
        %v943 = vld [vmem:[%s910 + $0x18] sm:$0xff]
        %v944 = vld [vmem:[%s910 + $0x20] sm:$0xff]
        %v945 = vld [vmem:[%s910 + $0x28] sm:$0xff]
        %v946 = vld [vmem:[%s910 + $0x30] sm:$0xff]
        %v947 = vld [vmem:[%s910 + $0x38] sm:$0xff]
        %vm948 = vcmask 523264
        %v950 = vsel %vm948, %v941, 0
        %v953 = vsel %vm948, %v943, 0
        %v956 = vsel %vm948, %v945, 0
        %v959 = vsel %vm948, %v947, 0
        %961 = vmatpush.msra.mxu0 %v929
        %962 = vmatpush.msra.mxu0 %v928
        %963 = vmatpush.msra.mxu0 %v927
        %964 = vmatpush.msra.mxu0 %v926
        %965 = vmatpush.msra.mxu0 %v925
        %966 = vmatpush.msra.mxu0 %v924
        %967 = vmatpush.msra.mxu0 %v923
        %968 = vmatpush.msra.mxu0 %v922
        %969 = vmatpush.msra.mxu0 %v921
        %970 = vmatpush.msra.mxu0 %v920
        %971 = vmatpush.msra.mxu0 %v919
        %972 = vmatpush.msra.mxu0 %v918
        %973 = vmatpush.msra.mxu0 %v917
        %974 = vmatpush.msra.mxu0 %v916
        %975 = vmatpush.msra.mxu0 %v915
        %976 = vmatpush.msra.mxu0 %v914
        %977 = vmatmul.f32.gmra.mxu0 %v940
        %v978 = vpop.f32.mrf.mxu0
        %v979 = vadd.f32 0.0, %v978
        %980 = vmatmul.f32.gmra.mxu0 %v942
        %v981 = vpop.f32.mrf.mxu0
        %v982 = vadd.f32 0.0, %v981
        %983 = vmatmul.f32.gmra.mxu0 %v944
        %v984 = vpop.f32.mrf.mxu0
        %v985 = vadd.f32 0.0, %v984
        %986 = vmatmul.f32.gmra.mxu0 %v946
        %v987 = vpop.f32.mrf.mxu0
        %v988 = vadd.f32 0.0, %v987
        %989 = vdwg.mxu0
        %990 = vmatpush.msra.mxu0 0.0
        %991 = vmatpush.msra.mxu0 0.0
        %992 = vmatpush.msra.mxu0 0.0
        %993 = vmatpush.msra.mxu0 0.0
        %994 = vmatpush.msra.mxu0 0.0
        %995 = vmatpush.msra.mxu0 0.0
        %996 = vmatpush.msra.mxu0 0.0
        %997 = vmatpush.msra.mxu0 0.0
        %998 = vmatpush.msra.mxu0 %v937
        %999 = vmatpush.msra.mxu0 %v936
        %1000 = vmatpush.msra.mxu0 %v935
        %1001 = vmatpush.msra.mxu0 %v934
        %1002 = vmatpush.msra.mxu0 %v933
        %1003 = vmatpush.msra.mxu0 %v932
        %1004 = vmatpush.msra.mxu0 %v931
        %1005 = vmatpush.msra.mxu0 %v930
        %1006 = vmatmul.f32.gmra.mxu0 %v950
        %v1007 = vpop.f32.mrf.mxu0
        %v1008 = vadd.f32 %v979, %v1007
        %1009 = vmatmul.f32.gmra.mxu0 %v953
        %v1010 = vpop.f32.mrf.mxu0
        %v1011 = vadd.f32 %v982, %v1010
        %1012 = vmatmul.f32.gmra.mxu0 %v956
        %v1013 = vpop.f32.mrf.mxu0
        %v1014 = vadd.f32 %v985, %v1013
        %1015 = vmatmul.f32.gmra.mxu0 %v959
        %v1016 = vpop.f32.mrf.mxu0
        %v1017 = vadd.f32 %v988, %v1016
        %1018 = vdwg.mxu0
        %v1020 = vperm.slane %v938, 0
        %v1022 = vmul.f32 %v1008, %v1020
        %v1023 = vmul.f32 %v1011, %v1020
        %v1024 = vmul.f32 %v1014, %v1020
        %v1025 = vmul.f32 %v1017, %v1020
        %v1027 = vperm.slane %v939, 0
        %v1029 = vadd.f32 %v1022, %v1027
        %v1030 = vadd.f32 %v1023, %v1027
        %v1031 = vadd.f32 %v1024, %v1027
        %v1032 = vadd.f32 %v1025, %v1027
        %s1033 = scalar_lea.vmem %s910, 64
        %v1034 = vld [vmem:[%s1033] sm:$0xff]
        %v1035 = vld [vmem:[%s1033 + $0x8] sm:$0xff]
        %v1036 = vld [vmem:[%s1033 + $0x10] sm:$0xff]
        %v1037 = vld [vmem:[%s1033 + $0x18] sm:$0xff]
        %v1038 = vld [vmem:[%s1033 + $0x20] sm:$0xff]
        %v1039 = vld [vmem:[%s1033 + $0x28] sm:$0xff]
        %v1040 = vld [vmem:[%s1033 + $0x30] sm:$0xff]
        %v1041 = vld [vmem:[%s1033 + $0x38] sm:$0xff]
        %v1043 = vsel %vm948, %v1035, 0
        %v1046 = vsel %vm948, %v1037, 0
        %v1049 = vsel %vm948, %v1039, 0
        %v1052 = vsel %vm948, %v1041, 0
        %1054 = vmatpush.msra.mxu0 %v929
        %1055 = vmatpush.msra.mxu0 %v928
        %1056 = vmatpush.msra.mxu0 %v927
        %1057 = vmatpush.msra.mxu0 %v926
        %1058 = vmatpush.msra.mxu0 %v925
        %1059 = vmatpush.msra.mxu0 %v924
        %1060 = vmatpush.msra.mxu0 %v923
        %1061 = vmatpush.msra.mxu0 %v922
        %1062 = vmatpush.msra.mxu0 %v921
        %1063 = vmatpush.msra.mxu0 %v920
        %1064 = vmatpush.msra.mxu0 %v919
        %1065 = vmatpush.msra.mxu0 %v918
        %1066 = vmatpush.msra.mxu0 %v917
        %1067 = vmatpush.msra.mxu0 %v916
        %1068 = vmatpush.msra.mxu0 %v915
        %1069 = vmatpush.msra.mxu0 %v914
        %1070 = vmatmul.f32.gmra.mxu0 %v1034
        %v1071 = vpop.f32.mrf.mxu0
        %v1072 = vadd.f32 0.0, %v1071
        %1073 = vmatmul.f32.gmra.mxu0 %v1036
        %v1074 = vpop.f32.mrf.mxu0
        %v1075 = vadd.f32 0.0, %v1074
        %1076 = vmatmul.f32.gmra.mxu0 %v1038
        %v1077 = vpop.f32.mrf.mxu0
        %v1078 = vadd.f32 0.0, %v1077
        %1079 = vmatmul.f32.gmra.mxu0 %v1040
        %v1080 = vpop.f32.mrf.mxu0
        %v1081 = vadd.f32 0.0, %v1080
        %1082 = vdwg.mxu0
        %1083 = vmatpush.msra.mxu0 0.0
        %1084 = vmatpush.msra.mxu0 0.0
        %1085 = vmatpush.msra.mxu0 0.0
        %1086 = vmatpush.msra.mxu0 0.0
        %1087 = vmatpush.msra.mxu0 0.0
        %1088 = vmatpush.msra.mxu0 0.0
        %1089 = vmatpush.msra.mxu0 0.0
        %1090 = vmatpush.msra.mxu0 0.0
        %1091 = vmatpush.msra.mxu0 %v937
        %1092 = vmatpush.msra.mxu0 %v936
        %1093 = vmatpush.msra.mxu0 %v935
        %1094 = vmatpush.msra.mxu0 %v934
        %1095 = vmatpush.msra.mxu0 %v933
        %1096 = vmatpush.msra.mxu0 %v932
        %1097 = vmatpush.msra.mxu0 %v931
        %1098 = vmatpush.msra.mxu0 %v930
        %1099 = vmatmul.f32.gmra.mxu0 %v1043
        %v1100 = vpop.f32.mrf.mxu0
        %v1101 = vadd.f32 %v1072, %v1100
        %1102 = vmatmul.f32.gmra.mxu0 %v1046
        %v1103 = vpop.f32.mrf.mxu0
        %v1104 = vadd.f32 %v1075, %v1103
        %1105 = vmatmul.f32.gmra.mxu0 %v1049
        %v1106 = vpop.f32.mrf.mxu0
        %v1107 = vadd.f32 %v1078, %v1106
        %1108 = vmatmul.f32.gmra.mxu0 %v1052
        %v1109 = vpop.f32.mrf.mxu0
        %v1110 = vadd.f32 %v1081, %v1109
        %1111 = vdwg.mxu0
        %v1112 = vmul.f32 %v1101, %v1020
        %v1113 = vmul.f32 %v1104, %v1020
        %v1114 = vmul.f32 %v1107, %v1020
        %v1115 = vmul.f32 %v1110, %v1020
        %v1116 = vadd.f32 %v1112, %v1027
        %v1117 = vadd.f32 %v1113, %v1027
        %v1118 = vadd.f32 %v1114, %v1027
        %v1119 = vadd.f32 %v1115, %v1027
        %v1120 = vmax.f32 %v1029, %v1116
        %v1121 = vmax.f32 %v1030, %v1117
        %v1122 = vmax.f32 %v1031, %v1118
        %v1123 = vmax.f32 %v1032, %v1119
        %s1124 = scalar_lea.vmem %s910, 128
        %v1125 = vld [vmem:[%s1124] sm:$0xff]
        %v1126 = vld [vmem:[%s1124 + $0x8] sm:$0xff]
        %v1127 = vld [vmem:[%s1124 + $0x10] sm:$0xff]
        %v1128 = vld [vmem:[%s1124 + $0x18] sm:$0xff]
        %v1129 = vld [vmem:[%s1124 + $0x20] sm:$0xff]
        %v1130 = vld [vmem:[%s1124 + $0x28] sm:$0xff]
        %v1131 = vld [vmem:[%s1124 + $0x30] sm:$0xff]
        %v1132 = vld [vmem:[%s1124 + $0x38] sm:$0xff]
        %v1134 = vsel %vm948, %v1126, 0
        %v1137 = vsel %vm948, %v1128, 0
        %v1140 = vsel %vm948, %v1130, 0
        %v1143 = vsel %vm948, %v1132, 0
        %1145 = vmatpush.msra.mxu0 %v929
        %1146 = vmatpush.msra.mxu0 %v928
        %1147 = vmatpush.msra.mxu0 %v927
        %1148 = vmatpush.msra.mxu0 %v926
        %1149 = vmatpush.msra.mxu0 %v925
        %1150 = vmatpush.msra.mxu0 %v924
        %1151 = vmatpush.msra.mxu0 %v923
        %1152 = vmatpush.msra.mxu0 %v922
        %1153 = vmatpush.msra.mxu0 %v921
        %1154 = vmatpush.msra.mxu0 %v920
        %1155 = vmatpush.msra.mxu0 %v919
        %1156 = vmatpush.msra.mxu0 %v918
        %1157 = vmatpush.msra.mxu0 %v917
        %1158 = vmatpush.msra.mxu0 %v916
        %1159 = vmatpush.msra.mxu0 %v915
        %1160 = vmatpush.msra.mxu0 %v914
        %1161 = vmatmul.f32.gmra.mxu0 %v1125
        %v1162 = vpop.f32.mrf.mxu0
        %v1163 = vadd.f32 0.0, %v1162
        %1164 = vmatmul.f32.gmra.mxu0 %v1127
        %v1165 = vpop.f32.mrf.mxu0
        %v1166 = vadd.f32 0.0, %v1165
        %1167 = vmatmul.f32.gmra.mxu0 %v1129
        %v1168 = vpop.f32.mrf.mxu0
        %v1169 = vadd.f32 0.0, %v1168
        %1170 = vmatmul.f32.gmra.mxu0 %v1131
        %v1171 = vpop.f32.mrf.mxu0
        %v1172 = vadd.f32 0.0, %v1171
        %1173 = vdwg.mxu0
        %1174 = vmatpush.msra.mxu0 0.0
        %1175 = vmatpush.msra.mxu0 0.0
        %1176 = vmatpush.msra.mxu0 0.0
        %1177 = vmatpush.msra.mxu0 0.0
        %1178 = vmatpush.msra.mxu0 0.0
        %1179 = vmatpush.msra.mxu0 0.0
        %1180 = vmatpush.msra.mxu0 0.0
        %1181 = vmatpush.msra.mxu0 0.0
        %1182 = vmatpush.msra.mxu0 %v937
        %1183 = vmatpush.msra.mxu0 %v936
        %1184 = vmatpush.msra.mxu0 %v935
        %1185 = vmatpush.msra.mxu0 %v934
        %1186 = vmatpush.msra.mxu0 %v933
        %1187 = vmatpush.msra.mxu0 %v932
        %1188 = vmatpush.msra.mxu0 %v931
        %1189 = vmatpush.msra.mxu0 %v930
        %1190 = vmatmul.f32.gmra.mxu0 %v1134
        %v1191 = vpop.f32.mrf.mxu0
        %v1192 = vadd.f32 %v1163, %v1191
        %1193 = vmatmul.f32.gmra.mxu0 %v1137
        %v1194 = vpop.f32.mrf.mxu0
        %v1195 = vadd.f32 %v1166, %v1194
        %1196 = vmatmul.f32.gmra.mxu0 %v1140
        %v1197 = vpop.f32.mrf.mxu0
        %v1198 = vadd.f32 %v1169, %v1197
        %1199 = vmatmul.f32.gmra.mxu0 %v1143
        %v1200 = vpop.f32.mrf.mxu0
        %v1201 = vadd.f32 %v1172, %v1200
        %1202 = vdwg.mxu0
        %v1203 = vmul.f32 %v1192, %v1020
        %v1204 = vmul.f32 %v1195, %v1020
        %v1205 = vmul.f32 %v1198, %v1020
        %v1206 = vmul.f32 %v1201, %v1020
        %v1207 = vadd.f32 %v1203, %v1027
        %v1208 = vadd.f32 %v1204, %v1027
        %v1209 = vadd.f32 %v1205, %v1027
        %v1210 = vadd.f32 %v1206, %v1027
        %v1211 = vmax.f32 %v1120, %v1207
        %v1212 = vmax.f32 %v1121, %v1208
        %v1213 = vmax.f32 %v1122, %v1209
        %v1214 = vmax.f32 %v1123, %v1210
        %s1215 = scalar_lea.vmem %s910, 192
        %v1216 = vld [vmem:[%s1215] sm:$0xff]
        %v1217 = vld [vmem:[%s1215 + $0x8] sm:$0xff]
        %v1218 = vld [vmem:[%s1215 + $0x10] sm:$0xff]
        %v1219 = vld [vmem:[%s1215 + $0x18] sm:$0xff]
        %v1220 = vld [vmem:[%s1215 + $0x20] sm:$0xff]
        %v1221 = vld [vmem:[%s1215 + $0x28] sm:$0xff]
        %v1222 = vld [vmem:[%s1215 + $0x30] sm:$0xff]
        %v1223 = vld [vmem:[%s1215 + $0x38] sm:$0xff]
        %v1225 = vsel %vm948, %v1217, 0
        %v1228 = vsel %vm948, %v1219, 0
        %v1231 = vsel %vm948, %v1221, 0
        %v1234 = vsel %vm948, %v1223, 0
        %1236 = vmatpush.msra.mxu0 %v929
        %1237 = vmatpush.msra.mxu0 %v928
        %1238 = vmatpush.msra.mxu0 %v927
        %1239 = vmatpush.msra.mxu0 %v926
        %1240 = vmatpush.msra.mxu0 %v925
        %1241 = vmatpush.msra.mxu0 %v924
        %1242 = vmatpush.msra.mxu0 %v923
        %1243 = vmatpush.msra.mxu0 %v922
        %1244 = vmatpush.msra.mxu0 %v921
        %1245 = vmatpush.msra.mxu0 %v920
        %1246 = vmatpush.msra.mxu0 %v919
        %1247 = vmatpush.msra.mxu0 %v918
        %1248 = vmatpush.msra.mxu0 %v917
        %1249 = vmatpush.msra.mxu0 %v916
        %1250 = vmatpush.msra.mxu0 %v915
        %1251 = vmatpush.msra.mxu0 %v914
        %1252 = vmatmul.f32.gmra.mxu0 %v1216
        %v1253 = vpop.f32.mrf.mxu0
        %v1254 = vadd.f32 0.0, %v1253
        %1255 = vmatmul.f32.gmra.mxu0 %v1218
        %v1256 = vpop.f32.mrf.mxu0
        %v1257 = vadd.f32 0.0, %v1256
        %1258 = vmatmul.f32.gmra.mxu0 %v1220
        %v1259 = vpop.f32.mrf.mxu0
        %v1260 = vadd.f32 0.0, %v1259
        %1261 = vmatmul.f32.gmra.mxu0 %v1222
        %v1262 = vpop.f32.mrf.mxu0
        %v1263 = vadd.f32 0.0, %v1262
        %1264 = vdwg.mxu0
        %1265 = vmatpush.msra.mxu0 0.0
        %1266 = vmatpush.msra.mxu0 0.0
        %1267 = vmatpush.msra.mxu0 0.0
        %1268 = vmatpush.msra.mxu0 0.0
        %1269 = vmatpush.msra.mxu0 0.0
        %1270 = vmatpush.msra.mxu0 0.0
        %1271 = vmatpush.msra.mxu0 0.0
        %1272 = vmatpush.msra.mxu0 0.0
        %1273 = vmatpush.msra.mxu0 %v937
        %1274 = vmatpush.msra.mxu0 %v936
        %1275 = vmatpush.msra.mxu0 %v935
        %1276 = vmatpush.msra.mxu0 %v934
        %1277 = vmatpush.msra.mxu0 %v933
        %1278 = vmatpush.msra.mxu0 %v932
        %1279 = vmatpush.msra.mxu0 %v931
        %1280 = vmatpush.msra.mxu0 %v930
        %1281 = vmatmul.f32.gmra.mxu0 %v1225
        %v1282 = vpop.f32.mrf.mxu0
        %v1283 = vadd.f32 %v1254, %v1282
        %1284 = vmatmul.f32.gmra.mxu0 %v1228
        %v1285 = vpop.f32.mrf.mxu0
        %v1286 = vadd.f32 %v1257, %v1285
        %1287 = vmatmul.f32.gmra.mxu0 %v1231
        %v1288 = vpop.f32.mrf.mxu0
        %v1289 = vadd.f32 %v1260, %v1288
        %1290 = vmatmul.f32.gmra.mxu0 %v1234
        %v1291 = vpop.f32.mrf.mxu0
        %v1292 = vadd.f32 %v1263, %v1291
        %1293 = vdwg.mxu0
        %v1294 = vmul.f32 %v1283, %v1020
        %v1295 = vmul.f32 %v1286, %v1020
        %v1296 = vmul.f32 %v1289, %v1020
        %v1297 = vmul.f32 %v1292, %v1020
        %v1298 = vadd.f32 %v1294, %v1027
        %v1299 = vadd.f32 %v1295, %v1027
        %v1300 = vadd.f32 %v1296, %v1027
        %v1301 = vadd.f32 %v1297, %v1027
        %v1302 = vmax.f32 %v1211, %v1298
        %v1303 = vmax.f32 %v1212, %v1299
        %v1304 = vmax.f32 %v1213, %v1300
        %v1305 = vmax.f32 %v1214, %v1301
        %v1306 = vmax.f32 %v1302, 0.0
        %v1307 = vmax.f32 %v1303, 0.0
        %v1308 = vmax.f32 %v1304, 0.0
        %v1309 = vmax.f32 %v1305, 0.0
        %1310 = vst [vmem:[#allocation2] sm:$0xff] 0.0
        %1311 = vst [vmem:[#allocation2 + $0x28] sm:$0xff] 0.0
        %1312 = vst [vmem:[#allocation2 + $0x8] sm:$0xff] %v1306
        %1313 = vst [vmem:[#allocation2 + $0x10] sm:$0xff] %v1307
        %1314 = vst [vmem:[#allocation2 + $0x18] sm:$0xff] %v1308
        %1315 = vst [vmem:[#allocation2 + $0x20] sm:$0xff] %v1309
        %v1316 = vld [vmem:[#allocation2 + $0x4] sm:$0xff]
        %v1317 = vld [vmem:[#allocation2 + $0xc] sm:$0xff]
        %v1318 = vld [vmem:[#allocation2 + $0x14] sm:$0xff]
        %v1319 = vld [vmem:[#allocation2 + $0x1c] sm:$0xff]
        %v1320 = vld [vmem:[%s11] sm:$0xff]
        %v1321 = vld [vmem:[%s11 + $0x8] sm:$0xff]
        %v1322 = vld [vmem:[%s11 + $0x10] sm:$0xff]
        %v1323 = vld [vmem:[%s11 + $0x18] sm:$0xff]
        %v1324 = vld [vmem:[%s11 + $0x20] sm:$0xff]
        %v1325 = vld [vmem:[%s11 + $0x28] sm:$0xff]
        %v1326 = vld [vmem:[%s11 + $0x30] sm:$0xff]
        %v1327 = vld [vmem:[%s11 + $0x38] sm:$0xff]
        %v1328 = vld [vmem:[%s11 + $0x40] sm:$0xff]
        %v1329 = vld [vmem:[%s11 + $0x48] sm:$0xff]
        %v1330 = vld [vmem:[%s11 + $0x50] sm:$0xff]
        %v1331 = vld [vmem:[%s11 + $0x58] sm:$0xff]
        %v1332 = vld [vmem:[%s11 + $0x60] sm:$0xff]
        %v1333 = vld [vmem:[%s11 + $0x68] sm:$0xff]
        %v1334 = vld [vmem:[%s11 + $0x70] sm:$0xff]
        %v1335 = vld [vmem:[%s11 + $0x78] sm:$0xff]
        %v1336 = vld [vmem:[#allocation2 + $0x5] sm:$0xff]
        %v1337 = vld [vmem:[#allocation2 + $0xd] sm:$0xff]
        %v1338 = vld [vmem:[#allocation2 + $0x15] sm:$0xff]
        %v1339 = vld [vmem:[#allocation2 + $0x1d] sm:$0xff]
        %s1340 = scalar_lea.vmem %s11, 128
        %v1341 = vld [vmem:[%s1340] sm:$0xff]
        %v1342 = vld [vmem:[%s1340 + $0x8] sm:$0xff]
        %v1343 = vld [vmem:[%s1340 + $0x10] sm:$0xff]
        %v1344 = vld [vmem:[%s1340 + $0x18] sm:$0xff]
        %v1345 = vld [vmem:[%s1340 + $0x20] sm:$0xff]
        %v1346 = vld [vmem:[%s1340 + $0x28] sm:$0xff]
        %v1347 = vld [vmem:[%s1340 + $0x30] sm:$0xff]
        %v1348 = vld [vmem:[%s1340 + $0x38] sm:$0xff]
        %v1349 = vld [vmem:[%s1340 + $0x40] sm:$0xff]
        %v1350 = vld [vmem:[%s1340 + $0x48] sm:$0xff]
        %v1351 = vld [vmem:[%s1340 + $0x50] sm:$0xff]
        %v1352 = vld [vmem:[%s1340 + $0x58] sm:$0xff]
        %v1353 = vld [vmem:[%s1340 + $0x60] sm:$0xff]
        %v1354 = vld [vmem:[%s1340 + $0x68] sm:$0xff]
        %v1355 = vld [vmem:[%s1340 + $0x70] sm:$0xff]
        %v1356 = vld [vmem:[%s1340 + $0x78] sm:$0xff]
        %1357 = vmatpush.msra.mxu0 %v1356
        %1358 = vmatpush.msra.mxu0 %v1355
        %1359 = vmatpush.msra.mxu0 %v1354
        %1360 = vmatpush.msra.mxu0 %v1353
        %1361 = vmatpush.msra.mxu0 %v1352
        %1362 = vmatpush.msra.mxu0 %v1351
        %1363 = vmatpush.msra.mxu0 %v1350
        %1364 = vmatpush.msra.mxu0 %v1349
        %1365 = vmatpush.msra.mxu0 %v1348
        %1366 = vmatpush.msra.mxu0 %v1347
        %1367 = vmatpush.msra.mxu0 %v1346
        %1368 = vmatpush.msra.mxu0 %v1345
        %1369 = vmatpush.msra.mxu0 %v1344
        %1370 = vmatpush.msra.mxu0 %v1343
        %1371 = vmatpush.msra.mxu0 %v1342
        %1372 = vmatpush.msra.mxu0 %v1341
        %1373 = vmatmul.f32.gmra.mxu0 %v1336
        %v1374 = vpop.f32.mrf.mxu0
        %v1375 = vadd.f32 0.0, %v1374
        %1376 = vmatmul.f32.gmra.mxu0 %v1337
        %v1377 = vpop.f32.mrf.mxu0
        %v1378 = vadd.f32 0.0, %v1377
        %1379 = vmatmul.f32.gmra.mxu0 %v1338
        %v1380 = vpop.f32.mrf.mxu0
        %v1381 = vadd.f32 0.0, %v1380
        %1382 = vmatmul.f32.gmra.mxu0 %v1339
        %v1383 = vpop.f32.mrf.mxu0
        %v1384 = vadd.f32 0.0, %v1383
        %1385 = vdwg.mxu0
        %1386 = vmatpush.msra.mxu0 %v1335
        %1387 = vmatpush.msra.mxu0 %v1334
        %1388 = vmatpush.msra.mxu0 %v1333
        %1389 = vmatpush.msra.mxu0 %v1332
        %1390 = vmatpush.msra.mxu0 %v1331
        %1391 = vmatpush.msra.mxu0 %v1330
        %1392 = vmatpush.msra.mxu0 %v1329
        %1393 = vmatpush.msra.mxu0 %v1328
        %1394 = vmatpush.msra.mxu0 %v1327
        %1395 = vmatpush.msra.mxu0 %v1326
        %1396 = vmatpush.msra.mxu0 %v1325
        %1397 = vmatpush.msra.mxu0 %v1324
        %1398 = vmatpush.msra.mxu0 %v1323
        %1399 = vmatpush.msra.mxu0 %v1322
        %1400 = vmatpush.msra.mxu0 %v1321
        %1401 = vmatpush.msra.mxu0 %v1320
        %1402 = vmatmul.f32.gmra.mxu0 %v1316
        %v1403 = vpop.f32.mrf.mxu0
        %v1404 = vadd.f32 %v1375, %v1403
        %1405 = vmatmul.f32.gmra.mxu0 %v1317
        %v1406 = vpop.f32.mrf.mxu0
        %v1407 = vadd.f32 %v1378, %v1406
        %1408 = vmatmul.f32.gmra.mxu0 %v1318
        %v1409 = vpop.f32.mrf.mxu0
        %v1410 = vadd.f32 %v1381, %v1409
        %1411 = vmatmul.f32.gmra.mxu0 %v1319
        %v1412 = vpop.f32.mrf.mxu0
        %v1413 = vadd.f32 %v1384, %v1412
        %1414 = vdwg.mxu0
        %v1415 = vld [vmem:[#allocation2 + $0x6] sm:$0xff]
        %v1416 = vld [vmem:[#allocation2 + $0xe] sm:$0xff]
        %v1417 = vld [vmem:[#allocation2 + $0x16] sm:$0xff]
        %v1418 = vld [vmem:[#allocation2 + $0x1e] sm:$0xff]
        %s1419 = scalar_lea.vmem %s11, 256
        %v1420 = vld [vmem:[%s1419] sm:$0xff]
        %v1421 = vld [vmem:[%s1419 + $0x8] sm:$0xff]
        %v1422 = vld [vmem:[%s1419 + $0x10] sm:$0xff]
        %v1423 = vld [vmem:[%s1419 + $0x18] sm:$0xff]
        %v1424 = vld [vmem:[%s1419 + $0x20] sm:$0xff]
        %v1425 = vld [vmem:[%s1419 + $0x28] sm:$0xff]
        %v1426 = vld [vmem:[%s1419 + $0x30] sm:$0xff]
        %v1427 = vld [vmem:[%s1419 + $0x38] sm:$0xff]
        %v1428 = vld [vmem:[%s1419 + $0x40] sm:$0xff]
        %v1429 = vld [vmem:[%s1419 + $0x48] sm:$0xff]
        %v1430 = vld [vmem:[%s1419 + $0x50] sm:$0xff]
        %v1431 = vld [vmem:[%s1419 + $0x58] sm:$0xff]
        %v1432 = vld [vmem:[%s1419 + $0x60] sm:$0xff]
        %v1433 = vld [vmem:[%s1419 + $0x68] sm:$0xff]
        %v1434 = vld [vmem:[%s1419 + $0x70] sm:$0xff]
        %v1435 = vld [vmem:[%s1419 + $0x78] sm:$0xff]
        %1436 = vmatpush.msra.mxu0 %v1435
        %1437 = vmatpush.msra.mxu0 %v1434
        %1438 = vmatpush.msra.mxu0 %v1433
        %1439 = vmatpush.msra.mxu0 %v1432
        %1440 = vmatpush.msra.mxu0 %v1431
        %1441 = vmatpush.msra.mxu0 %v1430
        %1442 = vmatpush.msra.mxu0 %v1429
        %1443 = vmatpush.msra.mxu0 %v1428
        %1444 = vmatpush.msra.mxu0 %v1427
        %1445 = vmatpush.msra.mxu0 %v1426
        %1446 = vmatpush.msra.mxu0 %v1425
        %1447 = vmatpush.msra.mxu0 %v1424
        %1448 = vmatpush.msra.mxu0 %v1423
        %1449 = vmatpush.msra.mxu0 %v1422
        %1450 = vmatpush.msra.mxu0 %v1421
        %1451 = vmatpush.msra.mxu0 %v1420
        %1452 = vmatmul.f32.gmra.mxu0 %v1415
        %v1453 = vpop.f32.mrf.mxu0
        %v1454 = vadd.f32 0.0, %v1453
        %1455 = vmatmul.f32.gmra.mxu0 %v1416
        %v1456 = vpop.f32.mrf.mxu0
        %v1457 = vadd.f32 0.0, %v1456
        %1458 = vmatmul.f32.gmra.mxu0 %v1417
        %v1459 = vpop.f32.mrf.mxu0
        %v1460 = vadd.f32 0.0, %v1459
        %1461 = vmatmul.f32.gmra.mxu0 %v1418
        %v1462 = vpop.f32.mrf.mxu0
        %v1463 = vadd.f32 0.0, %v1462
        %1464 = vdwg.mxu0
        %v1465 = vadd.f32 %v1404, %v1454
        %v1466 = vadd.f32 %v1407, %v1457
        %v1467 = vadd.f32 %v1410, %v1460
        %v1468 = vadd.f32 %v1413, %v1463
        %v1469 = vld [vmem:[#allocation2 + $0x7] sm:$0xff]
        %v1470 = vld [vmem:[#allocation2 + $0xf] sm:$0xff]
        %v1471 = vld [vmem:[#allocation2 + $0x17] sm:$0xff]
        %v1472 = vld [vmem:[#allocation2 + $0x1f] sm:$0xff]
        %s1473 = scalar_lea.vmem %s11, 384
        %v1474 = vld [vmem:[%s1473] sm:$0xff]
        %v1475 = vld [vmem:[%s1473 + $0x8] sm:$0xff]
        %v1476 = vld [vmem:[%s1473 + $0x10] sm:$0xff]
        %v1477 = vld [vmem:[%s1473 + $0x18] sm:$0xff]
        %v1478 = vld [vmem:[%s1473 + $0x20] sm:$0xff]
        %v1479 = vld [vmem:[%s1473 + $0x28] sm:$0xff]
        %v1480 = vld [vmem:[%s1473 + $0x30] sm:$0xff]
        %v1481 = vld [vmem:[%s1473 + $0x38] sm:$0xff]
        %v1482 = vld [vmem:[%s1473 + $0x40] sm:$0xff]
        %v1483 = vld [vmem:[%s1473 + $0x48] sm:$0xff]
        %v1484 = vld [vmem:[%s1473 + $0x50] sm:$0xff]
        %v1485 = vld [vmem:[%s1473 + $0x58] sm:$0xff]
        %v1486 = vld [vmem:[%s1473 + $0x60] sm:$0xff]
        %v1487 = vld [vmem:[%s1473 + $0x68] sm:$0xff]
        %v1488 = vld [vmem:[%s1473 + $0x70] sm:$0xff]
        %v1489 = vld [vmem:[%s1473 + $0x78] sm:$0xff]
        %1490 = vmatpush.msra.mxu0 %v1489
        %1491 = vmatpush.msra.mxu0 %v1488
        %1492 = vmatpush.msra.mxu0 %v1487
        %1493 = vmatpush.msra.mxu0 %v1486
        %1494 = vmatpush.msra.mxu0 %v1485
        %1495 = vmatpush.msra.mxu0 %v1484
        %1496 = vmatpush.msra.mxu0 %v1483
        %1497 = vmatpush.msra.mxu0 %v1482
        %1498 = vmatpush.msra.mxu0 %v1481
        %1499 = vmatpush.msra.mxu0 %v1480
        %1500 = vmatpush.msra.mxu0 %v1479
        %1501 = vmatpush.msra.mxu0 %v1478
        %1502 = vmatpush.msra.mxu0 %v1477
        %1503 = vmatpush.msra.mxu0 %v1476
        %1504 = vmatpush.msra.mxu0 %v1475
        %1505 = vmatpush.msra.mxu0 %v1474
        %1506 = vmatmul.f32.gmra.mxu0 %v1469
        %v1507 = vpop.f32.mrf.mxu0
        %v1508 = vadd.f32 0.0, %v1507
        %1509 = vmatmul.f32.gmra.mxu0 %v1470
        %v1510 = vpop.f32.mrf.mxu0
        %v1511 = vadd.f32 0.0, %v1510
        %1512 = vmatmul.f32.gmra.mxu0 %v1471
        %v1513 = vpop.f32.mrf.mxu0
        %v1514 = vadd.f32 0.0, %v1513
        %1515 = vmatmul.f32.gmra.mxu0 %v1472
        %v1516 = vpop.f32.mrf.mxu0
        %v1517 = vadd.f32 0.0, %v1516
        %1518 = vdwg.mxu0
        %v1519 = vadd.f32 %v1465, %v1508
        %v1520 = vadd.f32 %v1466, %v1511
        %v1521 = vadd.f32 %v1467, %v1514
        %v1522 = vadd.f32 %v1468, %v1517
        %v1523 = vld [vmem:[#allocation2 + $0x8] sm:$0xff]
        %v1524 = vld [vmem:[#allocation2 + $0x10] sm:$0xff]
        %v1525 = vld [vmem:[#allocation2 + $0x18] sm:$0xff]
        %v1526 = vld [vmem:[#allocation2 + $0x20] sm:$0xff]
        %s1527 = scalar_lea.vmem %s11, 512
        %v1528 = vld [vmem:[%s1527] sm:$0xff]
        %v1529 = vld [vmem:[%s1527 + $0x8] sm:$0xff]
        %v1530 = vld [vmem:[%s1527 + $0x10] sm:$0xff]
        %v1531 = vld [vmem:[%s1527 + $0x18] sm:$0xff]
        %v1532 = vld [vmem:[%s1527 + $0x20] sm:$0xff]
        %v1533 = vld [vmem:[%s1527 + $0x28] sm:$0xff]
        %v1534 = vld [vmem:[%s1527 + $0x30] sm:$0xff]
        %v1535 = vld [vmem:[%s1527 + $0x38] sm:$0xff]
        %v1536 = vld [vmem:[%s1527 + $0x40] sm:$0xff]
        %v1537 = vld [vmem:[%s1527 + $0x48] sm:$0xff]
        %v1538 = vld [vmem:[%s1527 + $0x50] sm:$0xff]
        %v1539 = vld [vmem:[%s1527 + $0x58] sm:$0xff]
        %v1540 = vld [vmem:[%s1527 + $0x60] sm:$0xff]
        %v1541 = vld [vmem:[%s1527 + $0x68] sm:$0xff]
        %v1542 = vld [vmem:[%s1527 + $0x70] sm:$0xff]
        %v1543 = vld [vmem:[%s1527 + $0x78] sm:$0xff]
        %1544 = vmatpush.msra.mxu0 %v1543
        %1545 = vmatpush.msra.mxu0 %v1542
        %1546 = vmatpush.msra.mxu0 %v1541
        %1547 = vmatpush.msra.mxu0 %v1540
        %1548 = vmatpush.msra.mxu0 %v1539
        %1549 = vmatpush.msra.mxu0 %v1538
        %1550 = vmatpush.msra.mxu0 %v1537
        %1551 = vmatpush.msra.mxu0 %v1536
        %1552 = vmatpush.msra.mxu0 %v1535
        %1553 = vmatpush.msra.mxu0 %v1534
        %1554 = vmatpush.msra.mxu0 %v1533
        %1555 = vmatpush.msra.mxu0 %v1532
        %1556 = vmatpush.msra.mxu0 %v1531
        %1557 = vmatpush.msra.mxu0 %v1530
        %1558 = vmatpush.msra.mxu0 %v1529
        %1559 = vmatpush.msra.mxu0 %v1528
        %1560 = vmatmul.f32.gmra.mxu0 %v1523
        %v1561 = vpop.f32.mrf.mxu0
        %v1562 = vadd.f32 0.0, %v1561
        %1563 = vmatmul.f32.gmra.mxu0 %v1524
        %v1564 = vpop.f32.mrf.mxu0
        %v1565 = vadd.f32 0.0, %v1564
        %1566 = vmatmul.f32.gmra.mxu0 %v1525
        %v1567 = vpop.f32.mrf.mxu0
        %v1568 = vadd.f32 0.0, %v1567
        %1569 = vmatmul.f32.gmra.mxu0 %v1526
        %v1570 = vpop.f32.mrf.mxu0
        %v1571 = vadd.f32 0.0, %v1570
        %1572 = vdwg.mxu0
        %v1573 = vadd.f32 %v1519, %v1562
        %v1574 = vadd.f32 %v1520, %v1565
        %v1575 = vadd.f32 %v1521, %v1568
        %v1576 = vadd.f32 %v1522, %v1571
        %v1577 = vld [vmem:[#allocation2 + $0x9] sm:$0xff]
        %v1578 = vld [vmem:[#allocation2 + $0x11] sm:$0xff]
        %v1579 = vld [vmem:[#allocation2 + $0x19] sm:$0xff]
        %v1580 = vld [vmem:[#allocation2 + $0x21] sm:$0xff]
        %s1581 = scalar_lea.vmem %s11, 640
        %v1582 = vld [vmem:[%s1581] sm:$0xff]
        %v1583 = vld [vmem:[%s1581 + $0x8] sm:$0xff]
        %v1584 = vld [vmem:[%s1581 + $0x10] sm:$0xff]
        %v1585 = vld [vmem:[%s1581 + $0x18] sm:$0xff]
        %v1586 = vld [vmem:[%s1581 + $0x20] sm:$0xff]
        %v1587 = vld [vmem:[%s1581 + $0x28] sm:$0xff]
        %v1588 = vld [vmem:[%s1581 + $0x30] sm:$0xff]
        %v1589 = vld [vmem:[%s1581 + $0x38] sm:$0xff]
        %v1590 = vld [vmem:[%s1581 + $0x40] sm:$0xff]
        %v1591 = vld [vmem:[%s1581 + $0x48] sm:$0xff]
        %v1592 = vld [vmem:[%s1581 + $0x50] sm:$0xff]
        %v1593 = vld [vmem:[%s1581 + $0x58] sm:$0xff]
        %v1594 = vld [vmem:[%s1581 + $0x60] sm:$0xff]
        %v1595 = vld [vmem:[%s1581 + $0x68] sm:$0xff]
        %v1596 = vld [vmem:[%s1581 + $0x70] sm:$0xff]
        %v1597 = vld [vmem:[%s1581 + $0x78] sm:$0xff]
        %1598 = vmatpush.msra.mxu0 %v1597
        %1599 = vmatpush.msra.mxu0 %v1596
        %1600 = vmatpush.msra.mxu0 %v1595
        %1601 = vmatpush.msra.mxu0 %v1594
        %1602 = vmatpush.msra.mxu0 %v1593
        %1603 = vmatpush.msra.mxu0 %v1592
        %1604 = vmatpush.msra.mxu0 %v1591
        %1605 = vmatpush.msra.mxu0 %v1590
        %1606 = vmatpush.msra.mxu0 %v1589
        %1607 = vmatpush.msra.mxu0 %v1588
        %1608 = vmatpush.msra.mxu0 %v1587
        %1609 = vmatpush.msra.mxu0 %v1586
        %1610 = vmatpush.msra.mxu0 %v1585
        %1611 = vmatpush.msra.mxu0 %v1584
        %1612 = vmatpush.msra.mxu0 %v1583
        %1613 = vmatpush.msra.mxu0 %v1582
        %1614 = vmatmul.f32.gmra.mxu0 %v1577
        %v1615 = vpop.f32.mrf.mxu0
        %v1616 = vadd.f32 0.0, %v1615
        %1617 = vmatmul.f32.gmra.mxu0 %v1578
        %v1618 = vpop.f32.mrf.mxu0
        %v1619 = vadd.f32 0.0, %v1618
        %1620 = vmatmul.f32.gmra.mxu0 %v1579
        %v1621 = vpop.f32.mrf.mxu0
        %v1622 = vadd.f32 0.0, %v1621
        %1623 = vmatmul.f32.gmra.mxu0 %v1580
        %v1624 = vpop.f32.mrf.mxu0
        %v1625 = vadd.f32 0.0, %v1624
        %1626 = vdwg.mxu0
        %v1627 = vadd.f32 %v1573, %v1616
        %v1628 = vadd.f32 %v1574, %v1619
        %v1629 = vadd.f32 %v1575, %v1622
        %v1630 = vadd.f32 %v1576, %v1625
        %v1631 = vld [vmem:[#allocation2 + $0xa] sm:$0xff]
        %v1632 = vld [vmem:[#allocation2 + $0x12] sm:$0xff]
        %v1633 = vld [vmem:[#allocation2 + $0x1a] sm:$0xff]
        %v1634 = vld [vmem:[#allocation2 + $0x22] sm:$0xff]
        %s1635 = scalar_lea.vmem %s11, 768
        %v1636 = vld [vmem:[%s1635] sm:$0xff]
        %v1637 = vld [vmem:[%s1635 + $0x8] sm:$0xff]
        %v1638 = vld [vmem:[%s1635 + $0x10] sm:$0xff]
        %v1639 = vld [vmem:[%s1635 + $0x18] sm:$0xff]
        %v1640 = vld [vmem:[%s1635 + $0x20] sm:$0xff]
        %v1641 = vld [vmem:[%s1635 + $0x28] sm:$0xff]
        %v1642 = vld [vmem:[%s1635 + $0x30] sm:$0xff]
        %v1643 = vld [vmem:[%s1635 + $0x38] sm:$0xff]
        %v1644 = vld [vmem:[%s1635 + $0x40] sm:$0xff]
        %v1645 = vld [vmem:[%s1635 + $0x48] sm:$0xff]
        %v1646 = vld [vmem:[%s1635 + $0x50] sm:$0xff]
        %v1647 = vld [vmem:[%s1635 + $0x58] sm:$0xff]
        %v1648 = vld [vmem:[%s1635 + $0x60] sm:$0xff]
        %v1649 = vld [vmem:[%s1635 + $0x68] sm:$0xff]
        %v1650 = vld [vmem:[%s1635 + $0x70] sm:$0xff]
        %v1651 = vld [vmem:[%s1635 + $0x78] sm:$0xff]
        %1652 = vmatpush.msra.mxu0 %v1651
        %1653 = vmatpush.msra.mxu0 %v1650
        %1654 = vmatpush.msra.mxu0 %v1649
        %1655 = vmatpush.msra.mxu0 %v1648
        %1656 = vmatpush.msra.mxu0 %v1647
        %1657 = vmatpush.msra.mxu0 %v1646
        %1658 = vmatpush.msra.mxu0 %v1645
        %1659 = vmatpush.msra.mxu0 %v1644
        %1660 = vmatpush.msra.mxu0 %v1643
        %1661 = vmatpush.msra.mxu0 %v1642
        %1662 = vmatpush.msra.mxu0 %v1641
        %1663 = vmatpush.msra.mxu0 %v1640
        %1664 = vmatpush.msra.mxu0 %v1639
        %1665 = vmatpush.msra.mxu0 %v1638
        %1666 = vmatpush.msra.mxu0 %v1637
        %1667 = vmatpush.msra.mxu0 %v1636
        %1668 = vmatmul.f32.gmra.mxu0 %v1631
        %v1669 = vpop.f32.mrf.mxu0
        %v1670 = vadd.f32 0.0, %v1669
        %1671 = vmatmul.f32.gmra.mxu0 %v1632
        %v1672 = vpop.f32.mrf.mxu0
        %v1673 = vadd.f32 0.0, %v1672
        %1674 = vmatmul.f32.gmra.mxu0 %v1633
        %v1675 = vpop.f32.mrf.mxu0
        %v1676 = vadd.f32 0.0, %v1675
        %1677 = vmatmul.f32.gmra.mxu0 %v1634
        %v1678 = vpop.f32.mrf.mxu0
        %v1679 = vadd.f32 0.0, %v1678
        %1680 = vdwg.mxu0
        %v1681 = vadd.f32 %v1627, %v1670
        %v1682 = vadd.f32 %v1628, %v1673
        %v1683 = vadd.f32 %v1629, %v1676
        %v1684 = vadd.f32 %v1630, %v1679
        %v1685 = vld [vmem:[#allocation2 + $0xb] sm:$0xff]
        %v1686 = vld [vmem:[#allocation2 + $0x13] sm:$0xff]
        %v1687 = vld [vmem:[#allocation2 + $0x1b] sm:$0xff]
        %v1688 = vld [vmem:[#allocation2 + $0x23] sm:$0xff]
        %s1689 = scalar_lea.vmem %s11, 896
        %v1690 = vld [vmem:[%s1689] sm:$0xff]
        %v1691 = vld [vmem:[%s1689 + $0x8] sm:$0xff]
        %v1692 = vld [vmem:[%s1689 + $0x10] sm:$0xff]
        %v1693 = vld [vmem:[%s1689 + $0x18] sm:$0xff]
        %v1694 = vld [vmem:[%s1689 + $0x20] sm:$0xff]
        %v1695 = vld [vmem:[%s1689 + $0x28] sm:$0xff]
        %v1696 = vld [vmem:[%s1689 + $0x30] sm:$0xff]
        %v1697 = vld [vmem:[%s1689 + $0x38] sm:$0xff]
        %v1698 = vld [vmem:[%s1689 + $0x40] sm:$0xff]
        %v1699 = vld [vmem:[%s1689 + $0x48] sm:$0xff]
        %v1700 = vld [vmem:[%s1689 + $0x50] sm:$0xff]
        %v1701 = vld [vmem:[%s1689 + $0x58] sm:$0xff]
        %v1702 = vld [vmem:[%s1689 + $0x60] sm:$0xff]
        %v1703 = vld [vmem:[%s1689 + $0x68] sm:$0xff]
        %v1704 = vld [vmem:[%s1689 + $0x70] sm:$0xff]
        %v1705 = vld [vmem:[%s1689 + $0x78] sm:$0xff]
        %1706 = vmatpush.msra.mxu0 %v1705
        %1707 = vmatpush.msra.mxu0 %v1704
        %1708 = vmatpush.msra.mxu0 %v1703
        %1709 = vmatpush.msra.mxu0 %v1702
        %1710 = vmatpush.msra.mxu0 %v1701
        %1711 = vmatpush.msra.mxu0 %v1700
        %1712 = vmatpush.msra.mxu0 %v1699
        %1713 = vmatpush.msra.mxu0 %v1698
        %1714 = vmatpush.msra.mxu0 %v1697
        %1715 = vmatpush.msra.mxu0 %v1696
        %1716 = vmatpush.msra.mxu0 %v1695
        %1717 = vmatpush.msra.mxu0 %v1694
        %1718 = vmatpush.msra.mxu0 %v1693
        %1719 = vmatpush.msra.mxu0 %v1692
        %1720 = vmatpush.msra.mxu0 %v1691
        %1721 = vmatpush.msra.mxu0 %v1690
        %1722 = vmatmul.f32.gmra.mxu0 %v1685
        %v1723 = vpop.f32.mrf.mxu0
        %v1724 = vadd.f32 0.0, %v1723
        %1725 = vmatmul.f32.gmra.mxu0 %v1686
        %v1726 = vpop.f32.mrf.mxu0
        %v1727 = vadd.f32 0.0, %v1726
        %1728 = vmatmul.f32.gmra.mxu0 %v1687
        %v1729 = vpop.f32.mrf.mxu0
        %v1730 = vadd.f32 0.0, %v1729
        %1731 = vmatmul.f32.gmra.mxu0 %v1688
        %v1732 = vpop.f32.mrf.mxu0
        %v1733 = vadd.f32 0.0, %v1732
        %1734 = vdwg.mxu0
        %v1735 = vadd.f32 %v1681, %v1724
        %v1736 = vadd.f32 %v1682, %v1727
        %v1737 = vadd.f32 %v1683, %v1730
        %v1738 = vadd.f32 %v1684, %v1733
        %v1739 = vld [vmem:[#allocation2 + $0xc] sm:$0xff]
        %v1740 = vld [vmem:[#allocation2 + $0x14] sm:$0xff]
        %v1741 = vld [vmem:[#allocation2 + $0x1c] sm:$0xff]
        %v1742 = vld [vmem:[#allocation2 + $0x24] sm:$0xff]
        %s1743 = scalar_lea.vmem %s11, 1024
        %v1744 = vld [vmem:[%s1743] sm:$0xff]
        %v1745 = vld [vmem:[%s1743 + $0x8] sm:$0xff]
        %v1746 = vld [vmem:[%s1743 + $0x10] sm:$0xff]
        %v1747 = vld [vmem:[%s1743 + $0x18] sm:$0xff]
        %v1748 = vld [vmem:[%s1743 + $0x20] sm:$0xff]
        %v1749 = vld [vmem:[%s1743 + $0x28] sm:$0xff]
        %v1750 = vld [vmem:[%s1743 + $0x30] sm:$0xff]
        %v1751 = vld [vmem:[%s1743 + $0x38] sm:$0xff]
        %v1752 = vld [vmem:[%s1743 + $0x40] sm:$0xff]
        %v1753 = vld [vmem:[%s1743 + $0x48] sm:$0xff]
        %v1754 = vld [vmem:[%s1743 + $0x50] sm:$0xff]
        %v1755 = vld [vmem:[%s1743 + $0x58] sm:$0xff]
        %v1756 = vld [vmem:[%s1743 + $0x60] sm:$0xff]
        %v1757 = vld [vmem:[%s1743 + $0x68] sm:$0xff]
        %v1758 = vld [vmem:[%s1743 + $0x70] sm:$0xff]
        %v1759 = vld [vmem:[%s1743 + $0x78] sm:$0xff]
        %1760 = vmatpush.msra.mxu0 %v1759
        %1761 = vmatpush.msra.mxu0 %v1758
        %1762 = vmatpush.msra.mxu0 %v1757
        %1763 = vmatpush.msra.mxu0 %v1756
        %1764 = vmatpush.msra.mxu0 %v1755
        %1765 = vmatpush.msra.mxu0 %v1754
        %1766 = vmatpush.msra.mxu0 %v1753
        %1767 = vmatpush.msra.mxu0 %v1752
        %1768 = vmatpush.msra.mxu0 %v1751
        %1769 = vmatpush.msra.mxu0 %v1750
        %1770 = vmatpush.msra.mxu0 %v1749
        %1771 = vmatpush.msra.mxu0 %v1748
        %1772 = vmatpush.msra.mxu0 %v1747
        %1773 = vmatpush.msra.mxu0 %v1746
        %1774 = vmatpush.msra.mxu0 %v1745
        %1775 = vmatpush.msra.mxu0 %v1744
        %1776 = vmatmul.f32.gmra.mxu0 %v1739
        %v1777 = vpop.f32.mrf.mxu0
        %v1778 = vadd.f32 0.0, %v1777
        %1779 = vmatmul.f32.gmra.mxu0 %v1740
        %v1780 = vpop.f32.mrf.mxu0
        %v1781 = vadd.f32 0.0, %v1780
        %1782 = vmatmul.f32.gmra.mxu0 %v1741
        %v1783 = vpop.f32.mrf.mxu0
        %v1784 = vadd.f32 0.0, %v1783
        %1785 = vmatmul.f32.gmra.mxu0 %v1742
        %v1786 = vpop.f32.mrf.mxu0
        %v1787 = vadd.f32 0.0, %v1786
        %1788 = vdwg.mxu0
        %v1789 = vadd.f32 %v1735, %v1778
        %v1790 = vadd.f32 %v1736, %v1781
        %v1791 = vadd.f32 %v1737, %v1784
        %v1792 = vadd.f32 %v1738, %v1787
        %v1793 = vld [vmem:[%s13] sm:$0x1]
        %v1795 = vperm.slane %v1793, 0
        %v1797 = vmul.f32 %v1789, %v1795
        %v1798 = vmul.f32 %v1790, %v1795
        %v1799 = vmul.f32 %v1791, %v1795
        %v1800 = vmul.f32 %v1792, %v1795
        %v1801 = vld [vmem:[%s15] sm:$0x1]
        %v1803 = vperm.slane %v1801, 0
        %v1805 = vadd.f32 %v1797, %v1803
        %v1806 = vadd.f32 %v1798, %v1803
        %v1807 = vadd.f32 %v1799, %v1803
        %v1808 = vadd.f32 %v1800, %v1803
        %v1809 = vmax.f32 %v1805, 0.0
        %v1810 = vmax.f32 %v1806, 0.0
        %v1811 = vmax.f32 %v1807, 0.0
        %v1812 = vmax.f32 %v1808, 0.0
        %v1813 = vld [vmem:[%s17] sm:$0xff]
        %v1814 = vld [vmem:[%s17 + $0x8] sm:$0xff]
        %v1815 = vld [vmem:[%s17 + $0x10] sm:$0xff]
        %v1816 = vld [vmem:[%s17 + $0x18] sm:$0xff]
        %v1817 = vld [vmem:[%s17 + $0x20] sm:$0xff]
        %v1818 = vld [vmem:[%s17 + $0x28] sm:$0xff]
        %v1819 = vld [vmem:[%s17 + $0x30] sm:$0xff]
        %v1820 = vld [vmem:[%s17 + $0x38] sm:$0xff]
        %v1821 = vld [vmem:[%s17 + $0x40] sm:$0xff]
        %v1822 = vld [vmem:[%s17 + $0x48] sm:$0xff]
        %v1823 = vld [vmem:[%s17 + $0x50] sm:$0xff]
        %v1824 = vld [vmem:[%s17 + $0x58] sm:$0xff]
        %v1825 = vld [vmem:[%s17 + $0x60] sm:$0xff]
        %v1826 = vld [vmem:[%s17 + $0x68] sm:$0xff]
        %v1827 = vld [vmem:[%s17 + $0x70] sm:$0xff]
        %v1828 = vld [vmem:[%s17 + $0x78] sm:$0xff]
        %v1829 = vld [vmem:[%s19] sm:$0x3]
        %v1831 = vperm.slane %v1829, 0
        %v1832 = vperm.slane %v1829, 1
        %v1836 = vsel %vm948, %v1809, 0
        %v1839 = vsel %vm948, %v1810, 0
        %v1842 = vsel %vm948, %v1811, 0
        %v1845 = vsel %vm948, %v1812, 0
        %1847 = vmatpush.msra.mxu0 0.0
        %1848 = vmatpush.msra.mxu0 0.0
        %1849 = vmatpush.msra.mxu0 0.0
        %1850 = vmatpush.msra.mxu0 0.0
        %1851 = vmatpush.msra.mxu0 0.0
        %1852 = vmatpush.msra.mxu0 0.0
        %1853 = vmatpush.msra.mxu0 0.0
        %1854 = vmatpush.msra.mxu0 0.0
        %1855 = vmatpush.msra.mxu0 %v1827
        %1856 = vmatpush.msra.mxu0 %v1825
        %1857 = vmatpush.msra.mxu0 %v1823
        %1858 = vmatpush.msra.mxu0 %v1821
        %1859 = vmatpush.msra.mxu0 %v1819
        %1860 = vmatpush.msra.mxu0 %v1817
        %1861 = vmatpush.msra.mxu0 %v1815
        %1862 = vmatpush.msra.mxu0 %v1813
        %1863 = vmatmul.f32.gmra.mxu0 %v1836
        %v1864 = vpop.f32.mrf.mxu0
        %v1865 = vadd.f32 %v1831, %v1864
        %1866 = vmatmul.f32.gmra.mxu0 %v1839
        %v1867 = vpop.f32.mrf.mxu0
        %v1868 = vadd.f32 %v1831, %v1867
        %1869 = vmatmul.f32.gmra.mxu0 %v1842
        %v1870 = vpop.f32.mrf.mxu0
        %v1871 = vadd.f32 %v1831, %v1870
        %1872 = vmatmul.f32.gmra.mxu0 %v1845
        %v1873 = vpop.f32.mrf.mxu0
        %v1874 = vadd.f32 %v1831, %v1873
        %1875 = vdwg.mxu0
        %1876 = vmatpush.msra.mxu0 0.0
        %1877 = vmatpush.msra.mxu0 0.0
        %1878 = vmatpush.msra.mxu0 0.0
        %1879 = vmatpush.msra.mxu0 0.0
        %1880 = vmatpush.msra.mxu0 0.0
        %1881 = vmatpush.msra.mxu0 0.0
        %1882 = vmatpush.msra.mxu0 0.0
        %1883 = vmatpush.msra.mxu0 0.0
        %1884 = vmatpush.msra.mxu0 %v1828
        %1885 = vmatpush.msra.mxu0 %v1826
        %1886 = vmatpush.msra.mxu0 %v1824
        %1887 = vmatpush.msra.mxu0 %v1822
        %1888 = vmatpush.msra.mxu0 %v1820
        %1889 = vmatpush.msra.mxu0 %v1818
        %1890 = vmatpush.msra.mxu0 %v1816
        %1891 = vmatpush.msra.mxu0 %v1814
        %1892 = vmatmul.f32.gmra.mxu0 %v1836
        %v1893 = vpop.f32.mrf.mxu0
        %v1894 = vadd.f32 %v1832, %v1893
        %1895 = vmatmul.f32.gmra.mxu0 %v1839
        %v1896 = vpop.f32.mrf.mxu0
        %v1897 = vadd.f32 %v1832, %v1896
        %1898 = vmatmul.f32.gmra.mxu0 %v1842
        %v1899 = vpop.f32.mrf.mxu0
        %v1900 = vadd.f32 %v1832, %v1899
        %1901 = vmatmul.f32.gmra.mxu0 %v1845
        %v1902 = vpop.f32.mrf.mxu0
        %v1903 = vadd.f32 %v1832, %v1902
        %1904 = vdwg.mxu0
        %1909 = vrot.lane.b32.xlu0 %v1865, 64
        %v1910 = vpop.permute.xlu0 %1909
        %1911 = vrot.lane.b32.xlu0 %v1868, 64
        %v1912 = vpop.permute.xlu0 %1911
        %1913 = vrot.lane.b32.xlu0 %v1871, 64
        %v1914 = vpop.permute.xlu0 %1913
        %1915 = vrot.lane.b32.xlu0 %v1874, 64
        %v1916 = vpop.permute.xlu0 %1915
        %vm1917 = vcmask 64512
        %v1918 = vsel %vm1917, %v1865, 0
        %v1920 = vsel %vm1917, %v1868, 0
        %v1922 = vsel %vm1917, %v1871, 0
        %v1924 = vsel %vm1917, %v1874, 0
        %v1926 = vsel %vm1917, %v1910, 0
        %v1928 = vsel %vm1917, %v1912, 0
        %v1930 = vsel %vm1917, %v1914, 0
        %v1932 = vsel %vm1917, %v1916, 0
        %1934 = vmatpush.xpose.msra.mxu0 0.0
        %1935 = vmatpush.xpose.msra.mxu0 0.0
        %1936 = vmatpush.xpose.msra.mxu0 0.0
        %1937 = vmatpush.xpose.msra.mxu0 0.0
        %1938 = vmatpush.xpose.msra.mxu0 0.0
        %1939 = vmatpush.xpose.msra.mxu0 0.0
        %1940 = vmatpush.xpose.msra.mxu0 0.0
        %1941 = vmatpush.xpose.msra.mxu0 0.0
        %1942 = vmatpush.xpose.msra.mxu0 0.0
        %1943 = vmatpush.xpose.msra.mxu0 0.0
        %1944 = vmatpush.xpose.msra.mxu0 0.0
        %1945 = vmatpush.xpose.msra.mxu0 0.0
        %1946 = vmatpush.xpose.msra.mxu0 %v1932
        %1947 = vmatpush.xpose.msra.mxu0 %v1930
        %1948 = vmatpush.xpose.msra.mxu0 %v1928
        %1949 = vmatpush.xpose.msra.mxu0 %v1926
        %1950 = vmatmul.f32.gmra.mxu0 %v1918
        %v1951 = vpop.f32.mrf.mxu0
        %v1952 = vadd.f32 0.0, %v1951
        %1953 = vmatmul.f32.gmra.mxu0 %v1920
        %v1954 = vpop.f32.mrf.mxu0
        %v1955 = vadd.f32 0.0, %v1954
        %1956 = vmatmul.f32.gmra.mxu0 %v1922
        %v1957 = vpop.f32.mrf.mxu0
        %v1958 = vadd.f32 0.0, %v1957
        %1959 = vmatmul.f32.gmra.mxu0 %v1924
        %v1960 = vpop.f32.mrf.mxu0
        %v1961 = vadd.f32 0.0, %v1960
        %1962 = vdwg.mxu0
        %vm1963 = vcmask 261120
        %v1964 = vsel %vm1963, %v1952, -inf
        %1965 = vmax.xlane.f32.xlu0 %v1964
        %v1966 = vpop.xlane.xlu0 %1965
        %v1967 = vsel %vm1963, %v1955, -inf
        %1968 = vmax.xlane.f32.xlu0 %v1967
        %v1969 = vpop.xlane.xlu0 %1968
        %v1970 = vsel %vm1963, %v1958, -inf
        %1971 = vmax.xlane.f32.xlu0 %v1970
        %v1972 = vpop.xlane.xlu0 %1971
        %v1973 = vsel %vm1963, %v1961, -inf
        %1974 = vmax.xlane.f32.xlu0 %v1973
        %v1975 = vpop.xlane.xlu0 %1974
        %v1976 = vsub.f32 %v1952, %v1966
        %v1977 = vsub.f32 %v1955, %v1969
        %v1978 = vsub.f32 %v1958, %v1972
        %v1979 = vsub.f32 %v1961, %v1975
        %v1980 = vmul.f32 %v1976, 1.442695
        %v1981 = vpow.pop %v1980
        %v1982 = vmul.f32 %v1977, 1.442695
        %v1983 = vpow.pop %v1982
        %v1984 = vmul.f32 %v1978, 1.442695
        %v1985 = vpow.pop %v1984
        %v1986 = vmul.f32 %v1979, 1.442695
        %v1987 = vpow.pop %v1986
        %v1988 = vsel %vm1963, %v1981, 0.0
        %1989 = vadd.xlane.f32.xlu0 %v1988
        %v1990 = vpop.xlane.xlu0 %1989
        %v1991 = vsel %vm1963, %v1983, 0.0
        %1992 = vadd.xlane.f32.xlu0 %v1991
        %v1993 = vpop.xlane.xlu0 %1992
        %v1994 = vsel %vm1963, %v1985, 0.0
        %1995 = vadd.xlane.f32.xlu0 %v1994
        %v1996 = vpop.xlane.xlu0 %1995
        %v1997 = vsel %vm1963, %v1987, 0.0
        %1998 = vadd.xlane.f32.xlu0 %v1997
        %v1999 = vpop.xlane.xlu0 %1998
        %v2000 = vrcp.pop %v1990
        %v2001 = vrcp.pop %v1993
        %v2002 = vrcp.pop %v1996
        %v2003 = vrcp.pop %v1999
        %v2004 = vmul.f32 %v1981, %v2000
        %v2005 = vmul.f32 %v1983, %v2001
        %v2006 = vmul.f32 %v1985, %v2002
        %v2007 = vmul.f32 %v1987, %v2003
        %v2009 = vsel %vm1963, %v2004, 0
        %v2012 = vsel %vm1963, %v2005, 0
        %v2015 = vsel %vm1963, %v2006, 0
        %v2018 = vsel %vm1963, %v2007, 0
        %2020 = vmatpush.msra.mxu0 0.0
        %2021 = vmatpush.msra.mxu0 0.0
        %2022 = vmatpush.msra.mxu0 0.0
        %2023 = vmatpush.msra.mxu0 0.0
        %2024 = vmatpush.msra.mxu0 0.0
        %2025 = vmatpush.msra.mxu0 0.0
        %2026 = vmatpush.msra.mxu0 0.0
        %2027 = vmatpush.msra.mxu0 0.0
        %2028 = vmatpush.msra.mxu0 0.0
        %2029 = vmatpush.msra.mxu0 0.0
        %2030 = vmatpush.msra.mxu0 0.0
        %2031 = vmatpush.msra.mxu0 0.0
        %2032 = vmatpush.msra.mxu0 %v1903
        %2033 = vmatpush.msra.mxu0 %v1900
        %2034 = vmatpush.msra.mxu0 %v1897
        %2035 = vmatpush.msra.mxu0 %v1894
        %2036 = vmatmul.f32.gmra.mxu0 %v2009
        %v2037 = vpop.f32.mrf.mxu0
        %v2038 = vadd.f32 0.0, %v2037
        %2039 = vmatmul.f32.gmra.mxu0 %v2012
        %v2040 = vpop.f32.mrf.mxu0
        %v2041 = vadd.f32 0.0, %v2040
        %2042 = vmatmul.f32.gmra.mxu0 %v2015
        %v2043 = vpop.f32.mrf.mxu0
        %v2044 = vadd.f32 0.0, %v2043
        %2045 = vmatmul.f32.gmra.mxu0 %v2018
        %v2046 = vpop.f32.mrf.mxu0
        %v2047 = vadd.f32 0.0, %v2046
        %2048 = vdwg.mxu0
        %2049 = vrot.lane.b32.xlu0 %v1865, 120
        %v2050 = vpop.permute.xlu0 %2049
        %2051 = vrot.lane.b32.xlu0 %v1868, 120
        %v2052 = vpop.permute.xlu0 %2051
        %2053 = vrot.lane.b32.xlu0 %v1871, 120
        %v2054 = vpop.permute.xlu0 %2053
        %2055 = vrot.lane.b32.xlu0 %v1874, 120
        %v2056 = vpop.permute.xlu0 %2055
        %2057 = vrot.lane.b32.xlu0 %v1865, 56
        %v2058 = vpop.permute.xlu0 %2057
        %2059 = vrot.lane.b32.xlu0 %v1868, 56
        %v2060 = vpop.permute.xlu0 %2059
        %2061 = vrot.lane.b32.xlu0 %v1871, 56
        %v2062 = vpop.permute.xlu0 %2061
        %2063 = vrot.lane.b32.xlu0 %v1874, 56
        %v2064 = vpop.permute.xlu0 %2063
        %v2065 = vsel %vm1917, %v2050, 0
        %v2067 = vsel %vm1917, %v2052, 0
        %v2069 = vsel %vm1917, %v2054, 0
        %v2071 = vsel %vm1917, %v2056, 0
        %v2073 = vsel %vm1917, %v2058, 0
        %v2075 = vsel %vm1917, %v2060, 0
        %v2077 = vsel %vm1917, %v2062, 0
        %v2079 = vsel %vm1917, %v2064, 0
        %2081 = vmatpush.xpose.msra.mxu0 0.0
        %2082 = vmatpush.xpose.msra.mxu0 0.0
        %2083 = vmatpush.xpose.msra.mxu0 0.0
        %2084 = vmatpush.xpose.msra.mxu0 0.0
        %2085 = vmatpush.xpose.msra.mxu0 0.0
        %2086 = vmatpush.xpose.msra.mxu0 0.0
        %2087 = vmatpush.xpose.msra.mxu0 0.0
        %2088 = vmatpush.xpose.msra.mxu0 0.0
        %2089 = vmatpush.xpose.msra.mxu0 0.0
        %2090 = vmatpush.xpose.msra.mxu0 0.0
        %2091 = vmatpush.xpose.msra.mxu0 0.0
        %2092 = vmatpush.xpose.msra.mxu0 0.0
        %2093 = vmatpush.xpose.msra.mxu0 %v2079
        %2094 = vmatpush.xpose.msra.mxu0 %v2077
        %2095 = vmatpush.xpose.msra.mxu0 %v2075
        %2096 = vmatpush.xpose.msra.mxu0 %v2073
        %2097 = vmatmul.f32.gmra.mxu0 %v2065
        %v2098 = vpop.f32.mrf.mxu0
        %v2099 = vadd.f32 0.0, %v2098
        %2100 = vmatmul.f32.gmra.mxu0 %v2067
        %v2101 = vpop.f32.mrf.mxu0
        %v2102 = vadd.f32 0.0, %v2101
        %2103 = vmatmul.f32.gmra.mxu0 %v2069
        %v2104 = vpop.f32.mrf.mxu0
        %v2105 = vadd.f32 0.0, %v2104
        %2106 = vmatmul.f32.gmra.mxu0 %v2071
        %v2107 = vpop.f32.mrf.mxu0
        %v2108 = vadd.f32 0.0, %v2107
        %2109 = vdwg.mxu0
        %v2110 = vsel %vm1963, %v2099, -inf
        %2111 = vmax.xlane.f32.xlu0 %v2110
        %v2112 = vpop.xlane.xlu0 %2111
        %v2113 = vsel %vm1963, %v2102, -inf
        %2114 = vmax.xlane.f32.xlu0 %v2113
        %v2115 = vpop.xlane.xlu0 %2114
        %v2116 = vsel %vm1963, %v2105, -inf
        %2117 = vmax.xlane.f32.xlu0 %v2116
        %v2118 = vpop.xlane.xlu0 %2117
        %v2119 = vsel %vm1963, %v2108, -inf
        %2120 = vmax.xlane.f32.xlu0 %v2119
        %v2121 = vpop.xlane.xlu0 %2120
        %v2122 = vsub.f32 %v2099, %v2112
        %v2123 = vsub.f32 %v2102, %v2115
        %v2124 = vsub.f32 %v2105, %v2118
        %v2125 = vsub.f32 %v2108, %v2121
        %v2126 = vmul.f32 %v2122, 1.442695
        %v2127 = vpow.pop %v2126
        %v2128 = vmul.f32 %v2123, 1.442695
        %v2129 = vpow.pop %v2128
        %v2130 = vmul.f32 %v2124, 1.442695
        %v2131 = vpow.pop %v2130
        %v2132 = vmul.f32 %v2125, 1.442695
        %v2133 = vpow.pop %v2132
        %v2134 = vsel %vm1963, %v2127, 0.0
        %2135 = vadd.xlane.f32.xlu0 %v2134
        %v2136 = vpop.xlane.xlu0 %2135
        %v2137 = vsel %vm1963, %v2129, 0.0
        %2138 = vadd.xlane.f32.xlu0 %v2137
        %v2139 = vpop.xlane.xlu0 %2138
        %v2140 = vsel %vm1963, %v2131, 0.0
        %2141 = vadd.xlane.f32.xlu0 %v2140
        %v2142 = vpop.xlane.xlu0 %2141
        %v2143 = vsel %vm1963, %v2133, 0.0
        %2144 = vadd.xlane.f32.xlu0 %v2143
        %v2145 = vpop.xlane.xlu0 %2144
        %v2146 = vrcp.pop %v2136
        %v2147 = vrcp.pop %v2139
        %v2148 = vrcp.pop %v2142
        %v2149 = vrcp.pop %v2145
        %v2150 = vmul.f32 %v2127, %v2146
        %v2151 = vmul.f32 %v2129, %v2147
        %v2152 = vmul.f32 %v2131, %v2148
        %v2153 = vmul.f32 %v2133, %v2149
        %2158 = vrot.lane.b32.xlu0 %v1894, 120
        %v2159 = vpop.permute.xlu0 %2158
        %2160 = vrot.lane.b32.xlu0 %v1897, 120
        %v2161 = vpop.permute.xlu0 %2160
        %2162 = vrot.lane.b32.xlu0 %v1900, 120
        %v2163 = vpop.permute.xlu0 %2162
        %2164 = vrot.lane.b32.xlu0 %v1903, 120
        %v2165 = vpop.permute.xlu0 %2164
        %v2171 = vsel %vm1963, %v2150, 0
        %v2174 = vsel %vm1963, %v2151, 0
        %v2177 = vsel %vm1963, %v2152, 0
        %v2180 = vsel %vm1963, %v2153, 0
        %2182 = vmatpush.msra.mxu0 0.0
        %2183 = vmatpush.msra.mxu0 0.0
        %2184 = vmatpush.msra.mxu0 0.0
        %2185 = vmatpush.msra.mxu0 0.0
        %2186 = vmatpush.msra.mxu0 0.0
        %2187 = vmatpush.msra.mxu0 0.0
        %2188 = vmatpush.msra.mxu0 0.0
        %2189 = vmatpush.msra.mxu0 0.0
        %2190 = vmatpush.msra.mxu0 0.0
        %2191 = vmatpush.msra.mxu0 0.0
        %2192 = vmatpush.msra.mxu0 0.0
        %2193 = vmatpush.msra.mxu0 0.0
        %2194 = vmatpush.msra.mxu0 %v2165
        %2195 = vmatpush.msra.mxu0 %v2163
        %2196 = vmatpush.msra.mxu0 %v2161
        %2197 = vmatpush.msra.mxu0 %v2159
        %2198 = vmatmul.f32.gmra.mxu0 %v2171
        %v2199 = vpop.f32.mrf.mxu0
        %v2200 = vadd.f32 0.0, %v2199
        %2201 = vmatmul.f32.gmra.mxu0 %v2174
        %v2202 = vpop.f32.mrf.mxu0
        %v2203 = vadd.f32 0.0, %v2202
        %2204 = vmatmul.f32.gmra.mxu0 %v2177
        %v2205 = vpop.f32.mrf.mxu0
        %v2206 = vadd.f32 0.0, %v2205
        %2207 = vmatmul.f32.gmra.mxu0 %v2180
        %v2208 = vpop.f32.mrf.mxu0
        %v2209 = vadd.f32 0.0, %v2208
        %2210 = vdwg.mxu0
        %2211 = vrot.lane.b32.xlu0 %v1865, 112
        %v2212 = vpop.permute.xlu0 %2211
        %2213 = vrot.lane.b32.xlu0 %v1868, 112
        %v2214 = vpop.permute.xlu0 %2213
        %2215 = vrot.lane.b32.xlu0 %v1871, 112
        %v2216 = vpop.permute.xlu0 %2215
        %2217 = vrot.lane.b32.xlu0 %v1874, 112
        %v2218 = vpop.permute.xlu0 %2217
        %2219 = vrot.lane.b32.xlu0 %v1865, 48
        %v2220 = vpop.permute.xlu0 %2219
        %2221 = vrot.lane.b32.xlu0 %v1868, 48
        %v2222 = vpop.permute.xlu0 %2221
        %2223 = vrot.lane.b32.xlu0 %v1871, 48
        %v2224 = vpop.permute.xlu0 %2223
        %2225 = vrot.lane.b32.xlu0 %v1874, 48
        %v2226 = vpop.permute.xlu0 %2225
        %v2227 = vsel %vm1917, %v2212, 0
        %v2229 = vsel %vm1917, %v2214, 0
        %v2231 = vsel %vm1917, %v2216, 0
        %v2233 = vsel %vm1917, %v2218, 0
        %v2235 = vsel %vm1917, %v2220, 0
        %v2237 = vsel %vm1917, %v2222, 0
        %v2239 = vsel %vm1917, %v2224, 0
        %v2241 = vsel %vm1917, %v2226, 0
        %2243 = vmatpush.xpose.msra.mxu0 0.0
        %2244 = vmatpush.xpose.msra.mxu0 0.0
        %2245 = vmatpush.xpose.msra.mxu0 0.0
        %2246 = vmatpush.xpose.msra.mxu0 0.0
        %2247 = vmatpush.xpose.msra.mxu0 0.0
        %2248 = vmatpush.xpose.msra.mxu0 0.0
        %2249 = vmatpush.xpose.msra.mxu0 0.0
        %2250 = vmatpush.xpose.msra.mxu0 0.0
        %2251 = vmatpush.xpose.msra.mxu0 0.0
        %2252 = vmatpush.xpose.msra.mxu0 0.0
        %2253 = vmatpush.xpose.msra.mxu0 0.0
        %2254 = vmatpush.xpose.msra.mxu0 0.0
        %2255 = vmatpush.xpose.msra.mxu0 %v2241
        %2256 = vmatpush.xpose.msra.mxu0 %v2239
        %2257 = vmatpush.xpose.msra.mxu0 %v2237
        %2258 = vmatpush.xpose.msra.mxu0 %v2235
        %2259 = vmatmul.f32.gmra.mxu0 %v2227
        %v2260 = vpop.f32.mrf.mxu0
        %v2261 = vadd.f32 0.0, %v2260
        %2262 = vmatmul.f32.gmra.mxu0 %v2229
        %v2263 = vpop.f32.mrf.mxu0
        %v2264 = vadd.f32 0.0, %v2263
        %2265 = vmatmul.f32.gmra.mxu0 %v2231
        %v2266 = vpop.f32.mrf.mxu0
        %v2267 = vadd.f32 0.0, %v2266
        %2268 = vmatmul.f32.gmra.mxu0 %v2233
        %v2269 = vpop.f32.mrf.mxu0
        %v2270 = vadd.f32 0.0, %v2269
        %2271 = vdwg.mxu0
        %v2272 = vsel %vm1963, %v2261, -inf
        %2273 = vmax.xlane.f32.xlu0 %v2272
        %v2274 = vpop.xlane.xlu0 %2273
        %v2275 = vsel %vm1963, %v2264, -inf
        %2276 = vmax.xlane.f32.xlu0 %v2275
        %v2277 = vpop.xlane.xlu0 %2276
        %v2278 = vsel %vm1963, %v2267, -inf
        %2279 = vmax.xlane.f32.xlu0 %v2278
        %v2280 = vpop.xlane.xlu0 %2279
        %v2281 = vsel %vm1963, %v2270, -inf
        %2282 = vmax.xlane.f32.xlu0 %v2281
        %v2283 = vpop.xlane.xlu0 %2282
        %v2284 = vsub.f32 %v2261, %v2274
        %v2285 = vsub.f32 %v2264, %v2277
        %v2286 = vsub.f32 %v2267, %v2280
        %v2287 = vsub.f32 %v2270, %v2283
        %v2288 = vmul.f32 %v2284, 1.442695
        %v2289 = vpow.pop %v2288
        %v2290 = vmul.f32 %v2285, 1.442695
        %v2291 = vpow.pop %v2290
        %v2292 = vmul.f32 %v2286, 1.442695
        %v2293 = vpow.pop %v2292
        %v2294 = vmul.f32 %v2287, 1.442695
        %v2295 = vpow.pop %v2294
        %v2296 = vsel %vm1963, %v2289, 0.0
        %2297 = vadd.xlane.f32.xlu0 %v2296
        %v2298 = vpop.xlane.xlu0 %2297
        %v2299 = vsel %vm1963, %v2291, 0.0
        %2300 = vadd.xlane.f32.xlu0 %v2299
        %v2301 = vpop.xlane.xlu0 %2300
        %v2302 = vsel %vm1963, %v2293, 0.0
        %2303 = vadd.xlane.f32.xlu0 %v2302
        %v2304 = vpop.xlane.xlu0 %2303
        %v2305 = vsel %vm1963, %v2295, 0.0
        %2306 = vadd.xlane.f32.xlu0 %v2305
        %v2307 = vpop.xlane.xlu0 %2306
        %v2308 = vrcp.pop %v2298
        %v2309 = vrcp.pop %v2301
        %v2310 = vrcp.pop %v2304
        %v2311 = vrcp.pop %v2307
        %v2312 = vmul.f32 %v2289, %v2308
        %v2313 = vmul.f32 %v2291, %v2309
        %v2314 = vmul.f32 %v2293, %v2310
        %v2315 = vmul.f32 %v2295, %v2311
        %2316 = vrot.lane.b32.xlu0 %v1894, 112
        %v2317 = vpop.permute.xlu0 %2316
        %2318 = vrot.lane.b32.xlu0 %v1897, 112
        %v2319 = vpop.permute.xlu0 %2318
        %2320 = vrot.lane.b32.xlu0 %v1900, 112
        %v2321 = vpop.permute.xlu0 %2320
        %2322 = vrot.lane.b32.xlu0 %v1903, 112
        %v2323 = vpop.permute.xlu0 %2322
        %v2329 = vsel %vm1963, %v2312, 0
        %v2332 = vsel %vm1963, %v2313, 0
        %v2335 = vsel %vm1963, %v2314, 0
        %v2338 = vsel %vm1963, %v2315, 0
        %2340 = vmatpush.msra.mxu0 0.0
        %2341 = vmatpush.msra.mxu0 0.0
        %2342 = vmatpush.msra.mxu0 0.0
        %2343 = vmatpush.msra.mxu0 0.0
        %2344 = vmatpush.msra.mxu0 0.0
        %2345 = vmatpush.msra.mxu0 0.0
        %2346 = vmatpush.msra.mxu0 0.0
        %2347 = vmatpush.msra.mxu0 0.0
        %2348 = vmatpush.msra.mxu0 0.0
        %2349 = vmatpush.msra.mxu0 0.0
        %2350 = vmatpush.msra.mxu0 0.0
        %2351 = vmatpush.msra.mxu0 0.0
        %2352 = vmatpush.msra.mxu0 %v2323
        %2353 = vmatpush.msra.mxu0 %v2321
        %2354 = vmatpush.msra.mxu0 %v2319
        %2355 = vmatpush.msra.mxu0 %v2317
        %2356 = vmatmul.f32.gmra.mxu0 %v2329
        %v2357 = vpop.f32.mrf.mxu0
        %v2358 = vadd.f32 0.0, %v2357
        %2359 = vmatmul.f32.gmra.mxu0 %v2332
        %v2360 = vpop.f32.mrf.mxu0
        %v2361 = vadd.f32 0.0, %v2360
        %2362 = vmatmul.f32.gmra.mxu0 %v2335
        %v2363 = vpop.f32.mrf.mxu0
        %v2364 = vadd.f32 0.0, %v2363
        %2365 = vmatmul.f32.gmra.mxu0 %v2338
        %v2366 = vpop.f32.mrf.mxu0
        %v2367 = vadd.f32 0.0, %v2366
        %2368 = vdwg.mxu0
        %2369 = vrot.lane.b32.xlu0 %v1865, 104
        %v2370 = vpop.permute.xlu0 %2369
        %2371 = vrot.lane.b32.xlu0 %v1868, 104
        %v2372 = vpop.permute.xlu0 %2371
        %2373 = vrot.lane.b32.xlu0 %v1871, 104
        %v2374 = vpop.permute.xlu0 %2373
        %2375 = vrot.lane.b32.xlu0 %v1874, 104
        %v2376 = vpop.permute.xlu0 %2375
        %2377 = vrot.lane.b32.xlu0 %v1865, 40
        %v2378 = vpop.permute.xlu0 %2377
        %2379 = vrot.lane.b32.xlu0 %v1868, 40
        %v2380 = vpop.permute.xlu0 %2379
        %2381 = vrot.lane.b32.xlu0 %v1871, 40
        %v2382 = vpop.permute.xlu0 %2381
        %2383 = vrot.lane.b32.xlu0 %v1874, 40
        %v2384 = vpop.permute.xlu0 %2383
        %v2385 = vsel %vm1917, %v2370, 0
        %v2387 = vsel %vm1917, %v2372, 0
        %v2389 = vsel %vm1917, %v2374, 0
        %v2391 = vsel %vm1917, %v2376, 0
        %v2393 = vsel %vm1917, %v2378, 0
        %v2395 = vsel %vm1917, %v2380, 0
        %v2397 = vsel %vm1917, %v2382, 0
        %v2399 = vsel %vm1917, %v2384, 0
        %2401 = vmatpush.xpose.msra.mxu0 0.0
        %2402 = vmatpush.xpose.msra.mxu0 0.0
        %2403 = vmatpush.xpose.msra.mxu0 0.0
        %2404 = vmatpush.xpose.msra.mxu0 0.0
        %2405 = vmatpush.xpose.msra.mxu0 0.0
        %2406 = vmatpush.xpose.msra.mxu0 0.0
        %2407 = vmatpush.xpose.msra.mxu0 0.0
        %2408 = vmatpush.xpose.msra.mxu0 0.0
        %2409 = vmatpush.xpose.msra.mxu0 0.0
        %2410 = vmatpush.xpose.msra.mxu0 0.0
        %2411 = vmatpush.xpose.msra.mxu0 0.0
        %2412 = vmatpush.xpose.msra.mxu0 0.0
        %2413 = vmatpush.xpose.msra.mxu0 %v2399
        %2414 = vmatpush.xpose.msra.mxu0 %v2397
        %2415 = vmatpush.xpose.msra.mxu0 %v2395
        %2416 = vmatpush.xpose.msra.mxu0 %v2393
        %2417 = vmatmul.f32.gmra.mxu0 %v2385
        %v2418 = vpop.f32.mrf.mxu0
        %v2419 = vadd.f32 0.0, %v2418
        %2420 = vmatmul.f32.gmra.mxu0 %v2387
        %v2421 = vpop.f32.mrf.mxu0
        %v2422 = vadd.f32 0.0, %v2421
        %2423 = vmatmul.f32.gmra.mxu0 %v2389
        %v2424 = vpop.f32.mrf.mxu0
        %v2425 = vadd.f32 0.0, %v2424
        %2426 = vmatmul.f32.gmra.mxu0 %v2391
        %v2427 = vpop.f32.mrf.mxu0
        %v2428 = vadd.f32 0.0, %v2427
        %2429 = vdwg.mxu0
        %v2430 = vsel %vm1963, %v2419, -inf
        %2431 = vmax.xlane.f32.xlu0 %v2430
        %v2432 = vpop.xlane.xlu0 %2431
        %v2433 = vsel %vm1963, %v2422, -inf
        %2434 = vmax.xlane.f32.xlu0 %v2433
        %v2435 = vpop.xlane.xlu0 %2434
        %v2436 = vsel %vm1963, %v2425, -inf
        %2437 = vmax.xlane.f32.xlu0 %v2436
        %v2438 = vpop.xlane.xlu0 %2437
        %v2439 = vsel %vm1963, %v2428, -inf
        %2440 = vmax.xlane.f32.xlu0 %v2439
        %v2441 = vpop.xlane.xlu0 %2440
        %v2442 = vsub.f32 %v2419, %v2432
        %v2443 = vsub.f32 %v2422, %v2435
        %v2444 = vsub.f32 %v2425, %v2438
        %v2445 = vsub.f32 %v2428, %v2441
        %v2446 = vmul.f32 %v2442, 1.442695
        %v2447 = vpow.pop %v2446
        %v2448 = vmul.f32 %v2443, 1.442695
        %v2449 = vpow.pop %v2448
        %v2450 = vmul.f32 %v2444, 1.442695
        %v2451 = vpow.pop %v2450
        %v2452 = vmul.f32 %v2445, 1.442695
        %v2453 = vpow.pop %v2452
        %v2454 = vsel %vm1963, %v2447, 0.0
        %2455 = vadd.xlane.f32.xlu0 %v2454
        %v2456 = vpop.xlane.xlu0 %2455
        %v2457 = vsel %vm1963, %v2449, 0.0
        %2458 = vadd.xlane.f32.xlu0 %v2457
        %v2459 = vpop.xlane.xlu0 %2458
        %v2460 = vsel %vm1963, %v2451, 0.0
        %2461 = vadd.xlane.f32.xlu0 %v2460
        %v2462 = vpop.xlane.xlu0 %2461
        %v2463 = vsel %vm1963, %v2453, 0.0
        %2464 = vadd.xlane.f32.xlu0 %v2463
        %v2465 = vpop.xlane.xlu0 %2464
        %v2466 = vrcp.pop %v2456
        %v2467 = vrcp.pop %v2459
        %v2468 = vrcp.pop %v2462
        %v2469 = vrcp.pop %v2465
        %v2470 = vmul.f32 %v2447, %v2466
        %v2471 = vmul.f32 %v2449, %v2467
        %v2472 = vmul.f32 %v2451, %v2468
        %v2473 = vmul.f32 %v2453, %v2469
        %2474 = vrot.lane.b32.xlu0 %v1894, 104
        %v2475 = vpop.permute.xlu0 %2474
        %2476 = vrot.lane.b32.xlu0 %v1897, 104
        %v2477 = vpop.permute.xlu0 %2476
        %2478 = vrot.lane.b32.xlu0 %v1900, 104
        %v2479 = vpop.permute.xlu0 %2478
        %2480 = vrot.lane.b32.xlu0 %v1903, 104
        %v2481 = vpop.permute.xlu0 %2480
        %v2487 = vsel %vm1963, %v2470, 0
        %v2490 = vsel %vm1963, %v2471, 0
        %v2493 = vsel %vm1963, %v2472, 0
        %v2496 = vsel %vm1963, %v2473, 0
        %2498 = vmatpush.msra.mxu0 0.0
        %2499 = vmatpush.msra.mxu0 0.0
        %2500 = vmatpush.msra.mxu0 0.0
        %2501 = vmatpush.msra.mxu0 0.0
        %2502 = vmatpush.msra.mxu0 0.0
        %2503 = vmatpush.msra.mxu0 0.0
        %2504 = vmatpush.msra.mxu0 0.0
        %2505 = vmatpush.msra.mxu0 0.0
        %2506 = vmatpush.msra.mxu0 0.0
        %2507 = vmatpush.msra.mxu0 0.0
        %2508 = vmatpush.msra.mxu0 0.0
        %2509 = vmatpush.msra.mxu0 0.0
        %2510 = vmatpush.msra.mxu0 %v2481
        %2511 = vmatpush.msra.mxu0 %v2479
        %2512 = vmatpush.msra.mxu0 %v2477
        %2513 = vmatpush.msra.mxu0 %v2475
        %2514 = vmatmul.f32.gmra.mxu0 %v2487
        %v2515 = vpop.f32.mrf.mxu0
        %v2516 = vadd.f32 0.0, %v2515
        %2517 = vmatmul.f32.gmra.mxu0 %v2490
        %v2518 = vpop.f32.mrf.mxu0
        %v2519 = vadd.f32 0.0, %v2518
        %2520 = vmatmul.f32.gmra.mxu0 %v2493
        %v2521 = vpop.f32.mrf.mxu0
        %v2522 = vadd.f32 0.0, %v2521
        %2523 = vmatmul.f32.gmra.mxu0 %v2496
        %v2524 = vpop.f32.mrf.mxu0
        %v2525 = vadd.f32 0.0, %v2524
        %2526 = vdwg.mxu0
        %2527 = vrot.lane.b32.xlu0 %v1865, 96
        %v2528 = vpop.permute.xlu0 %2527
        %2529 = vrot.lane.b32.xlu0 %v1868, 96
        %v2530 = vpop.permute.xlu0 %2529
        %2531 = vrot.lane.b32.xlu0 %v1871, 96
        %v2532 = vpop.permute.xlu0 %2531
        %2533 = vrot.lane.b32.xlu0 %v1874, 96
        %v2534 = vpop.permute.xlu0 %2533
        %2535 = vrot.lane.b32.xlu0 %v1865, 32
        %v2536 = vpop.permute.xlu0 %2535
        %2537 = vrot.lane.b32.xlu0 %v1868, 32
        %v2538 = vpop.permute.xlu0 %2537
        %2539 = vrot.lane.b32.xlu0 %v1871, 32
        %v2540 = vpop.permute.xlu0 %2539
        %2541 = vrot.lane.b32.xlu0 %v1874, 32
        %v2542 = vpop.permute.xlu0 %2541
        %v2543 = vsel %vm1917, %v2528, 0
        %v2545 = vsel %vm1917, %v2530, 0
        %v2547 = vsel %vm1917, %v2532, 0
        %v2549 = vsel %vm1917, %v2534, 0
        %v2551 = vsel %vm1917, %v2536, 0
        %v2553 = vsel %vm1917, %v2538, 0
        %v2555 = vsel %vm1917, %v2540, 0
        %v2557 = vsel %vm1917, %v2542, 0
        %2559 = vmatpush.xpose.msra.mxu0 0.0
        %2560 = vmatpush.xpose.msra.mxu0 0.0
        %2561 = vmatpush.xpose.msra.mxu0 0.0
        %2562 = vmatpush.xpose.msra.mxu0 0.0
        %2563 = vmatpush.xpose.msra.mxu0 0.0
        %2564 = vmatpush.xpose.msra.mxu0 0.0
        %2565 = vmatpush.xpose.msra.mxu0 0.0
        %2566 = vmatpush.xpose.msra.mxu0 0.0
        %2567 = vmatpush.xpose.msra.mxu0 0.0
        %2568 = vmatpush.xpose.msra.mxu0 0.0
        %2569 = vmatpush.xpose.msra.mxu0 0.0
        %2570 = vmatpush.xpose.msra.mxu0 0.0
        %2571 = vmatpush.xpose.msra.mxu0 %v2557
        %2572 = vmatpush.xpose.msra.mxu0 %v2555
        %2573 = vmatpush.xpose.msra.mxu0 %v2553
        %2574 = vmatpush.xpose.msra.mxu0 %v2551
        %2575 = vmatmul.f32.gmra.mxu0 %v2543
        %v2576 = vpop.f32.mrf.mxu0
        %v2577 = vadd.f32 0.0, %v2576
        %2578 = vmatmul.f32.gmra.mxu0 %v2545
        %v2579 = vpop.f32.mrf.mxu0
        %v2580 = vadd.f32 0.0, %v2579
        %2581 = vmatmul.f32.gmra.mxu0 %v2547
        %v2582 = vpop.f32.mrf.mxu0
        %v2583 = vadd.f32 0.0, %v2582
        %2584 = vmatmul.f32.gmra.mxu0 %v2549
        %v2585 = vpop.f32.mrf.mxu0
        %v2586 = vadd.f32 0.0, %v2585
        %2587 = vdwg.mxu0
        %v2588 = vsel %vm1963, %v2577, -inf
        %2589 = vmax.xlane.f32.xlu0 %v2588
        %v2590 = vpop.xlane.xlu0 %2589
        %v2591 = vsel %vm1963, %v2580, -inf
        %2592 = vmax.xlane.f32.xlu0 %v2591
        %v2593 = vpop.xlane.xlu0 %2592
        %v2594 = vsel %vm1963, %v2583, -inf
        %2595 = vmax.xlane.f32.xlu0 %v2594
        %v2596 = vpop.xlane.xlu0 %2595
        %v2597 = vsel %vm1963, %v2586, -inf
        %2598 = vmax.xlane.f32.xlu0 %v2597
        %v2599 = vpop.xlane.xlu0 %2598
        %v2600 = vsub.f32 %v2577, %v2590
        %v2601 = vsub.f32 %v2580, %v2593
        %v2602 = vsub.f32 %v2583, %v2596
        %v2603 = vsub.f32 %v2586, %v2599
        %v2604 = vmul.f32 %v2600, 1.442695
        %v2605 = vpow.pop %v2604
        %v2606 = vmul.f32 %v2601, 1.442695
        %v2607 = vpow.pop %v2606
        %v2608 = vmul.f32 %v2602, 1.442695
        %v2609 = vpow.pop %v2608
        %v2610 = vmul.f32 %v2603, 1.442695
        %v2611 = vpow.pop %v2610
        %v2612 = vsel %vm1963, %v2605, 0.0
        %2613 = vadd.xlane.f32.xlu0 %v2612
        %v2614 = vpop.xlane.xlu0 %2613
        %v2615 = vsel %vm1963, %v2607, 0.0
        %2616 = vadd.xlane.f32.xlu0 %v2615
        %v2617 = vpop.xlane.xlu0 %2616
        %v2618 = vsel %vm1963, %v2609, 0.0
        %2619 = vadd.xlane.f32.xlu0 %v2618
        %v2620 = vpop.xlane.xlu0 %2619
        %v2621 = vsel %vm1963, %v2611, 0.0
        %2622 = vadd.xlane.f32.xlu0 %v2621
        %v2623 = vpop.xlane.xlu0 %2622
        %v2624 = vrcp.pop %v2614
        %v2625 = vrcp.pop %v2617
        %v2626 = vrcp.pop %v2620
        %v2627 = vrcp.pop %v2623
        %v2628 = vmul.f32 %v2605, %v2624
        %v2629 = vmul.f32 %v2607, %v2625
        %v2630 = vmul.f32 %v2609, %v2626
        %v2631 = vmul.f32 %v2611, %v2627
        %2632 = vrot.lane.b32.xlu0 %v1894, 96
        %v2633 = vpop.permute.xlu0 %2632
        %2634 = vrot.lane.b32.xlu0 %v1897, 96
        %v2635 = vpop.permute.xlu0 %2634
        %2636 = vrot.lane.b32.xlu0 %v1900, 96
        %v2637 = vpop.permute.xlu0 %2636
        %2638 = vrot.lane.b32.xlu0 %v1903, 96
        %v2639 = vpop.permute.xlu0 %2638
        %v2645 = vsel %vm1963, %v2628, 0
        %v2648 = vsel %vm1963, %v2629, 0
        %v2651 = vsel %vm1963, %v2630, 0
        %v2654 = vsel %vm1963, %v2631, 0
        %2656 = vmatpush.msra.mxu0 0.0
        %2657 = vmatpush.msra.mxu0 0.0
        %2658 = vmatpush.msra.mxu0 0.0
        %2659 = vmatpush.msra.mxu0 0.0
        %2660 = vmatpush.msra.mxu0 0.0
        %2661 = vmatpush.msra.mxu0 0.0
        %2662 = vmatpush.msra.mxu0 0.0
        %2663 = vmatpush.msra.mxu0 0.0
        %2664 = vmatpush.msra.mxu0 0.0
        %2665 = vmatpush.msra.mxu0 0.0
        %2666 = vmatpush.msra.mxu0 0.0
        %2667 = vmatpush.msra.mxu0 0.0
        %2668 = vmatpush.msra.mxu0 %v2639
        %2669 = vmatpush.msra.mxu0 %v2637
        %2670 = vmatpush.msra.mxu0 %v2635
        %2671 = vmatpush.msra.mxu0 %v2633
        %2672 = vmatmul.f32.gmra.mxu0 %v2645
        %v2673 = vpop.f32.mrf.mxu0
        %v2674 = vadd.f32 0.0, %v2673
        %2675 = vmatmul.f32.gmra.mxu0 %v2648
        %v2676 = vpop.f32.mrf.mxu0
        %v2677 = vadd.f32 0.0, %v2676
        %2678 = vmatmul.f32.gmra.mxu0 %v2651
        %v2679 = vpop.f32.mrf.mxu0
        %v2680 = vadd.f32 0.0, %v2679
        %2681 = vmatmul.f32.gmra.mxu0 %v2654
        %v2682 = vpop.f32.mrf.mxu0
        %v2683 = vadd.f32 0.0, %v2682
        %2684 = vdwg.mxu0
        %2685 = vrot.lane.b32.xlu0 %v1865, 88
        %v2686 = vpop.permute.xlu0 %2685
        %2687 = vrot.lane.b32.xlu0 %v1868, 88
        %v2688 = vpop.permute.xlu0 %2687
        %2689 = vrot.lane.b32.xlu0 %v1871, 88
        %v2690 = vpop.permute.xlu0 %2689
        %2691 = vrot.lane.b32.xlu0 %v1874, 88
        %v2692 = vpop.permute.xlu0 %2691
        %2693 = vrot.lane.b32.xlu0 %v1865, 24
        %v2694 = vpop.permute.xlu0 %2693
        %2695 = vrot.lane.b32.xlu0 %v1868, 24
        %v2696 = vpop.permute.xlu0 %2695
        %2697 = vrot.lane.b32.xlu0 %v1871, 24
        %v2698 = vpop.permute.xlu0 %2697
        %2699 = vrot.lane.b32.xlu0 %v1874, 24
        %v2700 = vpop.permute.xlu0 %2699
        %v2701 = vsel %vm1917, %v2686, 0
        %v2703 = vsel %vm1917, %v2688, 0
        %v2705 = vsel %vm1917, %v2690, 0
        %v2707 = vsel %vm1917, %v2692, 0
        %v2709 = vsel %vm1917, %v2694, 0
        %v2711 = vsel %vm1917, %v2696, 0
        %v2713 = vsel %vm1917, %v2698, 0
        %v2715 = vsel %vm1917, %v2700, 0
        %2717 = vmatpush.xpose.msra.mxu0 0.0
        %2718 = vmatpush.xpose.msra.mxu0 0.0
        %2719 = vmatpush.xpose.msra.mxu0 0.0
        %2720 = vmatpush.xpose.msra.mxu0 0.0
        %2721 = vmatpush.xpose.msra.mxu0 0.0
        %2722 = vmatpush.xpose.msra.mxu0 0.0
        %2723 = vmatpush.xpose.msra.mxu0 0.0
        %2724 = vmatpush.xpose.msra.mxu0 0.0
        %2725 = vmatpush.xpose.msra.mxu0 0.0
        %2726 = vmatpush.xpose.msra.mxu0 0.0
        %2727 = vmatpush.xpose.msra.mxu0 0.0
        %2728 = vmatpush.xpose.msra.mxu0 0.0
        %2729 = vmatpush.xpose.msra.mxu0 %v2715
        %2730 = vmatpush.xpose.msra.mxu0 %v2713
        %2731 = vmatpush.xpose.msra.mxu0 %v2711
        %2732 = vmatpush.xpose.msra.mxu0 %v2709
        %2733 = vmatmul.f32.gmra.mxu0 %v2701
        %v2734 = vpop.f32.mrf.mxu0
        %v2735 = vadd.f32 0.0, %v2734
        %2736 = vmatmul.f32.gmra.mxu0 %v2703
        %v2737 = vpop.f32.mrf.mxu0
        %v2738 = vadd.f32 0.0, %v2737
        %2739 = vmatmul.f32.gmra.mxu0 %v2705
        %v2740 = vpop.f32.mrf.mxu0
        %v2741 = vadd.f32 0.0, %v2740
        %2742 = vmatmul.f32.gmra.mxu0 %v2707
        %v2743 = vpop.f32.mrf.mxu0
        %v2744 = vadd.f32 0.0, %v2743
        %2745 = vdwg.mxu0
        %v2746 = vsel %vm1963, %v2735, -inf
        %2747 = vmax.xlane.f32.xlu0 %v2746
        %v2748 = vpop.xlane.xlu0 %2747
        %v2749 = vsel %vm1963, %v2738, -inf
        %2750 = vmax.xlane.f32.xlu0 %v2749
        %v2751 = vpop.xlane.xlu0 %2750
        %v2752 = vsel %vm1963, %v2741, -inf
        %2753 = vmax.xlane.f32.xlu0 %v2752
        %v2754 = vpop.xlane.xlu0 %2753
        %v2755 = vsel %vm1963, %v2744, -inf
        %2756 = vmax.xlane.f32.xlu0 %v2755
        %v2757 = vpop.xlane.xlu0 %2756
        %v2758 = vsub.f32 %v2735, %v2748
        %v2759 = vsub.f32 %v2738, %v2751
        %v2760 = vsub.f32 %v2741, %v2754
        %v2761 = vsub.f32 %v2744, %v2757
        %v2762 = vmul.f32 %v2758, 1.442695
        %v2763 = vpow.pop %v2762
        %v2764 = vmul.f32 %v2759, 1.442695
        %v2765 = vpow.pop %v2764
        %v2766 = vmul.f32 %v2760, 1.442695
        %v2767 = vpow.pop %v2766
        %v2768 = vmul.f32 %v2761, 1.442695
        %v2769 = vpow.pop %v2768
        %v2770 = vsel %vm1963, %v2763, 0.0
        %2771 = vadd.xlane.f32.xlu0 %v2770
        %v2772 = vpop.xlane.xlu0 %2771
        %v2773 = vsel %vm1963, %v2765, 0.0
        %2774 = vadd.xlane.f32.xlu0 %v2773
        %v2775 = vpop.xlane.xlu0 %2774
        %v2776 = vsel %vm1963, %v2767, 0.0
        %2777 = vadd.xlane.f32.xlu0 %v2776
        %v2778 = vpop.xlane.xlu0 %2777
        %v2779 = vsel %vm1963, %v2769, 0.0
        %2780 = vadd.xlane.f32.xlu0 %v2779
        %v2781 = vpop.xlane.xlu0 %2780
        %v2782 = vrcp.pop %v2772
        %v2783 = vrcp.pop %v2775
        %v2784 = vrcp.pop %v2778
        %v2785 = vrcp.pop %v2781
        %v2786 = vmul.f32 %v2763, %v2782
        %v2787 = vmul.f32 %v2765, %v2783
        %v2788 = vmul.f32 %v2767, %v2784
        %v2789 = vmul.f32 %v2769, %v2785
        %2790 = vrot.lane.b32.xlu0 %v1894, 88
        %v2791 = vpop.permute.xlu0 %2790
        %2792 = vrot.lane.b32.xlu0 %v1897, 88
        %v2793 = vpop.permute.xlu0 %2792
        %2794 = vrot.lane.b32.xlu0 %v1900, 88
        %v2795 = vpop.permute.xlu0 %2794
        %2796 = vrot.lane.b32.xlu0 %v1903, 88
        %v2797 = vpop.permute.xlu0 %2796
        %v2803 = vsel %vm1963, %v2786, 0
        %v2806 = vsel %vm1963, %v2787, 0
        %v2809 = vsel %vm1963, %v2788, 0
        %v2812 = vsel %vm1963, %v2789, 0
        %2814 = vmatpush.msra.mxu0 0.0
        %2815 = vmatpush.msra.mxu0 0.0
        %2816 = vmatpush.msra.mxu0 0.0
        %2817 = vmatpush.msra.mxu0 0.0
        %2818 = vmatpush.msra.mxu0 0.0
        %2819 = vmatpush.msra.mxu0 0.0
        %2820 = vmatpush.msra.mxu0 0.0
        %2821 = vmatpush.msra.mxu0 0.0
        %2822 = vmatpush.msra.mxu0 0.0
        %2823 = vmatpush.msra.mxu0 0.0
        %2824 = vmatpush.msra.mxu0 0.0
        %2825 = vmatpush.msra.mxu0 0.0
        %2826 = vmatpush.msra.mxu0 %v2797
        %2827 = vmatpush.msra.mxu0 %v2795
        %2828 = vmatpush.msra.mxu0 %v2793
        %2829 = vmatpush.msra.mxu0 %v2791
        %2830 = vmatmul.f32.gmra.mxu0 %v2803
        %v2831 = vpop.f32.mrf.mxu0
        %v2832 = vadd.f32 0.0, %v2831
        %2833 = vmatmul.f32.gmra.mxu0 %v2806
        %v2834 = vpop.f32.mrf.mxu0
        %v2835 = vadd.f32 0.0, %v2834
        %2836 = vmatmul.f32.gmra.mxu0 %v2809
        %v2837 = vpop.f32.mrf.mxu0
        %v2838 = vadd.f32 0.0, %v2837
        %2839 = vmatmul.f32.gmra.mxu0 %v2812
        %v2840 = vpop.f32.mrf.mxu0
        %v2841 = vadd.f32 0.0, %v2840
        %2842 = vdwg.mxu0
        %2843 = vrot.lane.b32.xlu0 %v1865, 80
        %v2844 = vpop.permute.xlu0 %2843
        %2845 = vrot.lane.b32.xlu0 %v1868, 80
        %v2846 = vpop.permute.xlu0 %2845
        %2847 = vrot.lane.b32.xlu0 %v1871, 80
        %v2848 = vpop.permute.xlu0 %2847
        %2849 = vrot.lane.b32.xlu0 %v1874, 80
        %v2850 = vpop.permute.xlu0 %2849
        %2851 = vrot.lane.b32.xlu0 %v1865, 16
        %v2852 = vpop.permute.xlu0 %2851
        %2853 = vrot.lane.b32.xlu0 %v1868, 16
        %v2854 = vpop.permute.xlu0 %2853
        %2855 = vrot.lane.b32.xlu0 %v1871, 16
        %v2856 = vpop.permute.xlu0 %2855
        %2857 = vrot.lane.b32.xlu0 %v1874, 16
        %v2858 = vpop.permute.xlu0 %2857
        %v2859 = vsel %vm1917, %v2844, 0
        %v2861 = vsel %vm1917, %v2846, 0
        %v2863 = vsel %vm1917, %v2848, 0
        %v2865 = vsel %vm1917, %v2850, 0
        %v2867 = vsel %vm1917, %v2852, 0
        %v2869 = vsel %vm1917, %v2854, 0
        %v2871 = vsel %vm1917, %v2856, 0
        %v2873 = vsel %vm1917, %v2858, 0
        %2875 = vmatpush.xpose.msra.mxu0 0.0
        %2876 = vmatpush.xpose.msra.mxu0 0.0
        %2877 = vmatpush.xpose.msra.mxu0 0.0
        %2878 = vmatpush.xpose.msra.mxu0 0.0
        %2879 = vmatpush.xpose.msra.mxu0 0.0
        %2880 = vmatpush.xpose.msra.mxu0 0.0
        %2881 = vmatpush.xpose.msra.mxu0 0.0
        %2882 = vmatpush.xpose.msra.mxu0 0.0
        %2883 = vmatpush.xpose.msra.mxu0 0.0
        %2884 = vmatpush.xpose.msra.mxu0 0.0
        %2885 = vmatpush.xpose.msra.mxu0 0.0
        %2886 = vmatpush.xpose.msra.mxu0 0.0
        %2887 = vmatpush.xpose.msra.mxu0 %v2873
        %2888 = vmatpush.xpose.msra.mxu0 %v2871
        %2889 = vmatpush.xpose.msra.mxu0 %v2869
        %2890 = vmatpush.xpose.msra.mxu0 %v2867
        %2891 = vmatmul.f32.gmra.mxu0 %v2859
        %v2892 = vpop.f32.mrf.mxu0
        %v2893 = vadd.f32 0.0, %v2892
        %2894 = vmatmul.f32.gmra.mxu0 %v2861
        %v2895 = vpop.f32.mrf.mxu0
        %v2896 = vadd.f32 0.0, %v2895
        %2897 = vmatmul.f32.gmra.mxu0 %v2863
        %v2898 = vpop.f32.mrf.mxu0
        %v2899 = vadd.f32 0.0, %v2898
        %2900 = vmatmul.f32.gmra.mxu0 %v2865
        %v2901 = vpop.f32.mrf.mxu0
        %v2902 = vadd.f32 0.0, %v2901
        %2903 = vdwg.mxu0
        %v2904 = vsel %vm1963, %v2893, -inf
        %2905 = vmax.xlane.f32.xlu0 %v2904
        %v2906 = vpop.xlane.xlu0 %2905
        %v2907 = vsel %vm1963, %v2896, -inf
        %2908 = vmax.xlane.f32.xlu0 %v2907
        %v2909 = vpop.xlane.xlu0 %2908
        %v2910 = vsel %vm1963, %v2899, -inf
        %2911 = vmax.xlane.f32.xlu0 %v2910
        %v2912 = vpop.xlane.xlu0 %2911
        %v2913 = vsel %vm1963, %v2902, -inf
        %2914 = vmax.xlane.f32.xlu0 %v2913
        %v2915 = vpop.xlane.xlu0 %2914
        %v2916 = vsub.f32 %v2893, %v2906
        %v2917 = vsub.f32 %v2896, %v2909
        %v2918 = vsub.f32 %v2899, %v2912
        %v2919 = vsub.f32 %v2902, %v2915
        %v2920 = vmul.f32 %v2916, 1.442695
        %v2921 = vpow.pop %v2920
        %v2922 = vmul.f32 %v2917, 1.442695
        %v2923 = vpow.pop %v2922
        %v2924 = vmul.f32 %v2918, 1.442695
        %v2925 = vpow.pop %v2924
        %v2926 = vmul.f32 %v2919, 1.442695
        %v2927 = vpow.pop %v2926
        %v2928 = vsel %vm1963, %v2921, 0.0
        %2929 = vadd.xlane.f32.xlu0 %v2928
        %v2930 = vpop.xlane.xlu0 %2929
        %v2931 = vsel %vm1963, %v2923, 0.0
        %2932 = vadd.xlane.f32.xlu0 %v2931
        %v2933 = vpop.xlane.xlu0 %2932
        %v2934 = vsel %vm1963, %v2925, 0.0
        %2935 = vadd.xlane.f32.xlu0 %v2934
        %v2936 = vpop.xlane.xlu0 %2935
        %v2937 = vsel %vm1963, %v2927, 0.0
        %2938 = vadd.xlane.f32.xlu0 %v2937
        %v2939 = vpop.xlane.xlu0 %2938
        %v2940 = vrcp.pop %v2930
        %v2941 = vrcp.pop %v2933
        %v2942 = vrcp.pop %v2936
        %v2943 = vrcp.pop %v2939
        %v2944 = vmul.f32 %v2921, %v2940
        %v2945 = vmul.f32 %v2923, %v2941
        %v2946 = vmul.f32 %v2925, %v2942
        %v2947 = vmul.f32 %v2927, %v2943
        %2948 = vrot.lane.b32.xlu0 %v1894, 80
        %v2949 = vpop.permute.xlu0 %2948
        %2950 = vrot.lane.b32.xlu0 %v1897, 80
        %v2951 = vpop.permute.xlu0 %2950
        %2952 = vrot.lane.b32.xlu0 %v1900, 80
        %v2953 = vpop.permute.xlu0 %2952
        %2954 = vrot.lane.b32.xlu0 %v1903, 80
        %v2955 = vpop.permute.xlu0 %2954
        %v2961 = vsel %vm1963, %v2944, 0
        %v2964 = vsel %vm1963, %v2945, 0
        %v2967 = vsel %vm1963, %v2946, 0
        %v2970 = vsel %vm1963, %v2947, 0
        %2972 = vmatpush.msra.mxu0 0.0
        %2973 = vmatpush.msra.mxu0 0.0
        %2974 = vmatpush.msra.mxu0 0.0
        %2975 = vmatpush.msra.mxu0 0.0
        %2976 = vmatpush.msra.mxu0 0.0
        %2977 = vmatpush.msra.mxu0 0.0
        %2978 = vmatpush.msra.mxu0 0.0
        %2979 = vmatpush.msra.mxu0 0.0
        %2980 = vmatpush.msra.mxu0 0.0
        %2981 = vmatpush.msra.mxu0 0.0
        %2982 = vmatpush.msra.mxu0 0.0
        %2983 = vmatpush.msra.mxu0 0.0
        %2984 = vmatpush.msra.mxu0 %v2955
        %2985 = vmatpush.msra.mxu0 %v2953
        %2986 = vmatpush.msra.mxu0 %v2951
        %2987 = vmatpush.msra.mxu0 %v2949
        %2988 = vmatmul.f32.gmra.mxu0 %v2961
        %v2989 = vpop.f32.mrf.mxu0
        %v2990 = vadd.f32 0.0, %v2989
        %2991 = vmatmul.f32.gmra.mxu0 %v2964
        %v2992 = vpop.f32.mrf.mxu0
        %v2993 = vadd.f32 0.0, %v2992
        %2994 = vmatmul.f32.gmra.mxu0 %v2967
        %v2995 = vpop.f32.mrf.mxu0
        %v2996 = vadd.f32 0.0, %v2995
        %2997 = vmatmul.f32.gmra.mxu0 %v2970
        %v2998 = vpop.f32.mrf.mxu0
        %v2999 = vadd.f32 0.0, %v2998
        %3000 = vdwg.mxu0
        %3001 = vrot.lane.b32.xlu0 %v1865, 72
        %v3002 = vpop.permute.xlu0 %3001
        %3003 = vrot.lane.b32.xlu0 %v1868, 72
        %v3004 = vpop.permute.xlu0 %3003
        %3005 = vrot.lane.b32.xlu0 %v1871, 72
        %v3006 = vpop.permute.xlu0 %3005
        %3007 = vrot.lane.b32.xlu0 %v1874, 72
        %v3008 = vpop.permute.xlu0 %3007
        %3009 = vrot.lane.b32.xlu0 %v1865, 8
        %v3010 = vpop.permute.xlu0 %3009
        %3011 = vrot.lane.b32.xlu0 %v1868, 8
        %v3012 = vpop.permute.xlu0 %3011
        %3013 = vrot.lane.b32.xlu0 %v1871, 8
        %v3014 = vpop.permute.xlu0 %3013
        %3015 = vrot.lane.b32.xlu0 %v1874, 8
        %v3016 = vpop.permute.xlu0 %3015
        %v3017 = vsel %vm1917, %v3002, 0
        %v3019 = vsel %vm1917, %v3004, 0
        %v3021 = vsel %vm1917, %v3006, 0
        %v3023 = vsel %vm1917, %v3008, 0
        %v3025 = vsel %vm1917, %v3010, 0
        %v3027 = vsel %vm1917, %v3012, 0
        %v3029 = vsel %vm1917, %v3014, 0
        %v3031 = vsel %vm1917, %v3016, 0
        %3033 = vmatpush.xpose.msra.mxu0 0.0
        %3034 = vmatpush.xpose.msra.mxu0 0.0
        %3035 = vmatpush.xpose.msra.mxu0 0.0
        %3036 = vmatpush.xpose.msra.mxu0 0.0
        %3037 = vmatpush.xpose.msra.mxu0 0.0
        %3038 = vmatpush.xpose.msra.mxu0 0.0
        %3039 = vmatpush.xpose.msra.mxu0 0.0
        %3040 = vmatpush.xpose.msra.mxu0 0.0
        %3041 = vmatpush.xpose.msra.mxu0 0.0
        %3042 = vmatpush.xpose.msra.mxu0 0.0
        %3043 = vmatpush.xpose.msra.mxu0 0.0
        %3044 = vmatpush.xpose.msra.mxu0 0.0
        %3045 = vmatpush.xpose.msra.mxu0 %v3031
        %3046 = vmatpush.xpose.msra.mxu0 %v3029
        %3047 = vmatpush.xpose.msra.mxu0 %v3027
        %3048 = vmatpush.xpose.msra.mxu0 %v3025
        %3049 = vmatmul.f32.gmra.mxu0 %v3017
        %v3050 = vpop.f32.mrf.mxu0
        %v3051 = vadd.f32 0.0, %v3050
        %3052 = vmatmul.f32.gmra.mxu0 %v3019
        %v3053 = vpop.f32.mrf.mxu0
        %v3054 = vadd.f32 0.0, %v3053
        %3055 = vmatmul.f32.gmra.mxu0 %v3021
        %v3056 = vpop.f32.mrf.mxu0
        %v3057 = vadd.f32 0.0, %v3056
        %3058 = vmatmul.f32.gmra.mxu0 %v3023
        %v3059 = vpop.f32.mrf.mxu0
        %v3060 = vadd.f32 0.0, %v3059
        %3061 = vdwg.mxu0
        %v3062 = vsel %vm1963, %v3051, -inf
        %3063 = vmax.xlane.f32.xlu0 %v3062
        %v3064 = vpop.xlane.xlu0 %3063
        %v3065 = vsel %vm1963, %v3054, -inf
        %3066 = vmax.xlane.f32.xlu0 %v3065
        %v3067 = vpop.xlane.xlu0 %3066
        %v3068 = vsel %vm1963, %v3057, -inf
        %3069 = vmax.xlane.f32.xlu0 %v3068
        %v3070 = vpop.xlane.xlu0 %3069
        %v3071 = vsel %vm1963, %v3060, -inf
        %3072 = vmax.xlane.f32.xlu0 %v3071
        %v3073 = vpop.xlane.xlu0 %3072
        %v3074 = vsub.f32 %v3051, %v3064
        %v3075 = vsub.f32 %v3054, %v3067
        %v3076 = vsub.f32 %v3057, %v3070
        %v3077 = vsub.f32 %v3060, %v3073
        %v3078 = vmul.f32 %v3074, 1.442695
        %v3079 = vpow.pop %v3078
        %v3080 = vmul.f32 %v3075, 1.442695
        %v3081 = vpow.pop %v3080
        %v3082 = vmul.f32 %v3076, 1.442695
        %v3083 = vpow.pop %v3082
        %v3084 = vmul.f32 %v3077, 1.442695
        %v3085 = vpow.pop %v3084
        %v3086 = vsel %vm1963, %v3079, 0.0
        %3087 = vadd.xlane.f32.xlu0 %v3086
        %v3088 = vpop.xlane.xlu0 %3087
        %v3089 = vsel %vm1963, %v3081, 0.0
        %3090 = vadd.xlane.f32.xlu0 %v3089
        %v3091 = vpop.xlane.xlu0 %3090
        %v3092 = vsel %vm1963, %v3083, 0.0
        %3093 = vadd.xlane.f32.xlu0 %v3092
        %v3094 = vpop.xlane.xlu0 %3093
        %v3095 = vsel %vm1963, %v3085, 0.0
        %3096 = vadd.xlane.f32.xlu0 %v3095
        %v3097 = vpop.xlane.xlu0 %3096
        %v3098 = vrcp.pop %v3088
        %v3099 = vrcp.pop %v3091
        %v3100 = vrcp.pop %v3094
        %v3101 = vrcp.pop %v3097
        %v3102 = vmul.f32 %v3079, %v3098
        %v3103 = vmul.f32 %v3081, %v3099
        %v3104 = vmul.f32 %v3083, %v3100
        %v3105 = vmul.f32 %v3085, %v3101
        %3106 = vrot.lane.b32.xlu0 %v1894, 72
        %v3107 = vpop.permute.xlu0 %3106
        %3108 = vrot.lane.b32.xlu0 %v1897, 72
        %v3109 = vpop.permute.xlu0 %3108
        %3110 = vrot.lane.b32.xlu0 %v1900, 72
        %v3111 = vpop.permute.xlu0 %3110
        %3112 = vrot.lane.b32.xlu0 %v1903, 72
        %v3113 = vpop.permute.xlu0 %3112
        %v3119 = vsel %vm1963, %v3102, 0
        %v3122 = vsel %vm1963, %v3103, 0
        %v3125 = vsel %vm1963, %v3104, 0
        %v3128 = vsel %vm1963, %v3105, 0
        %3130 = vmatpush.msra.mxu0 0.0
        %3131 = vmatpush.msra.mxu0 0.0
        %3132 = vmatpush.msra.mxu0 0.0
        %3133 = vmatpush.msra.mxu0 0.0
        %3134 = vmatpush.msra.mxu0 0.0
        %3135 = vmatpush.msra.mxu0 0.0
        %3136 = vmatpush.msra.mxu0 0.0
        %3137 = vmatpush.msra.mxu0 0.0
        %3138 = vmatpush.msra.mxu0 0.0
        %3139 = vmatpush.msra.mxu0 0.0
        %3140 = vmatpush.msra.mxu0 0.0
        %3141 = vmatpush.msra.mxu0 0.0
        %3142 = vmatpush.msra.mxu0 %v3113
        %3143 = vmatpush.msra.mxu0 %v3111
        %3144 = vmatpush.msra.mxu0 %v3109
        %3145 = vmatpush.msra.mxu0 %v3107
        %3146 = vmatmul.f32.gmra.mxu0 %v3119
        %v3147 = vpop.f32.mrf.mxu0
        %v3148 = vadd.f32 0.0, %v3147
        %3149 = vmatmul.f32.gmra.mxu0 %v3122
        %v3150 = vpop.f32.mrf.mxu0
        %v3151 = vadd.f32 0.0, %v3150
        %3152 = vmatmul.f32.gmra.mxu0 %v3125
        %v3153 = vpop.f32.mrf.mxu0
        %v3154 = vadd.f32 0.0, %v3153
        %3155 = vmatmul.f32.gmra.mxu0 %v3128
        %v3156 = vpop.f32.mrf.mxu0
        %v3157 = vadd.f32 0.0, %v3156
        %3158 = vdwg.mxu0
        %3163 = vrot.lane.b32.xlu0 %v2200, 8
        %v3164 = vpop.permute.xlu0 %3163
        %3165 = vrot.lane.b32.xlu0 %v2203, 8
        %v3166 = vpop.permute.xlu0 %3165
        %3167 = vrot.lane.b32.xlu0 %v2206, 8
        %v3168 = vpop.permute.xlu0 %3167
        %3169 = vrot.lane.b32.xlu0 %v2209, 8
        %v3170 = vpop.permute.xlu0 %3169
        %3179 = vrot.lane.b32.xlu0 %v2358, 16
        %v3180 = vpop.permute.xlu0 %3179
        %3181 = vrot.lane.b32.xlu0 %v2361, 16
        %v3182 = vpop.permute.xlu0 %3181
        %3183 = vrot.lane.b32.xlu0 %v2364, 16
        %v3184 = vpop.permute.xlu0 %3183
        %3185 = vrot.lane.b32.xlu0 %v2367, 16
        %v3186 = vpop.permute.xlu0 %3185
        %3195 = vrot.lane.b32.xlu0 %v2516, 24
        %v3196 = vpop.permute.xlu0 %3195
        %3197 = vrot.lane.b32.xlu0 %v2519, 24
        %v3198 = vpop.permute.xlu0 %3197
        %3199 = vrot.lane.b32.xlu0 %v2522, 24
        %v3200 = vpop.permute.xlu0 %3199
        %3201 = vrot.lane.b32.xlu0 %v2525, 24
        %v3202 = vpop.permute.xlu0 %3201
        %3211 = vrot.lane.b32.xlu0 %v2674, 32
        %v3212 = vpop.permute.xlu0 %3211
        %3213 = vrot.lane.b32.xlu0 %v2677, 32
        %v3214 = vpop.permute.xlu0 %3213
        %3215 = vrot.lane.b32.xlu0 %v2680, 32
        %v3216 = vpop.permute.xlu0 %3215
        %3217 = vrot.lane.b32.xlu0 %v2683, 32
        %v3218 = vpop.permute.xlu0 %3217
        %3227 = vrot.lane.b32.xlu0 %v2832, 40
        %v3228 = vpop.permute.xlu0 %3227
        %3229 = vrot.lane.b32.xlu0 %v2835, 40
        %v3230 = vpop.permute.xlu0 %3229
        %3231 = vrot.lane.b32.xlu0 %v2838, 40
        %v3232 = vpop.permute.xlu0 %3231
        %3233 = vrot.lane.b32.xlu0 %v2841, 40
        %v3234 = vpop.permute.xlu0 %3233
        %3243 = vrot.lane.b32.xlu0 %v2990, 48
        %v3244 = vpop.permute.xlu0 %3243
        %3245 = vrot.lane.b32.xlu0 %v2993, 48
        %v3246 = vpop.permute.xlu0 %3245
        %3247 = vrot.lane.b32.xlu0 %v2996, 48
        %v3248 = vpop.permute.xlu0 %3247
        %3249 = vrot.lane.b32.xlu0 %v2999, 48
        %v3250 = vpop.permute.xlu0 %3249
        %3259 = vrot.lane.b32.xlu0 %v3148, 56
        %v3260 = vpop.permute.xlu0 %3259
        %3261 = vrot.lane.b32.xlu0 %v3151, 56
        %v3262 = vpop.permute.xlu0 %3261
        %3263 = vrot.lane.b32.xlu0 %v3154, 56
        %v3264 = vpop.permute.xlu0 %3263
        %3265 = vrot.lane.b32.xlu0 %v3157, 56
        %v3266 = vpop.permute.xlu0 %3265
        %v3271 = vsel %vm1917, %v2038, %v3164
        %v3272 = vsel %vm1917, %v2041, %v3166
        %v3273 = vsel %vm1917, %v2044, %v3168
        %v3274 = vsel %vm1917, %v2047, %v3170
        %vm3275 = vcmask 130048
        %v3276 = vsel %vm3275, %v3271, %v3180
        %v3277 = vsel %vm3275, %v3272, %v3182
        %v3278 = vsel %vm3275, %v3273, %v3184
        %v3279 = vsel %vm3275, %v3274, %v3186
        %vm3280 = vcmask 195584
        %v3281 = vsel %vm3280, %v3276, %v3196
        %v3282 = vsel %vm3280, %v3277, %v3198
        %v3283 = vsel %vm3280, %v3278, %v3200
        %v3284 = vsel %vm3280, %v3279, %v3202
        %v3285 = vsel %vm1963, %v3281, %v3212
        %v3286 = vsel %vm1963, %v3282, %v3214
        %v3287 = vsel %vm1963, %v3283, %v3216
        %v3288 = vsel %vm1963, %v3284, %v3218
        %vm3289 = vcmask 326656
        %v3290 = vsel %vm3289, %v3285, %v3228
        %v3291 = vsel %vm3289, %v3286, %v3230
        %v3292 = vsel %vm3289, %v3287, %v3232
        %v3293 = vsel %vm3289, %v3288, %v3234
        %vm3294 = vcmask 392192
        %v3295 = vsel %vm3294, %v3290, %v3244
        %v3296 = vsel %vm3294, %v3291, %v3246
        %v3297 = vsel %vm3294, %v3292, %v3248
        %v3298 = vsel %vm3294, %v3293, %v3250
        %vm3299 = vcmask 457728
        %v3300 = vsel %vm3299, %v3295, %v3260
        %v3301 = vsel %vm3299, %v3296, %v3262
        %v3302 = vsel %vm3299, %v3297, %v3264
        %v3303 = vsel %vm3299, %v3298, %v3266
        %v3304 = vld [vmem:[%s21] sm:$0xff]
        %v3305 = vld [vmem:[%s21 + $0x8] sm:$0xff]
        %v3306 = vld [vmem:[%s21 + $0x10] sm:$0xff]
        %v3307 = vld [vmem:[%s21 + $0x18] sm:$0xff]
        %v3308 = vld [vmem:[%s21 + $0x20] sm:$0xff]
        %v3309 = vld [vmem:[%s21 + $0x28] sm:$0xff]
        %v3310 = vld [vmem:[%s21 + $0x30] sm:$0xff]
        %v3311 = vld [vmem:[%s21 + $0x38] sm:$0xff]
        %v3312 = vld [vmem:[%s23] sm:$0x1]
        %v3314 = vperm.slane %v3312, 0
        %v3317 = vsel %vm948, %v3300, 0
        %v3320 = vsel %vm948, %v3301, 0
        %v3323 = vsel %vm948, %v3302, 0
        %v3326 = vsel %vm948, %v3303, 0
        %3328 = vmatpush.msra.mxu0 0.0
        %3329 = vmatpush.msra.mxu0 0.0
        %3330 = vmatpush.msra.mxu0 0.0
        %3331 = vmatpush.msra.mxu0 0.0
        %3332 = vmatpush.msra.mxu0 0.0
        %3333 = vmatpush.msra.mxu0 0.0
        %3334 = vmatpush.msra.mxu0 0.0
        %3335 = vmatpush.msra.mxu0 0.0
        %3336 = vmatpush.msra.mxu0 %v3311
        %3337 = vmatpush.msra.mxu0 %v3310
        %3338 = vmatpush.msra.mxu0 %v3309
        %3339 = vmatpush.msra.mxu0 %v3308
        %3340 = vmatpush.msra.mxu0 %v3307
        %3341 = vmatpush.msra.mxu0 %v3306
        %3342 = vmatpush.msra.mxu0 %v3305
        %3343 = vmatpush.msra.mxu0 %v3304
        %3344 = vmatmul.f32.gmra.mxu0 %v3317
        %v3345 = vpop.f32.mrf.mxu0
        %v3346 = vadd.f32 %v3314, %v3345
        %3347 = vmatmul.f32.gmra.mxu0 %v3320
        %v3348 = vpop.f32.mrf.mxu0
        %v3349 = vadd.f32 %v3314, %v3348
        %3350 = vmatmul.f32.gmra.mxu0 %v3323
        %v3351 = vpop.f32.mrf.mxu0
        %v3352 = vadd.f32 %v3314, %v3351
        %3353 = vmatmul.f32.gmra.mxu0 %v3326
        %v3354 = vpop.f32.mrf.mxu0
        %v3355 = vadd.f32 %v3314, %v3354
        %3356 = vdwg.mxu0
        %v3357 = vadd.f32 %v1809, %v3346
        %v3358 = vadd.f32 %v1810, %v3349
        %v3359 = vadd.f32 %v1811, %v3352
        %v3360 = vadd.f32 %v1812, %v3355
        %v3361 = vld [vmem:[%s25] sm:$0x1]
        %v3362 = vld [vmem:[%s27] sm:$0x1]
        %v3363 = vsel %vm948, %v3357, 0.0
        %3364 = vadd.xlane.f32.xlu0 %v3363
        %v3365 = vpop.xlane.xlu0 %3364
        %v3366 = vsel %vm948, %v3358, 0.0
        %3367 = vadd.xlane.f32.xlu0 %v3366
        %v3368 = vpop.xlane.xlu0 %3367
        %v3369 = vsel %vm948, %v3359, 0.0
        %3370 = vadd.xlane.f32.xlu0 %v3369
        %v3371 = vpop.xlane.xlu0 %3370
        %v3372 = vsel %vm948, %v3360, 0.0
        %3373 = vadd.xlane.f32.xlu0 %v3372
        %v3374 = vpop.xlane.xlu0 %3373
        %v3375 = vrcp.pop 64.0
        %v3376 = vmul.f32 64.0, %v3375
        %v3377 = vsub.f32 1.0, %v3376
        %v3378 = vmul.f32 %v3375, %v3377
        %v3379 = vadd.f32 %v3375, %v3378
        %vm3380 = vweird.f32 %v3375
        %v3381 = vsel %vm3380, %v3375, %v3379
        %v3382 = vmul.f32 %v3365, %v3381
        %v3383 = vmul.f32 %v3368, %v3381
        %v3384 = vmul.f32 %v3371, %v3381
        %v3385 = vmul.f32 %v3374, %v3381
        %v3386 = vsub.f32 %v3357, %v3382
        %v3387 = vsub.f32 %v3358, %v3383
        %v3388 = vsub.f32 %v3359, %v3384
        %v3389 = vsub.f32 %v3360, %v3385
        %v3390 = vmul.f32 %v3386, %v3386
        %v3391 = vmul.f32 %v3387, %v3387
        %v3392 = vmul.f32 %v3388, %v3388
        %v3393 = vmul.f32 %v3389, %v3389
        %v3394 = vsel %vm948, %v3390, 0.0
        %3395 = vadd.xlane.f32.xlu0 %v3394
        %v3396 = vpop.xlane.xlu0 %3395
        %v3397 = vsel %vm948, %v3391, 0.0
        %3398 = vadd.xlane.f32.xlu0 %v3397
        %v3399 = vpop.xlane.xlu0 %3398
        %v3400 = vsel %vm948, %v3392, 0.0
        %3401 = vadd.xlane.f32.xlu0 %v3400
        %v3402 = vpop.xlane.xlu0 %3401
        %v3403 = vsel %vm948, %v3393, 0.0
        %3404 = vadd.xlane.f32.xlu0 %v3403
        %v3405 = vpop.xlane.xlu0 %3404
        %v3406 = vmul.f32 %v3396, %v3381
        %v3407 = vmul.f32 %v3399, %v3381
        %v3408 = vmul.f32 %v3402, %v3381
        %v3409 = vmul.f32 %v3405, %v3381
        %v3410 = vadd.f32 %v3406, 1e-05
        %v3411 = vadd.f32 %v3407, 1e-05
        %v3412 = vadd.f32 %v3408, 1e-05
        %v3413 = vadd.f32 %v3409, 1e-05
        %v3414 = vrsqrt.pop %v3410
        %v3415 = vmul.f32 %v3414, %v3410
        %v3416 = vmul.f32 %v3415, %v3414
        %v3417 = vmul.f32 0.5, %v3416
        %v3418 = vsub.f32 1.5, %v3417
        %v3419 = vmul.f32 %v3414, %v3418
        %vm3420 = vweird.f32 %v3410
        %vm3421 = vweird.f32 %v3414
        %vm3422 = vmor %vm3420, %vm3421
        %v3423 = vsel %vm3422, %v3414, %v3419
        %v3424 = vrsqrt.pop %v3411
        %v3425 = vmul.f32 %v3424, %v3411
        %v3426 = vmul.f32 %v3425, %v3424
        %v3427 = vmul.f32 0.5, %v3426
        %v3428 = vsub.f32 1.5, %v3427
        %v3429 = vmul.f32 %v3424, %v3428
        %vm3430 = vweird.f32 %v3411
        %vm3431 = vweird.f32 %v3424
        %vm3432 = vmor %vm3430, %vm3431
        %v3433 = vsel %vm3432, %v3424, %v3429
        %v3434 = vrsqrt.pop %v3412
        %v3435 = vmul.f32 %v3434, %v3412
        %v3436 = vmul.f32 %v3435, %v3434
        %v3437 = vmul.f32 0.5, %v3436
        %v3438 = vsub.f32 1.5, %v3437
        %v3439 = vmul.f32 %v3434, %v3438
        %vm3440 = vweird.f32 %v3412
        %vm3441 = vweird.f32 %v3434
        %vm3442 = vmor %vm3440, %vm3441
        %v3443 = vsel %vm3442, %v3434, %v3439
        %v3444 = vrsqrt.pop %v3413
        %v3445 = vmul.f32 %v3444, %v3413
        %v3446 = vmul.f32 %v3445, %v3444
        %v3447 = vmul.f32 0.5, %v3446
        %v3448 = vsub.f32 1.5, %v3447
        %v3449 = vmul.f32 %v3444, %v3448
        %vm3450 = vweird.f32 %v3413
        %vm3451 = vweird.f32 %v3444
        %vm3452 = vmor %vm3450, %vm3451
        %v3453 = vsel %vm3452, %v3444, %v3449
        %v3454 = vmul.f32 %v3386, %v3423
        %v3455 = vmul.f32 %v3387, %v3433
        %v3456 = vmul.f32 %v3388, %v3443
        %v3457 = vmul.f32 %v3389, %v3453
        %v3459 = vperm.slane %v3361, 0
        %v3461 = vmul.f32 %v3454, %v3459
        %v3462 = vmul.f32 %v3455, %v3459
        %v3463 = vmul.f32 %v3456, %v3459
        %v3464 = vmul.f32 %v3457, %v3459
        %v3466 = vperm.slane %v3362, 0
        %v3468 = vadd.f32 %v3461, %v3466
        %v3469 = vadd.f32 %v3462, %v3466
        %v3470 = vadd.f32 %v3463, %v3466
        %v3471 = vadd.f32 %v3464, %v3466
        %v3472 = vld [vmem:[%s29] sm:$0xff]
        %v3473 = vld [vmem:[%s29 + $0x8] sm:$0xff]
        %v3474 = vld [vmem:[%s29 + $0x10] sm:$0xff]
        %v3475 = vld [vmem:[%s29 + $0x18] sm:$0xff]
        %v3476 = vld [vmem:[%s29 + $0x20] sm:$0xff]
        %v3477 = vld [vmem:[%s29 + $0x28] sm:$0xff]
        %v3478 = vld [vmem:[%s29 + $0x30] sm:$0xff]
        %v3479 = vld [vmem:[%s29 + $0x38] sm:$0xff]
        %v3480 = vld [vmem:[%s29 + $0x40] sm:$0xff]
        %v3481 = vld [vmem:[%s29 + $0x48] sm:$0xff]
        %v3482 = vld [vmem:[%s29 + $0x50] sm:$0xff]
        %v3483 = vld [vmem:[%s29 + $0x58] sm:$0xff]
        %v3484 = vld [vmem:[%s29 + $0x60] sm:$0xff]
        %v3485 = vld [vmem:[%s29 + $0x68] sm:$0xff]
        %v3486 = vld [vmem:[%s29 + $0x70] sm:$0xff]
        %v3487 = vld [vmem:[%s29 + $0x78] sm:$0xff]
        %v3488 = vld [vmem:[%s31] sm:$0x3]
        %v3490 = vperm.slane %v3488, 0
        %v3491 = vperm.slane %v3488, 1
        %v3495 = vsel %vm948, %v3468, 0
        %v3498 = vsel %vm948, %v3469, 0
        %v3501 = vsel %vm948, %v3470, 0
        %v3504 = vsel %vm948, %v3471, 0
        %3506 = vmatpush.msra.mxu0 0.0
        %3507 = vmatpush.msra.mxu0 0.0
        %3508 = vmatpush.msra.mxu0 0.0
        %3509 = vmatpush.msra.mxu0 0.0
        %3510 = vmatpush.msra.mxu0 0.0
        %3511 = vmatpush.msra.mxu0 0.0
        %3512 = vmatpush.msra.mxu0 0.0
        %3513 = vmatpush.msra.mxu0 0.0
        %3514 = vmatpush.msra.mxu0 %v3486
        %3515 = vmatpush.msra.mxu0 %v3484
        %3516 = vmatpush.msra.mxu0 %v3482
        %3517 = vmatpush.msra.mxu0 %v3480
        %3518 = vmatpush.msra.mxu0 %v3478
        %3519 = vmatpush.msra.mxu0 %v3476
        %3520 = vmatpush.msra.mxu0 %v3474
        %3521 = vmatpush.msra.mxu0 %v3472
        %3522 = vmatmul.f32.gmra.mxu0 %v3495
        %v3523 = vpop.f32.mrf.mxu0
        %v3524 = vadd.f32 %v3490, %v3523
        %3525 = vmatmul.f32.gmra.mxu0 %v3498
        %v3526 = vpop.f32.mrf.mxu0
        %v3527 = vadd.f32 %v3490, %v3526
        %3528 = vmatmul.f32.gmra.mxu0 %v3501
        %v3529 = vpop.f32.mrf.mxu0
        %v3530 = vadd.f32 %v3490, %v3529
        %3531 = vmatmul.f32.gmra.mxu0 %v3504
        %v3532 = vpop.f32.mrf.mxu0
        %v3533 = vadd.f32 %v3490, %v3532
        %3534 = vdwg.mxu0
        %3535 = vmatpush.msra.mxu0 0.0
        %3536 = vmatpush.msra.mxu0 0.0
        %3537 = vmatpush.msra.mxu0 0.0
        %3538 = vmatpush.msra.mxu0 0.0
        %3539 = vmatpush.msra.mxu0 0.0
        %3540 = vmatpush.msra.mxu0 0.0
        %3541 = vmatpush.msra.mxu0 0.0
        %3542 = vmatpush.msra.mxu0 0.0
        %3543 = vmatpush.msra.mxu0 %v3487
        %3544 = vmatpush.msra.mxu0 %v3485
        %3545 = vmatpush.msra.mxu0 %v3483
        %3546 = vmatpush.msra.mxu0 %v3481
        %3547 = vmatpush.msra.mxu0 %v3479
        %3548 = vmatpush.msra.mxu0 %v3477
        %3549 = vmatpush.msra.mxu0 %v3475
        %3550 = vmatpush.msra.mxu0 %v3473
        %3551 = vmatmul.f32.gmra.mxu0 %v3495
        %v3552 = vpop.f32.mrf.mxu0
        %v3553 = vadd.f32 %v3491, %v3552
        %3554 = vmatmul.f32.gmra.mxu0 %v3498
        %v3555 = vpop.f32.mrf.mxu0
        %v3556 = vadd.f32 %v3491, %v3555
        %3557 = vmatmul.f32.gmra.mxu0 %v3501
        %v3558 = vpop.f32.mrf.mxu0
        %v3559 = vadd.f32 %v3491, %v3558
        %3560 = vmatmul.f32.gmra.mxu0 %v3504
        %v3561 = vpop.f32.mrf.mxu0
        %v3562 = vadd.f32 %v3491, %v3561
        %3563 = vdwg.mxu0
        %v3564 = vmax.f32 %v3524, 0.0
        %v3565 = vmax.f32 %v3553, 0.0
        %v3566 = vmax.f32 %v3527, 0.0
        %v3567 = vmax.f32 %v3556, 0.0
        %v3568 = vmax.f32 %v3530, 0.0
        %v3569 = vmax.f32 %v3559, 0.0
        %v3570 = vmax.f32 %v3533, 0.0
        %v3571 = vmax.f32 %v3562, 0.0
        %v3572 = vld [vmem:[%s33] sm:$0xff]
        %v3573 = vld [vmem:[%s33 + $0x8] sm:$0xff]
        %v3574 = vld [vmem:[%s33 + $0x10] sm:$0xff]
        %v3575 = vld [vmem:[%s33 + $0x18] sm:$0xff]
        %v3576 = vld [vmem:[%s33 + $0x20] sm:$0xff]
        %v3577 = vld [vmem:[%s33 + $0x28] sm:$0xff]
        %v3578 = vld [vmem:[%s33 + $0x30] sm:$0xff]
        %v3579 = vld [vmem:[%s33 + $0x38] sm:$0xff]
        %v3580 = vld [vmem:[%s33 + $0x40] sm:$0xff]
        %v3581 = vld [vmem:[%s33 + $0x48] sm:$0xff]
        %v3582 = vld [vmem:[%s33 + $0x50] sm:$0xff]
        %v3583 = vld [vmem:[%s33 + $0x58] sm:$0xff]
        %v3584 = vld [vmem:[%s33 + $0x60] sm:$0xff]
        %v3585 = vld [vmem:[%s33 + $0x68] sm:$0xff]
        %v3586 = vld [vmem:[%s33 + $0x70] sm:$0xff]
        %v3587 = vld [vmem:[%s33 + $0x78] sm:$0xff]
        %v3588 = vld [vmem:[%s33 + $0x80] sm:$0xff]
        %v3589 = vld [vmem:[%s33 + $0x88] sm:$0xff]
        %v3590 = vld [vmem:[%s33 + $0x90] sm:$0xff]
        %v3591 = vld [vmem:[%s33 + $0x98] sm:$0xff]
        %v3592 = vld [vmem:[%s33 + $0xa0] sm:$0xff]
        %v3593 = vld [vmem:[%s33 + $0xa8] sm:$0xff]
        %v3594 = vld [vmem:[%s33 + $0xb0] sm:$0xff]
        %v3595 = vld [vmem:[%s33 + $0xb8] sm:$0xff]
        %v3596 = vld [vmem:[%s33 + $0xc0] sm:$0xff]
        %v3597 = vld [vmem:[%s33 + $0xc8] sm:$0xff]
        %v3598 = vld [vmem:[%s33 + $0xd0] sm:$0xff]
        %v3599 = vld [vmem:[%s33 + $0xd8] sm:$0xff]
        %v3600 = vld [vmem:[%s33 + $0xe0] sm:$0xff]
        %v3601 = vld [vmem:[%s33 + $0xe8] sm:$0xff]
        %v3602 = vld [vmem:[%s33 + $0xf0] sm:$0xff]
        %v3603 = vld [vmem:[%s33 + $0xf8] sm:$0xff]
        %v3604 = vld [vmem:[%s35] sm:$0x1]
        %v3606 = vperm.slane %v3604, 0
        %3608 = vmatpush.msra.mxu0 %v3587
        %3609 = vmatpush.msra.mxu0 %v3586
        %3610 = vmatpush.msra.mxu0 %v3585
        %3611 = vmatpush.msra.mxu0 %v3584
        %3612 = vmatpush.msra.mxu0 %v3583
        %3613 = vmatpush.msra.mxu0 %v3582
        %3614 = vmatpush.msra.mxu0 %v3581
        %3615 = vmatpush.msra.mxu0 %v3580
        %3616 = vmatpush.msra.mxu0 %v3579
        %3617 = vmatpush.msra.mxu0 %v3578
        %3618 = vmatpush.msra.mxu0 %v3577
        %3619 = vmatpush.msra.mxu0 %v3576
        %3620 = vmatpush.msra.mxu0 %v3575
        %3621 = vmatpush.msra.mxu0 %v3574
        %3622 = vmatpush.msra.mxu0 %v3573
        %3623 = vmatpush.msra.mxu0 %v3572
        %3624 = vmatmul.f32.gmra.mxu0 %v3564
        %v3625 = vpop.f32.mrf.mxu0
        %v3626 = vadd.f32 %v3606, %v3625
        %3627 = vmatmul.f32.gmra.mxu0 %v3566
        %v3628 = vpop.f32.mrf.mxu0
        %v3629 = vadd.f32 %v3606, %v3628
        %3630 = vmatmul.f32.gmra.mxu0 %v3568
        %v3631 = vpop.f32.mrf.mxu0
        %v3632 = vadd.f32 %v3606, %v3631
        %3633 = vmatmul.f32.gmra.mxu0 %v3570
        %v3634 = vpop.f32.mrf.mxu0
        %v3635 = vadd.f32 %v3606, %v3634
        %3636 = vdwg.mxu0
        %3637 = vmatpush.msra.mxu0 %v3603
        %3638 = vmatpush.msra.mxu0 %v3602
        %3639 = vmatpush.msra.mxu0 %v3601
        %3640 = vmatpush.msra.mxu0 %v3600
        %3641 = vmatpush.msra.mxu0 %v3599
        %3642 = vmatpush.msra.mxu0 %v3598
        %3643 = vmatpush.msra.mxu0 %v3597
        %3644 = vmatpush.msra.mxu0 %v3596
        %3645 = vmatpush.msra.mxu0 %v3595
        %3646 = vmatpush.msra.mxu0 %v3594
        %3647 = vmatpush.msra.mxu0 %v3593
        %3648 = vmatpush.msra.mxu0 %v3592
        %3649 = vmatpush.msra.mxu0 %v3591
        %3650 = vmatpush.msra.mxu0 %v3590
        %3651 = vmatpush.msra.mxu0 %v3589
        %3652 = vmatpush.msra.mxu0 %v3588
        %3653 = vmatmul.f32.gmra.mxu0 %v3565
        %v3654 = vpop.f32.mrf.mxu0
        %v3655 = vadd.f32 %v3626, %v3654
        %3656 = vmatmul.f32.gmra.mxu0 %v3567
        %v3657 = vpop.f32.mrf.mxu0
        %v3658 = vadd.f32 %v3629, %v3657
        %3659 = vmatmul.f32.gmra.mxu0 %v3569
        %v3660 = vpop.f32.mrf.mxu0
        %v3661 = vadd.f32 %v3632, %v3660
        %3662 = vmatmul.f32.gmra.mxu0 %v3571
        %v3663 = vpop.f32.mrf.mxu0
        %v3664 = vadd.f32 %v3635, %v3663
        %3665 = vdwg.mxu0
        %v3666 = vadd.f32 %v3468, %v3655
        %v3667 = vadd.f32 %v3469, %v3658
        %v3668 = vadd.f32 %v3470, %v3661
        %v3669 = vadd.f32 %v3471, %v3664
        %v3670 = vld [vmem:[%s37] sm:$0x1]
        %v3671 = vld [vmem:[%s39] sm:$0x1]
        %v3672 = vsel %vm948, %v3666, 0.0
        %3673 = vadd.xlane.f32.xlu0 %v3672
        %v3674 = vpop.xlane.xlu0 %3673
        %v3675 = vsel %vm948, %v3667, 0.0
        %3676 = vadd.xlane.f32.xlu0 %v3675
        %v3677 = vpop.xlane.xlu0 %3676
        %v3678 = vsel %vm948, %v3668, 0.0
        %3679 = vadd.xlane.f32.xlu0 %v3678
        %v3680 = vpop.xlane.xlu0 %3679
        %v3681 = vsel %vm948, %v3669, 0.0
        %3682 = vadd.xlane.f32.xlu0 %v3681
        %v3683 = vpop.xlane.xlu0 %3682
        %v3684 = vmul.f32 %v3674, %v3381
        %v3685 = vmul.f32 %v3677, %v3381
        %v3686 = vmul.f32 %v3680, %v3381
        %v3687 = vmul.f32 %v3683, %v3381
        %v3688 = vsub.f32 %v3666, %v3684
        %v3689 = vsub.f32 %v3667, %v3685
        %v3690 = vsub.f32 %v3668, %v3686
        %v3691 = vsub.f32 %v3669, %v3687
        %v3692 = vmul.f32 %v3688, %v3688
        %v3693 = vmul.f32 %v3689, %v3689
        %v3694 = vmul.f32 %v3690, %v3690
        %v3695 = vmul.f32 %v3691, %v3691
        %v3696 = vsel %vm948, %v3692, 0.0
        %3697 = vadd.xlane.f32.xlu0 %v3696
        %v3698 = vpop.xlane.xlu0 %3697
        %v3699 = vsel %vm948, %v3693, 0.0
        %3700 = vadd.xlane.f32.xlu0 %v3699
        %v3701 = vpop.xlane.xlu0 %3700
        %v3702 = vsel %vm948, %v3694, 0.0
        %3703 = vadd.xlane.f32.xlu0 %v3702
        %v3704 = vpop.xlane.xlu0 %3703
        %v3705 = vsel %vm948, %v3695, 0.0
        %3706 = vadd.xlane.f32.xlu0 %v3705
        %v3707 = vpop.xlane.xlu0 %3706
        %v3708 = vmul.f32 %v3698, %v3381
        %v3709 = vmul.f32 %v3701, %v3381
        %v3710 = vmul.f32 %v3704, %v3381
        %v3711 = vmul.f32 %v3707, %v3381
        %v3712 = vadd.f32 %v3708, 1e-05
        %v3713 = vadd.f32 %v3709, 1e-05
        %v3714 = vadd.f32 %v3710, 1e-05
        %v3715 = vadd.f32 %v3711, 1e-05
        %v3716 = vrsqrt.pop %v3712
        %v3717 = vmul.f32 %v3716, %v3712
        %v3718 = vmul.f32 %v3717, %v3716
        %v3719 = vmul.f32 0.5, %v3718
        %v3720 = vsub.f32 1.5, %v3719
        %v3721 = vmul.f32 %v3716, %v3720
        %vm3722 = vweird.f32 %v3712
        %vm3723 = vweird.f32 %v3716
        %vm3724 = vmor %vm3722, %vm3723
        %v3725 = vsel %vm3724, %v3716, %v3721
        %v3726 = vrsqrt.pop %v3713
        %v3727 = vmul.f32 %v3726, %v3713
        %v3728 = vmul.f32 %v3727, %v3726
        %v3729 = vmul.f32 0.5, %v3728
        %v3730 = vsub.f32 1.5, %v3729
        %v3731 = vmul.f32 %v3726, %v3730
        %vm3732 = vweird.f32 %v3713
        %vm3733 = vweird.f32 %v3726
        %vm3734 = vmor %vm3732, %vm3733
        %v3735 = vsel %vm3734, %v3726, %v3731
        %v3736 = vrsqrt.pop %v3714
        %v3737 = vmul.f32 %v3736, %v3714
        %v3738 = vmul.f32 %v3737, %v3736
        %v3739 = vmul.f32 0.5, %v3738
        %v3740 = vsub.f32 1.5, %v3739
        %v3741 = vmul.f32 %v3736, %v3740
        %vm3742 = vweird.f32 %v3714
        %vm3743 = vweird.f32 %v3736
        %vm3744 = vmor %vm3742, %vm3743
        %v3745 = vsel %vm3744, %v3736, %v3741
        %v3746 = vrsqrt.pop %v3715
        %v3747 = vmul.f32 %v3746, %v3715
        %v3748 = vmul.f32 %v3747, %v3746
        %v3749 = vmul.f32 0.5, %v3748
        %v3750 = vsub.f32 1.5, %v3749
        %v3751 = vmul.f32 %v3746, %v3750
        %vm3752 = vweird.f32 %v3715
        %vm3753 = vweird.f32 %v3746
        %vm3754 = vmor %vm3752, %vm3753
        %v3755 = vsel %vm3754, %v3746, %v3751
        %v3756 = vmul.f32 %v3688, %v3725
        %v3757 = vmul.f32 %v3689, %v3735
        %v3758 = vmul.f32 %v3690, %v3745
        %v3759 = vmul.f32 %v3691, %v3755
        %v3761 = vperm.slane %v3670, 0
        %v3763 = vmul.f32 %v3756, %v3761
        %v3764 = vmul.f32 %v3757, %v3761
        %v3765 = vmul.f32 %v3758, %v3761
        %v3766 = vmul.f32 %v3759, %v3761
        %v3768 = vperm.slane %v3671, 0
        %v3770 = vadd.f32 %v3763, %v3768
        %v3771 = vadd.f32 %v3764, %v3768
        %v3772 = vadd.f32 %v3765, %v3768
        %v3773 = vadd.f32 %v3766, %v3768
        %s3774 = scalar_lea.vmem %s17, 128
        %v3775 = vld [vmem:[%s3774] sm:$0xff]
        %v3776 = vld [vmem:[%s3774 + $0x8] sm:$0xff]
        %v3777 = vld [vmem:[%s3774 + $0x10] sm:$0xff]
        %v3778 = vld [vmem:[%s3774 + $0x18] sm:$0xff]
        %v3779 = vld [vmem:[%s3774 + $0x20] sm:$0xff]
        %v3780 = vld [vmem:[%s3774 + $0x28] sm:$0xff]
        %v3781 = vld [vmem:[%s3774 + $0x30] sm:$0xff]
        %v3782 = vld [vmem:[%s3774 + $0x38] sm:$0xff]
        %v3783 = vld [vmem:[%s3774 + $0x40] sm:$0xff]
        %v3784 = vld [vmem:[%s3774 + $0x48] sm:$0xff]
        %v3785 = vld [vmem:[%s3774 + $0x50] sm:$0xff]
        %v3786 = vld [vmem:[%s3774 + $0x58] sm:$0xff]
        %v3787 = vld [vmem:[%s3774 + $0x60] sm:$0xff]
        %v3788 = vld [vmem:[%s3774 + $0x68] sm:$0xff]
        %v3789 = vld [vmem:[%s3774 + $0x70] sm:$0xff]
        %v3790 = vld [vmem:[%s3774 + $0x78] sm:$0xff]
        %s3791 = scalar_lea.vmem %s19, 2
        %v3792 = vld [vmem:[%s3791] sm:$0x3]
        %v3794 = vperm.slane %v3792, 0
        %v3795 = vperm.slane %v3792, 1
        %v3799 = vsel %vm948, %v3770, 0
        %v3802 = vsel %vm948, %v3771, 0
        %v3805 = vsel %vm948, %v3772, 0
        %v3808 = vsel %vm948, %v3773, 0
        %3810 = vmatpush.msra.mxu0 0.0
        %3811 = vmatpush.msra.mxu0 0.0
        %3812 = vmatpush.msra.mxu0 0.0
        %3813 = vmatpush.msra.mxu0 0.0
        %3814 = vmatpush.msra.mxu0 0.0
        %3815 = vmatpush.msra.mxu0 0.0
        %3816 = vmatpush.msra.mxu0 0.0
        %3817 = vmatpush.msra.mxu0 0.0
        %3818 = vmatpush.msra.mxu0 %v3789
        %3819 = vmatpush.msra.mxu0 %v3787
        %3820 = vmatpush.msra.mxu0 %v3785
        %3821 = vmatpush.msra.mxu0 %v3783
        %3822 = vmatpush.msra.mxu0 %v3781
        %3823 = vmatpush.msra.mxu0 %v3779
        %3824 = vmatpush.msra.mxu0 %v3777
        %3825 = vmatpush.msra.mxu0 %v3775
        %3826 = vmatmul.f32.gmra.mxu0 %v3799
        %v3827 = vpop.f32.mrf.mxu0
        %v3828 = vadd.f32 %v3794, %v3827
        %3829 = vmatmul.f32.gmra.mxu0 %v3802
        %v3830 = vpop.f32.mrf.mxu0
        %v3831 = vadd.f32 %v3794, %v3830
        %3832 = vmatmul.f32.gmra.mxu0 %v3805
        %v3833 = vpop.f32.mrf.mxu0
        %v3834 = vadd.f32 %v3794, %v3833
        %3835 = vmatmul.f32.gmra.mxu0 %v3808
        %v3836 = vpop.f32.mrf.mxu0
        %v3837 = vadd.f32 %v3794, %v3836
        %3838 = vdwg.mxu0
        %3839 = vmatpush.msra.mxu0 0.0
        %3840 = vmatpush.msra.mxu0 0.0
        %3841 = vmatpush.msra.mxu0 0.0
        %3842 = vmatpush.msra.mxu0 0.0
        %3843 = vmatpush.msra.mxu0 0.0
        %3844 = vmatpush.msra.mxu0 0.0
        %3845 = vmatpush.msra.mxu0 0.0
        %3846 = vmatpush.msra.mxu0 0.0
        %3847 = vmatpush.msra.mxu0 %v3790
        %3848 = vmatpush.msra.mxu0 %v3788
        %3849 = vmatpush.msra.mxu0 %v3786
        %3850 = vmatpush.msra.mxu0 %v3784
        %3851 = vmatpush.msra.mxu0 %v3782
        %3852 = vmatpush.msra.mxu0 %v3780
        %3853 = vmatpush.msra.mxu0 %v3778
        %3854 = vmatpush.msra.mxu0 %v3776
        %3855 = vmatmul.f32.gmra.mxu0 %v3799
        %v3856 = vpop.f32.mrf.mxu0
        %v3857 = vadd.f32 %v3795, %v3856
        %3858 = vmatmul.f32.gmra.mxu0 %v3802
        %v3859 = vpop.f32.mrf.mxu0
        %v3860 = vadd.f32 %v3795, %v3859
        %3861 = vmatmul.f32.gmra.mxu0 %v3805
        %v3862 = vpop.f32.mrf.mxu0
        %v3863 = vadd.f32 %v3795, %v3862
        %3864 = vmatmul.f32.gmra.mxu0 %v3808
        %v3865 = vpop.f32.mrf.mxu0
        %v3866 = vadd.f32 %v3795, %v3865
        %3867 = vdwg.mxu0
        %3872 = vrot.lane.b32.xlu0 %v3828, 64
        %v3873 = vpop.permute.xlu0 %3872
        %3874 = vrot.lane.b32.xlu0 %v3831, 64
        %v3875 = vpop.permute.xlu0 %3874
        %3876 = vrot.lane.b32.xlu0 %v3834, 64
        %v3877 = vpop.permute.xlu0 %3876
        %3878 = vrot.lane.b32.xlu0 %v3837, 64
        %v3879 = vpop.permute.xlu0 %3878
        %v3880 = vsel %vm1917, %v3828, 0
        %v3882 = vsel %vm1917, %v3831, 0
        %v3884 = vsel %vm1917, %v3834, 0
        %v3886 = vsel %vm1917, %v3837, 0
        %v3888 = vsel %vm1917, %v3873, 0
        %v3890 = vsel %vm1917, %v3875, 0
        %v3892 = vsel %vm1917, %v3877, 0
        %v3894 = vsel %vm1917, %v3879, 0
        %3896 = vmatpush.xpose.msra.mxu0 0.0
        %3897 = vmatpush.xpose.msra.mxu0 0.0
        %3898 = vmatpush.xpose.msra.mxu0 0.0
        %3899 = vmatpush.xpose.msra.mxu0 0.0
        %3900 = vmatpush.xpose.msra.mxu0 0.0
        %3901 = vmatpush.xpose.msra.mxu0 0.0
        %3902 = vmatpush.xpose.msra.mxu0 0.0
        %3903 = vmatpush.xpose.msra.mxu0 0.0
        %3904 = vmatpush.xpose.msra.mxu0 0.0
        %3905 = vmatpush.xpose.msra.mxu0 0.0
        %3906 = vmatpush.xpose.msra.mxu0 0.0
        %3907 = vmatpush.xpose.msra.mxu0 0.0
        %3908 = vmatpush.xpose.msra.mxu0 %v3894
        %3909 = vmatpush.xpose.msra.mxu0 %v3892
        %3910 = vmatpush.xpose.msra.mxu0 %v3890
        %3911 = vmatpush.xpose.msra.mxu0 %v3888
        %3912 = vmatmul.f32.gmra.mxu0 %v3880
        %v3913 = vpop.f32.mrf.mxu0
        %v3914 = vadd.f32 0.0, %v3913
        %3915 = vmatmul.f32.gmra.mxu0 %v3882
        %v3916 = vpop.f32.mrf.mxu0
        %v3917 = vadd.f32 0.0, %v3916
        %3918 = vmatmul.f32.gmra.mxu0 %v3884
        %v3919 = vpop.f32.mrf.mxu0
        %v3920 = vadd.f32 0.0, %v3919
        %3921 = vmatmul.f32.gmra.mxu0 %v3886
        %v3922 = vpop.f32.mrf.mxu0
        %v3923 = vadd.f32 0.0, %v3922
        %3924 = vdwg.mxu0
        %v3925 = vsel %vm1963, %v3914, -inf
        %3926 = vmax.xlane.f32.xlu0 %v3925
        %v3927 = vpop.xlane.xlu0 %3926
        %v3928 = vsel %vm1963, %v3917, -inf
        %3929 = vmax.xlane.f32.xlu0 %v3928
        %v3930 = vpop.xlane.xlu0 %3929
        %v3931 = vsel %vm1963, %v3920, -inf
        %3932 = vmax.xlane.f32.xlu0 %v3931
        %v3933 = vpop.xlane.xlu0 %3932
        %v3934 = vsel %vm1963, %v3923, -inf
        %3935 = vmax.xlane.f32.xlu0 %v3934
        %v3936 = vpop.xlane.xlu0 %3935
        %v3937 = vsub.f32 %v3914, %v3927
        %v3938 = vsub.f32 %v3917, %v3930
        %v3939 = vsub.f32 %v3920, %v3933
        %v3940 = vsub.f32 %v3923, %v3936
        %v3941 = vmul.f32 %v3937, 1.442695
        %v3942 = vpow.pop %v3941
        %v3943 = vmul.f32 %v3938, 1.442695
        %v3944 = vpow.pop %v3943
        %v3945 = vmul.f32 %v3939, 1.442695
        %v3946 = vpow.pop %v3945
        %v3947 = vmul.f32 %v3940, 1.442695
        %v3948 = vpow.pop %v3947
        %v3949 = vsel %vm1963, %v3942, 0.0
        %3950 = vadd.xlane.f32.xlu0 %v3949
        %v3951 = vpop.xlane.xlu0 %3950
        %v3952 = vsel %vm1963, %v3944, 0.0
        %3953 = vadd.xlane.f32.xlu0 %v3952
        %v3954 = vpop.xlane.xlu0 %3953
        %v3955 = vsel %vm1963, %v3946, 0.0
        %3956 = vadd.xlane.f32.xlu0 %v3955
        %v3957 = vpop.xlane.xlu0 %3956
        %v3958 = vsel %vm1963, %v3948, 0.0
        %3959 = vadd.xlane.f32.xlu0 %v3958
        %v3960 = vpop.xlane.xlu0 %3959
        %v3961 = vrcp.pop %v3951
        %v3962 = vrcp.pop %v3954
        %v3963 = vrcp.pop %v3957
        %v3964 = vrcp.pop %v3960
        %v3965 = vmul.f32 %v3942, %v3961
        %v3966 = vmul.f32 %v3944, %v3962
        %v3967 = vmul.f32 %v3946, %v3963
        %v3968 = vmul.f32 %v3948, %v3964
        %v3970 = vsel %vm1963, %v3965, 0
        %v3973 = vsel %vm1963, %v3966, 0
        %v3976 = vsel %vm1963, %v3967, 0
        %v3979 = vsel %vm1963, %v3968, 0
        %3981 = vmatpush.msra.mxu0 0.0
        %3982 = vmatpush.msra.mxu0 0.0
        %3983 = vmatpush.msra.mxu0 0.0
        %3984 = vmatpush.msra.mxu0 0.0
        %3985 = vmatpush.msra.mxu0 0.0
        %3986 = vmatpush.msra.mxu0 0.0
        %3987 = vmatpush.msra.mxu0 0.0
        %3988 = vmatpush.msra.mxu0 0.0
        %3989 = vmatpush.msra.mxu0 0.0
        %3990 = vmatpush.msra.mxu0 0.0
        %3991 = vmatpush.msra.mxu0 0.0
        %3992 = vmatpush.msra.mxu0 0.0
        %3993 = vmatpush.msra.mxu0 %v3866
        %3994 = vmatpush.msra.mxu0 %v3863
        %3995 = vmatpush.msra.mxu0 %v3860
        %3996 = vmatpush.msra.mxu0 %v3857
        %3997 = vmatmul.f32.gmra.mxu0 %v3970
        %v3998 = vpop.f32.mrf.mxu0
        %v3999 = vadd.f32 0.0, %v3998
        %4000 = vmatmul.f32.gmra.mxu0 %v3973
        %v4001 = vpop.f32.mrf.mxu0
        %v4002 = vadd.f32 0.0, %v4001
        %4003 = vmatmul.f32.gmra.mxu0 %v3976
        %v4004 = vpop.f32.mrf.mxu0
        %v4005 = vadd.f32 0.0, %v4004
        %4006 = vmatmul.f32.gmra.mxu0 %v3979
        %v4007 = vpop.f32.mrf.mxu0
        %v4008 = vadd.f32 0.0, %v4007
        %4009 = vdwg.mxu0
        %4010 = vrot.lane.b32.xlu0 %v3828, 120
        %v4011 = vpop.permute.xlu0 %4010
        %4012 = vrot.lane.b32.xlu0 %v3831, 120
        %v4013 = vpop.permute.xlu0 %4012
        %4014 = vrot.lane.b32.xlu0 %v3834, 120
        %v4015 = vpop.permute.xlu0 %4014
        %4016 = vrot.lane.b32.xlu0 %v3837, 120
        %v4017 = vpop.permute.xlu0 %4016
        %4018 = vrot.lane.b32.xlu0 %v3828, 56
        %v4019 = vpop.permute.xlu0 %4018
        %4020 = vrot.lane.b32.xlu0 %v3831, 56
        %v4021 = vpop.permute.xlu0 %4020
        %4022 = vrot.lane.b32.xlu0 %v3834, 56
        %v4023 = vpop.permute.xlu0 %4022
        %4024 = vrot.lane.b32.xlu0 %v3837, 56
        %v4025 = vpop.permute.xlu0 %4024
        %v4026 = vsel %vm1917, %v4011, 0
        %v4028 = vsel %vm1917, %v4013, 0
        %v4030 = vsel %vm1917, %v4015, 0
        %v4032 = vsel %vm1917, %v4017, 0
        %v4034 = vsel %vm1917, %v4019, 0
        %v4036 = vsel %vm1917, %v4021, 0
        %v4038 = vsel %vm1917, %v4023, 0
        %v4040 = vsel %vm1917, %v4025, 0
        %4042 = vmatpush.xpose.msra.mxu0 0.0
        %4043 = vmatpush.xpose.msra.mxu0 0.0
        %4044 = vmatpush.xpose.msra.mxu0 0.0
        %4045 = vmatpush.xpose.msra.mxu0 0.0
        %4046 = vmatpush.xpose.msra.mxu0 0.0
        %4047 = vmatpush.xpose.msra.mxu0 0.0
        %4048 = vmatpush.xpose.msra.mxu0 0.0
        %4049 = vmatpush.xpose.msra.mxu0 0.0
        %4050 = vmatpush.xpose.msra.mxu0 0.0
        %4051 = vmatpush.xpose.msra.mxu0 0.0
        %4052 = vmatpush.xpose.msra.mxu0 0.0
        %4053 = vmatpush.xpose.msra.mxu0 0.0
        %4054 = vmatpush.xpose.msra.mxu0 %v4040
        %4055 = vmatpush.xpose.msra.mxu0 %v4038
        %4056 = vmatpush.xpose.msra.mxu0 %v4036
        %4057 = vmatpush.xpose.msra.mxu0 %v4034
        %4058 = vmatmul.f32.gmra.mxu0 %v4026
        %v4059 = vpop.f32.mrf.mxu0
        %v4060 = vadd.f32 0.0, %v4059
        %4061 = vmatmul.f32.gmra.mxu0 %v4028
        %v4062 = vpop.f32.mrf.mxu0
        %v4063 = vadd.f32 0.0, %v4062
        %4064 = vmatmul.f32.gmra.mxu0 %v4030
        %v4065 = vpop.f32.mrf.mxu0
        %v4066 = vadd.f32 0.0, %v4065
        %4067 = vmatmul.f32.gmra.mxu0 %v4032
        %v4068 = vpop.f32.mrf.mxu0
        %v4069 = vadd.f32 0.0, %v4068
        %4070 = vdwg.mxu0
        %v4071 = vsel %vm1963, %v4060, -inf
        %4072 = vmax.xlane.f32.xlu0 %v4071
        %v4073 = vpop.xlane.xlu0 %4072
        %v4074 = vsel %vm1963, %v4063, -inf
        %4075 = vmax.xlane.f32.xlu0 %v4074
        %v4076 = vpop.xlane.xlu0 %4075
        %v4077 = vsel %vm1963, %v4066, -inf
        %4078 = vmax.xlane.f32.xlu0 %v4077
        %v4079 = vpop.xlane.xlu0 %4078
        %v4080 = vsel %vm1963, %v4069, -inf
        %4081 = vmax.xlane.f32.xlu0 %v4080
        %v4082 = vpop.xlane.xlu0 %4081
        %v4083 = vsub.f32 %v4060, %v4073
        %v4084 = vsub.f32 %v4063, %v4076
        %v4085 = vsub.f32 %v4066, %v4079
        %v4086 = vsub.f32 %v4069, %v4082
        %v4087 = vmul.f32 %v4083, 1.442695
        %v4088 = vpow.pop %v4087
        %v4089 = vmul.f32 %v4084, 1.442695
        %v4090 = vpow.pop %v4089
        %v4091 = vmul.f32 %v4085, 1.442695
        %v4092 = vpow.pop %v4091
        %v4093 = vmul.f32 %v4086, 1.442695
        %v4094 = vpow.pop %v4093
        %v4095 = vsel %vm1963, %v4088, 0.0
        %4096 = vadd.xlane.f32.xlu0 %v4095
        %v4097 = vpop.xlane.xlu0 %4096
        %v4098 = vsel %vm1963, %v4090, 0.0
        %4099 = vadd.xlane.f32.xlu0 %v4098
        %v4100 = vpop.xlane.xlu0 %4099
        %v4101 = vsel %vm1963, %v4092, 0.0
        %4102 = vadd.xlane.f32.xlu0 %v4101
        %v4103 = vpop.xlane.xlu0 %4102
        %v4104 = vsel %vm1963, %v4094, 0.0
        %4105 = vadd.xlane.f32.xlu0 %v4104
        %v4106 = vpop.xlane.xlu0 %4105
        %v4107 = vrcp.pop %v4097
        %v4108 = vrcp.pop %v4100
        %v4109 = vrcp.pop %v4103
        %v4110 = vrcp.pop %v4106
        %v4111 = vmul.f32 %v4088, %v4107
        %v4112 = vmul.f32 %v4090, %v4108
        %v4113 = vmul.f32 %v4092, %v4109
        %v4114 = vmul.f32 %v4094, %v4110
        %4119 = vrot.lane.b32.xlu0 %v3857, 120
        %v4120 = vpop.permute.xlu0 %4119
        %4121 = vrot.lane.b32.xlu0 %v3860, 120
        %v4122 = vpop.permute.xlu0 %4121
        %4123 = vrot.lane.b32.xlu0 %v3863, 120
        %v4124 = vpop.permute.xlu0 %4123
        %4125 = vrot.lane.b32.xlu0 %v3866, 120
        %v4126 = vpop.permute.xlu0 %4125
        %v4132 = vsel %vm1963, %v4111, 0
        %v4135 = vsel %vm1963, %v4112, 0
        %v4138 = vsel %vm1963, %v4113, 0
        %v4141 = vsel %vm1963, %v4114, 0
        %4143 = vmatpush.msra.mxu0 0.0
        %4144 = vmatpush.msra.mxu0 0.0
        %4145 = vmatpush.msra.mxu0 0.0
        %4146 = vmatpush.msra.mxu0 0.0
        %4147 = vmatpush.msra.mxu0 0.0
        %4148 = vmatpush.msra.mxu0 0.0
        %4149 = vmatpush.msra.mxu0 0.0
        %4150 = vmatpush.msra.mxu0 0.0
        %4151 = vmatpush.msra.mxu0 0.0
        %4152 = vmatpush.msra.mxu0 0.0
        %4153 = vmatpush.msra.mxu0 0.0
        %4154 = vmatpush.msra.mxu0 0.0
        %4155 = vmatpush.msra.mxu0 %v4126
        %4156 = vmatpush.msra.mxu0 %v4124
        %4157 = vmatpush.msra.mxu0 %v4122
        %4158 = vmatpush.msra.mxu0 %v4120
        %4159 = vmatmul.f32.gmra.mxu0 %v4132
        %v4160 = vpop.f32.mrf.mxu0
        %v4161 = vadd.f32 0.0, %v4160
        %4162 = vmatmul.f32.gmra.mxu0 %v4135
        %v4163 = vpop.f32.mrf.mxu0
        %v4164 = vadd.f32 0.0, %v4163
        %4165 = vmatmul.f32.gmra.mxu0 %v4138
        %v4166 = vpop.f32.mrf.mxu0
        %v4167 = vadd.f32 0.0, %v4166
        %4168 = vmatmul.f32.gmra.mxu0 %v4141
        %v4169 = vpop.f32.mrf.mxu0
        %v4170 = vadd.f32 0.0, %v4169
        %4171 = vdwg.mxu0
        %4172 = vrot.lane.b32.xlu0 %v3828, 112
        %v4173 = vpop.permute.xlu0 %4172
        %4174 = vrot.lane.b32.xlu0 %v3831, 112
        %v4175 = vpop.permute.xlu0 %4174
        %4176 = vrot.lane.b32.xlu0 %v3834, 112
        %v4177 = vpop.permute.xlu0 %4176
        %4178 = vrot.lane.b32.xlu0 %v3837, 112
        %v4179 = vpop.permute.xlu0 %4178
        %4180 = vrot.lane.b32.xlu0 %v3828, 48
        %v4181 = vpop.permute.xlu0 %4180
        %4182 = vrot.lane.b32.xlu0 %v3831, 48
        %v4183 = vpop.permute.xlu0 %4182
        %4184 = vrot.lane.b32.xlu0 %v3834, 48
        %v4185 = vpop.permute.xlu0 %4184
        %4186 = vrot.lane.b32.xlu0 %v3837, 48
        %v4187 = vpop.permute.xlu0 %4186
        %v4188 = vsel %vm1917, %v4173, 0
        %v4190 = vsel %vm1917, %v4175, 0
        %v4192 = vsel %vm1917, %v4177, 0
        %v4194 = vsel %vm1917, %v4179, 0
        %v4196 = vsel %vm1917, %v4181, 0
        %v4198 = vsel %vm1917, %v4183, 0
        %v4200 = vsel %vm1917, %v4185, 0
        %v4202 = vsel %vm1917, %v4187, 0
        %4204 = vmatpush.xpose.msra.mxu0 0.0
        %4205 = vmatpush.xpose.msra.mxu0 0.0
        %4206 = vmatpush.xpose.msra.mxu0 0.0
        %4207 = vmatpush.xpose.msra.mxu0 0.0
        %4208 = vmatpush.xpose.msra.mxu0 0.0
        %4209 = vmatpush.xpose.msra.mxu0 0.0
        %4210 = vmatpush.xpose.msra.mxu0 0.0
        %4211 = vmatpush.xpose.msra.mxu0 0.0
        %4212 = vmatpush.xpose.msra.mxu0 0.0
        %4213 = vmatpush.xpose.msra.mxu0 0.0
        %4214 = vmatpush.xpose.msra.mxu0 0.0
        %4215 = vmatpush.xpose.msra.mxu0 0.0
        %4216 = vmatpush.xpose.msra.mxu0 %v4202
        %4217 = vmatpush.xpose.msra.mxu0 %v4200
        %4218 = vmatpush.xpose.msra.mxu0 %v4198
        %4219 = vmatpush.xpose.msra.mxu0 %v4196
        %4220 = vmatmul.f32.gmra.mxu0 %v4188
        %v4221 = vpop.f32.mrf.mxu0
        %v4222 = vadd.f32 0.0, %v4221
        %4223 = vmatmul.f32.gmra.mxu0 %v4190
        %v4224 = vpop.f32.mrf.mxu0
        %v4225 = vadd.f32 0.0, %v4224
        %4226 = vmatmul.f32.gmra.mxu0 %v4192
        %v4227 = vpop.f32.mrf.mxu0
        %v4228 = vadd.f32 0.0, %v4227
        %4229 = vmatmul.f32.gmra.mxu0 %v4194
        %v4230 = vpop.f32.mrf.mxu0
        %v4231 = vadd.f32 0.0, %v4230
        %4232 = vdwg.mxu0
        %v4233 = vsel %vm1963, %v4222, -inf
        %4234 = vmax.xlane.f32.xlu0 %v4233
        %v4235 = vpop.xlane.xlu0 %4234
        %v4236 = vsel %vm1963, %v4225, -inf
        %4237 = vmax.xlane.f32.xlu0 %v4236
        %v4238 = vpop.xlane.xlu0 %4237
        %v4239 = vsel %vm1963, %v4228, -inf
        %4240 = vmax.xlane.f32.xlu0 %v4239
        %v4241 = vpop.xlane.xlu0 %4240
        %v4242 = vsel %vm1963, %v4231, -inf
        %4243 = vmax.xlane.f32.xlu0 %v4242
        %v4244 = vpop.xlane.xlu0 %4243
        %v4245 = vsub.f32 %v4222, %v4235
        %v4246 = vsub.f32 %v4225, %v4238
        %v4247 = vsub.f32 %v4228, %v4241
        %v4248 = vsub.f32 %v4231, %v4244
        %v4249 = vmul.f32 %v4245, 1.442695
        %v4250 = vpow.pop %v4249
        %v4251 = vmul.f32 %v4246, 1.442695
        %v4252 = vpow.pop %v4251
        %v4253 = vmul.f32 %v4247, 1.442695
        %v4254 = vpow.pop %v4253
        %v4255 = vmul.f32 %v4248, 1.442695
        %v4256 = vpow.pop %v4255
        %v4257 = vsel %vm1963, %v4250, 0.0
        %4258 = vadd.xlane.f32.xlu0 %v4257
        %v4259 = vpop.xlane.xlu0 %4258
        %v4260 = vsel %vm1963, %v4252, 0.0
        %4261 = vadd.xlane.f32.xlu0 %v4260
        %v4262 = vpop.xlane.xlu0 %4261
        %v4263 = vsel %vm1963, %v4254, 0.0
        %4264 = vadd.xlane.f32.xlu0 %v4263
        %v4265 = vpop.xlane.xlu0 %4264
        %v4266 = vsel %vm1963, %v4256, 0.0
        %4267 = vadd.xlane.f32.xlu0 %v4266
        %v4268 = vpop.xlane.xlu0 %4267
        %v4269 = vrcp.pop %v4259
        %v4270 = vrcp.pop %v4262
        %v4271 = vrcp.pop %v4265
        %v4272 = vrcp.pop %v4268
        %v4273 = vmul.f32 %v4250, %v4269
        %v4274 = vmul.f32 %v4252, %v4270
        %v4275 = vmul.f32 %v4254, %v4271
        %v4276 = vmul.f32 %v4256, %v4272
        %4277 = vrot.lane.b32.xlu0 %v3857, 112
        %v4278 = vpop.permute.xlu0 %4277
        %4279 = vrot.lane.b32.xlu0 %v3860, 112
        %v4280 = vpop.permute.xlu0 %4279
        %4281 = vrot.lane.b32.xlu0 %v3863, 112
        %v4282 = vpop.permute.xlu0 %4281
        %4283 = vrot.lane.b32.xlu0 %v3866, 112
        %v4284 = vpop.permute.xlu0 %4283
        %v4290 = vsel %vm1963, %v4273, 0
        %v4293 = vsel %vm1963, %v4274, 0
        %v4296 = vsel %vm1963, %v4275, 0
        %v4299 = vsel %vm1963, %v4276, 0
        %4301 = vmatpush.msra.mxu0 0.0
        %4302 = vmatpush.msra.mxu0 0.0
        %4303 = vmatpush.msra.mxu0 0.0
        %4304 = vmatpush.msra.mxu0 0.0
        %4305 = vmatpush.msra.mxu0 0.0
        %4306 = vmatpush.msra.mxu0 0.0
        %4307 = vmatpush.msra.mxu0 0.0
        %4308 = vmatpush.msra.mxu0 0.0
        %4309 = vmatpush.msra.mxu0 0.0
        %4310 = vmatpush.msra.mxu0 0.0
        %4311 = vmatpush.msra.mxu0 0.0
        %4312 = vmatpush.msra.mxu0 0.0
        %4313 = vmatpush.msra.mxu0 %v4284
        %4314 = vmatpush.msra.mxu0 %v4282
        %4315 = vmatpush.msra.mxu0 %v4280
        %4316 = vmatpush.msra.mxu0 %v4278
        %4317 = vmatmul.f32.gmra.mxu0 %v4290
        %v4318 = vpop.f32.mrf.mxu0
        %v4319 = vadd.f32 0.0, %v4318
        %4320 = vmatmul.f32.gmra.mxu0 %v4293
        %v4321 = vpop.f32.mrf.mxu0
        %v4322 = vadd.f32 0.0, %v4321
        %4323 = vmatmul.f32.gmra.mxu0 %v4296
        %v4324 = vpop.f32.mrf.mxu0
        %v4325 = vadd.f32 0.0, %v4324
        %4326 = vmatmul.f32.gmra.mxu0 %v4299
        %v4327 = vpop.f32.mrf.mxu0
        %v4328 = vadd.f32 0.0, %v4327
        %4329 = vdwg.mxu0
        %4330 = vrot.lane.b32.xlu0 %v3828, 104
        %v4331 = vpop.permute.xlu0 %4330
        %4332 = vrot.lane.b32.xlu0 %v3831, 104
        %v4333 = vpop.permute.xlu0 %4332
        %4334 = vrot.lane.b32.xlu0 %v3834, 104
        %v4335 = vpop.permute.xlu0 %4334
        %4336 = vrot.lane.b32.xlu0 %v3837, 104
        %v4337 = vpop.permute.xlu0 %4336
        %4338 = vrot.lane.b32.xlu0 %v3828, 40
        %v4339 = vpop.permute.xlu0 %4338
        %4340 = vrot.lane.b32.xlu0 %v3831, 40
        %v4341 = vpop.permute.xlu0 %4340
        %4342 = vrot.lane.b32.xlu0 %v3834, 40
        %v4343 = vpop.permute.xlu0 %4342
        %4344 = vrot.lane.b32.xlu0 %v3837, 40
        %v4345 = vpop.permute.xlu0 %4344
        %v4346 = vsel %vm1917, %v4331, 0
        %v4348 = vsel %vm1917, %v4333, 0
        %v4350 = vsel %vm1917, %v4335, 0
        %v4352 = vsel %vm1917, %v4337, 0
        %v4354 = vsel %vm1917, %v4339, 0
        %v4356 = vsel %vm1917, %v4341, 0
        %v4358 = vsel %vm1917, %v4343, 0
        %v4360 = vsel %vm1917, %v4345, 0
        %4362 = vmatpush.xpose.msra.mxu0 0.0
        %4363 = vmatpush.xpose.msra.mxu0 0.0
        %4364 = vmatpush.xpose.msra.mxu0 0.0
        %4365 = vmatpush.xpose.msra.mxu0 0.0
        %4366 = vmatpush.xpose.msra.mxu0 0.0
        %4367 = vmatpush.xpose.msra.mxu0 0.0
        %4368 = vmatpush.xpose.msra.mxu0 0.0
        %4369 = vmatpush.xpose.msra.mxu0 0.0
        %4370 = vmatpush.xpose.msra.mxu0 0.0
        %4371 = vmatpush.xpose.msra.mxu0 0.0
        %4372 = vmatpush.xpose.msra.mxu0 0.0
        %4373 = vmatpush.xpose.msra.mxu0 0.0
        %4374 = vmatpush.xpose.msra.mxu0 %v4360
        %4375 = vmatpush.xpose.msra.mxu0 %v4358
        %4376 = vmatpush.xpose.msra.mxu0 %v4356
        %4377 = vmatpush.xpose.msra.mxu0 %v4354
        %4378 = vmatmul.f32.gmra.mxu0 %v4346
        %v4379 = vpop.f32.mrf.mxu0
        %v4380 = vadd.f32 0.0, %v4379
        %4381 = vmatmul.f32.gmra.mxu0 %v4348
        %v4382 = vpop.f32.mrf.mxu0
        %v4383 = vadd.f32 0.0, %v4382
        %4384 = vmatmul.f32.gmra.mxu0 %v4350
        %v4385 = vpop.f32.mrf.mxu0
        %v4386 = vadd.f32 0.0, %v4385
        %4387 = vmatmul.f32.gmra.mxu0 %v4352
        %v4388 = vpop.f32.mrf.mxu0
        %v4389 = vadd.f32 0.0, %v4388
        %4390 = vdwg.mxu0
        %v4391 = vsel %vm1963, %v4380, -inf
        %4392 = vmax.xlane.f32.xlu0 %v4391
        %v4393 = vpop.xlane.xlu0 %4392
        %v4394 = vsel %vm1963, %v4383, -inf
        %4395 = vmax.xlane.f32.xlu0 %v4394
        %v4396 = vpop.xlane.xlu0 %4395
        %v4397 = vsel %vm1963, %v4386, -inf
        %4398 = vmax.xlane.f32.xlu0 %v4397
        %v4399 = vpop.xlane.xlu0 %4398
        %v4400 = vsel %vm1963, %v4389, -inf
        %4401 = vmax.xlane.f32.xlu0 %v4400
        %v4402 = vpop.xlane.xlu0 %4401
        %v4403 = vsub.f32 %v4380, %v4393
        %v4404 = vsub.f32 %v4383, %v4396
        %v4405 = vsub.f32 %v4386, %v4399
        %v4406 = vsub.f32 %v4389, %v4402
        %v4407 = vmul.f32 %v4403, 1.442695
        %v4408 = vpow.pop %v4407
        %v4409 = vmul.f32 %v4404, 1.442695
        %v4410 = vpow.pop %v4409
        %v4411 = vmul.f32 %v4405, 1.442695
        %v4412 = vpow.pop %v4411
        %v4413 = vmul.f32 %v4406, 1.442695
        %v4414 = vpow.pop %v4413
        %v4415 = vsel %vm1963, %v4408, 0.0
        %4416 = vadd.xlane.f32.xlu0 %v4415
        %v4417 = vpop.xlane.xlu0 %4416
        %v4418 = vsel %vm1963, %v4410, 0.0
        %4419 = vadd.xlane.f32.xlu0 %v4418
        %v4420 = vpop.xlane.xlu0 %4419
        %v4421 = vsel %vm1963, %v4412, 0.0
        %4422 = vadd.xlane.f32.xlu0 %v4421
        %v4423 = vpop.xlane.xlu0 %4422
        %v4424 = vsel %vm1963, %v4414, 0.0
        %4425 = vadd.xlane.f32.xlu0 %v4424
        %v4426 = vpop.xlane.xlu0 %4425
        %v4427 = vrcp.pop %v4417
        %v4428 = vrcp.pop %v4420
        %v4429 = vrcp.pop %v4423
        %v4430 = vrcp.pop %v4426
        %v4431 = vmul.f32 %v4408, %v4427
        %v4432 = vmul.f32 %v4410, %v4428
        %v4433 = vmul.f32 %v4412, %v4429
        %v4434 = vmul.f32 %v4414, %v4430
        %4435 = vrot.lane.b32.xlu0 %v3857, 104
        %v4436 = vpop.permute.xlu0 %4435
        %4437 = vrot.lane.b32.xlu0 %v3860, 104
        %v4438 = vpop.permute.xlu0 %4437
        %4439 = vrot.lane.b32.xlu0 %v3863, 104
        %v4440 = vpop.permute.xlu0 %4439
        %4441 = vrot.lane.b32.xlu0 %v3866, 104
        %v4442 = vpop.permute.xlu0 %4441
        %v4448 = vsel %vm1963, %v4431, 0
        %v4451 = vsel %vm1963, %v4432, 0
        %v4454 = vsel %vm1963, %v4433, 0
        %v4457 = vsel %vm1963, %v4434, 0
        %4459 = vmatpush.msra.mxu0 0.0
        %4460 = vmatpush.msra.mxu0 0.0
        %4461 = vmatpush.msra.mxu0 0.0
        %4462 = vmatpush.msra.mxu0 0.0
        %4463 = vmatpush.msra.mxu0 0.0
        %4464 = vmatpush.msra.mxu0 0.0
        %4465 = vmatpush.msra.mxu0 0.0
        %4466 = vmatpush.msra.mxu0 0.0
        %4467 = vmatpush.msra.mxu0 0.0
        %4468 = vmatpush.msra.mxu0 0.0
        %4469 = vmatpush.msra.mxu0 0.0
        %4470 = vmatpush.msra.mxu0 0.0
        %4471 = vmatpush.msra.mxu0 %v4442
        %4472 = vmatpush.msra.mxu0 %v4440
        %4473 = vmatpush.msra.mxu0 %v4438
        %4474 = vmatpush.msra.mxu0 %v4436
        %4475 = vmatmul.f32.gmra.mxu0 %v4448
        %v4476 = vpop.f32.mrf.mxu0
        %v4477 = vadd.f32 0.0, %v4476
        %4478 = vmatmul.f32.gmra.mxu0 %v4451
        %v4479 = vpop.f32.mrf.mxu0
        %v4480 = vadd.f32 0.0, %v4479
        %4481 = vmatmul.f32.gmra.mxu0 %v4454
        %v4482 = vpop.f32.mrf.mxu0
        %v4483 = vadd.f32 0.0, %v4482
        %4484 = vmatmul.f32.gmra.mxu0 %v4457
        %v4485 = vpop.f32.mrf.mxu0
        %v4486 = vadd.f32 0.0, %v4485
        %4487 = vdwg.mxu0
        %4488 = vrot.lane.b32.xlu0 %v3828, 96
        %v4489 = vpop.permute.xlu0 %4488
        %4490 = vrot.lane.b32.xlu0 %v3831, 96
        %v4491 = vpop.permute.xlu0 %4490
        %4492 = vrot.lane.b32.xlu0 %v3834, 96
        %v4493 = vpop.permute.xlu0 %4492
        %4494 = vrot.lane.b32.xlu0 %v3837, 96
        %v4495 = vpop.permute.xlu0 %4494
        %4496 = vrot.lane.b32.xlu0 %v3828, 32
        %v4497 = vpop.permute.xlu0 %4496
        %4498 = vrot.lane.b32.xlu0 %v3831, 32
        %v4499 = vpop.permute.xlu0 %4498
        %4500 = vrot.lane.b32.xlu0 %v3834, 32
        %v4501 = vpop.permute.xlu0 %4500
        %4502 = vrot.lane.b32.xlu0 %v3837, 32
        %v4503 = vpop.permute.xlu0 %4502
        %v4504 = vsel %vm1917, %v4489, 0
        %v4506 = vsel %vm1917, %v4491, 0
        %v4508 = vsel %vm1917, %v4493, 0
        %v4510 = vsel %vm1917, %v4495, 0
        %v4512 = vsel %vm1917, %v4497, 0
        %v4514 = vsel %vm1917, %v4499, 0
        %v4516 = vsel %vm1917, %v4501, 0
        %v4518 = vsel %vm1917, %v4503, 0
        %4520 = vmatpush.xpose.msra.mxu0 0.0
        %4521 = vmatpush.xpose.msra.mxu0 0.0
        %4522 = vmatpush.xpose.msra.mxu0 0.0
        %4523 = vmatpush.xpose.msra.mxu0 0.0
        %4524 = vmatpush.xpose.msra.mxu0 0.0
        %4525 = vmatpush.xpose.msra.mxu0 0.0
        %4526 = vmatpush.xpose.msra.mxu0 0.0
        %4527 = vmatpush.xpose.msra.mxu0 0.0
        %4528 = vmatpush.xpose.msra.mxu0 0.0
        %4529 = vmatpush.xpose.msra.mxu0 0.0
        %4530 = vmatpush.xpose.msra.mxu0 0.0
        %4531 = vmatpush.xpose.msra.mxu0 0.0
        %4532 = vmatpush.xpose.msra.mxu0 %v4518
        %4533 = vmatpush.xpose.msra.mxu0 %v4516
        %4534 = vmatpush.xpose.msra.mxu0 %v4514
        %4535 = vmatpush.xpose.msra.mxu0 %v4512
        %4536 = vmatmul.f32.gmra.mxu0 %v4504
        %v4537 = vpop.f32.mrf.mxu0
        %v4538 = vadd.f32 0.0, %v4537
        %4539 = vmatmul.f32.gmra.mxu0 %v4506
        %v4540 = vpop.f32.mrf.mxu0
        %v4541 = vadd.f32 0.0, %v4540
        %4542 = vmatmul.f32.gmra.mxu0 %v4508
        %v4543 = vpop.f32.mrf.mxu0
        %v4544 = vadd.f32 0.0, %v4543
        %4545 = vmatmul.f32.gmra.mxu0 %v4510
        %v4546 = vpop.f32.mrf.mxu0
        %v4547 = vadd.f32 0.0, %v4546
        %4548 = vdwg.mxu0
        %v4549 = vsel %vm1963, %v4538, -inf
        %4550 = vmax.xlane.f32.xlu0 %v4549
        %v4551 = vpop.xlane.xlu0 %4550
        %v4552 = vsel %vm1963, %v4541, -inf
        %4553 = vmax.xlane.f32.xlu0 %v4552
        %v4554 = vpop.xlane.xlu0 %4553
        %v4555 = vsel %vm1963, %v4544, -inf
        %4556 = vmax.xlane.f32.xlu0 %v4555
        %v4557 = vpop.xlane.xlu0 %4556
        %v4558 = vsel %vm1963, %v4547, -inf
        %4559 = vmax.xlane.f32.xlu0 %v4558
        %v4560 = vpop.xlane.xlu0 %4559
        %v4561 = vsub.f32 %v4538, %v4551
        %v4562 = vsub.f32 %v4541, %v4554
        %v4563 = vsub.f32 %v4544, %v4557
        %v4564 = vsub.f32 %v4547, %v4560
        %v4565 = vmul.f32 %v4561, 1.442695
        %v4566 = vpow.pop %v4565
        %v4567 = vmul.f32 %v4562, 1.442695
        %v4568 = vpow.pop %v4567
        %v4569 = vmul.f32 %v4563, 1.442695
        %v4570 = vpow.pop %v4569
        %v4571 = vmul.f32 %v4564, 1.442695
        %v4572 = vpow.pop %v4571
        %v4573 = vsel %vm1963, %v4566, 0.0
        %4574 = vadd.xlane.f32.xlu0 %v4573
        %v4575 = vpop.xlane.xlu0 %4574
        %v4576 = vsel %vm1963, %v4568, 0.0
        %4577 = vadd.xlane.f32.xlu0 %v4576
        %v4578 = vpop.xlane.xlu0 %4577
        %v4579 = vsel %vm1963, %v4570, 0.0
        %4580 = vadd.xlane.f32.xlu0 %v4579
        %v4581 = vpop.xlane.xlu0 %4580
        %v4582 = vsel %vm1963, %v4572, 0.0
        %4583 = vadd.xlane.f32.xlu0 %v4582
        %v4584 = vpop.xlane.xlu0 %4583
        %v4585 = vrcp.pop %v4575
        %v4586 = vrcp.pop %v4578
        %v4587 = vrcp.pop %v4581
        %v4588 = vrcp.pop %v4584
        %v4589 = vmul.f32 %v4566, %v4585
        %v4590 = vmul.f32 %v4568, %v4586
        %v4591 = vmul.f32 %v4570, %v4587
        %v4592 = vmul.f32 %v4572, %v4588
        %4593 = vrot.lane.b32.xlu0 %v3857, 96
        %v4594 = vpop.permute.xlu0 %4593
        %4595 = vrot.lane.b32.xlu0 %v3860, 96
        %v4596 = vpop.permute.xlu0 %4595
        %4597 = vrot.lane.b32.xlu0 %v3863, 96
        %v4598 = vpop.permute.xlu0 %4597
        %4599 = vrot.lane.b32.xlu0 %v3866, 96
        %v4600 = vpop.permute.xlu0 %4599
        %v4606 = vsel %vm1963, %v4589, 0
        %v4609 = vsel %vm1963, %v4590, 0
        %v4612 = vsel %vm1963, %v4591, 0
        %v4615 = vsel %vm1963, %v4592, 0
        %4617 = vmatpush.msra.mxu0 0.0
        %4618 = vmatpush.msra.mxu0 0.0
        %4619 = vmatpush.msra.mxu0 0.0
        %4620 = vmatpush.msra.mxu0 0.0
        %4621 = vmatpush.msra.mxu0 0.0
        %4622 = vmatpush.msra.mxu0 0.0
        %4623 = vmatpush.msra.mxu0 0.0
        %4624 = vmatpush.msra.mxu0 0.0
        %4625 = vmatpush.msra.mxu0 0.0
        %4626 = vmatpush.msra.mxu0 0.0
        %4627 = vmatpush.msra.mxu0 0.0
        %4628 = vmatpush.msra.mxu0 0.0
        %4629 = vmatpush.msra.mxu0 %v4600
        %4630 = vmatpush.msra.mxu0 %v4598
        %4631 = vmatpush.msra.mxu0 %v4596
        %4632 = vmatpush.msra.mxu0 %v4594
        %4633 = vmatmul.f32.gmra.mxu0 %v4606
        %v4634 = vpop.f32.mrf.mxu0
        %v4635 = vadd.f32 0.0, %v4634
        %4636 = vmatmul.f32.gmra.mxu0 %v4609
        %v4637 = vpop.f32.mrf.mxu0
        %v4638 = vadd.f32 0.0, %v4637
        %4639 = vmatmul.f32.gmra.mxu0 %v4612
        %v4640 = vpop.f32.mrf.mxu0
        %v4641 = vadd.f32 0.0, %v4640
        %4642 = vmatmul.f32.gmra.mxu0 %v4615
        %v4643 = vpop.f32.mrf.mxu0
        %v4644 = vadd.f32 0.0, %v4643
        %4645 = vdwg.mxu0
        %4646 = vrot.lane.b32.xlu0 %v3828, 88
        %v4647 = vpop.permute.xlu0 %4646
        %4648 = vrot.lane.b32.xlu0 %v3831, 88
        %v4649 = vpop.permute.xlu0 %4648
        %4650 = vrot.lane.b32.xlu0 %v3834, 88
        %v4651 = vpop.permute.xlu0 %4650
        %4652 = vrot.lane.b32.xlu0 %v3837, 88
        %v4653 = vpop.permute.xlu0 %4652
        %4654 = vrot.lane.b32.xlu0 %v3828, 24
        %v4655 = vpop.permute.xlu0 %4654
        %4656 = vrot.lane.b32.xlu0 %v3831, 24
        %v4657 = vpop.permute.xlu0 %4656
        %4658 = vrot.lane.b32.xlu0 %v3834, 24
        %v4659 = vpop.permute.xlu0 %4658
        %4660 = vrot.lane.b32.xlu0 %v3837, 24
        %v4661 = vpop.permute.xlu0 %4660
        %v4662 = vsel %vm1917, %v4647, 0
        %v4664 = vsel %vm1917, %v4649, 0
        %v4666 = vsel %vm1917, %v4651, 0
        %v4668 = vsel %vm1917, %v4653, 0
        %v4670 = vsel %vm1917, %v4655, 0
        %v4672 = vsel %vm1917, %v4657, 0
        %v4674 = vsel %vm1917, %v4659, 0
        %v4676 = vsel %vm1917, %v4661, 0
        %4678 = vmatpush.xpose.msra.mxu0 0.0
        %4679 = vmatpush.xpose.msra.mxu0 0.0
        %4680 = vmatpush.xpose.msra.mxu0 0.0
        %4681 = vmatpush.xpose.msra.mxu0 0.0
        %4682 = vmatpush.xpose.msra.mxu0 0.0
        %4683 = vmatpush.xpose.msra.mxu0 0.0
        %4684 = vmatpush.xpose.msra.mxu0 0.0
        %4685 = vmatpush.xpose.msra.mxu0 0.0
        %4686 = vmatpush.xpose.msra.mxu0 0.0
        %4687 = vmatpush.xpose.msra.mxu0 0.0
        %4688 = vmatpush.xpose.msra.mxu0 0.0
        %4689 = vmatpush.xpose.msra.mxu0 0.0
        %4690 = vmatpush.xpose.msra.mxu0 %v4676
        %4691 = vmatpush.xpose.msra.mxu0 %v4674
        %4692 = vmatpush.xpose.msra.mxu0 %v4672
        %4693 = vmatpush.xpose.msra.mxu0 %v4670
        %4694 = vmatmul.f32.gmra.mxu0 %v4662
        %v4695 = vpop.f32.mrf.mxu0
        %v4696 = vadd.f32 0.0, %v4695
        %4697 = vmatmul.f32.gmra.mxu0 %v4664
        %v4698 = vpop.f32.mrf.mxu0
        %v4699 = vadd.f32 0.0, %v4698
        %4700 = vmatmul.f32.gmra.mxu0 %v4666
        %v4701 = vpop.f32.mrf.mxu0
        %v4702 = vadd.f32 0.0, %v4701
        %4703 = vmatmul.f32.gmra.mxu0 %v4668
        %v4704 = vpop.f32.mrf.mxu0
        %v4705 = vadd.f32 0.0, %v4704
        %4706 = vdwg.mxu0
        %v4707 = vsel %vm1963, %v4696, -inf
        %4708 = vmax.xlane.f32.xlu0 %v4707
        %v4709 = vpop.xlane.xlu0 %4708
        %v4710 = vsel %vm1963, %v4699, -inf
        %4711 = vmax.xlane.f32.xlu0 %v4710
        %v4712 = vpop.xlane.xlu0 %4711
        %v4713 = vsel %vm1963, %v4702, -inf
        %4714 = vmax.xlane.f32.xlu0 %v4713
        %v4715 = vpop.xlane.xlu0 %4714
        %v4716 = vsel %vm1963, %v4705, -inf
        %4717 = vmax.xlane.f32.xlu0 %v4716
        %v4718 = vpop.xlane.xlu0 %4717
        %v4719 = vsub.f32 %v4696, %v4709
        %v4720 = vsub.f32 %v4699, %v4712
        %v4721 = vsub.f32 %v4702, %v4715
        %v4722 = vsub.f32 %v4705, %v4718
        %v4723 = vmul.f32 %v4719, 1.442695
        %v4724 = vpow.pop %v4723
        %v4725 = vmul.f32 %v4720, 1.442695
        %v4726 = vpow.pop %v4725
        %v4727 = vmul.f32 %v4721, 1.442695
        %v4728 = vpow.pop %v4727
        %v4729 = vmul.f32 %v4722, 1.442695
        %v4730 = vpow.pop %v4729
        %v4731 = vsel %vm1963, %v4724, 0.0
        %4732 = vadd.xlane.f32.xlu0 %v4731
        %v4733 = vpop.xlane.xlu0 %4732
        %v4734 = vsel %vm1963, %v4726, 0.0
        %4735 = vadd.xlane.f32.xlu0 %v4734
        %v4736 = vpop.xlane.xlu0 %4735
        %v4737 = vsel %vm1963, %v4728, 0.0
        %4738 = vadd.xlane.f32.xlu0 %v4737
        %v4739 = vpop.xlane.xlu0 %4738
        %v4740 = vsel %vm1963, %v4730, 0.0
        %4741 = vadd.xlane.f32.xlu0 %v4740
        %v4742 = vpop.xlane.xlu0 %4741
        %v4743 = vrcp.pop %v4733
        %v4744 = vrcp.pop %v4736
        %v4745 = vrcp.pop %v4739
        %v4746 = vrcp.pop %v4742
        %v4747 = vmul.f32 %v4724, %v4743
        %v4748 = vmul.f32 %v4726, %v4744
        %v4749 = vmul.f32 %v4728, %v4745
        %v4750 = vmul.f32 %v4730, %v4746
        %4751 = vrot.lane.b32.xlu0 %v3857, 88
        %v4752 = vpop.permute.xlu0 %4751
        %4753 = vrot.lane.b32.xlu0 %v3860, 88
        %v4754 = vpop.permute.xlu0 %4753
        %4755 = vrot.lane.b32.xlu0 %v3863, 88
        %v4756 = vpop.permute.xlu0 %4755
        %4757 = vrot.lane.b32.xlu0 %v3866, 88
        %v4758 = vpop.permute.xlu0 %4757
        %v4764 = vsel %vm1963, %v4747, 0
        %v4767 = vsel %vm1963, %v4748, 0
        %v4770 = vsel %vm1963, %v4749, 0
        %v4773 = vsel %vm1963, %v4750, 0
        %4775 = vmatpush.msra.mxu0 0.0
        %4776 = vmatpush.msra.mxu0 0.0
        %4777 = vmatpush.msra.mxu0 0.0
        %4778 = vmatpush.msra.mxu0 0.0
        %4779 = vmatpush.msra.mxu0 0.0
        %4780 = vmatpush.msra.mxu0 0.0
        %4781 = vmatpush.msra.mxu0 0.0
        %4782 = vmatpush.msra.mxu0 0.0
        %4783 = vmatpush.msra.mxu0 0.0
        %4784 = vmatpush.msra.mxu0 0.0
        %4785 = vmatpush.msra.mxu0 0.0
        %4786 = vmatpush.msra.mxu0 0.0
        %4787 = vmatpush.msra.mxu0 %v4758
        %4788 = vmatpush.msra.mxu0 %v4756
        %4789 = vmatpush.msra.mxu0 %v4754
        %4790 = vmatpush.msra.mxu0 %v4752
        %4791 = vmatmul.f32.gmra.mxu0 %v4764
        %v4792 = vpop.f32.mrf.mxu0
        %v4793 = vadd.f32 0.0, %v4792
        %4794 = vmatmul.f32.gmra.mxu0 %v4767
        %v4795 = vpop.f32.mrf.mxu0
        %v4796 = vadd.f32 0.0, %v4795
        %4797 = vmatmul.f32.gmra.mxu0 %v4770
        %v4798 = vpop.f32.mrf.mxu0
        %v4799 = vadd.f32 0.0, %v4798
        %4800 = vmatmul.f32.gmra.mxu0 %v4773
        %v4801 = vpop.f32.mrf.mxu0
        %v4802 = vadd.f32 0.0, %v4801
        %4803 = vdwg.mxu0
        %4804 = vrot.lane.b32.xlu0 %v3828, 80
        %v4805 = vpop.permute.xlu0 %4804
        %4806 = vrot.lane.b32.xlu0 %v3831, 80
        %v4807 = vpop.permute.xlu0 %4806
        %4808 = vrot.lane.b32.xlu0 %v3834, 80
        %v4809 = vpop.permute.xlu0 %4808
        %4810 = vrot.lane.b32.xlu0 %v3837, 80
        %v4811 = vpop.permute.xlu0 %4810
        %4812 = vrot.lane.b32.xlu0 %v3828, 16
        %v4813 = vpop.permute.xlu0 %4812
        %4814 = vrot.lane.b32.xlu0 %v3831, 16
        %v4815 = vpop.permute.xlu0 %4814
        %4816 = vrot.lane.b32.xlu0 %v3834, 16
        %v4817 = vpop.permute.xlu0 %4816
        %4818 = vrot.lane.b32.xlu0 %v3837, 16
        %v4819 = vpop.permute.xlu0 %4818
        %v4820 = vsel %vm1917, %v4805, 0
        %v4822 = vsel %vm1917, %v4807, 0
        %v4824 = vsel %vm1917, %v4809, 0
        %v4826 = vsel %vm1917, %v4811, 0
        %v4828 = vsel %vm1917, %v4813, 0
        %v4830 = vsel %vm1917, %v4815, 0
        %v4832 = vsel %vm1917, %v4817, 0
        %v4834 = vsel %vm1917, %v4819, 0
        %4836 = vmatpush.xpose.msra.mxu0 0.0
        %4837 = vmatpush.xpose.msra.mxu0 0.0
        %4838 = vmatpush.xpose.msra.mxu0 0.0
        %4839 = vmatpush.xpose.msra.mxu0 0.0
        %4840 = vmatpush.xpose.msra.mxu0 0.0
        %4841 = vmatpush.xpose.msra.mxu0 0.0
        %4842 = vmatpush.xpose.msra.mxu0 0.0
        %4843 = vmatpush.xpose.msra.mxu0 0.0
        %4844 = vmatpush.xpose.msra.mxu0 0.0
        %4845 = vmatpush.xpose.msra.mxu0 0.0
        %4846 = vmatpush.xpose.msra.mxu0 0.0
        %4847 = vmatpush.xpose.msra.mxu0 0.0
        %4848 = vmatpush.xpose.msra.mxu0 %v4834
        %4849 = vmatpush.xpose.msra.mxu0 %v4832
        %4850 = vmatpush.xpose.msra.mxu0 %v4830
        %4851 = vmatpush.xpose.msra.mxu0 %v4828
        %4852 = vmatmul.f32.gmra.mxu0 %v4820
        %v4853 = vpop.f32.mrf.mxu0
        %v4854 = vadd.f32 0.0, %v4853
        %4855 = vmatmul.f32.gmra.mxu0 %v4822
        %v4856 = vpop.f32.mrf.mxu0
        %v4857 = vadd.f32 0.0, %v4856
        %4858 = vmatmul.f32.gmra.mxu0 %v4824
        %v4859 = vpop.f32.mrf.mxu0
        %v4860 = vadd.f32 0.0, %v4859
        %4861 = vmatmul.f32.gmra.mxu0 %v4826
        %v4862 = vpop.f32.mrf.mxu0
        %v4863 = vadd.f32 0.0, %v4862
        %4864 = vdwg.mxu0
        %v4865 = vsel %vm1963, %v4854, -inf
        %4866 = vmax.xlane.f32.xlu0 %v4865
        %v4867 = vpop.xlane.xlu0 %4866
        %v4868 = vsel %vm1963, %v4857, -inf
        %4869 = vmax.xlane.f32.xlu0 %v4868
        %v4870 = vpop.xlane.xlu0 %4869
        %v4871 = vsel %vm1963, %v4860, -inf
        %4872 = vmax.xlane.f32.xlu0 %v4871
        %v4873 = vpop.xlane.xlu0 %4872
        %v4874 = vsel %vm1963, %v4863, -inf
        %4875 = vmax.xlane.f32.xlu0 %v4874
        %v4876 = vpop.xlane.xlu0 %4875
        %v4877 = vsub.f32 %v4854, %v4867
        %v4878 = vsub.f32 %v4857, %v4870
        %v4879 = vsub.f32 %v4860, %v4873
        %v4880 = vsub.f32 %v4863, %v4876
        %v4881 = vmul.f32 %v4877, 1.442695
        %v4882 = vpow.pop %v4881
        %v4883 = vmul.f32 %v4878, 1.442695
        %v4884 = vpow.pop %v4883
        %v4885 = vmul.f32 %v4879, 1.442695
        %v4886 = vpow.pop %v4885
        %v4887 = vmul.f32 %v4880, 1.442695
        %v4888 = vpow.pop %v4887
        %v4889 = vsel %vm1963, %v4882, 0.0
        %4890 = vadd.xlane.f32.xlu0 %v4889
        %v4891 = vpop.xlane.xlu0 %4890
        %v4892 = vsel %vm1963, %v4884, 0.0
        %4893 = vadd.xlane.f32.xlu0 %v4892
        %v4894 = vpop.xlane.xlu0 %4893
        %v4895 = vsel %vm1963, %v4886, 0.0
        %4896 = vadd.xlane.f32.xlu0 %v4895
        %v4897 = vpop.xlane.xlu0 %4896
        %v4898 = vsel %vm1963, %v4888, 0.0
        %4899 = vadd.xlane.f32.xlu0 %v4898
        %v4900 = vpop.xlane.xlu0 %4899
        %v4901 = vrcp.pop %v4891
        %v4902 = vrcp.pop %v4894
        %v4903 = vrcp.pop %v4897
        %v4904 = vrcp.pop %v4900
        %v4905 = vmul.f32 %v4882, %v4901
        %v4906 = vmul.f32 %v4884, %v4902
        %v4907 = vmul.f32 %v4886, %v4903
        %v4908 = vmul.f32 %v4888, %v4904
        %4909 = vrot.lane.b32.xlu0 %v3857, 80
        %v4910 = vpop.permute.xlu0 %4909
        %4911 = vrot.lane.b32.xlu0 %v3860, 80
        %v4912 = vpop.permute.xlu0 %4911
        %4913 = vrot.lane.b32.xlu0 %v3863, 80
        %v4914 = vpop.permute.xlu0 %4913
        %4915 = vrot.lane.b32.xlu0 %v3866, 80
        %v4916 = vpop.permute.xlu0 %4915
        %v4922 = vsel %vm1963, %v4905, 0
        %v4925 = vsel %vm1963, %v4906, 0
        %v4928 = vsel %vm1963, %v4907, 0
        %v4931 = vsel %vm1963, %v4908, 0
        %4933 = vmatpush.msra.mxu0 0.0
        %4934 = vmatpush.msra.mxu0 0.0
        %4935 = vmatpush.msra.mxu0 0.0
        %4936 = vmatpush.msra.mxu0 0.0
        %4937 = vmatpush.msra.mxu0 0.0
        %4938 = vmatpush.msra.mxu0 0.0
        %4939 = vmatpush.msra.mxu0 0.0
        %4940 = vmatpush.msra.mxu0 0.0
        %4941 = vmatpush.msra.mxu0 0.0
        %4942 = vmatpush.msra.mxu0 0.0
        %4943 = vmatpush.msra.mxu0 0.0
        %4944 = vmatpush.msra.mxu0 0.0
        %4945 = vmatpush.msra.mxu0 %v4916
        %4946 = vmatpush.msra.mxu0 %v4914
        %4947 = vmatpush.msra.mxu0 %v4912
        %4948 = vmatpush.msra.mxu0 %v4910
        %4949 = vmatmul.f32.gmra.mxu0 %v4922
        %v4950 = vpop.f32.mrf.mxu0
        %v4951 = vadd.f32 0.0, %v4950
        %4952 = vmatmul.f32.gmra.mxu0 %v4925
        %v4953 = vpop.f32.mrf.mxu0
        %v4954 = vadd.f32 0.0, %v4953
        %4955 = vmatmul.f32.gmra.mxu0 %v4928
        %v4956 = vpop.f32.mrf.mxu0
        %v4957 = vadd.f32 0.0, %v4956
        %4958 = vmatmul.f32.gmra.mxu0 %v4931
        %v4959 = vpop.f32.mrf.mxu0
        %v4960 = vadd.f32 0.0, %v4959
        %4961 = vdwg.mxu0
        %4962 = vrot.lane.b32.xlu0 %v3828, 72
        %v4963 = vpop.permute.xlu0 %4962
        %4964 = vrot.lane.b32.xlu0 %v3831, 72
        %v4965 = vpop.permute.xlu0 %4964
        %4966 = vrot.lane.b32.xlu0 %v3834, 72
        %v4967 = vpop.permute.xlu0 %4966
        %4968 = vrot.lane.b32.xlu0 %v3837, 72
        %v4969 = vpop.permute.xlu0 %4968
        %4970 = vrot.lane.b32.xlu0 %v3828, 8
        %v4971 = vpop.permute.xlu0 %4970
        %4972 = vrot.lane.b32.xlu0 %v3831, 8
        %v4973 = vpop.permute.xlu0 %4972
        %4974 = vrot.lane.b32.xlu0 %v3834, 8
        %v4975 = vpop.permute.xlu0 %4974
        %4976 = vrot.lane.b32.xlu0 %v3837, 8
        %v4977 = vpop.permute.xlu0 %4976
        %v4978 = vsel %vm1917, %v4963, 0
        %v4980 = vsel %vm1917, %v4965, 0
        %v4982 = vsel %vm1917, %v4967, 0
        %v4984 = vsel %vm1917, %v4969, 0
        %v4986 = vsel %vm1917, %v4971, 0
        %v4988 = vsel %vm1917, %v4973, 0
        %v4990 = vsel %vm1917, %v4975, 0
        %v4992 = vsel %vm1917, %v4977, 0
        %4994 = vmatpush.xpose.msra.mxu0 0.0
        %4995 = vmatpush.xpose.msra.mxu0 0.0
        %4996 = vmatpush.xpose.msra.mxu0 0.0
        %4997 = vmatpush.xpose.msra.mxu0 0.0
        %4998 = vmatpush.xpose.msra.mxu0 0.0
        %4999 = vmatpush.xpose.msra.mxu0 0.0
        %5000 = vmatpush.xpose.msra.mxu0 0.0
        %5001 = vmatpush.xpose.msra.mxu0 0.0
        %5002 = vmatpush.xpose.msra.mxu0 0.0
        %5003 = vmatpush.xpose.msra.mxu0 0.0
        %5004 = vmatpush.xpose.msra.mxu0 0.0
        %5005 = vmatpush.xpose.msra.mxu0 0.0
        %5006 = vmatpush.xpose.msra.mxu0 %v4992
        %5007 = vmatpush.xpose.msra.mxu0 %v4990
        %5008 = vmatpush.xpose.msra.mxu0 %v4988
        %5009 = vmatpush.xpose.msra.mxu0 %v4986
        %5010 = vmatmul.f32.gmra.mxu0 %v4978
        %v5011 = vpop.f32.mrf.mxu0
        %v5012 = vadd.f32 0.0, %v5011
        %5013 = vmatmul.f32.gmra.mxu0 %v4980
        %v5014 = vpop.f32.mrf.mxu0
        %v5015 = vadd.f32 0.0, %v5014
        %5016 = vmatmul.f32.gmra.mxu0 %v4982
        %v5017 = vpop.f32.mrf.mxu0
        %v5018 = vadd.f32 0.0, %v5017
        %5019 = vmatmul.f32.gmra.mxu0 %v4984
        %v5020 = vpop.f32.mrf.mxu0
        %v5021 = vadd.f32 0.0, %v5020
        %5022 = vdwg.mxu0
        %v5023 = vsel %vm1963, %v5012, -inf
        %5024 = vmax.xlane.f32.xlu0 %v5023
        %v5025 = vpop.xlane.xlu0 %5024
        %v5026 = vsel %vm1963, %v5015, -inf
        %5027 = vmax.xlane.f32.xlu0 %v5026
        %v5028 = vpop.xlane.xlu0 %5027
        %v5029 = vsel %vm1963, %v5018, -inf
        %5030 = vmax.xlane.f32.xlu0 %v5029
        %v5031 = vpop.xlane.xlu0 %5030
        %v5032 = vsel %vm1963, %v5021, -inf
        %5033 = vmax.xlane.f32.xlu0 %v5032
        %v5034 = vpop.xlane.xlu0 %5033
        %v5035 = vsub.f32 %v5012, %v5025
        %v5036 = vsub.f32 %v5015, %v5028
        %v5037 = vsub.f32 %v5018, %v5031
        %v5038 = vsub.f32 %v5021, %v5034
        %v5039 = vmul.f32 %v5035, 1.442695
        %v5040 = vpow.pop %v5039
        %v5041 = vmul.f32 %v5036, 1.442695
        %v5042 = vpow.pop %v5041
        %v5043 = vmul.f32 %v5037, 1.442695
        %v5044 = vpow.pop %v5043
        %v5045 = vmul.f32 %v5038, 1.442695
        %v5046 = vpow.pop %v5045
        %v5047 = vsel %vm1963, %v5040, 0.0
        %5048 = vadd.xlane.f32.xlu0 %v5047
        %v5049 = vpop.xlane.xlu0 %5048
        %v5050 = vsel %vm1963, %v5042, 0.0
        %5051 = vadd.xlane.f32.xlu0 %v5050
        %v5052 = vpop.xlane.xlu0 %5051
        %v5053 = vsel %vm1963, %v5044, 0.0
        %5054 = vadd.xlane.f32.xlu0 %v5053
        %v5055 = vpop.xlane.xlu0 %5054
        %v5056 = vsel %vm1963, %v5046, 0.0
        %5057 = vadd.xlane.f32.xlu0 %v5056
        %v5058 = vpop.xlane.xlu0 %5057
        %v5059 = vrcp.pop %v5049
        %v5060 = vrcp.pop %v5052
        %v5061 = vrcp.pop %v5055
        %v5062 = vrcp.pop %v5058
        %v5063 = vmul.f32 %v5040, %v5059
        %v5064 = vmul.f32 %v5042, %v5060
        %v5065 = vmul.f32 %v5044, %v5061
        %v5066 = vmul.f32 %v5046, %v5062
        %5067 = vrot.lane.b32.xlu0 %v3857, 72
        %v5068 = vpop.permute.xlu0 %5067
        %5069 = vrot.lane.b32.xlu0 %v3860, 72
        %v5070 = vpop.permute.xlu0 %5069
        %5071 = vrot.lane.b32.xlu0 %v3863, 72
        %v5072 = vpop.permute.xlu0 %5071
        %5073 = vrot.lane.b32.xlu0 %v3866, 72
        %v5074 = vpop.permute.xlu0 %5073
        %v5080 = vsel %vm1963, %v5063, 0
        %v5083 = vsel %vm1963, %v5064, 0
        %v5086 = vsel %vm1963, %v5065, 0
        %v5089 = vsel %vm1963, %v5066, 0
        %5091 = vmatpush.msra.mxu0 0.0
        %5092 = vmatpush.msra.mxu0 0.0
        %5093 = vmatpush.msra.mxu0 0.0
        %5094 = vmatpush.msra.mxu0 0.0
        %5095 = vmatpush.msra.mxu0 0.0
        %5096 = vmatpush.msra.mxu0 0.0
        %5097 = vmatpush.msra.mxu0 0.0
        %5098 = vmatpush.msra.mxu0 0.0
        %5099 = vmatpush.msra.mxu0 0.0
        %5100 = vmatpush.msra.mxu0 0.0
        %5101 = vmatpush.msra.mxu0 0.0
        %5102 = vmatpush.msra.mxu0 0.0
        %5103 = vmatpush.msra.mxu0 %v5074
        %5104 = vmatpush.msra.mxu0 %v5072
        %5105 = vmatpush.msra.mxu0 %v5070
        %5106 = vmatpush.msra.mxu0 %v5068
        %5107 = vmatmul.f32.gmra.mxu0 %v5080
        %v5108 = vpop.f32.mrf.mxu0
        %v5109 = vadd.f32 0.0, %v5108
        %5110 = vmatmul.f32.gmra.mxu0 %v5083
        %v5111 = vpop.f32.mrf.mxu0
        %v5112 = vadd.f32 0.0, %v5111
        %5113 = vmatmul.f32.gmra.mxu0 %v5086
        %v5114 = vpop.f32.mrf.mxu0
        %v5115 = vadd.f32 0.0, %v5114
        %5116 = vmatmul.f32.gmra.mxu0 %v5089
        %v5117 = vpop.f32.mrf.mxu0
        %v5118 = vadd.f32 0.0, %v5117
        %5119 = vdwg.mxu0
        %5124 = vrot.lane.b32.xlu0 %v4161, 8
        %v5125 = vpop.permute.xlu0 %5124
        %5126 = vrot.lane.b32.xlu0 %v4164, 8
        %v5127 = vpop.permute.xlu0 %5126
        %5128 = vrot.lane.b32.xlu0 %v4167, 8
        %v5129 = vpop.permute.xlu0 %5128
        %5130 = vrot.lane.b32.xlu0 %v4170, 8
        %v5131 = vpop.permute.xlu0 %5130
        %5140 = vrot.lane.b32.xlu0 %v4319, 16
        %v5141 = vpop.permute.xlu0 %5140
        %5142 = vrot.lane.b32.xlu0 %v4322, 16
        %v5143 = vpop.permute.xlu0 %5142
        %5144 = vrot.lane.b32.xlu0 %v4325, 16
        %v5145 = vpop.permute.xlu0 %5144
        %5146 = vrot.lane.b32.xlu0 %v4328, 16
        %v5147 = vpop.permute.xlu0 %5146
        %5156 = vrot.lane.b32.xlu0 %v4477, 24
        %v5157 = vpop.permute.xlu0 %5156
        %5158 = vrot.lane.b32.xlu0 %v4480, 24
        %v5159 = vpop.permute.xlu0 %5158
        %5160 = vrot.lane.b32.xlu0 %v4483, 24
        %v5161 = vpop.permute.xlu0 %5160
        %5162 = vrot.lane.b32.xlu0 %v4486, 24
        %v5163 = vpop.permute.xlu0 %5162
        %5172 = vrot.lane.b32.xlu0 %v4635, 32
        %v5173 = vpop.permute.xlu0 %5172
        %5174 = vrot.lane.b32.xlu0 %v4638, 32
        %v5175 = vpop.permute.xlu0 %5174
        %5176 = vrot.lane.b32.xlu0 %v4641, 32
        %v5177 = vpop.permute.xlu0 %5176
        %5178 = vrot.lane.b32.xlu0 %v4644, 32
        %v5179 = vpop.permute.xlu0 %5178
        %5188 = vrot.lane.b32.xlu0 %v4793, 40
        %v5189 = vpop.permute.xlu0 %5188
        %5190 = vrot.lane.b32.xlu0 %v4796, 40
        %v5191 = vpop.permute.xlu0 %5190
        %5192 = vrot.lane.b32.xlu0 %v4799, 40
        %v5193 = vpop.permute.xlu0 %5192
        %5194 = vrot.lane.b32.xlu0 %v4802, 40
        %v5195 = vpop.permute.xlu0 %5194
        %5204 = vrot.lane.b32.xlu0 %v4951, 48
        %v5205 = vpop.permute.xlu0 %5204
        %5206 = vrot.lane.b32.xlu0 %v4954, 48
        %v5207 = vpop.permute.xlu0 %5206
        %5208 = vrot.lane.b32.xlu0 %v4957, 48
        %v5209 = vpop.permute.xlu0 %5208
        %5210 = vrot.lane.b32.xlu0 %v4960, 48
        %v5211 = vpop.permute.xlu0 %5210
        %5220 = vrot.lane.b32.xlu0 %v5109, 56
        %v5221 = vpop.permute.xlu0 %5220
        %5222 = vrot.lane.b32.xlu0 %v5112, 56
        %v5223 = vpop.permute.xlu0 %5222
        %5224 = vrot.lane.b32.xlu0 %v5115, 56
        %v5225 = vpop.permute.xlu0 %5224
        %5226 = vrot.lane.b32.xlu0 %v5118, 56
        %v5227 = vpop.permute.xlu0 %5226
        %v5232 = vsel %vm1917, %v3999, %v5125
        %v5233 = vsel %vm1917, %v4002, %v5127
        %v5234 = vsel %vm1917, %v4005, %v5129
        %v5235 = vsel %vm1917, %v4008, %v5131
        %v5236 = vsel %vm3275, %v5232, %v5141
        %v5237 = vsel %vm3275, %v5233, %v5143
        %v5238 = vsel %vm3275, %v5234, %v5145
        %v5239 = vsel %vm3275, %v5235, %v5147
        %v5240 = vsel %vm3280, %v5236, %v5157
        %v5241 = vsel %vm3280, %v5237, %v5159
        %v5242 = vsel %vm3280, %v5238, %v5161
        %v5243 = vsel %vm3280, %v5239, %v5163
        %v5244 = vsel %vm1963, %v5240, %v5173
        %v5245 = vsel %vm1963, %v5241, %v5175
        %v5246 = vsel %vm1963, %v5242, %v5177
        %v5247 = vsel %vm1963, %v5243, %v5179
        %v5248 = vsel %vm3289, %v5244, %v5189
        %v5249 = vsel %vm3289, %v5245, %v5191
        %v5250 = vsel %vm3289, %v5246, %v5193
        %v5251 = vsel %vm3289, %v5247, %v5195
        %v5252 = vsel %vm3294, %v5248, %v5205
        %v5253 = vsel %vm3294, %v5249, %v5207
        %v5254 = vsel %vm3294, %v5250, %v5209
        %v5255 = vsel %vm3294, %v5251, %v5211
        %v5256 = vsel %vm3299, %v5252, %v5221
        %v5257 = vsel %vm3299, %v5253, %v5223
        %v5258 = vsel %vm3299, %v5254, %v5225
        %v5259 = vsel %vm3299, %v5255, %v5227
        %s5260 = scalar_lea.vmem %s21, 64
        %v5261 = vld [vmem:[%s5260] sm:$0xff]
        %v5262 = vld [vmem:[%s5260 + $0x8] sm:$0xff]
        %v5263 = vld [vmem:[%s5260 + $0x10] sm:$0xff]
        %v5264 = vld [vmem:[%s5260 + $0x18] sm:$0xff]
        %v5265 = vld [vmem:[%s5260 + $0x20] sm:$0xff]
        %v5266 = vld [vmem:[%s5260 + $0x28] sm:$0xff]
        %v5267 = vld [vmem:[%s5260 + $0x30] sm:$0xff]
        %v5268 = vld [vmem:[%s5260 + $0x38] sm:$0xff]
        %s5269 = scalar_lea.vmem %s23, 1
        %v5270 = vld [vmem:[%s5269] sm:$0x1]
        %v5272 = vperm.slane %v5270, 0
        %v5275 = vsel %vm948, %v5256, 0
        %v5278 = vsel %vm948, %v5257, 0
        %v5281 = vsel %vm948, %v5258, 0
        %v5284 = vsel %vm948, %v5259, 0
        %5286 = vmatpush.msra.mxu0 0.0
        %5287 = vmatpush.msra.mxu0 0.0
        %5288 = vmatpush.msra.mxu0 0.0
        %5289 = vmatpush.msra.mxu0 0.0
        %5290 = vmatpush.msra.mxu0 0.0
        %5291 = vmatpush.msra.mxu0 0.0
        %5292 = vmatpush.msra.mxu0 0.0
        %5293 = vmatpush.msra.mxu0 0.0
        %5294 = vmatpush.msra.mxu0 %v5268
        %5295 = vmatpush.msra.mxu0 %v5267
        %5296 = vmatpush.msra.mxu0 %v5266
        %5297 = vmatpush.msra.mxu0 %v5265
        %5298 = vmatpush.msra.mxu0 %v5264
        %5299 = vmatpush.msra.mxu0 %v5263
        %5300 = vmatpush.msra.mxu0 %v5262
        %5301 = vmatpush.msra.mxu0 %v5261
        %5302 = vmatmul.f32.gmra.mxu0 %v5275
        %v5303 = vpop.f32.mrf.mxu0
        %v5304 = vadd.f32 %v5272, %v5303
        %5305 = vmatmul.f32.gmra.mxu0 %v5278
        %v5306 = vpop.f32.mrf.mxu0
        %v5307 = vadd.f32 %v5272, %v5306
        %5308 = vmatmul.f32.gmra.mxu0 %v5281
        %v5309 = vpop.f32.mrf.mxu0
        %v5310 = vadd.f32 %v5272, %v5309
        %5311 = vmatmul.f32.gmra.mxu0 %v5284
        %v5312 = vpop.f32.mrf.mxu0
        %v5313 = vadd.f32 %v5272, %v5312
        %5314 = vdwg.mxu0
        %v5315 = vadd.f32 %v3770, %v5304
        %v5316 = vadd.f32 %v3771, %v5307
        %v5317 = vadd.f32 %v3772, %v5310
        %v5318 = vadd.f32 %v3773, %v5313
        %s5319 = scalar_lea.vmem %s25, 1
        %v5320 = vld [vmem:[%s5319] sm:$0x1]
        %s5321 = scalar_lea.vmem %s27, 1
        %v5322 = vld [vmem:[%s5321] sm:$0x1]
        %v5323 = vsel %vm948, %v5315, 0.0
        %5324 = vadd.xlane.f32.xlu0 %v5323
        %v5325 = vpop.xlane.xlu0 %5324
        %v5326 = vsel %vm948, %v5316, 0.0
        %5327 = vadd.xlane.f32.xlu0 %v5326
        %v5328 = vpop.xlane.xlu0 %5327
        %v5329 = vsel %vm948, %v5317, 0.0
        %5330 = vadd.xlane.f32.xlu0 %v5329
        %v5331 = vpop.xlane.xlu0 %5330
        %v5332 = vsel %vm948, %v5318, 0.0
        %5333 = vadd.xlane.f32.xlu0 %v5332
        %v5334 = vpop.xlane.xlu0 %5333
        %v5335 = vmul.f32 %v5325, %v3381
        %v5336 = vmul.f32 %v5328, %v3381
        %v5337 = vmul.f32 %v5331, %v3381
        %v5338 = vmul.f32 %v5334, %v3381
        %v5339 = vsub.f32 %v5315, %v5335
        %v5340 = vsub.f32 %v5316, %v5336
        %v5341 = vsub.f32 %v5317, %v5337
        %v5342 = vsub.f32 %v5318, %v5338
        %v5343 = vmul.f32 %v5339, %v5339
        %v5344 = vmul.f32 %v5340, %v5340
        %v5345 = vmul.f32 %v5341, %v5341
        %v5346 = vmul.f32 %v5342, %v5342
        %v5347 = vsel %vm948, %v5343, 0.0
        %5348 = vadd.xlane.f32.xlu0 %v5347
        %v5349 = vpop.xlane.xlu0 %5348
        %v5350 = vsel %vm948, %v5344, 0.0
        %5351 = vadd.xlane.f32.xlu0 %v5350
        %v5352 = vpop.xlane.xlu0 %5351
        %v5353 = vsel %vm948, %v5345, 0.0
        %5354 = vadd.xlane.f32.xlu0 %v5353
        %v5355 = vpop.xlane.xlu0 %5354
        %v5356 = vsel %vm948, %v5346, 0.0
        %5357 = vadd.xlane.f32.xlu0 %v5356
        %v5358 = vpop.xlane.xlu0 %5357
        %v5359 = vmul.f32 %v5349, %v3381
        %v5360 = vmul.f32 %v5352, %v3381
        %v5361 = vmul.f32 %v5355, %v3381
        %v5362 = vmul.f32 %v5358, %v3381
        %v5363 = vadd.f32 %v5359, 1e-05
        %v5364 = vadd.f32 %v5360, 1e-05
        %v5365 = vadd.f32 %v5361, 1e-05
        %v5366 = vadd.f32 %v5362, 1e-05
        %v5367 = vrsqrt.pop %v5363
        %v5368 = vmul.f32 %v5367, %v5363
        %v5369 = vmul.f32 %v5368, %v5367
        %v5370 = vmul.f32 0.5, %v5369
        %v5371 = vsub.f32 1.5, %v5370
        %v5372 = vmul.f32 %v5367, %v5371
        %vm5373 = vweird.f32 %v5363
        %vm5374 = vweird.f32 %v5367
        %vm5375 = vmor %vm5373, %vm5374
        %v5376 = vsel %vm5375, %v5367, %v5372
        %v5377 = vrsqrt.pop %v5364
        %v5378 = vmul.f32 %v5377, %v5364
        %v5379 = vmul.f32 %v5378, %v5377
        %v5380 = vmul.f32 0.5, %v5379
        %v5381 = vsub.f32 1.5, %v5380
        %v5382 = vmul.f32 %v5377, %v5381
        %vm5383 = vweird.f32 %v5364
        %vm5384 = vweird.f32 %v5377
        %vm5385 = vmor %vm5383, %vm5384
        %v5386 = vsel %vm5385, %v5377, %v5382
        %v5387 = vrsqrt.pop %v5365
        %v5388 = vmul.f32 %v5387, %v5365
        %v5389 = vmul.f32 %v5388, %v5387
        %v5390 = vmul.f32 0.5, %v5389
        %v5391 = vsub.f32 1.5, %v5390
        %v5392 = vmul.f32 %v5387, %v5391
        %vm5393 = vweird.f32 %v5365
        %vm5394 = vweird.f32 %v5387
        %vm5395 = vmor %vm5393, %vm5394
        %v5396 = vsel %vm5395, %v5387, %v5392
        %v5397 = vrsqrt.pop %v5366
        %v5398 = vmul.f32 %v5397, %v5366
        %v5399 = vmul.f32 %v5398, %v5397
        %v5400 = vmul.f32 0.5, %v5399
        %v5401 = vsub.f32 1.5, %v5400
        %v5402 = vmul.f32 %v5397, %v5401
        %vm5403 = vweird.f32 %v5366
        %vm5404 = vweird.f32 %v5397
        %vm5405 = vmor %vm5403, %vm5404
        %v5406 = vsel %vm5405, %v5397, %v5402
        %v5407 = vmul.f32 %v5339, %v5376
        %v5408 = vmul.f32 %v5340, %v5386
        %v5409 = vmul.f32 %v5341, %v5396
        %v5410 = vmul.f32 %v5342, %v5406
        %v5412 = vperm.slane %v5320, 0
        %v5414 = vmul.f32 %v5407, %v5412
        %v5415 = vmul.f32 %v5408, %v5412
        %v5416 = vmul.f32 %v5409, %v5412
        %v5417 = vmul.f32 %v5410, %v5412
        %v5419 = vperm.slane %v5322, 0
        %v5421 = vadd.f32 %v5414, %v5419
        %v5422 = vadd.f32 %v5415, %v5419
        %v5423 = vadd.f32 %v5416, %v5419
        %v5424 = vadd.f32 %v5417, %v5419
        %s5425 = scalar_lea.vmem %s29, 128
        %v5426 = vld [vmem:[%s5425] sm:$0xff]
        %v5427 = vld [vmem:[%s5425 + $0x8] sm:$0xff]
        %v5428 = vld [vmem:[%s5425 + $0x10] sm:$0xff]
        %v5429 = vld [vmem:[%s5425 + $0x18] sm:$0xff]
        %v5430 = vld [vmem:[%s5425 + $0x20] sm:$0xff]
        %v5431 = vld [vmem:[%s5425 + $0x28] sm:$0xff]
        %v5432 = vld [vmem:[%s5425 + $0x30] sm:$0xff]
        %v5433 = vld [vmem:[%s5425 + $0x38] sm:$0xff]
        %v5434 = vld [vmem:[%s5425 + $0x40] sm:$0xff]
        %v5435 = vld [vmem:[%s5425 + $0x48] sm:$0xff]
        %v5436 = vld [vmem:[%s5425 + $0x50] sm:$0xff]
        %v5437 = vld [vmem:[%s5425 + $0x58] sm:$0xff]
        %v5438 = vld [vmem:[%s5425 + $0x60] sm:$0xff]
        %v5439 = vld [vmem:[%s5425 + $0x68] sm:$0xff]
        %v5440 = vld [vmem:[%s5425 + $0x70] sm:$0xff]
        %v5441 = vld [vmem:[%s5425 + $0x78] sm:$0xff]
        %s5442 = scalar_lea.vmem %s31, 2
        %v5443 = vld [vmem:[%s5442] sm:$0x3]
        %v5445 = vperm.slane %v5443, 0
        %v5446 = vperm.slane %v5443, 1
        %v5450 = vsel %vm948, %v5421, 0
        %v5453 = vsel %vm948, %v5422, 0
        %v5456 = vsel %vm948, %v5423, 0
        %v5459 = vsel %vm948, %v5424, 0
        %5461 = vmatpush.msra.mxu0 0.0
        %5462 = vmatpush.msra.mxu0 0.0
        %5463 = vmatpush.msra.mxu0 0.0
        %5464 = vmatpush.msra.mxu0 0.0
        %5465 = vmatpush.msra.mxu0 0.0
        %5466 = vmatpush.msra.mxu0 0.0
        %5467 = vmatpush.msra.mxu0 0.0
        %5468 = vmatpush.msra.mxu0 0.0
        %5469 = vmatpush.msra.mxu0 %v5440
        %5470 = vmatpush.msra.mxu0 %v5438
        %5471 = vmatpush.msra.mxu0 %v5436
        %5472 = vmatpush.msra.mxu0 %v5434
        %5473 = vmatpush.msra.mxu0 %v5432
        %5474 = vmatpush.msra.mxu0 %v5430
        %5475 = vmatpush.msra.mxu0 %v5428
        %5476 = vmatpush.msra.mxu0 %v5426
        %5477 = vmatmul.f32.gmra.mxu0 %v5450
        %v5478 = vpop.f32.mrf.mxu0
        %v5479 = vadd.f32 %v5445, %v5478
        %5480 = vmatmul.f32.gmra.mxu0 %v5453
        %v5481 = vpop.f32.mrf.mxu0
        %v5482 = vadd.f32 %v5445, %v5481
        %5483 = vmatmul.f32.gmra.mxu0 %v5456
        %v5484 = vpop.f32.mrf.mxu0
        %v5485 = vadd.f32 %v5445, %v5484
        %5486 = vmatmul.f32.gmra.mxu0 %v5459
        %v5487 = vpop.f32.mrf.mxu0
        %v5488 = vadd.f32 %v5445, %v5487
        %5489 = vdwg.mxu0
        %5490 = vmatpush.msra.mxu0 0.0
        %5491 = vmatpush.msra.mxu0 0.0
        %5492 = vmatpush.msra.mxu0 0.0
        %5493 = vmatpush.msra.mxu0 0.0
        %5494 = vmatpush.msra.mxu0 0.0
        %5495 = vmatpush.msra.mxu0 0.0
        %5496 = vmatpush.msra.mxu0 0.0
        %5497 = vmatpush.msra.mxu0 0.0
        %5498 = vmatpush.msra.mxu0 %v5441
        %5499 = vmatpush.msra.mxu0 %v5439
        %5500 = vmatpush.msra.mxu0 %v5437
        %5501 = vmatpush.msra.mxu0 %v5435
        %5502 = vmatpush.msra.mxu0 %v5433
        %5503 = vmatpush.msra.mxu0 %v5431
        %5504 = vmatpush.msra.mxu0 %v5429
        %5505 = vmatpush.msra.mxu0 %v5427
        %5506 = vmatmul.f32.gmra.mxu0 %v5450
        %v5507 = vpop.f32.mrf.mxu0
        %v5508 = vadd.f32 %v5446, %v5507
        %5509 = vmatmul.f32.gmra.mxu0 %v5453
        %v5510 = vpop.f32.mrf.mxu0
        %v5511 = vadd.f32 %v5446, %v5510
        %5512 = vmatmul.f32.gmra.mxu0 %v5456
        %v5513 = vpop.f32.mrf.mxu0
        %v5514 = vadd.f32 %v5446, %v5513
        %5515 = vmatmul.f32.gmra.mxu0 %v5459
        %v5516 = vpop.f32.mrf.mxu0
        %v5517 = vadd.f32 %v5446, %v5516
        %5518 = vdwg.mxu0
        %v5519 = vmax.f32 %v5479, 0.0
        %v5520 = vmax.f32 %v5508, 0.0
        %v5521 = vmax.f32 %v5482, 0.0
        %v5522 = vmax.f32 %v5511, 0.0
        %v5523 = vmax.f32 %v5485, 0.0
        %v5524 = vmax.f32 %v5514, 0.0
        %v5525 = vmax.f32 %v5488, 0.0
        %v5526 = vmax.f32 %v5517, 0.0
        %s5527 = scalar_lea.vmem %s33, 256
        %v5528 = vld [vmem:[%s5527] sm:$0xff]
        %v5529 = vld [vmem:[%s5527 + $0x8] sm:$0xff]
        %v5530 = vld [vmem:[%s5527 + $0x10] sm:$0xff]
        %v5531 = vld [vmem:[%s5527 + $0x18] sm:$0xff]
        %v5532 = vld [vmem:[%s5527 + $0x20] sm:$0xff]
        %v5533 = vld [vmem:[%s5527 + $0x28] sm:$0xff]
        %v5534 = vld [vmem:[%s5527 + $0x30] sm:$0xff]
        %v5535 = vld [vmem:[%s5527 + $0x38] sm:$0xff]
        %v5536 = vld [vmem:[%s5527 + $0x40] sm:$0xff]
        %v5537 = vld [vmem:[%s5527 + $0x48] sm:$0xff]
        %v5538 = vld [vmem:[%s5527 + $0x50] sm:$0xff]
        %v5539 = vld [vmem:[%s5527 + $0x58] sm:$0xff]
        %v5540 = vld [vmem:[%s5527 + $0x60] sm:$0xff]
        %v5541 = vld [vmem:[%s5527 + $0x68] sm:$0xff]
        %v5542 = vld [vmem:[%s5527 + $0x70] sm:$0xff]
        %v5543 = vld [vmem:[%s5527 + $0x78] sm:$0xff]
        %v5544 = vld [vmem:[%s5527 + $0x80] sm:$0xff]
        %v5545 = vld [vmem:[%s5527 + $0x88] sm:$0xff]
        %v5546 = vld [vmem:[%s5527 + $0x90] sm:$0xff]
        %v5547 = vld [vmem:[%s5527 + $0x98] sm:$0xff]
        %v5548 = vld [vmem:[%s5527 + $0xa0] sm:$0xff]
        %v5549 = vld [vmem:[%s5527 + $0xa8] sm:$0xff]
        %v5550 = vld [vmem:[%s5527 + $0xb0] sm:$0xff]
        %v5551 = vld [vmem:[%s5527 + $0xb8] sm:$0xff]
        %v5552 = vld [vmem:[%s5527 + $0xc0] sm:$0xff]
        %v5553 = vld [vmem:[%s5527 + $0xc8] sm:$0xff]
        %v5554 = vld [vmem:[%s5527 + $0xd0] sm:$0xff]
        %v5555 = vld [vmem:[%s5527 + $0xd8] sm:$0xff]
        %v5556 = vld [vmem:[%s5527 + $0xe0] sm:$0xff]
        %v5557 = vld [vmem:[%s5527 + $0xe8] sm:$0xff]
        %v5558 = vld [vmem:[%s5527 + $0xf0] sm:$0xff]
        %v5559 = vld [vmem:[%s5527 + $0xf8] sm:$0xff]
        %s5560 = scalar_lea.vmem %s35, 1
        %v5561 = vld [vmem:[%s5560] sm:$0x1]
        %v5563 = vperm.slane %v5561, 0
        %5565 = vmatpush.msra.mxu0 %v5543
        %5566 = vmatpush.msra.mxu0 %v5542
        %5567 = vmatpush.msra.mxu0 %v5541
        %5568 = vmatpush.msra.mxu0 %v5540
        %5569 = vmatpush.msra.mxu0 %v5539
        %5570 = vmatpush.msra.mxu0 %v5538
        %5571 = vmatpush.msra.mxu0 %v5537
        %5572 = vmatpush.msra.mxu0 %v5536
        %5573 = vmatpush.msra.mxu0 %v5535
        %5574 = vmatpush.msra.mxu0 %v5534
        %5575 = vmatpush.msra.mxu0 %v5533
        %5576 = vmatpush.msra.mxu0 %v5532
        %5577 = vmatpush.msra.mxu0 %v5531
        %5578 = vmatpush.msra.mxu0 %v5530
        %5579 = vmatpush.msra.mxu0 %v5529
        %5580 = vmatpush.msra.mxu0 %v5528
        %5581 = vmatmul.f32.gmra.mxu0 %v5519
        %v5582 = vpop.f32.mrf.mxu0
        %v5583 = vadd.f32 %v5563, %v5582
        %5584 = vmatmul.f32.gmra.mxu0 %v5521
        %v5585 = vpop.f32.mrf.mxu0
        %v5586 = vadd.f32 %v5563, %v5585
        %5587 = vmatmul.f32.gmra.mxu0 %v5523
        %v5588 = vpop.f32.mrf.mxu0
        %v5589 = vadd.f32 %v5563, %v5588
        %5590 = vmatmul.f32.gmra.mxu0 %v5525
        %v5591 = vpop.f32.mrf.mxu0
        %v5592 = vadd.f32 %v5563, %v5591
        %5593 = vdwg.mxu0
        %5594 = vmatpush.msra.mxu0 %v5559
        %5595 = vmatpush.msra.mxu0 %v5558
        %5596 = vmatpush.msra.mxu0 %v5557
        %5597 = vmatpush.msra.mxu0 %v5556
        %5598 = vmatpush.msra.mxu0 %v5555
        %5599 = vmatpush.msra.mxu0 %v5554
        %5600 = vmatpush.msra.mxu0 %v5553
        %5601 = vmatpush.msra.mxu0 %v5552
        %5602 = vmatpush.msra.mxu0 %v5551
        %5603 = vmatpush.msra.mxu0 %v5550
        %5604 = vmatpush.msra.mxu0 %v5549
        %5605 = vmatpush.msra.mxu0 %v5548
        %5606 = vmatpush.msra.mxu0 %v5547
        %5607 = vmatpush.msra.mxu0 %v5546
        %5608 = vmatpush.msra.mxu0 %v5545
        %5609 = vmatpush.msra.mxu0 %v5544
        %5610 = vmatmul.f32.gmra.mxu0 %v5520
        %v5611 = vpop.f32.mrf.mxu0
        %v5612 = vadd.f32 %v5583, %v5611
        %5613 = vmatmul.f32.gmra.mxu0 %v5522
        %v5614 = vpop.f32.mrf.mxu0
        %v5615 = vadd.f32 %v5586, %v5614
        %5616 = vmatmul.f32.gmra.mxu0 %v5524
        %v5617 = vpop.f32.mrf.mxu0
        %v5618 = vadd.f32 %v5589, %v5617
        %5619 = vmatmul.f32.gmra.mxu0 %v5526
        %v5620 = vpop.f32.mrf.mxu0
        %v5621 = vadd.f32 %v5592, %v5620
        %5622 = vdwg.mxu0
        %v5623 = vadd.f32 %v5421, %v5612
        %v5624 = vadd.f32 %v5422, %v5615
        %v5625 = vadd.f32 %v5423, %v5618
        %v5626 = vadd.f32 %v5424, %v5621
        %s5627 = scalar_lea.vmem %s37, 1
        %v5628 = vld [vmem:[%s5627] sm:$0x1]
        %s5629 = scalar_lea.vmem %s39, 1
        %v5630 = vld [vmem:[%s5629] sm:$0x1]
        %v5631 = vsel %vm948, %v5623, 0.0
        %5632 = vadd.xlane.f32.xlu0 %v5631
        %v5633 = vpop.xlane.xlu0 %5632
        %v5634 = vsel %vm948, %v5624, 0.0
        %5635 = vadd.xlane.f32.xlu0 %v5634
        %v5636 = vpop.xlane.xlu0 %5635
        %v5637 = vsel %vm948, %v5625, 0.0
        %5638 = vadd.xlane.f32.xlu0 %v5637
        %v5639 = vpop.xlane.xlu0 %5638
        %v5640 = vsel %vm948, %v5626, 0.0
        %5641 = vadd.xlane.f32.xlu0 %v5640
        %v5642 = vpop.xlane.xlu0 %5641
        %v5643 = vmul.f32 %v5633, %v3381
        %v5644 = vmul.f32 %v5636, %v3381
        %v5645 = vmul.f32 %v5639, %v3381
        %v5646 = vmul.f32 %v5642, %v3381
        %v5647 = vsub.f32 %v5623, %v5643
        %v5648 = vsub.f32 %v5624, %v5644
        %v5649 = vsub.f32 %v5625, %v5645
        %v5650 = vsub.f32 %v5626, %v5646
        %v5651 = vmul.f32 %v5647, %v5647
        %v5652 = vmul.f32 %v5648, %v5648
        %v5653 = vmul.f32 %v5649, %v5649
        %v5654 = vmul.f32 %v5650, %v5650
        %v5655 = vsel %vm948, %v5651, 0.0
        %5656 = vadd.xlane.f32.xlu0 %v5655
        %v5657 = vpop.xlane.xlu0 %5656
        %v5658 = vsel %vm948, %v5652, 0.0
        %5659 = vadd.xlane.f32.xlu0 %v5658
        %v5660 = vpop.xlane.xlu0 %5659
        %v5661 = vsel %vm948, %v5653, 0.0
        %5662 = vadd.xlane.f32.xlu0 %v5661
        %v5663 = vpop.xlane.xlu0 %5662
        %v5664 = vsel %vm948, %v5654, 0.0
        %5665 = vadd.xlane.f32.xlu0 %v5664
        %v5666 = vpop.xlane.xlu0 %5665
        %v5667 = vmul.f32 %v5657, %v3381
        %v5668 = vmul.f32 %v5660, %v3381
        %v5669 = vmul.f32 %v5663, %v3381
        %v5670 = vmul.f32 %v5666, %v3381
        %v5671 = vadd.f32 %v5667, 1e-05
        %v5672 = vadd.f32 %v5668, 1e-05
        %v5673 = vadd.f32 %v5669, 1e-05
        %v5674 = vadd.f32 %v5670, 1e-05
        %v5675 = vrsqrt.pop %v5671
        %v5676 = vmul.f32 %v5675, %v5671
        %v5677 = vmul.f32 %v5676, %v5675
        %v5678 = vmul.f32 0.5, %v5677
        %v5679 = vsub.f32 1.5, %v5678
        %v5680 = vmul.f32 %v5675, %v5679
        %vm5681 = vweird.f32 %v5671
        %vm5682 = vweird.f32 %v5675
        %vm5683 = vmor %vm5681, %vm5682
        %v5684 = vsel %vm5683, %v5675, %v5680
        %v5685 = vrsqrt.pop %v5672
        %v5686 = vmul.f32 %v5685, %v5672
        %v5687 = vmul.f32 %v5686, %v5685
        %v5688 = vmul.f32 0.5, %v5687
        %v5689 = vsub.f32 1.5, %v5688
        %v5690 = vmul.f32 %v5685, %v5689
        %vm5691 = vweird.f32 %v5672
        %vm5692 = vweird.f32 %v5685
        %vm5693 = vmor %vm5691, %vm5692
        %v5694 = vsel %vm5693, %v5685, %v5690
        %v5695 = vrsqrt.pop %v5673
        %v5696 = vmul.f32 %v5695, %v5673
        %v5697 = vmul.f32 %v5696, %v5695
        %v5698 = vmul.f32 0.5, %v5697
        %v5699 = vsub.f32 1.5, %v5698
        %v5700 = vmul.f32 %v5695, %v5699
        %vm5701 = vweird.f32 %v5673
        %vm5702 = vweird.f32 %v5695
        %vm5703 = vmor %vm5701, %vm5702
        %v5704 = vsel %vm5703, %v5695, %v5700
        %v5705 = vrsqrt.pop %v5674
        %v5706 = vmul.f32 %v5705, %v5674
        %v5707 = vmul.f32 %v5706, %v5705
        %v5708 = vmul.f32 0.5, %v5707
        %v5709 = vsub.f32 1.5, %v5708
        %v5710 = vmul.f32 %v5705, %v5709
        %vm5711 = vweird.f32 %v5674
        %vm5712 = vweird.f32 %v5705
        %vm5713 = vmor %vm5711, %vm5712
        %v5714 = vsel %vm5713, %v5705, %v5710
        %v5715 = vmul.f32 %v5647, %v5684
        %v5716 = vmul.f32 %v5648, %v5694
        %v5717 = vmul.f32 %v5649, %v5704
        %v5718 = vmul.f32 %v5650, %v5714
        %v5720 = vperm.slane %v5628, 0
        %v5722 = vmul.f32 %v5715, %v5720
        %v5723 = vmul.f32 %v5716, %v5720
        %v5724 = vmul.f32 %v5717, %v5720
        %v5725 = vmul.f32 %v5718, %v5720
        %v5727 = vperm.slane %v5630, 0
        %v5729 = vadd.f32 %v5722, %v5727
        %v5730 = vadd.f32 %v5723, %v5727
        %v5731 = vadd.f32 %v5724, %v5727
        %v5732 = vadd.f32 %v5725, %v5727
        %s5733 = scalar_lea.vmem %s17, 256
        %v5734 = vld [vmem:[%s5733] sm:$0xff]
        %v5735 = vld [vmem:[%s5733 + $0x8] sm:$0xff]
        %v5736 = vld [vmem:[%s5733 + $0x10] sm:$0xff]
        %v5737 = vld [vmem:[%s5733 + $0x18] sm:$0xff]
        %v5738 = vld [vmem:[%s5733 + $0x20] sm:$0xff]
        %v5739 = vld [vmem:[%s5733 + $0x28] sm:$0xff]
        %v5740 = vld [vmem:[%s5733 + $0x30] sm:$0xff]
        %v5741 = vld [vmem:[%s5733 + $0x38] sm:$0xff]
        %v5742 = vld [vmem:[%s5733 + $0x40] sm:$0xff]
        %v5743 = vld [vmem:[%s5733 + $0x48] sm:$0xff]
        %v5744 = vld [vmem:[%s5733 + $0x50] sm:$0xff]
        %v5745 = vld [vmem:[%s5733 + $0x58] sm:$0xff]
        %v5746 = vld [vmem:[%s5733 + $0x60] sm:$0xff]
        %v5747 = vld [vmem:[%s5733 + $0x68] sm:$0xff]
        %v5748 = vld [vmem:[%s5733 + $0x70] sm:$0xff]
        %v5749 = vld [vmem:[%s5733 + $0x78] sm:$0xff]
        %s5750 = scalar_lea.vmem %s19, 4
        %v5751 = vld [vmem:[%s5750] sm:$0x3]
        %v5753 = vperm.slane %v5751, 0
        %v5754 = vperm.slane %v5751, 1
        %v5758 = vsel %vm948, %v5729, 0
        %v5761 = vsel %vm948, %v5730, 0
        %v5764 = vsel %vm948, %v5731, 0
        %v5767 = vsel %vm948, %v5732, 0
        %5769 = vmatpush.msra.mxu0 0.0
        %5770 = vmatpush.msra.mxu0 0.0
        %5771 = vmatpush.msra.mxu0 0.0
        %5772 = vmatpush.msra.mxu0 0.0
        %5773 = vmatpush.msra.mxu0 0.0
        %5774 = vmatpush.msra.mxu0 0.0
        %5775 = vmatpush.msra.mxu0 0.0
        %5776 = vmatpush.msra.mxu0 0.0
        %5777 = vmatpush.msra.mxu0 %v5748
        %5778 = vmatpush.msra.mxu0 %v5746
        %5779 = vmatpush.msra.mxu0 %v5744
        %5780 = vmatpush.msra.mxu0 %v5742
        %5781 = vmatpush.msra.mxu0 %v5740
        %5782 = vmatpush.msra.mxu0 %v5738
        %5783 = vmatpush.msra.mxu0 %v5736
        %5784 = vmatpush.msra.mxu0 %v5734
        %5785 = vmatmul.f32.gmra.mxu0 %v5758
        %v5786 = vpop.f32.mrf.mxu0
        %v5787 = vadd.f32 %v5753, %v5786
        %5788 = vmatmul.f32.gmra.mxu0 %v5761
        %v5789 = vpop.f32.mrf.mxu0
        %v5790 = vadd.f32 %v5753, %v5789
        %5791 = vmatmul.f32.gmra.mxu0 %v5764
        %v5792 = vpop.f32.mrf.mxu0
        %v5793 = vadd.f32 %v5753, %v5792
        %5794 = vmatmul.f32.gmra.mxu0 %v5767
        %v5795 = vpop.f32.mrf.mxu0
        %v5796 = vadd.f32 %v5753, %v5795
        %5797 = vdwg.mxu0
        %5798 = vmatpush.msra.mxu0 0.0
        %5799 = vmatpush.msra.mxu0 0.0
        %5800 = vmatpush.msra.mxu0 0.0
        %5801 = vmatpush.msra.mxu0 0.0
        %5802 = vmatpush.msra.mxu0 0.0
        %5803 = vmatpush.msra.mxu0 0.0
        %5804 = vmatpush.msra.mxu0 0.0
        %5805 = vmatpush.msra.mxu0 0.0
        %5806 = vmatpush.msra.mxu0 %v5749
        %5807 = vmatpush.msra.mxu0 %v5747
        %5808 = vmatpush.msra.mxu0 %v5745
        %5809 = vmatpush.msra.mxu0 %v5743
        %5810 = vmatpush.msra.mxu0 %v5741
        %5811 = vmatpush.msra.mxu0 %v5739
        %5812 = vmatpush.msra.mxu0 %v5737
        %5813 = vmatpush.msra.mxu0 %v5735
        %5814 = vmatmul.f32.gmra.mxu0 %v5758
        %v5815 = vpop.f32.mrf.mxu0
        %v5816 = vadd.f32 %v5754, %v5815
        %5817 = vmatmul.f32.gmra.mxu0 %v5761
        %v5818 = vpop.f32.mrf.mxu0
        %v5819 = vadd.f32 %v5754, %v5818
        %5820 = vmatmul.f32.gmra.mxu0 %v5764
        %v5821 = vpop.f32.mrf.mxu0
        %v5822 = vadd.f32 %v5754, %v5821
        %5823 = vmatmul.f32.gmra.mxu0 %v5767
        %v5824 = vpop.f32.mrf.mxu0
        %v5825 = vadd.f32 %v5754, %v5824
        %5826 = vdwg.mxu0
        %5831 = vrot.lane.b32.xlu0 %v5787, 64
        %v5832 = vpop.permute.xlu0 %5831
        %5833 = vrot.lane.b32.xlu0 %v5790, 64
        %v5834 = vpop.permute.xlu0 %5833
        %5835 = vrot.lane.b32.xlu0 %v5793, 64
        %v5836 = vpop.permute.xlu0 %5835
        %5837 = vrot.lane.b32.xlu0 %v5796, 64
        %v5838 = vpop.permute.xlu0 %5837
        %v5839 = vsel %vm1917, %v5787, 0
        %v5841 = vsel %vm1917, %v5790, 0
        %v5843 = vsel %vm1917, %v5793, 0
        %v5845 = vsel %vm1917, %v5796, 0
        %v5847 = vsel %vm1917, %v5832, 0
        %v5849 = vsel %vm1917, %v5834, 0
        %v5851 = vsel %vm1917, %v5836, 0
        %v5853 = vsel %vm1917, %v5838, 0
        %5855 = vmatpush.xpose.msra.mxu0 0.0
        %5856 = vmatpush.xpose.msra.mxu0 0.0
        %5857 = vmatpush.xpose.msra.mxu0 0.0
        %5858 = vmatpush.xpose.msra.mxu0 0.0
        %5859 = vmatpush.xpose.msra.mxu0 0.0
        %5860 = vmatpush.xpose.msra.mxu0 0.0
        %5861 = vmatpush.xpose.msra.mxu0 0.0
        %5862 = vmatpush.xpose.msra.mxu0 0.0
        %5863 = vmatpush.xpose.msra.mxu0 0.0
        %5864 = vmatpush.xpose.msra.mxu0 0.0
        %5865 = vmatpush.xpose.msra.mxu0 0.0
        %5866 = vmatpush.xpose.msra.mxu0 0.0
        %5867 = vmatpush.xpose.msra.mxu0 %v5853
        %5868 = vmatpush.xpose.msra.mxu0 %v5851
        %5869 = vmatpush.xpose.msra.mxu0 %v5849
        %5870 = vmatpush.xpose.msra.mxu0 %v5847
        %5871 = vmatmul.f32.gmra.mxu0 %v5839
        %v5872 = vpop.f32.mrf.mxu0
        %v5873 = vadd.f32 0.0, %v5872
        %5874 = vmatmul.f32.gmra.mxu0 %v5841
        %v5875 = vpop.f32.mrf.mxu0
        %v5876 = vadd.f32 0.0, %v5875
        %5877 = vmatmul.f32.gmra.mxu0 %v5843
        %v5878 = vpop.f32.mrf.mxu0
        %v5879 = vadd.f32 0.0, %v5878
        %5880 = vmatmul.f32.gmra.mxu0 %v5845
        %v5881 = vpop.f32.mrf.mxu0
        %v5882 = vadd.f32 0.0, %v5881
        %5883 = vdwg.mxu0
        %v5884 = vsel %vm1963, %v5873, -inf
        %5885 = vmax.xlane.f32.xlu0 %v5884
        %v5886 = vpop.xlane.xlu0 %5885
        %v5887 = vsel %vm1963, %v5876, -inf
        %5888 = vmax.xlane.f32.xlu0 %v5887
        %v5889 = vpop.xlane.xlu0 %5888
        %v5890 = vsel %vm1963, %v5879, -inf
        %5891 = vmax.xlane.f32.xlu0 %v5890
        %v5892 = vpop.xlane.xlu0 %5891
        %v5893 = vsel %vm1963, %v5882, -inf
        %5894 = vmax.xlane.f32.xlu0 %v5893
        %v5895 = vpop.xlane.xlu0 %5894
        %v5896 = vsub.f32 %v5873, %v5886
        %v5897 = vsub.f32 %v5876, %v5889
        %v5898 = vsub.f32 %v5879, %v5892
        %v5899 = vsub.f32 %v5882, %v5895
        %v5900 = vmul.f32 %v5896, 1.442695
        %v5901 = vpow.pop %v5900
        %v5902 = vmul.f32 %v5897, 1.442695
        %v5903 = vpow.pop %v5902
        %v5904 = vmul.f32 %v5898, 1.442695
        %v5905 = vpow.pop %v5904
        %v5906 = vmul.f32 %v5899, 1.442695
        %v5907 = vpow.pop %v5906
        %v5908 = vsel %vm1963, %v5901, 0.0
        %5909 = vadd.xlane.f32.xlu0 %v5908
        %v5910 = vpop.xlane.xlu0 %5909
        %v5911 = vsel %vm1963, %v5903, 0.0
        %5912 = vadd.xlane.f32.xlu0 %v5911
        %v5913 = vpop.xlane.xlu0 %5912
        %v5914 = vsel %vm1963, %v5905, 0.0
        %5915 = vadd.xlane.f32.xlu0 %v5914
        %v5916 = vpop.xlane.xlu0 %5915
        %v5917 = vsel %vm1963, %v5907, 0.0
        %5918 = vadd.xlane.f32.xlu0 %v5917
        %v5919 = vpop.xlane.xlu0 %5918
        %v5920 = vrcp.pop %v5910
        %v5921 = vrcp.pop %v5913
        %v5922 = vrcp.pop %v5916
        %v5923 = vrcp.pop %v5919
        %v5924 = vmul.f32 %v5901, %v5920
        %v5925 = vmul.f32 %v5903, %v5921
        %v5926 = vmul.f32 %v5905, %v5922
        %v5927 = vmul.f32 %v5907, %v5923
        %v5929 = vsel %vm1963, %v5924, 0
        %v5932 = vsel %vm1963, %v5925, 0
        %v5935 = vsel %vm1963, %v5926, 0
        %v5938 = vsel %vm1963, %v5927, 0
        %5940 = vmatpush.msra.mxu0 0.0
        %5941 = vmatpush.msra.mxu0 0.0
        %5942 = vmatpush.msra.mxu0 0.0
        %5943 = vmatpush.msra.mxu0 0.0
        %5944 = vmatpush.msra.mxu0 0.0
        %5945 = vmatpush.msra.mxu0 0.0
        %5946 = vmatpush.msra.mxu0 0.0
        %5947 = vmatpush.msra.mxu0 0.0
        %5948 = vmatpush.msra.mxu0 0.0
        %5949 = vmatpush.msra.mxu0 0.0
        %5950 = vmatpush.msra.mxu0 0.0
        %5951 = vmatpush.msra.mxu0 0.0
        %5952 = vmatpush.msra.mxu0 %v5825
        %5953 = vmatpush.msra.mxu0 %v5822
        %5954 = vmatpush.msra.mxu0 %v5819
        %5955 = vmatpush.msra.mxu0 %v5816
        %5956 = vmatmul.f32.gmra.mxu0 %v5929
        %v5957 = vpop.f32.mrf.mxu0
        %v5958 = vadd.f32 0.0, %v5957
        %5959 = vmatmul.f32.gmra.mxu0 %v5932
        %v5960 = vpop.f32.mrf.mxu0
        %v5961 = vadd.f32 0.0, %v5960
        %5962 = vmatmul.f32.gmra.mxu0 %v5935
        %v5963 = vpop.f32.mrf.mxu0
        %v5964 = vadd.f32 0.0, %v5963
        %5965 = vmatmul.f32.gmra.mxu0 %v5938
        %v5966 = vpop.f32.mrf.mxu0
        %v5967 = vadd.f32 0.0, %v5966
        %5968 = vdwg.mxu0
        %5969 = vrot.lane.b32.xlu0 %v5787, 120
        %v5970 = vpop.permute.xlu0 %5969
        %5971 = vrot.lane.b32.xlu0 %v5790, 120
        %v5972 = vpop.permute.xlu0 %5971
        %5973 = vrot.lane.b32.xlu0 %v5793, 120
        %v5974 = vpop.permute.xlu0 %5973
        %5975 = vrot.lane.b32.xlu0 %v5796, 120
        %v5976 = vpop.permute.xlu0 %5975
        %5977 = vrot.lane.b32.xlu0 %v5787, 56
        %v5978 = vpop.permute.xlu0 %5977
        %5979 = vrot.lane.b32.xlu0 %v5790, 56
        %v5980 = vpop.permute.xlu0 %5979
        %5981 = vrot.lane.b32.xlu0 %v5793, 56
        %v5982 = vpop.permute.xlu0 %5981
        %5983 = vrot.lane.b32.xlu0 %v5796, 56
        %v5984 = vpop.permute.xlu0 %5983
        %v5985 = vsel %vm1917, %v5970, 0
        %v5987 = vsel %vm1917, %v5972, 0
        %v5989 = vsel %vm1917, %v5974, 0
        %v5991 = vsel %vm1917, %v5976, 0
        %v5993 = vsel %vm1917, %v5978, 0
        %v5995 = vsel %vm1917, %v5980, 0
        %v5997 = vsel %vm1917, %v5982, 0
        %v5999 = vsel %vm1917, %v5984, 0
        %6001 = vmatpush.xpose.msra.mxu0 0.0
        %6002 = vmatpush.xpose.msra.mxu0 0.0
        %6003 = vmatpush.xpose.msra.mxu0 0.0
        %6004 = vmatpush.xpose.msra.mxu0 0.0
        %6005 = vmatpush.xpose.msra.mxu0 0.0
        %6006 = vmatpush.xpose.msra.mxu0 0.0
        %6007 = vmatpush.xpose.msra.mxu0 0.0
        %6008 = vmatpush.xpose.msra.mxu0 0.0
        %6009 = vmatpush.xpose.msra.mxu0 0.0
        %6010 = vmatpush.xpose.msra.mxu0 0.0
        %6011 = vmatpush.xpose.msra.mxu0 0.0
        %6012 = vmatpush.xpose.msra.mxu0 0.0
        %6013 = vmatpush.xpose.msra.mxu0 %v5999
        %6014 = vmatpush.xpose.msra.mxu0 %v5997
        %6015 = vmatpush.xpose.msra.mxu0 %v5995
        %6016 = vmatpush.xpose.msra.mxu0 %v5993
        %6017 = vmatmul.f32.gmra.mxu0 %v5985
        %v6018 = vpop.f32.mrf.mxu0
        %v6019 = vadd.f32 0.0, %v6018
        %6020 = vmatmul.f32.gmra.mxu0 %v5987
        %v6021 = vpop.f32.mrf.mxu0
        %v6022 = vadd.f32 0.0, %v6021
        %6023 = vmatmul.f32.gmra.mxu0 %v5989
        %v6024 = vpop.f32.mrf.mxu0
        %v6025 = vadd.f32 0.0, %v6024
        %6026 = vmatmul.f32.gmra.mxu0 %v5991
        %v6027 = vpop.f32.mrf.mxu0
        %v6028 = vadd.f32 0.0, %v6027
        %6029 = vdwg.mxu0
        %v6030 = vsel %vm1963, %v6019, -inf
        %6031 = vmax.xlane.f32.xlu0 %v6030
        %v6032 = vpop.xlane.xlu0 %6031
        %v6033 = vsel %vm1963, %v6022, -inf
        %6034 = vmax.xlane.f32.xlu0 %v6033
        %v6035 = vpop.xlane.xlu0 %6034
        %v6036 = vsel %vm1963, %v6025, -inf
        %6037 = vmax.xlane.f32.xlu0 %v6036
        %v6038 = vpop.xlane.xlu0 %6037
        %v6039 = vsel %vm1963, %v6028, -inf
        %6040 = vmax.xlane.f32.xlu0 %v6039
        %v6041 = vpop.xlane.xlu0 %6040
        %v6042 = vsub.f32 %v6019, %v6032
        %v6043 = vsub.f32 %v6022, %v6035
        %v6044 = vsub.f32 %v6025, %v6038
        %v6045 = vsub.f32 %v6028, %v6041
        %v6046 = vmul.f32 %v6042, 1.442695
        %v6047 = vpow.pop %v6046
        %v6048 = vmul.f32 %v6043, 1.442695
        %v6049 = vpow.pop %v6048
        %v6050 = vmul.f32 %v6044, 1.442695
        %v6051 = vpow.pop %v6050
        %v6052 = vmul.f32 %v6045, 1.442695
        %v6053 = vpow.pop %v6052
        %v6054 = vsel %vm1963, %v6047, 0.0
        %6055 = vadd.xlane.f32.xlu0 %v6054
        %v6056 = vpop.xlane.xlu0 %6055
        %v6057 = vsel %vm1963, %v6049, 0.0
        %6058 = vadd.xlane.f32.xlu0 %v6057
        %v6059 = vpop.xlane.xlu0 %6058
        %v6060 = vsel %vm1963, %v6051, 0.0
        %6061 = vadd.xlane.f32.xlu0 %v6060
        %v6062 = vpop.xlane.xlu0 %6061
        %v6063 = vsel %vm1963, %v6053, 0.0
        %6064 = vadd.xlane.f32.xlu0 %v6063
        %v6065 = vpop.xlane.xlu0 %6064
        %v6066 = vrcp.pop %v6056
        %v6067 = vrcp.pop %v6059
        %v6068 = vrcp.pop %v6062
        %v6069 = vrcp.pop %v6065
        %v6070 = vmul.f32 %v6047, %v6066
        %v6071 = vmul.f32 %v6049, %v6067
        %v6072 = vmul.f32 %v6051, %v6068
        %v6073 = vmul.f32 %v6053, %v6069
        %6078 = vrot.lane.b32.xlu0 %v5816, 120
        %v6079 = vpop.permute.xlu0 %6078
        %6080 = vrot.lane.b32.xlu0 %v5819, 120
        %v6081 = vpop.permute.xlu0 %6080
        %6082 = vrot.lane.b32.xlu0 %v5822, 120
        %v6083 = vpop.permute.xlu0 %6082
        %6084 = vrot.lane.b32.xlu0 %v5825, 120
        %v6085 = vpop.permute.xlu0 %6084
        %v6091 = vsel %vm1963, %v6070, 0
        %v6094 = vsel %vm1963, %v6071, 0
        %v6097 = vsel %vm1963, %v6072, 0
        %v6100 = vsel %vm1963, %v6073, 0
        %6102 = vmatpush.msra.mxu0 0.0
        %6103 = vmatpush.msra.mxu0 0.0
        %6104 = vmatpush.msra.mxu0 0.0
        %6105 = vmatpush.msra.mxu0 0.0
        %6106 = vmatpush.msra.mxu0 0.0
        %6107 = vmatpush.msra.mxu0 0.0
        %6108 = vmatpush.msra.mxu0 0.0
        %6109 = vmatpush.msra.mxu0 0.0
        %6110 = vmatpush.msra.mxu0 0.0
        %6111 = vmatpush.msra.mxu0 0.0
        %6112 = vmatpush.msra.mxu0 0.0
        %6113 = vmatpush.msra.mxu0 0.0
        %6114 = vmatpush.msra.mxu0 %v6085
        %6115 = vmatpush.msra.mxu0 %v6083
        %6116 = vmatpush.msra.mxu0 %v6081
        %6117 = vmatpush.msra.mxu0 %v6079
        %6118 = vmatmul.f32.gmra.mxu0 %v6091
        %v6119 = vpop.f32.mrf.mxu0
        %v6120 = vadd.f32 0.0, %v6119
        %6121 = vmatmul.f32.gmra.mxu0 %v6094
        %v6122 = vpop.f32.mrf.mxu0
        %v6123 = vadd.f32 0.0, %v6122
        %6124 = vmatmul.f32.gmra.mxu0 %v6097
        %v6125 = vpop.f32.mrf.mxu0
        %v6126 = vadd.f32 0.0, %v6125
        %6127 = vmatmul.f32.gmra.mxu0 %v6100
        %v6128 = vpop.f32.mrf.mxu0
        %v6129 = vadd.f32 0.0, %v6128
        %6130 = vdwg.mxu0
        %6131 = vrot.lane.b32.xlu0 %v5787, 112
        %v6132 = vpop.permute.xlu0 %6131
        %6133 = vrot.lane.b32.xlu0 %v5790, 112
        %v6134 = vpop.permute.xlu0 %6133
        %6135 = vrot.lane.b32.xlu0 %v5793, 112
        %v6136 = vpop.permute.xlu0 %6135
        %6137 = vrot.lane.b32.xlu0 %v5796, 112
        %v6138 = vpop.permute.xlu0 %6137
        %6139 = vrot.lane.b32.xlu0 %v5787, 48
        %v6140 = vpop.permute.xlu0 %6139
        %6141 = vrot.lane.b32.xlu0 %v5790, 48
        %v6142 = vpop.permute.xlu0 %6141
        %6143 = vrot.lane.b32.xlu0 %v5793, 48
        %v6144 = vpop.permute.xlu0 %6143
        %6145 = vrot.lane.b32.xlu0 %v5796, 48
        %v6146 = vpop.permute.xlu0 %6145
        %v6147 = vsel %vm1917, %v6132, 0
        %v6149 = vsel %vm1917, %v6134, 0
        %v6151 = vsel %vm1917, %v6136, 0
        %v6153 = vsel %vm1917, %v6138, 0
        %v6155 = vsel %vm1917, %v6140, 0
        %v6157 = vsel %vm1917, %v6142, 0
        %v6159 = vsel %vm1917, %v6144, 0
        %v6161 = vsel %vm1917, %v6146, 0
        %6163 = vmatpush.xpose.msra.mxu0 0.0
        %6164 = vmatpush.xpose.msra.mxu0 0.0
        %6165 = vmatpush.xpose.msra.mxu0 0.0
        %6166 = vmatpush.xpose.msra.mxu0 0.0
        %6167 = vmatpush.xpose.msra.mxu0 0.0
        %6168 = vmatpush.xpose.msra.mxu0 0.0
        %6169 = vmatpush.xpose.msra.mxu0 0.0
        %6170 = vmatpush.xpose.msra.mxu0 0.0
        %6171 = vmatpush.xpose.msra.mxu0 0.0
        %6172 = vmatpush.xpose.msra.mxu0 0.0
        %6173 = vmatpush.xpose.msra.mxu0 0.0
        %6174 = vmatpush.xpose.msra.mxu0 0.0
        %6175 = vmatpush.xpose.msra.mxu0 %v6161
        %6176 = vmatpush.xpose.msra.mxu0 %v6159
        %6177 = vmatpush.xpose.msra.mxu0 %v6157
        %6178 = vmatpush.xpose.msra.mxu0 %v6155
        %6179 = vmatmul.f32.gmra.mxu0 %v6147
        %v6180 = vpop.f32.mrf.mxu0
        %v6181 = vadd.f32 0.0, %v6180
        %6182 = vmatmul.f32.gmra.mxu0 %v6149
        %v6183 = vpop.f32.mrf.mxu0
        %v6184 = vadd.f32 0.0, %v6183
        %6185 = vmatmul.f32.gmra.mxu0 %v6151
        %v6186 = vpop.f32.mrf.mxu0
        %v6187 = vadd.f32 0.0, %v6186
        %6188 = vmatmul.f32.gmra.mxu0 %v6153
        %v6189 = vpop.f32.mrf.mxu0
        %v6190 = vadd.f32 0.0, %v6189
        %6191 = vdwg.mxu0
        %v6192 = vsel %vm1963, %v6181, -inf
        %6193 = vmax.xlane.f32.xlu0 %v6192
        %v6194 = vpop.xlane.xlu0 %6193
        %v6195 = vsel %vm1963, %v6184, -inf
        %6196 = vmax.xlane.f32.xlu0 %v6195
        %v6197 = vpop.xlane.xlu0 %6196
        %v6198 = vsel %vm1963, %v6187, -inf
        %6199 = vmax.xlane.f32.xlu0 %v6198
        %v6200 = vpop.xlane.xlu0 %6199
        %v6201 = vsel %vm1963, %v6190, -inf
        %6202 = vmax.xlane.f32.xlu0 %v6201
        %v6203 = vpop.xlane.xlu0 %6202
        %v6204 = vsub.f32 %v6181, %v6194
        %v6205 = vsub.f32 %v6184, %v6197
        %v6206 = vsub.f32 %v6187, %v6200
        %v6207 = vsub.f32 %v6190, %v6203
        %v6208 = vmul.f32 %v6204, 1.442695
        %v6209 = vpow.pop %v6208
        %v6210 = vmul.f32 %v6205, 1.442695
        %v6211 = vpow.pop %v6210
        %v6212 = vmul.f32 %v6206, 1.442695
        %v6213 = vpow.pop %v6212
        %v6214 = vmul.f32 %v6207, 1.442695
        %v6215 = vpow.pop %v6214
        %v6216 = vsel %vm1963, %v6209, 0.0
        %6217 = vadd.xlane.f32.xlu0 %v6216
        %v6218 = vpop.xlane.xlu0 %6217
        %v6219 = vsel %vm1963, %v6211, 0.0
        %6220 = vadd.xlane.f32.xlu0 %v6219
        %v6221 = vpop.xlane.xlu0 %6220
        %v6222 = vsel %vm1963, %v6213, 0.0
        %6223 = vadd.xlane.f32.xlu0 %v6222
        %v6224 = vpop.xlane.xlu0 %6223
        %v6225 = vsel %vm1963, %v6215, 0.0
        %6226 = vadd.xlane.f32.xlu0 %v6225
        %v6227 = vpop.xlane.xlu0 %6226
        %v6228 = vrcp.pop %v6218
        %v6229 = vrcp.pop %v6221
        %v6230 = vrcp.pop %v6224
        %v6231 = vrcp.pop %v6227
        %v6232 = vmul.f32 %v6209, %v6228
        %v6233 = vmul.f32 %v6211, %v6229
        %v6234 = vmul.f32 %v6213, %v6230
        %v6235 = vmul.f32 %v6215, %v6231
        %6236 = vrot.lane.b32.xlu0 %v5816, 112
        %v6237 = vpop.permute.xlu0 %6236
        %6238 = vrot.lane.b32.xlu0 %v5819, 112
        %v6239 = vpop.permute.xlu0 %6238
        %6240 = vrot.lane.b32.xlu0 %v5822, 112
        %v6241 = vpop.permute.xlu0 %6240
        %6242 = vrot.lane.b32.xlu0 %v5825, 112
        %v6243 = vpop.permute.xlu0 %6242
        %v6249 = vsel %vm1963, %v6232, 0
        %v6252 = vsel %vm1963, %v6233, 0
        %v6255 = vsel %vm1963, %v6234, 0
        %v6258 = vsel %vm1963, %v6235, 0
        %6260 = vmatpush.msra.mxu0 0.0
        %6261 = vmatpush.msra.mxu0 0.0
        %6262 = vmatpush.msra.mxu0 0.0
        %6263 = vmatpush.msra.mxu0 0.0
        %6264 = vmatpush.msra.mxu0 0.0
        %6265 = vmatpush.msra.mxu0 0.0
        %6266 = vmatpush.msra.mxu0 0.0
        %6267 = vmatpush.msra.mxu0 0.0
        %6268 = vmatpush.msra.mxu0 0.0
        %6269 = vmatpush.msra.mxu0 0.0
        %6270 = vmatpush.msra.mxu0 0.0
        %6271 = vmatpush.msra.mxu0 0.0
        %6272 = vmatpush.msra.mxu0 %v6243
        %6273 = vmatpush.msra.mxu0 %v6241
        %6274 = vmatpush.msra.mxu0 %v6239
        %6275 = vmatpush.msra.mxu0 %v6237
        %6276 = vmatmul.f32.gmra.mxu0 %v6249
        %v6277 = vpop.f32.mrf.mxu0
        %v6278 = vadd.f32 0.0, %v6277
        %6279 = vmatmul.f32.gmra.mxu0 %v6252
        %v6280 = vpop.f32.mrf.mxu0
        %v6281 = vadd.f32 0.0, %v6280
        %6282 = vmatmul.f32.gmra.mxu0 %v6255
        %v6283 = vpop.f32.mrf.mxu0
        %v6284 = vadd.f32 0.0, %v6283
        %6285 = vmatmul.f32.gmra.mxu0 %v6258
        %v6286 = vpop.f32.mrf.mxu0
        %v6287 = vadd.f32 0.0, %v6286
        %6288 = vdwg.mxu0
        %6289 = vrot.lane.b32.xlu0 %v5787, 104
        %v6290 = vpop.permute.xlu0 %6289
        %6291 = vrot.lane.b32.xlu0 %v5790, 104
        %v6292 = vpop.permute.xlu0 %6291
        %6293 = vrot.lane.b32.xlu0 %v5793, 104
        %v6294 = vpop.permute.xlu0 %6293
        %6295 = vrot.lane.b32.xlu0 %v5796, 104
        %v6296 = vpop.permute.xlu0 %6295
        %6297 = vrot.lane.b32.xlu0 %v5787, 40
        %v6298 = vpop.permute.xlu0 %6297
        %6299 = vrot.lane.b32.xlu0 %v5790, 40
        %v6300 = vpop.permute.xlu0 %6299
        %6301 = vrot.lane.b32.xlu0 %v5793, 40
        %v6302 = vpop.permute.xlu0 %6301
        %6303 = vrot.lane.b32.xlu0 %v5796, 40
        %v6304 = vpop.permute.xlu0 %6303
        %v6305 = vsel %vm1917, %v6290, 0
        %v6307 = vsel %vm1917, %v6292, 0
        %v6309 = vsel %vm1917, %v6294, 0
        %v6311 = vsel %vm1917, %v6296, 0
        %v6313 = vsel %vm1917, %v6298, 0
        %v6315 = vsel %vm1917, %v6300, 0
        %v6317 = vsel %vm1917, %v6302, 0
        %v6319 = vsel %vm1917, %v6304, 0
        %6321 = vmatpush.xpose.msra.mxu0 0.0
        %6322 = vmatpush.xpose.msra.mxu0 0.0
        %6323 = vmatpush.xpose.msra.mxu0 0.0
        %6324 = vmatpush.xpose.msra.mxu0 0.0
        %6325 = vmatpush.xpose.msra.mxu0 0.0
        %6326 = vmatpush.xpose.msra.mxu0 0.0
        %6327 = vmatpush.xpose.msra.mxu0 0.0
        %6328 = vmatpush.xpose.msra.mxu0 0.0
        %6329 = vmatpush.xpose.msra.mxu0 0.0
        %6330 = vmatpush.xpose.msra.mxu0 0.0
        %6331 = vmatpush.xpose.msra.mxu0 0.0
        %6332 = vmatpush.xpose.msra.mxu0 0.0
        %6333 = vmatpush.xpose.msra.mxu0 %v6319
        %6334 = vmatpush.xpose.msra.mxu0 %v6317
        %6335 = vmatpush.xpose.msra.mxu0 %v6315
        %6336 = vmatpush.xpose.msra.mxu0 %v6313
        %6337 = vmatmul.f32.gmra.mxu0 %v6305
        %v6338 = vpop.f32.mrf.mxu0
        %v6339 = vadd.f32 0.0, %v6338
        %6340 = vmatmul.f32.gmra.mxu0 %v6307
        %v6341 = vpop.f32.mrf.mxu0
        %v6342 = vadd.f32 0.0, %v6341
        %6343 = vmatmul.f32.gmra.mxu0 %v6309
        %v6344 = vpop.f32.mrf.mxu0
        %v6345 = vadd.f32 0.0, %v6344
        %6346 = vmatmul.f32.gmra.mxu0 %v6311
        %v6347 = vpop.f32.mrf.mxu0
        %v6348 = vadd.f32 0.0, %v6347
        %6349 = vdwg.mxu0
        %v6350 = vsel %vm1963, %v6339, -inf
        %6351 = vmax.xlane.f32.xlu0 %v6350
        %v6352 = vpop.xlane.xlu0 %6351
        %v6353 = vsel %vm1963, %v6342, -inf
        %6354 = vmax.xlane.f32.xlu0 %v6353
        %v6355 = vpop.xlane.xlu0 %6354
        %v6356 = vsel %vm1963, %v6345, -inf
        %6357 = vmax.xlane.f32.xlu0 %v6356
        %v6358 = vpop.xlane.xlu0 %6357
        %v6359 = vsel %vm1963, %v6348, -inf
        %6360 = vmax.xlane.f32.xlu0 %v6359
        %v6361 = vpop.xlane.xlu0 %6360
        %v6362 = vsub.f32 %v6339, %v6352
        %v6363 = vsub.f32 %v6342, %v6355
        %v6364 = vsub.f32 %v6345, %v6358
        %v6365 = vsub.f32 %v6348, %v6361
        %v6366 = vmul.f32 %v6362, 1.442695
        %v6367 = vpow.pop %v6366
        %v6368 = vmul.f32 %v6363, 1.442695
        %v6369 = vpow.pop %v6368
        %v6370 = vmul.f32 %v6364, 1.442695
        %v6371 = vpow.pop %v6370
        %v6372 = vmul.f32 %v6365, 1.442695
        %v6373 = vpow.pop %v6372
        %v6374 = vsel %vm1963, %v6367, 0.0
        %6375 = vadd.xlane.f32.xlu0 %v6374
        %v6376 = vpop.xlane.xlu0 %6375
        %v6377 = vsel %vm1963, %v6369, 0.0
        %6378 = vadd.xlane.f32.xlu0 %v6377
        %v6379 = vpop.xlane.xlu0 %6378
        %v6380 = vsel %vm1963, %v6371, 0.0
        %6381 = vadd.xlane.f32.xlu0 %v6380
        %v6382 = vpop.xlane.xlu0 %6381
        %v6383 = vsel %vm1963, %v6373, 0.0
        %6384 = vadd.xlane.f32.xlu0 %v6383
        %v6385 = vpop.xlane.xlu0 %6384
        %v6386 = vrcp.pop %v6376
        %v6387 = vrcp.pop %v6379
        %v6388 = vrcp.pop %v6382
        %v6389 = vrcp.pop %v6385
        %v6390 = vmul.f32 %v6367, %v6386
        %v6391 = vmul.f32 %v6369, %v6387
        %v6392 = vmul.f32 %v6371, %v6388
        %v6393 = vmul.f32 %v6373, %v6389
        %6394 = vrot.lane.b32.xlu0 %v5816, 104
        %v6395 = vpop.permute.xlu0 %6394
        %6396 = vrot.lane.b32.xlu0 %v5819, 104
        %v6397 = vpop.permute.xlu0 %6396
        %6398 = vrot.lane.b32.xlu0 %v5822, 104
        %v6399 = vpop.permute.xlu0 %6398
        %6400 = vrot.lane.b32.xlu0 %v5825, 104
        %v6401 = vpop.permute.xlu0 %6400
        %v6407 = vsel %vm1963, %v6390, 0
        %v6410 = vsel %vm1963, %v6391, 0
        %v6413 = vsel %vm1963, %v6392, 0
        %v6416 = vsel %vm1963, %v6393, 0
        %6418 = vmatpush.msra.mxu0 0.0
        %6419 = vmatpush.msra.mxu0 0.0
        %6420 = vmatpush.msra.mxu0 0.0
        %6421 = vmatpush.msra.mxu0 0.0
        %6422 = vmatpush.msra.mxu0 0.0
        %6423 = vmatpush.msra.mxu0 0.0
        %6424 = vmatpush.msra.mxu0 0.0
        %6425 = vmatpush.msra.mxu0 0.0
        %6426 = vmatpush.msra.mxu0 0.0
        %6427 = vmatpush.msra.mxu0 0.0
        %6428 = vmatpush.msra.mxu0 0.0
        %6429 = vmatpush.msra.mxu0 0.0
        %6430 = vmatpush.msra.mxu0 %v6401
        %6431 = vmatpush.msra.mxu0 %v6399
        %6432 = vmatpush.msra.mxu0 %v6397
        %6433 = vmatpush.msra.mxu0 %v6395
        %6434 = vmatmul.f32.gmra.mxu0 %v6407
        %v6435 = vpop.f32.mrf.mxu0
        %v6436 = vadd.f32 0.0, %v6435
        %6437 = vmatmul.f32.gmra.mxu0 %v6410
        %v6438 = vpop.f32.mrf.mxu0
        %v6439 = vadd.f32 0.0, %v6438
        %6440 = vmatmul.f32.gmra.mxu0 %v6413
        %v6441 = vpop.f32.mrf.mxu0
        %v6442 = vadd.f32 0.0, %v6441
        %6443 = vmatmul.f32.gmra.mxu0 %v6416
        %v6444 = vpop.f32.mrf.mxu0
        %v6445 = vadd.f32 0.0, %v6444
        %6446 = vdwg.mxu0
        %6447 = vrot.lane.b32.xlu0 %v5787, 96
        %v6448 = vpop.permute.xlu0 %6447
        %6449 = vrot.lane.b32.xlu0 %v5790, 96
        %v6450 = vpop.permute.xlu0 %6449
        %6451 = vrot.lane.b32.xlu0 %v5793, 96
        %v6452 = vpop.permute.xlu0 %6451
        %6453 = vrot.lane.b32.xlu0 %v5796, 96
        %v6454 = vpop.permute.xlu0 %6453
        %6455 = vrot.lane.b32.xlu0 %v5787, 32
        %v6456 = vpop.permute.xlu0 %6455
        %6457 = vrot.lane.b32.xlu0 %v5790, 32
        %v6458 = vpop.permute.xlu0 %6457
        %6459 = vrot.lane.b32.xlu0 %v5793, 32
        %v6460 = vpop.permute.xlu0 %6459
        %6461 = vrot.lane.b32.xlu0 %v5796, 32
        %v6462 = vpop.permute.xlu0 %6461
        %v6463 = vsel %vm1917, %v6448, 0
        %v6465 = vsel %vm1917, %v6450, 0
        %v6467 = vsel %vm1917, %v6452, 0
        %v6469 = vsel %vm1917, %v6454, 0
        %v6471 = vsel %vm1917, %v6456, 0
        %v6473 = vsel %vm1917, %v6458, 0
        %v6475 = vsel %vm1917, %v6460, 0
        %v6477 = vsel %vm1917, %v6462, 0
        %6479 = vmatpush.xpose.msra.mxu0 0.0
        %6480 = vmatpush.xpose.msra.mxu0 0.0
        %6481 = vmatpush.xpose.msra.mxu0 0.0
        %6482 = vmatpush.xpose.msra.mxu0 0.0
        %6483 = vmatpush.xpose.msra.mxu0 0.0
        %6484 = vmatpush.xpose.msra.mxu0 0.0
        %6485 = vmatpush.xpose.msra.mxu0 0.0
        %6486 = vmatpush.xpose.msra.mxu0 0.0
        %6487 = vmatpush.xpose.msra.mxu0 0.0
        %6488 = vmatpush.xpose.msra.mxu0 0.0
        %6489 = vmatpush.xpose.msra.mxu0 0.0
        %6490 = vmatpush.xpose.msra.mxu0 0.0
        %6491 = vmatpush.xpose.msra.mxu0 %v6477
        %6492 = vmatpush.xpose.msra.mxu0 %v6475
        %6493 = vmatpush.xpose.msra.mxu0 %v6473
        %6494 = vmatpush.xpose.msra.mxu0 %v6471
        %6495 = vmatmul.f32.gmra.mxu0 %v6463
        %v6496 = vpop.f32.mrf.mxu0
        %v6497 = vadd.f32 0.0, %v6496
        %6498 = vmatmul.f32.gmra.mxu0 %v6465
        %v6499 = vpop.f32.mrf.mxu0
        %v6500 = vadd.f32 0.0, %v6499
        %6501 = vmatmul.f32.gmra.mxu0 %v6467
        %v6502 = vpop.f32.mrf.mxu0
        %v6503 = vadd.f32 0.0, %v6502
        %6504 = vmatmul.f32.gmra.mxu0 %v6469
        %v6505 = vpop.f32.mrf.mxu0
        %v6506 = vadd.f32 0.0, %v6505
        %6507 = vdwg.mxu0
        %v6508 = vsel %vm1963, %v6497, -inf
        %6509 = vmax.xlane.f32.xlu0 %v6508
        %v6510 = vpop.xlane.xlu0 %6509
        %v6511 = vsel %vm1963, %v6500, -inf
        %6512 = vmax.xlane.f32.xlu0 %v6511
        %v6513 = vpop.xlane.xlu0 %6512
        %v6514 = vsel %vm1963, %v6503, -inf
        %6515 = vmax.xlane.f32.xlu0 %v6514
        %v6516 = vpop.xlane.xlu0 %6515
        %v6517 = vsel %vm1963, %v6506, -inf
        %6518 = vmax.xlane.f32.xlu0 %v6517
        %v6519 = vpop.xlane.xlu0 %6518
        %v6520 = vsub.f32 %v6497, %v6510
        %v6521 = vsub.f32 %v6500, %v6513
        %v6522 = vsub.f32 %v6503, %v6516
        %v6523 = vsub.f32 %v6506, %v6519
        %v6524 = vmul.f32 %v6520, 1.442695
        %v6525 = vpow.pop %v6524
        %v6526 = vmul.f32 %v6521, 1.442695
        %v6527 = vpow.pop %v6526
        %v6528 = vmul.f32 %v6522, 1.442695
        %v6529 = vpow.pop %v6528
        %v6530 = vmul.f32 %v6523, 1.442695
        %v6531 = vpow.pop %v6530
        %v6532 = vsel %vm1963, %v6525, 0.0
        %6533 = vadd.xlane.f32.xlu0 %v6532
        %v6534 = vpop.xlane.xlu0 %6533
        %v6535 = vsel %vm1963, %v6527, 0.0
        %6536 = vadd.xlane.f32.xlu0 %v6535
        %v6537 = vpop.xlane.xlu0 %6536
        %v6538 = vsel %vm1963, %v6529, 0.0
        %6539 = vadd.xlane.f32.xlu0 %v6538
        %v6540 = vpop.xlane.xlu0 %6539
        %v6541 = vsel %vm1963, %v6531, 0.0
        %6542 = vadd.xlane.f32.xlu0 %v6541
        %v6543 = vpop.xlane.xlu0 %6542
        %v6544 = vrcp.pop %v6534
        %v6545 = vrcp.pop %v6537
        %v6546 = vrcp.pop %v6540
        %v6547 = vrcp.pop %v6543
        %v6548 = vmul.f32 %v6525, %v6544
        %v6549 = vmul.f32 %v6527, %v6545
        %v6550 = vmul.f32 %v6529, %v6546
        %v6551 = vmul.f32 %v6531, %v6547
        %6552 = vrot.lane.b32.xlu0 %v5816, 96
        %v6553 = vpop.permute.xlu0 %6552
        %6554 = vrot.lane.b32.xlu0 %v5819, 96
        %v6555 = vpop.permute.xlu0 %6554
        %6556 = vrot.lane.b32.xlu0 %v5822, 96
        %v6557 = vpop.permute.xlu0 %6556
        %6558 = vrot.lane.b32.xlu0 %v5825, 96
        %v6559 = vpop.permute.xlu0 %6558
        %v6565 = vsel %vm1963, %v6548, 0
        %v6568 = vsel %vm1963, %v6549, 0
        %v6571 = vsel %vm1963, %v6550, 0
        %v6574 = vsel %vm1963, %v6551, 0
        %6576 = vmatpush.msra.mxu0 0.0
        %6577 = vmatpush.msra.mxu0 0.0
        %6578 = vmatpush.msra.mxu0 0.0
        %6579 = vmatpush.msra.mxu0 0.0
        %6580 = vmatpush.msra.mxu0 0.0
        %6581 = vmatpush.msra.mxu0 0.0
        %6582 = vmatpush.msra.mxu0 0.0
        %6583 = vmatpush.msra.mxu0 0.0
        %6584 = vmatpush.msra.mxu0 0.0
        %6585 = vmatpush.msra.mxu0 0.0
        %6586 = vmatpush.msra.mxu0 0.0
        %6587 = vmatpush.msra.mxu0 0.0
        %6588 = vmatpush.msra.mxu0 %v6559
        %6589 = vmatpush.msra.mxu0 %v6557
        %6590 = vmatpush.msra.mxu0 %v6555
        %6591 = vmatpush.msra.mxu0 %v6553
        %6592 = vmatmul.f32.gmra.mxu0 %v6565
        %v6593 = vpop.f32.mrf.mxu0
        %v6594 = vadd.f32 0.0, %v6593
        %6595 = vmatmul.f32.gmra.mxu0 %v6568
        %v6596 = vpop.f32.mrf.mxu0
        %v6597 = vadd.f32 0.0, %v6596
        %6598 = vmatmul.f32.gmra.mxu0 %v6571
        %v6599 = vpop.f32.mrf.mxu0
        %v6600 = vadd.f32 0.0, %v6599
        %6601 = vmatmul.f32.gmra.mxu0 %v6574
        %v6602 = vpop.f32.mrf.mxu0
        %v6603 = vadd.f32 0.0, %v6602
        %6604 = vdwg.mxu0
        %6605 = vrot.lane.b32.xlu0 %v5787, 88
        %v6606 = vpop.permute.xlu0 %6605
        %6607 = vrot.lane.b32.xlu0 %v5790, 88
        %v6608 = vpop.permute.xlu0 %6607
        %6609 = vrot.lane.b32.xlu0 %v5793, 88
        %v6610 = vpop.permute.xlu0 %6609
        %6611 = vrot.lane.b32.xlu0 %v5796, 88
        %v6612 = vpop.permute.xlu0 %6611
        %6613 = vrot.lane.b32.xlu0 %v5787, 24
        %v6614 = vpop.permute.xlu0 %6613
        %6615 = vrot.lane.b32.xlu0 %v5790, 24
        %v6616 = vpop.permute.xlu0 %6615
        %6617 = vrot.lane.b32.xlu0 %v5793, 24
        %v6618 = vpop.permute.xlu0 %6617
        %6619 = vrot.lane.b32.xlu0 %v5796, 24
        %v6620 = vpop.permute.xlu0 %6619
        %v6621 = vsel %vm1917, %v6606, 0
        %v6623 = vsel %vm1917, %v6608, 0
        %v6625 = vsel %vm1917, %v6610, 0
        %v6627 = vsel %vm1917, %v6612, 0
        %v6629 = vsel %vm1917, %v6614, 0
        %v6631 = vsel %vm1917, %v6616, 0
        %v6633 = vsel %vm1917, %v6618, 0
        %v6635 = vsel %vm1917, %v6620, 0
        %6637 = vmatpush.xpose.msra.mxu0 0.0
        %6638 = vmatpush.xpose.msra.mxu0 0.0
        %6639 = vmatpush.xpose.msra.mxu0 0.0
        %6640 = vmatpush.xpose.msra.mxu0 0.0
        %6641 = vmatpush.xpose.msra.mxu0 0.0
        %6642 = vmatpush.xpose.msra.mxu0 0.0
        %6643 = vmatpush.xpose.msra.mxu0 0.0
        %6644 = vmatpush.xpose.msra.mxu0 0.0
        %6645 = vmatpush.xpose.msra.mxu0 0.0
        %6646 = vmatpush.xpose.msra.mxu0 0.0
        %6647 = vmatpush.xpose.msra.mxu0 0.0
        %6648 = vmatpush.xpose.msra.mxu0 0.0
        %6649 = vmatpush.xpose.msra.mxu0 %v6635
        %6650 = vmatpush.xpose.msra.mxu0 %v6633
        %6651 = vmatpush.xpose.msra.mxu0 %v6631
        %6652 = vmatpush.xpose.msra.mxu0 %v6629
        %6653 = vmatmul.f32.gmra.mxu0 %v6621
        %v6654 = vpop.f32.mrf.mxu0
        %v6655 = vadd.f32 0.0, %v6654
        %6656 = vmatmul.f32.gmra.mxu0 %v6623
        %v6657 = vpop.f32.mrf.mxu0
        %v6658 = vadd.f32 0.0, %v6657
        %6659 = vmatmul.f32.gmra.mxu0 %v6625
        %v6660 = vpop.f32.mrf.mxu0
        %v6661 = vadd.f32 0.0, %v6660
        %6662 = vmatmul.f32.gmra.mxu0 %v6627
        %v6663 = vpop.f32.mrf.mxu0
        %v6664 = vadd.f32 0.0, %v6663
        %6665 = vdwg.mxu0
        %v6666 = vsel %vm1963, %v6655, -inf
        %6667 = vmax.xlane.f32.xlu0 %v6666
        %v6668 = vpop.xlane.xlu0 %6667
        %v6669 = vsel %vm1963, %v6658, -inf
        %6670 = vmax.xlane.f32.xlu0 %v6669
        %v6671 = vpop.xlane.xlu0 %6670
        %v6672 = vsel %vm1963, %v6661, -inf
        %6673 = vmax.xlane.f32.xlu0 %v6672
        %v6674 = vpop.xlane.xlu0 %6673
        %v6675 = vsel %vm1963, %v6664, -inf
        %6676 = vmax.xlane.f32.xlu0 %v6675
        %v6677 = vpop.xlane.xlu0 %6676
        %v6678 = vsub.f32 %v6655, %v6668
        %v6679 = vsub.f32 %v6658, %v6671
        %v6680 = vsub.f32 %v6661, %v6674
        %v6681 = vsub.f32 %v6664, %v6677
        %v6682 = vmul.f32 %v6678, 1.442695
        %v6683 = vpow.pop %v6682
        %v6684 = vmul.f32 %v6679, 1.442695
        %v6685 = vpow.pop %v6684
        %v6686 = vmul.f32 %v6680, 1.442695
        %v6687 = vpow.pop %v6686
        %v6688 = vmul.f32 %v6681, 1.442695
        %v6689 = vpow.pop %v6688
        %v6690 = vsel %vm1963, %v6683, 0.0
        %6691 = vadd.xlane.f32.xlu0 %v6690
        %v6692 = vpop.xlane.xlu0 %6691
        %v6693 = vsel %vm1963, %v6685, 0.0
        %6694 = vadd.xlane.f32.xlu0 %v6693
        %v6695 = vpop.xlane.xlu0 %6694
        %v6696 = vsel %vm1963, %v6687, 0.0
        %6697 = vadd.xlane.f32.xlu0 %v6696
        %v6698 = vpop.xlane.xlu0 %6697
        %v6699 = vsel %vm1963, %v6689, 0.0
        %6700 = vadd.xlane.f32.xlu0 %v6699
        %v6701 = vpop.xlane.xlu0 %6700
        %v6702 = vrcp.pop %v6692
        %v6703 = vrcp.pop %v6695
        %v6704 = vrcp.pop %v6698
        %v6705 = vrcp.pop %v6701
        %v6706 = vmul.f32 %v6683, %v6702
        %v6707 = vmul.f32 %v6685, %v6703
        %v6708 = vmul.f32 %v6687, %v6704
        %v6709 = vmul.f32 %v6689, %v6705
        %6710 = vrot.lane.b32.xlu0 %v5816, 88
        %v6711 = vpop.permute.xlu0 %6710
        %6712 = vrot.lane.b32.xlu0 %v5819, 88
        %v6713 = vpop.permute.xlu0 %6712
        %6714 = vrot.lane.b32.xlu0 %v5822, 88
        %v6715 = vpop.permute.xlu0 %6714
        %6716 = vrot.lane.b32.xlu0 %v5825, 88
        %v6717 = vpop.permute.xlu0 %6716
        %v6723 = vsel %vm1963, %v6706, 0
        %v6726 = vsel %vm1963, %v6707, 0
        %v6729 = vsel %vm1963, %v6708, 0
        %v6732 = vsel %vm1963, %v6709, 0
        %6734 = vmatpush.msra.mxu0 0.0
        %6735 = vmatpush.msra.mxu0 0.0
        %6736 = vmatpush.msra.mxu0 0.0
        %6737 = vmatpush.msra.mxu0 0.0
        %6738 = vmatpush.msra.mxu0 0.0
        %6739 = vmatpush.msra.mxu0 0.0
        %6740 = vmatpush.msra.mxu0 0.0
        %6741 = vmatpush.msra.mxu0 0.0
        %6742 = vmatpush.msra.mxu0 0.0
        %6743 = vmatpush.msra.mxu0 0.0
        %6744 = vmatpush.msra.mxu0 0.0
        %6745 = vmatpush.msra.mxu0 0.0
        %6746 = vmatpush.msra.mxu0 %v6717
        %6747 = vmatpush.msra.mxu0 %v6715
        %6748 = vmatpush.msra.mxu0 %v6713
        %6749 = vmatpush.msra.mxu0 %v6711
        %6750 = vmatmul.f32.gmra.mxu0 %v6723
        %v6751 = vpop.f32.mrf.mxu0
        %v6752 = vadd.f32 0.0, %v6751
        %6753 = vmatmul.f32.gmra.mxu0 %v6726
        %v6754 = vpop.f32.mrf.mxu0
        %v6755 = vadd.f32 0.0, %v6754
        %6756 = vmatmul.f32.gmra.mxu0 %v6729
        %v6757 = vpop.f32.mrf.mxu0
        %v6758 = vadd.f32 0.0, %v6757
        %6759 = vmatmul.f32.gmra.mxu0 %v6732
        %v6760 = vpop.f32.mrf.mxu0
        %v6761 = vadd.f32 0.0, %v6760
        %6762 = vdwg.mxu0
        %6763 = vrot.lane.b32.xlu0 %v5787, 80
        %v6764 = vpop.permute.xlu0 %6763
        %6765 = vrot.lane.b32.xlu0 %v5790, 80
        %v6766 = vpop.permute.xlu0 %6765
        %6767 = vrot.lane.b32.xlu0 %v5793, 80
        %v6768 = vpop.permute.xlu0 %6767
        %6769 = vrot.lane.b32.xlu0 %v5796, 80
        %v6770 = vpop.permute.xlu0 %6769
        %6771 = vrot.lane.b32.xlu0 %v5787, 16
        %v6772 = vpop.permute.xlu0 %6771
        %6773 = vrot.lane.b32.xlu0 %v5790, 16
        %v6774 = vpop.permute.xlu0 %6773
        %6775 = vrot.lane.b32.xlu0 %v5793, 16
        %v6776 = vpop.permute.xlu0 %6775
        %6777 = vrot.lane.b32.xlu0 %v5796, 16
        %v6778 = vpop.permute.xlu0 %6777
        %v6779 = vsel %vm1917, %v6764, 0
        %v6781 = vsel %vm1917, %v6766, 0
        %v6783 = vsel %vm1917, %v6768, 0
        %v6785 = vsel %vm1917, %v6770, 0
        %v6787 = vsel %vm1917, %v6772, 0
        %v6789 = vsel %vm1917, %v6774, 0
        %v6791 = vsel %vm1917, %v6776, 0
        %v6793 = vsel %vm1917, %v6778, 0
        %6795 = vmatpush.xpose.msra.mxu0 0.0
        %6796 = vmatpush.xpose.msra.mxu0 0.0
        %6797 = vmatpush.xpose.msra.mxu0 0.0
        %6798 = vmatpush.xpose.msra.mxu0 0.0
        %6799 = vmatpush.xpose.msra.mxu0 0.0
        %6800 = vmatpush.xpose.msra.mxu0 0.0
        %6801 = vmatpush.xpose.msra.mxu0 0.0
        %6802 = vmatpush.xpose.msra.mxu0 0.0
        %6803 = vmatpush.xpose.msra.mxu0 0.0
        %6804 = vmatpush.xpose.msra.mxu0 0.0
        %6805 = vmatpush.xpose.msra.mxu0 0.0
        %6806 = vmatpush.xpose.msra.mxu0 0.0
        %6807 = vmatpush.xpose.msra.mxu0 %v6793
        %6808 = vmatpush.xpose.msra.mxu0 %v6791
        %6809 = vmatpush.xpose.msra.mxu0 %v6789
        %6810 = vmatpush.xpose.msra.mxu0 %v6787
        %6811 = vmatmul.f32.gmra.mxu0 %v6779
        %v6812 = vpop.f32.mrf.mxu0
        %v6813 = vadd.f32 0.0, %v6812
        %6814 = vmatmul.f32.gmra.mxu0 %v6781
        %v6815 = vpop.f32.mrf.mxu0
        %v6816 = vadd.f32 0.0, %v6815
        %6817 = vmatmul.f32.gmra.mxu0 %v6783
        %v6818 = vpop.f32.mrf.mxu0
        %v6819 = vadd.f32 0.0, %v6818
        %6820 = vmatmul.f32.gmra.mxu0 %v6785
        %v6821 = vpop.f32.mrf.mxu0
        %v6822 = vadd.f32 0.0, %v6821
        %6823 = vdwg.mxu0
        %v6824 = vsel %vm1963, %v6813, -inf
        %6825 = vmax.xlane.f32.xlu0 %v6824
        %v6826 = vpop.xlane.xlu0 %6825
        %v6827 = vsel %vm1963, %v6816, -inf
        %6828 = vmax.xlane.f32.xlu0 %v6827
        %v6829 = vpop.xlane.xlu0 %6828
        %v6830 = vsel %vm1963, %v6819, -inf
        %6831 = vmax.xlane.f32.xlu0 %v6830
        %v6832 = vpop.xlane.xlu0 %6831
        %v6833 = vsel %vm1963, %v6822, -inf
        %6834 = vmax.xlane.f32.xlu0 %v6833
        %v6835 = vpop.xlane.xlu0 %6834
        %v6836 = vsub.f32 %v6813, %v6826
        %v6837 = vsub.f32 %v6816, %v6829
        %v6838 = vsub.f32 %v6819, %v6832
        %v6839 = vsub.f32 %v6822, %v6835
        %v6840 = vmul.f32 %v6836, 1.442695
        %v6841 = vpow.pop %v6840
        %v6842 = vmul.f32 %v6837, 1.442695
        %v6843 = vpow.pop %v6842
        %v6844 = vmul.f32 %v6838, 1.442695
        %v6845 = vpow.pop %v6844
        %v6846 = vmul.f32 %v6839, 1.442695
        %v6847 = vpow.pop %v6846
        %v6848 = vsel %vm1963, %v6841, 0.0
        %6849 = vadd.xlane.f32.xlu0 %v6848
        %v6850 = vpop.xlane.xlu0 %6849
        %v6851 = vsel %vm1963, %v6843, 0.0
        %6852 = vadd.xlane.f32.xlu0 %v6851
        %v6853 = vpop.xlane.xlu0 %6852
        %v6854 = vsel %vm1963, %v6845, 0.0
        %6855 = vadd.xlane.f32.xlu0 %v6854
        %v6856 = vpop.xlane.xlu0 %6855
        %v6857 = vsel %vm1963, %v6847, 0.0
        %6858 = vadd.xlane.f32.xlu0 %v6857
        %v6859 = vpop.xlane.xlu0 %6858
        %v6860 = vrcp.pop %v6850
        %v6861 = vrcp.pop %v6853
        %v6862 = vrcp.pop %v6856
        %v6863 = vrcp.pop %v6859
        %v6864 = vmul.f32 %v6841, %v6860
        %v6865 = vmul.f32 %v6843, %v6861
        %v6866 = vmul.f32 %v6845, %v6862
        %v6867 = vmul.f32 %v6847, %v6863
        %6868 = vrot.lane.b32.xlu0 %v5816, 80
        %v6869 = vpop.permute.xlu0 %6868
        %6870 = vrot.lane.b32.xlu0 %v5819, 80
        %v6871 = vpop.permute.xlu0 %6870
        %6872 = vrot.lane.b32.xlu0 %v5822, 80
        %v6873 = vpop.permute.xlu0 %6872
        %6874 = vrot.lane.b32.xlu0 %v5825, 80
        %v6875 = vpop.permute.xlu0 %6874
        %v6881 = vsel %vm1963, %v6864, 0
        %v6884 = vsel %vm1963, %v6865, 0
        %v6887 = vsel %vm1963, %v6866, 0
        %v6890 = vsel %vm1963, %v6867, 0
        %6892 = vmatpush.msra.mxu0 0.0
        %6893 = vmatpush.msra.mxu0 0.0
        %6894 = vmatpush.msra.mxu0 0.0
        %6895 = vmatpush.msra.mxu0 0.0
        %6896 = vmatpush.msra.mxu0 0.0
        %6897 = vmatpush.msra.mxu0 0.0
        %6898 = vmatpush.msra.mxu0 0.0
        %6899 = vmatpush.msra.mxu0 0.0
        %6900 = vmatpush.msra.mxu0 0.0
        %6901 = vmatpush.msra.mxu0 0.0
        %6902 = vmatpush.msra.mxu0 0.0
        %6903 = vmatpush.msra.mxu0 0.0
        %6904 = vmatpush.msra.mxu0 %v6875
        %6905 = vmatpush.msra.mxu0 %v6873
        %6906 = vmatpush.msra.mxu0 %v6871
        %6907 = vmatpush.msra.mxu0 %v6869
        %6908 = vmatmul.f32.gmra.mxu0 %v6881
        %v6909 = vpop.f32.mrf.mxu0
        %v6910 = vadd.f32 0.0, %v6909
        %6911 = vmatmul.f32.gmra.mxu0 %v6884
        %v6912 = vpop.f32.mrf.mxu0
        %v6913 = vadd.f32 0.0, %v6912
        %6914 = vmatmul.f32.gmra.mxu0 %v6887
        %v6915 = vpop.f32.mrf.mxu0
        %v6916 = vadd.f32 0.0, %v6915
        %6917 = vmatmul.f32.gmra.mxu0 %v6890
        %v6918 = vpop.f32.mrf.mxu0
        %v6919 = vadd.f32 0.0, %v6918
        %6920 = vdwg.mxu0
        %6921 = vrot.lane.b32.xlu0 %v5787, 72
        %v6922 = vpop.permute.xlu0 %6921
        %6923 = vrot.lane.b32.xlu0 %v5790, 72
        %v6924 = vpop.permute.xlu0 %6923
        %6925 = vrot.lane.b32.xlu0 %v5793, 72
        %v6926 = vpop.permute.xlu0 %6925
        %6927 = vrot.lane.b32.xlu0 %v5796, 72
        %v6928 = vpop.permute.xlu0 %6927
        %6929 = vrot.lane.b32.xlu0 %v5787, 8
        %v6930 = vpop.permute.xlu0 %6929
        %6931 = vrot.lane.b32.xlu0 %v5790, 8
        %v6932 = vpop.permute.xlu0 %6931
        %6933 = vrot.lane.b32.xlu0 %v5793, 8
        %v6934 = vpop.permute.xlu0 %6933
        %6935 = vrot.lane.b32.xlu0 %v5796, 8
        %v6936 = vpop.permute.xlu0 %6935
        %v6937 = vsel %vm1917, %v6922, 0
        %v6939 = vsel %vm1917, %v6924, 0
        %v6941 = vsel %vm1917, %v6926, 0
        %v6943 = vsel %vm1917, %v6928, 0
        %v6945 = vsel %vm1917, %v6930, 0
        %v6947 = vsel %vm1917, %v6932, 0
        %v6949 = vsel %vm1917, %v6934, 0
        %v6951 = vsel %vm1917, %v6936, 0
        %6953 = vmatpush.xpose.msra.mxu0 0.0
        %6954 = vmatpush.xpose.msra.mxu0 0.0
        %6955 = vmatpush.xpose.msra.mxu0 0.0
        %6956 = vmatpush.xpose.msra.mxu0 0.0
        %6957 = vmatpush.xpose.msra.mxu0 0.0
        %6958 = vmatpush.xpose.msra.mxu0 0.0
        %6959 = vmatpush.xpose.msra.mxu0 0.0
        %6960 = vmatpush.xpose.msra.mxu0 0.0
        %6961 = vmatpush.xpose.msra.mxu0 0.0
        %6962 = vmatpush.xpose.msra.mxu0 0.0
        %6963 = vmatpush.xpose.msra.mxu0 0.0
        %6964 = vmatpush.xpose.msra.mxu0 0.0
        %6965 = vmatpush.xpose.msra.mxu0 %v6951
        %6966 = vmatpush.xpose.msra.mxu0 %v6949
        %6967 = vmatpush.xpose.msra.mxu0 %v6947
        %6968 = vmatpush.xpose.msra.mxu0 %v6945
        %6969 = vmatmul.f32.gmra.mxu0 %v6937
        %v6970 = vpop.f32.mrf.mxu0
        %v6971 = vadd.f32 0.0, %v6970
        %6972 = vmatmul.f32.gmra.mxu0 %v6939
        %v6973 = vpop.f32.mrf.mxu0
        %v6974 = vadd.f32 0.0, %v6973
        %6975 = vmatmul.f32.gmra.mxu0 %v6941
        %v6976 = vpop.f32.mrf.mxu0
        %v6977 = vadd.f32 0.0, %v6976
        %6978 = vmatmul.f32.gmra.mxu0 %v6943
        %v6979 = vpop.f32.mrf.mxu0
        %v6980 = vadd.f32 0.0, %v6979
        %6981 = vdwg.mxu0
        %v6982 = vsel %vm1963, %v6971, -inf
        %6983 = vmax.xlane.f32.xlu0 %v6982
        %v6984 = vpop.xlane.xlu0 %6983
        %v6985 = vsel %vm1963, %v6974, -inf
        %6986 = vmax.xlane.f32.xlu0 %v6985
        %v6987 = vpop.xlane.xlu0 %6986
        %v6988 = vsel %vm1963, %v6977, -inf
        %6989 = vmax.xlane.f32.xlu0 %v6988
        %v6990 = vpop.xlane.xlu0 %6989
        %v6991 = vsel %vm1963, %v6980, -inf
        %6992 = vmax.xlane.f32.xlu0 %v6991
        %v6993 = vpop.xlane.xlu0 %6992
        %v6994 = vsub.f32 %v6971, %v6984
        %v6995 = vsub.f32 %v6974, %v6987
        %v6996 = vsub.f32 %v6977, %v6990
        %v6997 = vsub.f32 %v6980, %v6993
        %v6998 = vmul.f32 %v6994, 1.442695
        %v6999 = vpow.pop %v6998
        %v7000 = vmul.f32 %v6995, 1.442695
        %v7001 = vpow.pop %v7000
        %v7002 = vmul.f32 %v6996, 1.442695
        %v7003 = vpow.pop %v7002
        %v7004 = vmul.f32 %v6997, 1.442695
        %v7005 = vpow.pop %v7004
        %v7006 = vsel %vm1963, %v6999, 0.0
        %7007 = vadd.xlane.f32.xlu0 %v7006
        %v7008 = vpop.xlane.xlu0 %7007
        %v7009 = vsel %vm1963, %v7001, 0.0
        %7010 = vadd.xlane.f32.xlu0 %v7009
        %v7011 = vpop.xlane.xlu0 %7010
        %v7012 = vsel %vm1963, %v7003, 0.0
        %7013 = vadd.xlane.f32.xlu0 %v7012
        %v7014 = vpop.xlane.xlu0 %7013
        %v7015 = vsel %vm1963, %v7005, 0.0
        %7016 = vadd.xlane.f32.xlu0 %v7015
        %v7017 = vpop.xlane.xlu0 %7016
        %v7018 = vrcp.pop %v7008
        %v7019 = vrcp.pop %v7011
        %v7020 = vrcp.pop %v7014
        %v7021 = vrcp.pop %v7017
        %v7022 = vmul.f32 %v6999, %v7018
        %v7023 = vmul.f32 %v7001, %v7019
        %v7024 = vmul.f32 %v7003, %v7020
        %v7025 = vmul.f32 %v7005, %v7021
        %7026 = vrot.lane.b32.xlu0 %v5816, 72
        %v7027 = vpop.permute.xlu0 %7026
        %7028 = vrot.lane.b32.xlu0 %v5819, 72
        %v7029 = vpop.permute.xlu0 %7028
        %7030 = vrot.lane.b32.xlu0 %v5822, 72
        %v7031 = vpop.permute.xlu0 %7030
        %7032 = vrot.lane.b32.xlu0 %v5825, 72
        %v7033 = vpop.permute.xlu0 %7032
        %v7039 = vsel %vm1963, %v7022, 0
        %v7042 = vsel %vm1963, %v7023, 0
        %v7045 = vsel %vm1963, %v7024, 0
        %v7048 = vsel %vm1963, %v7025, 0
        %7050 = vmatpush.msra.mxu0 0.0
        %7051 = vmatpush.msra.mxu0 0.0
        %7052 = vmatpush.msra.mxu0 0.0
        %7053 = vmatpush.msra.mxu0 0.0
        %7054 = vmatpush.msra.mxu0 0.0
        %7055 = vmatpush.msra.mxu0 0.0
        %7056 = vmatpush.msra.mxu0 0.0
        %7057 = vmatpush.msra.mxu0 0.0
        %7058 = vmatpush.msra.mxu0 0.0
        %7059 = vmatpush.msra.mxu0 0.0
        %7060 = vmatpush.msra.mxu0 0.0
        %7061 = vmatpush.msra.mxu0 0.0
        %7062 = vmatpush.msra.mxu0 %v7033
        %7063 = vmatpush.msra.mxu0 %v7031
        %7064 = vmatpush.msra.mxu0 %v7029
        %7065 = vmatpush.msra.mxu0 %v7027
        %7066 = vmatmul.f32.gmra.mxu0 %v7039
        %v7067 = vpop.f32.mrf.mxu0
        %v7068 = vadd.f32 0.0, %v7067
        %7069 = vmatmul.f32.gmra.mxu0 %v7042
        %v7070 = vpop.f32.mrf.mxu0
        %v7071 = vadd.f32 0.0, %v7070
        %7072 = vmatmul.f32.gmra.mxu0 %v7045
        %v7073 = vpop.f32.mrf.mxu0
        %v7074 = vadd.f32 0.0, %v7073
        %7075 = vmatmul.f32.gmra.mxu0 %v7048
        %v7076 = vpop.f32.mrf.mxu0
        %v7077 = vadd.f32 0.0, %v7076
        %7078 = vdwg.mxu0
        %7083 = vrot.lane.b32.xlu0 %v6120, 8
        %v7084 = vpop.permute.xlu0 %7083
        %7085 = vrot.lane.b32.xlu0 %v6123, 8
        %v7086 = vpop.permute.xlu0 %7085
        %7087 = vrot.lane.b32.xlu0 %v6126, 8
        %v7088 = vpop.permute.xlu0 %7087
        %7089 = vrot.lane.b32.xlu0 %v6129, 8
        %v7090 = vpop.permute.xlu0 %7089
        %7099 = vrot.lane.b32.xlu0 %v6278, 16
        %v7100 = vpop.permute.xlu0 %7099
        %7101 = vrot.lane.b32.xlu0 %v6281, 16
        %v7102 = vpop.permute.xlu0 %7101
        %7103 = vrot.lane.b32.xlu0 %v6284, 16
        %v7104 = vpop.permute.xlu0 %7103
        %7105 = vrot.lane.b32.xlu0 %v6287, 16
        %v7106 = vpop.permute.xlu0 %7105
        %7115 = vrot.lane.b32.xlu0 %v6436, 24
        %v7116 = vpop.permute.xlu0 %7115
        %7117 = vrot.lane.b32.xlu0 %v6439, 24
        %v7118 = vpop.permute.xlu0 %7117
        %7119 = vrot.lane.b32.xlu0 %v6442, 24
        %v7120 = vpop.permute.xlu0 %7119
        %7121 = vrot.lane.b32.xlu0 %v6445, 24
        %v7122 = vpop.permute.xlu0 %7121
        %7131 = vrot.lane.b32.xlu0 %v6594, 32
        %v7132 = vpop.permute.xlu0 %7131
        %7133 = vrot.lane.b32.xlu0 %v6597, 32
        %v7134 = vpop.permute.xlu0 %7133
        %7135 = vrot.lane.b32.xlu0 %v6600, 32
        %v7136 = vpop.permute.xlu0 %7135
        %7137 = vrot.lane.b32.xlu0 %v6603, 32
        %v7138 = vpop.permute.xlu0 %7137
        %7147 = vrot.lane.b32.xlu0 %v6752, 40
        %v7148 = vpop.permute.xlu0 %7147
        %7149 = vrot.lane.b32.xlu0 %v6755, 40
        %v7150 = vpop.permute.xlu0 %7149
        %7151 = vrot.lane.b32.xlu0 %v6758, 40
        %v7152 = vpop.permute.xlu0 %7151
        %7153 = vrot.lane.b32.xlu0 %v6761, 40
        %v7154 = vpop.permute.xlu0 %7153
        %7163 = vrot.lane.b32.xlu0 %v6910, 48
        %v7164 = vpop.permute.xlu0 %7163
        %7165 = vrot.lane.b32.xlu0 %v6913, 48
        %v7166 = vpop.permute.xlu0 %7165
        %7167 = vrot.lane.b32.xlu0 %v6916, 48
        %v7168 = vpop.permute.xlu0 %7167
        %7169 = vrot.lane.b32.xlu0 %v6919, 48
        %v7170 = vpop.permute.xlu0 %7169
        %7179 = vrot.lane.b32.xlu0 %v7068, 56
        %v7180 = vpop.permute.xlu0 %7179
        %7181 = vrot.lane.b32.xlu0 %v7071, 56
        %v7182 = vpop.permute.xlu0 %7181
        %7183 = vrot.lane.b32.xlu0 %v7074, 56
        %v7184 = vpop.permute.xlu0 %7183
        %7185 = vrot.lane.b32.xlu0 %v7077, 56
        %v7186 = vpop.permute.xlu0 %7185
        %v7191 = vsel %vm1917, %v5958, %v7084
        %v7192 = vsel %vm1917, %v5961, %v7086
        %v7193 = vsel %vm1917, %v5964, %v7088
        %v7194 = vsel %vm1917, %v5967, %v7090
        %v7195 = vsel %vm3275, %v7191, %v7100
        %v7196 = vsel %vm3275, %v7192, %v7102
        %v7197 = vsel %vm3275, %v7193, %v7104
        %v7198 = vsel %vm3275, %v7194, %v7106
        %v7199 = vsel %vm3280, %v7195, %v7116
        %v7200 = vsel %vm3280, %v7196, %v7118
        %v7201 = vsel %vm3280, %v7197, %v7120
        %v7202 = vsel %vm3280, %v7198, %v7122
        %v7203 = vsel %vm1963, %v7199, %v7132
        %v7204 = vsel %vm1963, %v7200, %v7134
        %v7205 = vsel %vm1963, %v7201, %v7136
        %v7206 = vsel %vm1963, %v7202, %v7138
        %v7207 = vsel %vm3289, %v7203, %v7148
        %v7208 = vsel %vm3289, %v7204, %v7150
        %v7209 = vsel %vm3289, %v7205, %v7152
        %v7210 = vsel %vm3289, %v7206, %v7154
        %v7211 = vsel %vm3294, %v7207, %v7164
        %v7212 = vsel %vm3294, %v7208, %v7166
        %v7213 = vsel %vm3294, %v7209, %v7168
        %v7214 = vsel %vm3294, %v7210, %v7170
        %v7215 = vsel %vm3299, %v7211, %v7180
        %v7216 = vsel %vm3299, %v7212, %v7182
        %v7217 = vsel %vm3299, %v7213, %v7184
        %v7218 = vsel %vm3299, %v7214, %v7186
        %s7219 = scalar_lea.vmem %s21, 128
        %v7220 = vld [vmem:[%s7219] sm:$0xff]
        %v7221 = vld [vmem:[%s7219 + $0x8] sm:$0xff]
        %v7222 = vld [vmem:[%s7219 + $0x10] sm:$0xff]
        %v7223 = vld [vmem:[%s7219 + $0x18] sm:$0xff]
        %v7224 = vld [vmem:[%s7219 + $0x20] sm:$0xff]
        %v7225 = vld [vmem:[%s7219 + $0x28] sm:$0xff]
        %v7226 = vld [vmem:[%s7219 + $0x30] sm:$0xff]
        %v7227 = vld [vmem:[%s7219 + $0x38] sm:$0xff]
        %s7228 = scalar_lea.vmem %s23, 2
        %v7229 = vld [vmem:[%s7228] sm:$0x1]
        %v7231 = vperm.slane %v7229, 0
        %v7234 = vsel %vm948, %v7215, 0
        %v7237 = vsel %vm948, %v7216, 0
        %v7240 = vsel %vm948, %v7217, 0
        %v7243 = vsel %vm948, %v7218, 0
        %7245 = vmatpush.msra.mxu0 0.0
        %7246 = vmatpush.msra.mxu0 0.0
        %7247 = vmatpush.msra.mxu0 0.0
        %7248 = vmatpush.msra.mxu0 0.0
        %7249 = vmatpush.msra.mxu0 0.0
        %7250 = vmatpush.msra.mxu0 0.0
        %7251 = vmatpush.msra.mxu0 0.0
        %7252 = vmatpush.msra.mxu0 0.0
        %7253 = vmatpush.msra.mxu0 %v7227
        %7254 = vmatpush.msra.mxu0 %v7226
        %7255 = vmatpush.msra.mxu0 %v7225
        %7256 = vmatpush.msra.mxu0 %v7224
        %7257 = vmatpush.msra.mxu0 %v7223
        %7258 = vmatpush.msra.mxu0 %v7222
        %7259 = vmatpush.msra.mxu0 %v7221
        %7260 = vmatpush.msra.mxu0 %v7220
        %7261 = vmatmul.f32.gmra.mxu0 %v7234
        %v7262 = vpop.f32.mrf.mxu0
        %v7263 = vadd.f32 %v7231, %v7262
        %7264 = vmatmul.f32.gmra.mxu0 %v7237
        %v7265 = vpop.f32.mrf.mxu0
        %v7266 = vadd.f32 %v7231, %v7265
        %7267 = vmatmul.f32.gmra.mxu0 %v7240
        %v7268 = vpop.f32.mrf.mxu0
        %v7269 = vadd.f32 %v7231, %v7268
        %7270 = vmatmul.f32.gmra.mxu0 %v7243
        %v7271 = vpop.f32.mrf.mxu0
        %v7272 = vadd.f32 %v7231, %v7271
        %7273 = vdwg.mxu0
        %v7274 = vadd.f32 %v5729, %v7263
        %v7275 = vadd.f32 %v5730, %v7266
        %v7276 = vadd.f32 %v5731, %v7269
        %v7277 = vadd.f32 %v5732, %v7272
        %s7278 = scalar_lea.vmem %s25, 2
        %v7279 = vld [vmem:[%s7278] sm:$0x1]
        %s7280 = scalar_lea.vmem %s27, 2
        %v7281 = vld [vmem:[%s7280] sm:$0x1]
        %v7282 = vsel %vm948, %v7274, 0.0
        %7283 = vadd.xlane.f32.xlu0 %v7282
        %v7284 = vpop.xlane.xlu0 %7283
        %v7285 = vsel %vm948, %v7275, 0.0
        %7286 = vadd.xlane.f32.xlu0 %v7285
        %v7287 = vpop.xlane.xlu0 %7286
        %v7288 = vsel %vm948, %v7276, 0.0
        %7289 = vadd.xlane.f32.xlu0 %v7288
        %v7290 = vpop.xlane.xlu0 %7289
        %v7291 = vsel %vm948, %v7277, 0.0
        %7292 = vadd.xlane.f32.xlu0 %v7291
        %v7293 = vpop.xlane.xlu0 %7292
        %v7294 = vmul.f32 %v7284, %v3381
        %v7295 = vmul.f32 %v7287, %v3381
        %v7296 = vmul.f32 %v7290, %v3381
        %v7297 = vmul.f32 %v7293, %v3381
        %v7298 = vsub.f32 %v7274, %v7294
        %v7299 = vsub.f32 %v7275, %v7295
        %v7300 = vsub.f32 %v7276, %v7296
        %v7301 = vsub.f32 %v7277, %v7297
        %v7302 = vmul.f32 %v7298, %v7298
        %v7303 = vmul.f32 %v7299, %v7299
        %v7304 = vmul.f32 %v7300, %v7300
        %v7305 = vmul.f32 %v7301, %v7301
        %v7306 = vsel %vm948, %v7302, 0.0
        %7307 = vadd.xlane.f32.xlu0 %v7306
        %v7308 = vpop.xlane.xlu0 %7307
        %v7309 = vsel %vm948, %v7303, 0.0
        %7310 = vadd.xlane.f32.xlu0 %v7309
        %v7311 = vpop.xlane.xlu0 %7310
        %v7312 = vsel %vm948, %v7304, 0.0
        %7313 = vadd.xlane.f32.xlu0 %v7312
        %v7314 = vpop.xlane.xlu0 %7313
        %v7315 = vsel %vm948, %v7305, 0.0
        %7316 = vadd.xlane.f32.xlu0 %v7315
        %v7317 = vpop.xlane.xlu0 %7316
        %v7318 = vmul.f32 %v7308, %v3381
        %v7319 = vmul.f32 %v7311, %v3381
        %v7320 = vmul.f32 %v7314, %v3381
        %v7321 = vmul.f32 %v7317, %v3381
        %v7322 = vadd.f32 %v7318, 1e-05
        %v7323 = vadd.f32 %v7319, 1e-05
        %v7324 = vadd.f32 %v7320, 1e-05
        %v7325 = vadd.f32 %v7321, 1e-05
        %v7326 = vrsqrt.pop %v7322
        %v7327 = vmul.f32 %v7326, %v7322
        %v7328 = vmul.f32 %v7327, %v7326
        %v7329 = vmul.f32 0.5, %v7328
        %v7330 = vsub.f32 1.5, %v7329
        %v7331 = vmul.f32 %v7326, %v7330
        %vm7332 = vweird.f32 %v7322
        %vm7333 = vweird.f32 %v7326
        %vm7334 = vmor %vm7332, %vm7333
        %v7335 = vsel %vm7334, %v7326, %v7331
        %v7336 = vrsqrt.pop %v7323
        %v7337 = vmul.f32 %v7336, %v7323
        %v7338 = vmul.f32 %v7337, %v7336
        %v7339 = vmul.f32 0.5, %v7338
        %v7340 = vsub.f32 1.5, %v7339
        %v7341 = vmul.f32 %v7336, %v7340
        %vm7342 = vweird.f32 %v7323
        %vm7343 = vweird.f32 %v7336
        %vm7344 = vmor %vm7342, %vm7343
        %v7345 = vsel %vm7344, %v7336, %v7341
        %v7346 = vrsqrt.pop %v7324
        %v7347 = vmul.f32 %v7346, %v7324
        %v7348 = vmul.f32 %v7347, %v7346
        %v7349 = vmul.f32 0.5, %v7348
        %v7350 = vsub.f32 1.5, %v7349
        %v7351 = vmul.f32 %v7346, %v7350
        %vm7352 = vweird.f32 %v7324
        %vm7353 = vweird.f32 %v7346
        %vm7354 = vmor %vm7352, %vm7353
        %v7355 = vsel %vm7354, %v7346, %v7351
        %v7356 = vrsqrt.pop %v7325
        %v7357 = vmul.f32 %v7356, %v7325
        %v7358 = vmul.f32 %v7357, %v7356
        %v7359 = vmul.f32 0.5, %v7358
        %v7360 = vsub.f32 1.5, %v7359
        %v7361 = vmul.f32 %v7356, %v7360
        %vm7362 = vweird.f32 %v7325
        %vm7363 = vweird.f32 %v7356
        %vm7364 = vmor %vm7362, %vm7363
        %v7365 = vsel %vm7364, %v7356, %v7361
        %v7366 = vmul.f32 %v7298, %v7335
        %v7367 = vmul.f32 %v7299, %v7345
        %v7368 = vmul.f32 %v7300, %v7355
        %v7369 = vmul.f32 %v7301, %v7365
        %v7371 = vperm.slane %v7279, 0
        %v7373 = vmul.f32 %v7366, %v7371
        %v7374 = vmul.f32 %v7367, %v7371
        %v7375 = vmul.f32 %v7368, %v7371
        %v7376 = vmul.f32 %v7369, %v7371
        %v7378 = vperm.slane %v7281, 0
        %v7380 = vadd.f32 %v7373, %v7378
        %v7381 = vadd.f32 %v7374, %v7378
        %v7382 = vadd.f32 %v7375, %v7378
        %v7383 = vadd.f32 %v7376, %v7378
        %s7384 = scalar_lea.vmem %s29, 256
        %v7385 = vld [vmem:[%s7384] sm:$0xff]
        %v7386 = vld [vmem:[%s7384 + $0x8] sm:$0xff]
        %v7387 = vld [vmem:[%s7384 + $0x10] sm:$0xff]
        %v7388 = vld [vmem:[%s7384 + $0x18] sm:$0xff]
        %v7389 = vld [vmem:[%s7384 + $0x20] sm:$0xff]
        %v7390 = vld [vmem:[%s7384 + $0x28] sm:$0xff]
        %v7391 = vld [vmem:[%s7384 + $0x30] sm:$0xff]
        %v7392 = vld [vmem:[%s7384 + $0x38] sm:$0xff]
        %v7393 = vld [vmem:[%s7384 + $0x40] sm:$0xff]
        %v7394 = vld [vmem:[%s7384 + $0x48] sm:$0xff]
        %v7395 = vld [vmem:[%s7384 + $0x50] sm:$0xff]
        %v7396 = vld [vmem:[%s7384 + $0x58] sm:$0xff]
        %v7397 = vld [vmem:[%s7384 + $0x60] sm:$0xff]
        %v7398 = vld [vmem:[%s7384 + $0x68] sm:$0xff]
        %v7399 = vld [vmem:[%s7384 + $0x70] sm:$0xff]
        %v7400 = vld [vmem:[%s7384 + $0x78] sm:$0xff]
        %s7401 = scalar_lea.vmem %s31, 4
        %v7402 = vld [vmem:[%s7401] sm:$0x3]
        %v7404 = vperm.slane %v7402, 0
        %v7405 = vperm.slane %v7402, 1
        %v7409 = vsel %vm948, %v7380, 0
        %v7412 = vsel %vm948, %v7381, 0
        %v7415 = vsel %vm948, %v7382, 0
        %v7418 = vsel %vm948, %v7383, 0
        %7420 = vmatpush.msra.mxu0 0.0
        %7421 = vmatpush.msra.mxu0 0.0
        %7422 = vmatpush.msra.mxu0 0.0
        %7423 = vmatpush.msra.mxu0 0.0
        %7424 = vmatpush.msra.mxu0 0.0
        %7425 = vmatpush.msra.mxu0 0.0
        %7426 = vmatpush.msra.mxu0 0.0
        %7427 = vmatpush.msra.mxu0 0.0
        %7428 = vmatpush.msra.mxu0 %v7399
        %7429 = vmatpush.msra.mxu0 %v7397
        %7430 = vmatpush.msra.mxu0 %v7395
        %7431 = vmatpush.msra.mxu0 %v7393
        %7432 = vmatpush.msra.mxu0 %v7391
        %7433 = vmatpush.msra.mxu0 %v7389
        %7434 = vmatpush.msra.mxu0 %v7387
        %7435 = vmatpush.msra.mxu0 %v7385
        %7436 = vmatmul.f32.gmra.mxu0 %v7409
        %v7437 = vpop.f32.mrf.mxu0
        %v7438 = vadd.f32 %v7404, %v7437
        %7439 = vmatmul.f32.gmra.mxu0 %v7412
        %v7440 = vpop.f32.mrf.mxu0
        %v7441 = vadd.f32 %v7404, %v7440
        %7442 = vmatmul.f32.gmra.mxu0 %v7415
        %v7443 = vpop.f32.mrf.mxu0
        %v7444 = vadd.f32 %v7404, %v7443
        %7445 = vmatmul.f32.gmra.mxu0 %v7418
        %v7446 = vpop.f32.mrf.mxu0
        %v7447 = vadd.f32 %v7404, %v7446
        %7448 = vdwg.mxu0
        %7449 = vmatpush.msra.mxu0 0.0
        %7450 = vmatpush.msra.mxu0 0.0
        %7451 = vmatpush.msra.mxu0 0.0
        %7452 = vmatpush.msra.mxu0 0.0
        %7453 = vmatpush.msra.mxu0 0.0
        %7454 = vmatpush.msra.mxu0 0.0
        %7455 = vmatpush.msra.mxu0 0.0
        %7456 = vmatpush.msra.mxu0 0.0
        %7457 = vmatpush.msra.mxu0 %v7400
        %7458 = vmatpush.msra.mxu0 %v7398
        %7459 = vmatpush.msra.mxu0 %v7396
        %7460 = vmatpush.msra.mxu0 %v7394
        %7461 = vmatpush.msra.mxu0 %v7392
        %7462 = vmatpush.msra.mxu0 %v7390
        %7463 = vmatpush.msra.mxu0 %v7388
        %7464 = vmatpush.msra.mxu0 %v7386
        %7465 = vmatmul.f32.gmra.mxu0 %v7409
        %v7466 = vpop.f32.mrf.mxu0
        %v7467 = vadd.f32 %v7405, %v7466
        %7468 = vmatmul.f32.gmra.mxu0 %v7412
        %v7469 = vpop.f32.mrf.mxu0
        %v7470 = vadd.f32 %v7405, %v7469
        %7471 = vmatmul.f32.gmra.mxu0 %v7415
        %v7472 = vpop.f32.mrf.mxu0
        %v7473 = vadd.f32 %v7405, %v7472
        %7474 = vmatmul.f32.gmra.mxu0 %v7418
        %v7475 = vpop.f32.mrf.mxu0
        %v7476 = vadd.f32 %v7405, %v7475
        %7477 = vdwg.mxu0
        %v7478 = vmax.f32 %v7438, 0.0
        %v7479 = vmax.f32 %v7467, 0.0
        %v7480 = vmax.f32 %v7441, 0.0
        %v7481 = vmax.f32 %v7470, 0.0
        %v7482 = vmax.f32 %v7444, 0.0
        %v7483 = vmax.f32 %v7473, 0.0
        %v7484 = vmax.f32 %v7447, 0.0
        %v7485 = vmax.f32 %v7476, 0.0
        %s7486 = scalar_lea.vmem %s33, 512
        %v7487 = vld [vmem:[%s7486] sm:$0xff]
        %v7488 = vld [vmem:[%s7486 + $0x8] sm:$0xff]
        %v7489 = vld [vmem:[%s7486 + $0x10] sm:$0xff]
        %v7490 = vld [vmem:[%s7486 + $0x18] sm:$0xff]
        %v7491 = vld [vmem:[%s7486 + $0x20] sm:$0xff]
        %v7492 = vld [vmem:[%s7486 + $0x28] sm:$0xff]
        %v7493 = vld [vmem:[%s7486 + $0x30] sm:$0xff]
        %v7494 = vld [vmem:[%s7486 + $0x38] sm:$0xff]
        %v7495 = vld [vmem:[%s7486 + $0x40] sm:$0xff]
        %v7496 = vld [vmem:[%s7486 + $0x48] sm:$0xff]
        %v7497 = vld [vmem:[%s7486 + $0x50] sm:$0xff]
        %v7498 = vld [vmem:[%s7486 + $0x58] sm:$0xff]
        %v7499 = vld [vmem:[%s7486 + $0x60] sm:$0xff]
        %v7500 = vld [vmem:[%s7486 + $0x68] sm:$0xff]
        %v7501 = vld [vmem:[%s7486 + $0x70] sm:$0xff]
        %v7502 = vld [vmem:[%s7486 + $0x78] sm:$0xff]
        %v7503 = vld [vmem:[%s7486 + $0x80] sm:$0xff]
        %v7504 = vld [vmem:[%s7486 + $0x88] sm:$0xff]
        %v7505 = vld [vmem:[%s7486 + $0x90] sm:$0xff]
        %v7506 = vld [vmem:[%s7486 + $0x98] sm:$0xff]
        %v7507 = vld [vmem:[%s7486 + $0xa0] sm:$0xff]
        %v7508 = vld [vmem:[%s7486 + $0xa8] sm:$0xff]
        %v7509 = vld [vmem:[%s7486 + $0xb0] sm:$0xff]
        %v7510 = vld [vmem:[%s7486 + $0xb8] sm:$0xff]
        %v7511 = vld [vmem:[%s7486 + $0xc0] sm:$0xff]
        %v7512 = vld [vmem:[%s7486 + $0xc8] sm:$0xff]
        %v7513 = vld [vmem:[%s7486 + $0xd0] sm:$0xff]
        %v7514 = vld [vmem:[%s7486 + $0xd8] sm:$0xff]
        %v7515 = vld [vmem:[%s7486 + $0xe0] sm:$0xff]
        %v7516 = vld [vmem:[%s7486 + $0xe8] sm:$0xff]
        %v7517 = vld [vmem:[%s7486 + $0xf0] sm:$0xff]
        %v7518 = vld [vmem:[%s7486 + $0xf8] sm:$0xff]
        %s7519 = scalar_lea.vmem %s35, 2
        %v7520 = vld [vmem:[%s7519] sm:$0x1]
        %v7522 = vperm.slane %v7520, 0
        %7524 = vmatpush.msra.mxu0 %v7502
        %7525 = vmatpush.msra.mxu0 %v7501
        %7526 = vmatpush.msra.mxu0 %v7500
        %7527 = vmatpush.msra.mxu0 %v7499
        %7528 = vmatpush.msra.mxu0 %v7498
        %7529 = vmatpush.msra.mxu0 %v7497
        %7530 = vmatpush.msra.mxu0 %v7496
        %7531 = vmatpush.msra.mxu0 %v7495
        %7532 = vmatpush.msra.mxu0 %v7494
        %7533 = vmatpush.msra.mxu0 %v7493
        %7534 = vmatpush.msra.mxu0 %v7492
        %7535 = vmatpush.msra.mxu0 %v7491
        %7536 = vmatpush.msra.mxu0 %v7490
        %7537 = vmatpush.msra.mxu0 %v7489
        %7538 = vmatpush.msra.mxu0 %v7488
        %7539 = vmatpush.msra.mxu0 %v7487
        %7540 = vmatmul.f32.gmra.mxu0 %v7478
        %v7541 = vpop.f32.mrf.mxu0
        %v7542 = vadd.f32 %v7522, %v7541
        %7543 = vmatmul.f32.gmra.mxu0 %v7480
        %v7544 = vpop.f32.mrf.mxu0
        %v7545 = vadd.f32 %v7522, %v7544
        %7546 = vmatmul.f32.gmra.mxu0 %v7482
        %v7547 = vpop.f32.mrf.mxu0
        %v7548 = vadd.f32 %v7522, %v7547
        %7549 = vmatmul.f32.gmra.mxu0 %v7484
        %v7550 = vpop.f32.mrf.mxu0
        %v7551 = vadd.f32 %v7522, %v7550
        %7552 = vdwg.mxu0
        %7553 = vmatpush.msra.mxu0 %v7518
        %7554 = vmatpush.msra.mxu0 %v7517
        %7555 = vmatpush.msra.mxu0 %v7516
        %7556 = vmatpush.msra.mxu0 %v7515
        %7557 = vmatpush.msra.mxu0 %v7514
        %7558 = vmatpush.msra.mxu0 %v7513
        %7559 = vmatpush.msra.mxu0 %v7512
        %7560 = vmatpush.msra.mxu0 %v7511
        %7561 = vmatpush.msra.mxu0 %v7510
        %7562 = vmatpush.msra.mxu0 %v7509
        %7563 = vmatpush.msra.mxu0 %v7508
        %7564 = vmatpush.msra.mxu0 %v7507
        %7565 = vmatpush.msra.mxu0 %v7506
        %7566 = vmatpush.msra.mxu0 %v7505
        %7567 = vmatpush.msra.mxu0 %v7504
        %7568 = vmatpush.msra.mxu0 %v7503
        %7569 = vmatmul.f32.gmra.mxu0 %v7479
        %v7570 = vpop.f32.mrf.mxu0
        %v7571 = vadd.f32 %v7542, %v7570
        %7572 = vmatmul.f32.gmra.mxu0 %v7481
        %v7573 = vpop.f32.mrf.mxu0
        %v7574 = vadd.f32 %v7545, %v7573
        %7575 = vmatmul.f32.gmra.mxu0 %v7483
        %v7576 = vpop.f32.mrf.mxu0
        %v7577 = vadd.f32 %v7548, %v7576
        %7578 = vmatmul.f32.gmra.mxu0 %v7485
        %v7579 = vpop.f32.mrf.mxu0
        %v7580 = vadd.f32 %v7551, %v7579
        %7581 = vdwg.mxu0
        %v7582 = vadd.f32 %v7380, %v7571
        %v7583 = vadd.f32 %v7381, %v7574
        %v7584 = vadd.f32 %v7382, %v7577
        %v7585 = vadd.f32 %v7383, %v7580
        %s7586 = scalar_lea.vmem %s37, 2
        %v7587 = vld [vmem:[%s7586] sm:$0x1]
        %s7588 = scalar_lea.vmem %s39, 2
        %v7589 = vld [vmem:[%s7588] sm:$0x1]
        %v7590 = vsel %vm948, %v7582, 0.0
        %7591 = vadd.xlane.f32.xlu0 %v7590
        %v7592 = vpop.xlane.xlu0 %7591
        %v7593 = vsel %vm948, %v7583, 0.0
        %7594 = vadd.xlane.f32.xlu0 %v7593
        %v7595 = vpop.xlane.xlu0 %7594
        %v7596 = vsel %vm948, %v7584, 0.0
        %7597 = vadd.xlane.f32.xlu0 %v7596
        %v7598 = vpop.xlane.xlu0 %7597
        %v7599 = vsel %vm948, %v7585, 0.0
        %7600 = vadd.xlane.f32.xlu0 %v7599
        %v7601 = vpop.xlane.xlu0 %7600
        %v7602 = vmul.f32 %v7592, %v3381
        %v7603 = vmul.f32 %v7595, %v3381
        %v7604 = vmul.f32 %v7598, %v3381
        %v7605 = vmul.f32 %v7601, %v3381
        %v7606 = vsub.f32 %v7582, %v7602
        %v7607 = vsub.f32 %v7583, %v7603
        %v7608 = vsub.f32 %v7584, %v7604
        %v7609 = vsub.f32 %v7585, %v7605
        %v7610 = vmul.f32 %v7606, %v7606
        %v7611 = vmul.f32 %v7607, %v7607
        %v7612 = vmul.f32 %v7608, %v7608
        %v7613 = vmul.f32 %v7609, %v7609
        %v7614 = vsel %vm948, %v7610, 0.0
        %7615 = vadd.xlane.f32.xlu0 %v7614
        %v7616 = vpop.xlane.xlu0 %7615
        %v7617 = vsel %vm948, %v7611, 0.0
        %7618 = vadd.xlane.f32.xlu0 %v7617
        %v7619 = vpop.xlane.xlu0 %7618
        %v7620 = vsel %vm948, %v7612, 0.0
        %7621 = vadd.xlane.f32.xlu0 %v7620
        %v7622 = vpop.xlane.xlu0 %7621
        %v7623 = vsel %vm948, %v7613, 0.0
        %7624 = vadd.xlane.f32.xlu0 %v7623
        %v7625 = vpop.xlane.xlu0 %7624
        %v7626 = vmul.f32 %v7616, %v3381
        %v7627 = vmul.f32 %v7619, %v3381
        %v7628 = vmul.f32 %v7622, %v3381
        %v7629 = vmul.f32 %v7625, %v3381
        %v7630 = vadd.f32 %v7626, 1e-05
        %v7631 = vadd.f32 %v7627, 1e-05
        %v7632 = vadd.f32 %v7628, 1e-05
        %v7633 = vadd.f32 %v7629, 1e-05
        %v7634 = vrsqrt.pop %v7630
        %v7635 = vmul.f32 %v7634, %v7630
        %v7636 = vmul.f32 %v7635, %v7634
        %v7637 = vmul.f32 0.5, %v7636
        %v7638 = vsub.f32 1.5, %v7637
        %v7639 = vmul.f32 %v7634, %v7638
        %vm7640 = vweird.f32 %v7630
        %vm7641 = vweird.f32 %v7634
        %vm7642 = vmor %vm7640, %vm7641
        %v7643 = vsel %vm7642, %v7634, %v7639
        %v7644 = vrsqrt.pop %v7631
        %v7645 = vmul.f32 %v7644, %v7631
        %v7646 = vmul.f32 %v7645, %v7644
        %v7647 = vmul.f32 0.5, %v7646
        %v7648 = vsub.f32 1.5, %v7647
        %v7649 = vmul.f32 %v7644, %v7648
        %vm7650 = vweird.f32 %v7631
        %vm7651 = vweird.f32 %v7644
        %vm7652 = vmor %vm7650, %vm7651
        %v7653 = vsel %vm7652, %v7644, %v7649
        %v7654 = vrsqrt.pop %v7632
        %v7655 = vmul.f32 %v7654, %v7632
        %v7656 = vmul.f32 %v7655, %v7654
        %v7657 = vmul.f32 0.5, %v7656
        %v7658 = vsub.f32 1.5, %v7657
        %v7659 = vmul.f32 %v7654, %v7658
        %vm7660 = vweird.f32 %v7632
        %vm7661 = vweird.f32 %v7654
        %vm7662 = vmor %vm7660, %vm7661
        %v7663 = vsel %vm7662, %v7654, %v7659
        %v7664 = vrsqrt.pop %v7633
        %v7665 = vmul.f32 %v7664, %v7633
        %v7666 = vmul.f32 %v7665, %v7664
        %v7667 = vmul.f32 0.5, %v7666
        %v7668 = vsub.f32 1.5, %v7667
        %v7669 = vmul.f32 %v7664, %v7668
        %vm7670 = vweird.f32 %v7633
        %vm7671 = vweird.f32 %v7664
        %vm7672 = vmor %vm7670, %vm7671
        %v7673 = vsel %vm7672, %v7664, %v7669
        %v7674 = vmul.f32 %v7606, %v7643
        %v7675 = vmul.f32 %v7607, %v7653
        %v7676 = vmul.f32 %v7608, %v7663
        %v7677 = vmul.f32 %v7609, %v7673
        %v7679 = vperm.slane %v7587, 0
        %v7681 = vmul.f32 %v7674, %v7679
        %v7682 = vmul.f32 %v7675, %v7679
        %v7683 = vmul.f32 %v7676, %v7679
        %v7684 = vmul.f32 %v7677, %v7679
        %v7686 = vperm.slane %v7589, 0
        %v7688 = vadd.f32 %v7681, %v7686
        %v7689 = vadd.f32 %v7682, %v7686
        %v7690 = vadd.f32 %v7683, %v7686
        %v7691 = vadd.f32 %v7684, %v7686
        %v7692 = vsel %vm948, %v7688, 0.0
        %v7693 = vsel %vm948, %v7689, 0.0
        %v7694 = vadd.f32 %v7692, %v7693
        %v7695 = vsel %vm948, %v7690, 0.0
        %v7696 = vadd.f32 %v7694, %v7695
        %v7697 = vsel %vm948, %v7691, 0.0
        %v7698 = vadd.f32 %v7696, %v7697
        %v7699 = vrot.slane %v7698, 4
        %v7700 = vadd.f32 %v7698, %v7699
        %v7701 = vrot.slane %v7700, 2
        %v7702 = vadd.f32 %v7700, %v7701
        %v7703 = vrot.slane %v7702, 1
        %v7704 = vadd.f32 %v7702, %v7703
        %v7705 = vrcp.pop 32.0
        %v7706 = vmul.f32 32.0, %v7705
        %v7707 = vsub.f32 1.0, %v7706
        %v7708 = vmul.f32 %v7705, %v7707
        %v7709 = vadd.f32 %v7705, %v7708
        %vm7710 = vweird.f32 %v7705
        %v7711 = vsel %vm7710, %v7705, %v7709
        %v7712 = vmul.f32 %v7704, %v7711
        %v7713 = vld [vmem:[%s913] sm:$0x1]
        %v7714 = vld [vmem:[%s41] sm:$0xff]
        %v7715 = vld [vmem:[%s41 + $0x8] sm:$0x3f]
        %v7716 = vld [vmem:[%s43] sm:$0x1]
        %vm7717 = vcmask 113664
        %v7719 = vsel %vm7717, %v7713, 0
        %vm7721 = vcmask 1045504
        %v7723 = vsel %vm7721, %v7715, 0
        %7725 = vmatpush.msra.mxu0 0.0
        %7726 = vmatpush.msra.mxu0 0.0
        %7727 = vmatpush.msra.mxu0 0.0
        %7728 = vmatpush.msra.mxu0 0.0
        %7729 = vmatpush.msra.mxu0 0.0
        %7730 = vmatpush.msra.mxu0 0.0
        %7731 = vmatpush.msra.mxu0 0.0
        %7732 = vmatpush.msra.mxu0 0.0
        %7733 = vmatpush.msra.mxu0 0.0
        %7734 = vmatpush.msra.mxu0 0.0
        %7735 = vmatpush.msra.mxu0 0.0
        %7736 = vmatpush.msra.mxu0 0.0
        %7737 = vmatpush.msra.mxu0 0.0
        %7738 = vmatpush.msra.mxu0 0.0
        %7739 = vmatpush.msra.mxu0 %v7723
        %7740 = vmatpush.msra.mxu0 %v7714
        %7741 = vmatmul.f32.gmra.mxu0 %v7719
        %v7742 = vpop.f32.mrf.mxu0
        %v7743 = vadd.f32 %v7716, %v7742
        %7744 = vdwg.mxu0
        %v7745 = vmax.f32 %v7743, 0.0
        %v7746 = vld [vmem:[%s45] sm:$0xff]
        %v7747 = vld [vmem:[%s45 + $0x8] sm:$0xff]
        %v7748 = vld [vmem:[%s45 + $0x10] sm:$0xff]
        %v7749 = vld [vmem:[%s45 + $0x18] sm:$0xff]
        %v7750 = vld [vmem:[%s45 + $0x20] sm:$0xff]
        %v7751 = vld [vmem:[%s45 + $0x28] sm:$0xff]
        %v7752 = vld [vmem:[%s47] sm:$0x1]
        %v7754 = vsel %vm3294, %v7745, 0
        %7756 = vmatpush.msra.mxu0 0.0
        %7757 = vmatpush.msra.mxu0 0.0
        %7758 = vmatpush.msra.mxu0 0.0
        %7759 = vmatpush.msra.mxu0 0.0
        %7760 = vmatpush.msra.mxu0 0.0
        %7761 = vmatpush.msra.mxu0 0.0
        %7762 = vmatpush.msra.mxu0 0.0
        %7763 = vmatpush.msra.mxu0 0.0
        %7764 = vmatpush.msra.mxu0 0.0
        %7765 = vmatpush.msra.mxu0 0.0
        %7766 = vmatpush.msra.mxu0 %v7751
        %7767 = vmatpush.msra.mxu0 %v7750
        %7768 = vmatpush.msra.mxu0 %v7749
        %7769 = vmatpush.msra.mxu0 %v7748
        %7770 = vmatpush.msra.mxu0 %v7747
        %7771 = vmatpush.msra.mxu0 %v7746
        %7772 = vmatmul.f32.gmra.mxu0 %v7754
        %v7773 = vpop.f32.mrf.mxu0
        %v7774 = vadd.f32 %v7752, %v7773
        %7775 = vdwg.mxu0
        %v7776 = vld [vmem:[%s49] sm:$0xff]
        %v7777 = vld [vmem:[%s49 + $0x8] sm:$0xff]
        %v7778 = vld [vmem:[%s49 + $0x10] sm:$0xff]
        %v7779 = vld [vmem:[%s49 + $0x18] sm:$0xff]
        %v7780 = vld [vmem:[%s49 + $0x20] sm:$0xff]
        %v7781 = vld [vmem:[%s49 + $0x28] sm:$0xff]
        %v7782 = vld [vmem:[%s49 + $0x30] sm:$0xff]
        %v7783 = vld [vmem:[%s49 + $0x38] sm:$0xff]
        %v7784 = vld [vmem:[%s51] sm:$0xff]
        %v7785 = vld [vmem:[%s51 + $0x8] sm:$0xff]
        %v7786 = vld [vmem:[%s51 + $0x10] sm:$0xff]
        %v7787 = vld [vmem:[%s51 + $0x18] sm:$0xff]
        %v7789 = vsel %vm1963, %v7774, 0
        %7791 = vmatpush.msra.mxu0 0.0
        %7792 = vmatpush.msra.mxu0 0.0
        %7793 = vmatpush.msra.mxu0 0.0
        %7794 = vmatpush.msra.mxu0 0.0
        %7795 = vmatpush.msra.mxu0 0.0
        %7796 = vmatpush.msra.mxu0 0.0
        %7797 = vmatpush.msra.mxu0 0.0
        %7798 = vmatpush.msra.mxu0 0.0
        %7799 = vmatpush.msra.mxu0 0.0
        %7800 = vmatpush.msra.mxu0 0.0
        %7801 = vmatpush.msra.mxu0 0.0
        %7802 = vmatpush.msra.mxu0 0.0
        %7803 = vmatpush.msra.mxu0 %v7787
        %7804 = vmatpush.msra.mxu0 %v7786
        %7805 = vmatpush.msra.mxu0 %v7785
        %7806 = vmatpush.msra.mxu0 %v7784
        %7807 = vmatmul.f32.gmra.mxu0 %v7789
        %v7808 = vpop.f32.mrf.mxu0
        %v7809 = vadd.f32 0.0, %v7808
        %7810 = vdwg.mxu0
        %v7812 = vsel %vm948, %v7712, 0
        %7814 = vmatpush.msra.mxu0 0.0
        %7815 = vmatpush.msra.mxu0 0.0
        %7816 = vmatpush.msra.mxu0 0.0
        %7817 = vmatpush.msra.mxu0 0.0
        %7818 = vmatpush.msra.mxu0 0.0
        %7819 = vmatpush.msra.mxu0 0.0
        %7820 = vmatpush.msra.mxu0 0.0
        %7821 = vmatpush.msra.mxu0 0.0
        %7822 = vmatpush.msra.mxu0 %v7783
        %7823 = vmatpush.msra.mxu0 %v7782
        %7824 = vmatpush.msra.mxu0 %v7781
        %7825 = vmatpush.msra.mxu0 %v7780
        %7826 = vmatpush.msra.mxu0 %v7779
        %7827 = vmatpush.msra.mxu0 %v7778
        %7828 = vmatpush.msra.mxu0 %v7777
        %7829 = vmatpush.msra.mxu0 %v7776
        %7830 = vmatmul.f32.gmra.mxu0 %v7812
        %v7831 = vpop.f32.mrf.mxu0
        %v7832 = vadd.f32 %v7809, %v7831
        %7833 = vdwg.mxu0
        %v7834 = vld [vmem:[%s53] sm:$0x1]
        %v7835 = vadd.f32 %v7832, %v7834
        %v7836 = vmax.f32 %v7835, 0.0
        %v7837 = vld [vmem:[%s55] sm:$0xff]
        %v7838 = vld [vmem:[%s55 + $0x8] sm:$0xff]
        %v7839 = vld [vmem:[%s55 + $0x10] sm:$0xff]
        %v7840 = vld [vmem:[%s55 + $0x18] sm:$0xff]
        %v7841 = vld [vmem:[%s55 + $0x20] sm:$0xff]
        %v7842 = vld [vmem:[%s55 + $0x28] sm:$0xff]
        %v7843 = vld [vmem:[%s55 + $0x30] sm:$0xff]
        %v7844 = vld [vmem:[%s55 + $0x38] sm:$0xff]
        %v7845 = vld [vmem:[%s57] sm:$0x1]
        %v7847 = vsel %vm948, %v7836, 0
        %7849 = vmatpush.msra.mxu0 0.0
        %7850 = vmatpush.msra.mxu0 0.0
        %7851 = vmatpush.msra.mxu0 0.0
        %7852 = vmatpush.msra.mxu0 0.0
        %7853 = vmatpush.msra.mxu0 0.0
        %7854 = vmatpush.msra.mxu0 0.0
        %7855 = vmatpush.msra.mxu0 0.0
        %7856 = vmatpush.msra.mxu0 0.0
        %7857 = vmatpush.msra.mxu0 %v7844
        %7858 = vmatpush.msra.mxu0 %v7843
        %7859 = vmatpush.msra.mxu0 %v7842
        %7860 = vmatpush.msra.mxu0 %v7841
        %7861 = vmatpush.msra.mxu0 %v7840
        %7862 = vmatpush.msra.mxu0 %v7839
        %7863 = vmatpush.msra.mxu0 %v7838
        %7864 = vmatpush.msra.mxu0 %v7837
        %7865 = vmatmul.f32.gmra.mxu0 %v7847
        %v7866 = vpop.f32.mrf.mxu0
        %v7867 = vadd.f32 %v7845, %v7866
        %7868 = vdwg.mxu0
        %vm7869 = vcmask 24576
        %7870 = vst.msk [vmem:[%s905] sm:$0x1] %vm7869, %v7867
        %s7871 = sand.u32 %s700, 1
        %s7872 = scalar_lea.sflag [#allocation4], %s7871
        %s7873 = sand.u32 %s700, 1
        %s7874 = scalar_lea.vmem [#allocation3], %s7873
        // Predicated region
        $region137: #{forward.1} parent=135 // pred_check
          %p7875 = pneg %p710
        $region138: #{forward.1} parent=135 // pred_check_branch
          %7877 = sbr.rel (%p7875) target = $region140
        $region139: #{forward.1} parent=135 // pred_region
          %7879 = vsyncadd %s7872, 0
          %s7880 = scalar_lea.hbm %s59, %s73
          %s7882 = sshll.u32 %s7874, 4
          %s7883 = int_to_ptr.vmem [resolvable:$true] %s7882
          %s7884 = sshll.u32 %s7880, 4
          %s7885 = int_to_ptr.hbm [resolvable:$true] %s7884
          %7887 = dma.vmem_to_hbm [thread:$0]  %s7883, 16, %s7885, %s7872
        $region140: #{forward.1} parent=135 // pred_fallthru
          _
      $region136: #{forward.1} parent=5 // pred_fallthru
        _
      %p7888 = scmp.le.s32.totalorder 2, %s68
      // Predicated region
      $region141: #{forward.1} parent=5 // pred_check
        %p7889 = pneg %p7888
      $region142: #{forward.1} parent=5 // pred_check_branch
        %7891 = sbr.rel (%p7889) target = $region144
      $region143: #{forward.1} parent=5 // pred_region
        %s7892 = ssub.s32 %s68, 2
        // Predicated region
        $region145: #{forward.1} parent=143 // pred_check
          %p7893 = pneg %p716
        $region146: #{forward.1} parent=143 // pred_check_branch
          %7895 = sbr.rel (%p7893) target = $region148
        $region147: #{forward.1} parent=143 // pred_region
          %s7896 = sand.u32 %s701, 1
          %s7897 = scalar_lea.sflag [#allocation4], %s7896
          %s7898 = sand.u32 %s701, 1
          %s7899 = scalar_lea.vmem [#allocation3], %s7898
          %7901 = dma.done %s7897, 16
        $region148: #{forward.1} parent=143 // pred_fallthru
          _
      $region144: #{forward.1} parent=5 // pred_fallthru
        _
    $region6: #{forward.1} parent=1 // loop_footer
      %s72 = sadd.s32 1, %s68
    $region7: #{forward.1} parent=1 // loop_footer_branch
      %67 = sbr.rel target = $region3
    $region8: #{forward.1} parent=1 // loop_exit
      _
    %7902 = vsyncpa [#allocation4], 1
    %s7903 = scalar_lea.sflag [#allocation4], 1
    %7904 = vsyncpa %s7903, 1

</llo_original>
